<compile_context>
chip_gen: v7x
topology: tpu7x:2x2x1
jax: 0.10.0
libtpu: 0.0.40
codegen_flags: <defaults>
</compile_context>

<pallas_src>
import jax
import jax.numpy as jnp
import numpy as np
from jax import lax
from jax.experimental import pallas as pl
from jax.experimental.pallas import tpu as pltpu


def _thenet_kernel(x2_ref, w1_ref, b1_ref, w2_ref, b2_ref,
                   fc1w_ref, fc1b_ref, fc2w_ref, fc2b_ref,
                   o_ref, q_ref):
    """Fused TheNet forward for one batch block of BN images.

    x2_ref  : (1, 4, 11*8*BN, 64)  pool-member / width-window im2col of x;
              rows ordered (h, j, b), lanes = kw*16 + kh1*4 + kw1
    w1_ref  : (64, 80)   block-diagonal conv1 weight (4 copies of (16,20) taps)
    b1_ref  : (1, 80)    conv1 bias tiled over the 4 kw groups
    w2_ref  : (4, 80, 20) conv2 weight per kh tap, rows = kw*20 + cin
    fc1w_ref: (16, 20, 60) fc1 weight regrouped per pooled (p,q) position
    o_ref   : (1, BN, 10)
    q_ref   : (11*8*BN, 80) VMEM scratch: pooled conv1 activations, conv2-ready
    """
    BN = o_ref.shape[1]
    R = 8 * BN                        # rows per conv spatial row: (j, b), b fastest

    # ---- conv1 (MXU) + fused 2x2/2 max-pool + bias + ReLU ------------------
    w1 = w1_ref[...]
    qm = jnp.dot(x2_ref[0, 0], w1, preferred_element_type=jnp.float32)
    for m in range(1, 4):             # max over the 4 pool-window members
        qm = jnp.maximum(qm, jnp.dot(x2_ref[0, m], w1,
                                     preferred_element_type=jnp.float32))
    q_ref[...] = jnp.maximum(qm + b1_ref[...], 0.0)            # (11*R, 80)

    # ---- conv2 (kh-accumulated MXU matmuls) + ReLU + 2x2/2 pool + fc1 ------
    # TODO(synk): nn.Dropout2d is identity at inference; training-mode channel
    # dropout is not implemented.
    b2 = b2_ref[...]
    h1 = jnp.zeros((BN, 60), jnp.float32)
    for p in range(4):                                 # pooled conv2 output row
        rows = []
        for di in range(2):
            i = 2 * p + di                             # conv2 output row (0..7)
            acc = jnp.dot(q_ref[pl.ds(i * R, R), :], w2_ref[0],
                          preferred_element_type=jnp.float32)
            for kh in range(1, 4):
                acc = acc + jnp.dot(q_ref[pl.ds((i + kh) * R, R), :], w2_ref[kh],
                                    preferred_element_type=jnp.float32)
            rows.append(jnp.maximum(acc + b2, 0.0))            # (R, 20), rows (j,b)
        mp = jnp.maximum(rows[0], rows[1])                     # max over di
        for q in range(4):                             # pooled conv2 output col
            pooled = jnp.maximum(mp[(2 * q) * BN:(2 * q + 1) * BN, :],
                                 mp[(2 * q + 1) * BN:(2 * q + 2) * BN, :])  # (BN,20)
            # fc1 accumulated per (p,q): folds PyTorch's (C,H,W) flatten order.
            h1 = h1 + jnp.dot(pooled, fc1w_ref[4 * p + q],
                              preferred_element_type=jnp.float32)

    # ---- MLP head: fc1 bias/ReLU + fc2 + log_softmax -----------------------
    h1 = jnp.maximum(h1 + fc1b_ref[...], 0.0)                  # (BN, 60)
    logits = jnp.dot(h1, fc2w_ref[...],
                     preferred_element_type=jnp.float32) + fc2b_ref[...]
    mx = jnp.max(logits, axis=-1, keepdims=True)
    s = logits - mx
    lse = jnp.log(jnp.sum(jnp.exp(s), axis=-1, keepdims=True))
    o_ref[0] = (s - lse).astype(o_ref.dtype)


def the_net_forward(x_nchw, params):
    N = x_nchw.shape[0]
    # Batch block: multiple of 8 (aligned pool/row slices), 8..32 images/step;
    # gives G >= 2 once N > 8 so both v7x TensorCores get work, and keeps the
    # per-step x2 block (< 3 MiB) inside every generation's VMEM budget.
    BN = 8 * int(max(1, min(4, pl.cdiv(N, 16))))
    G = int(pl.cdiv(N, BN))
    NP = G * BN

    x_img = x_nchw[:, 0, :, :].astype(jnp.float32)             # (N, 28, 28)
    if NP != N:
        x_img = jnp.pad(x_img, ((0, NP - N), (0, 0), (0, 0)))

    # --- trace-time im2col (pure gather / layout plumbing, no arithmetic) ---
    # x2[g, m, (h*8 + j)*BN + b, kw*16 + kh1*4 + kw1]
    #   = x[g*BN + b, 2h + dh_m + kh1, 2(j + kw) + dw_m + kw1]
    dh = np.array([0, 0, 1, 1])
    dw = np.array([0, 1, 0, 1])                                 # pool-member m
    h_ = np.arange(11)
    j_ = np.arange(8)
    kw_ = np.arange(4)
    kh1 = np.arange(4)
    kw1 = np.arange(4)
    U = (dh[:, None, None, None, None, None]
         + 2 * h_[None, :, None, None, None, None]
         + kh1[None, None, None, None, :, None])
    V = (dw[:, None, None, None, None, None]
         + 2 * (j_[None, None, :, None, None, None]
                + kw_[None, None, None, :, None, None])
         + kw1[None, None, None, None, None, :])
    U, V = np.broadcast_arrays(U, V)                            # (4,11,8,4,4,4)
    x2 = x_img[:, U, V].reshape(G, BN, 4, 11, 8, 64)
    x2 = jnp.transpose(x2, (0, 2, 3, 4, 1, 5)).reshape(G, 4, 11 * 8 * BN, 64)

    # --- weights rearranged at trace time ------------------------------------
    w1hw = jnp.transpose(params["conv1_w"], (2, 3, 1, 0)).reshape(16, 20)
    w1blk = jnp.zeros((64, 80), jnp.float32)
    for kw in range(4):                    # block-diagonal over the 4 kw shifts
        w1blk = w1blk.at[kw * 16:(kw + 1) * 16, kw * 20:(kw + 1) * 20].set(w1hw)
    b1t = jnp.tile(params["conv1_b"].reshape(1, 20), (1, 4))    # (1, 80)

    w2r = jnp.transpose(params["conv2_w"], (2, 3, 1, 0)).reshape(4, 80, 20)
    b2 = params["conv2_b"].reshape(1, 20)

    # fc1 rows regrouped per pooled position (p,q): folds the (C,H,W) flatten.
    fc1r = jnp.transpose(params["fc1_w"].reshape(20, 16, 60), (1, 0, 2))
    fc1b = params["fc1_b"].reshape(1, 60)
    fc2w = params["fc2_w"]
    fc2b = params["fc2_b"].reshape(1, 10)

    M = 11 * 8 * BN
    out = pl.pallas_call(
        _thenet_kernel,
        out_shape=jax.ShapeDtypeStruct((G, BN, 10), jnp.float32),
        grid=(G,),
        in_specs=[
            pl.BlockSpec((1, 4, M, 64), lambda g: (g, 0, 0, 0)),
            pl.BlockSpec((64, 80), lambda g: (0, 0)),
            pl.BlockSpec((1, 80), lambda g: (0, 0)),
            pl.BlockSpec((4, 80, 20), lambda g: (0, 0, 0)),
            pl.BlockSpec((1, 20), lambda g: (0, 0)),
            pl.BlockSpec((16, 20, 60), lambda g: (0, 0, 0)),
            pl.BlockSpec((1, 60), lambda g: (0, 0)),
            pl.BlockSpec((60, 10), lambda g: (0, 0)),
            pl.BlockSpec((1, 10), lambda g: (0, 0)),
        ],
        out_specs=pl.BlockSpec((1, BN, 10), lambda g: (g, 0, 0)),
        scratch_shapes=[pltpu.VMEM((M, 80), jnp.float32)],
        compiler_params=pltpu.CompilerParams(dimension_semantics=("parallel",)),
    )(x2, w1blk, b1t, w2r, b2, fc1r, fc1b, fc2w, fc2b)
    return out.reshape(NP, 10)[:N]


# ---------------------------------------------------------------------------
# Pure-JAX reference (sanity check only)
# ---------------------------------------------------------------------------
def reference_forward(x_nchw, params):
    dn = ("NCHW", "OIHW", "NCHW")
    y = lax.conv_general_dilated(x_nchw, params["conv1_w"], (1, 1), "VALID",
                                 dimension_numbers=dn)
    y = jax.nn.relu(y + params["conv1_b"][None, :, None, None])
    y = lax.reduce_window(y, -jnp.inf, lax.max, (1, 1, 2, 2), (1, 1, 2, 2), "VALID")
    y = lax.conv_general_dilated(y, params["conv2_w"], (1, 1), "VALID",
                                 dimension_numbers=dn)
    y = jax.nn.relu(y + params["conv2_b"][None, :, None, None])
    y = lax.reduce_window(y, -jnp.inf, lax.max, (1, 1, 2, 2), (1, 1, 2, 2), "VALID")
    y = y.reshape(y.shape[0], -1)
    y = jax.nn.relu(y @ params["fc1_w"] + params["fc1_b"])
    y = y @ params["fc2_w"] + params["fc2_b"]
    return jax.nn.log_softmax(y, axis=1)


def init_params(key):
    ks = jax.random.split(key, 8)

    def u(k, shape, fan_in):
        bound = 1.0 / float(fan_in) ** 0.5
        return jax.random.uniform(k, shape, jnp.float32, -bound, bound)

    return {
        "conv1_w": u(ks[0], (20, 1, 4, 4), 1 * 4 * 4),     # PyTorch OIHW
        "conv1_b": u(ks[1], (20,), 1 * 4 * 4),
        "conv2_w": u(ks[2], (20, 20, 4, 4), 20 * 4 * 4),
        "conv2_b": u(ks[3], (20,), 20 * 4 * 4),
        "fc1_w": u(ks[4], (320, 60), 320),                 # stored as (in, out)
        "fc1_b": u(ks[5], (60,), 320),
        "fc2_w": u(ks[6], (60, 10), 60),
        "fc2_b": u(ks[7], (10,), 60),
    }


if __name__ == "__main__":
    key = jax.random.PRNGKey(0)
    k_x, k_p = jax.random.split(key)
    # MNIST-shaped input (the 320-wide flatten implies 1x28x28), small batch=2.
    x = jax.random.normal(k_x, (2, 1, 28, 28), jnp.float32)
    params = init_params(k_p)

    out = jax.block_until_ready(jax.jit(the_net_forward)(x, params))

    ref = reference_forward(x, params)
    assert out.shape == (2, 10), out.shape
    assert bool(jnp.allclose(out, ref, atol=1e-3, rtol=1e-3)), \
        float(jnp.max(jnp.abs(out - ref)))
    print("KERNEL_OK")
</pallas_src>

<mosaic_0001>
module attributes {stable_mosaic.version = 11 : i64} {
  func.func @_thenet_kernel(%arg0: i32, %arg1: memref<1x4x704x64xf32, #tpu.memory_space<vmem>>, %arg2: memref<64x80xf32, #tpu.memory_space<vmem>>, %arg3: memref<1x80xf32, #tpu.memory_space<vmem>>, %arg4: memref<4x80x20xf32, #tpu.memory_space<vmem>>, %arg5: memref<1x20xf32, #tpu.memory_space<vmem>>, %arg6: memref<16x20x60xf32, #tpu.memory_space<vmem>>, %arg7: memref<1x60xf32, #tpu.memory_space<vmem>>, %arg8: memref<60x10xf32, #tpu.memory_space<vmem>>, %arg9: memref<1x10xf32, #tpu.memory_space<vmem>>, %arg10: memref<1x8x10xf32, #tpu.memory_space<vmem>>, %arg11: memref<704x80xf32, #tpu.memory_space<vmem>>) attributes {dimension_semantics = [#tpu.dimension_semantics<parallel>], iteration_bounds = array<i64: 1>, scalar_prefetch = 0 : i64, scratch_operands = 1 : i64, tpu.core_type = #tpu.core_type<tc>, window_params = [{transform_indices = @transform_0, window_bounds = array<i64: 1, 4, 704, 64>}, {pipeline_mode = #tpu.pipeline_mode<synchronous>, transform_indices = @transform_1, window_bounds = array<i64: 64, 80>}, {pipeline_mode = #tpu.pipeline_mode<synchronous>, transform_indices = @transform_2, window_bounds = array<i64: 1, 80>}, {pipeline_mode = #tpu.pipeline_mode<synchronous>, transform_indices = @transform_3, window_bounds = array<i64: 4, 80, 20>}, {pipeline_mode = #tpu.pipeline_mode<synchronous>, transform_indices = @transform_4, window_bounds = array<i64: 1, 20>}, {pipeline_mode = #tpu.pipeline_mode<synchronous>, transform_indices = @transform_5, window_bounds = array<i64: 16, 20, 60>}, {pipeline_mode = #tpu.pipeline_mode<synchronous>, transform_indices = @transform_6, window_bounds = array<i64: 1, 60>}, {pipeline_mode = #tpu.pipeline_mode<synchronous>, transform_indices = @transform_7, window_bounds = array<i64: 60, 10>}, {pipeline_mode = #tpu.pipeline_mode<synchronous>, transform_indices = @transform_8, window_bounds = array<i64: 1, 10>}, {transform_indices = @transform_9, window_bounds = array<i64: 1, 8, 10>}]} {
    %c0 = arith.constant 0 : index
    %c0_0 = arith.constant 0 : index
    %0 = vector.load %arg2[%c0, %c0_0] : memref<64x80xf32, #tpu.memory_space<vmem>>, vector<64x80xf32>
    %c0_1 = arith.constant 0 : index
    %c0_2 = arith.constant 0 : index
    %c0_3 = arith.constant 0 : index
    %c0_4 = arith.constant 0 : index
    %1 = vector.load %arg1[%c0_1, %c0_2, %c0_3, %c0_4] : memref<1x4x704x64xf32, #tpu.memory_space<vmem>>, vector<1x1x704x64xf32>
    %2 = vector.shape_cast %1 : vector<1x1x704x64xf32> to vector<704x64xf32>
    %cst = arith.constant dense<0.000000e+00> : vector<704x80xf32>
    %3 = tpu.matmul %2, %0, %cst {dimension_numbers = #tpu.dot_dimension_numbers<[1], [0], [0], [1], [0, 0, 1, 1], [], []>} : vector<704x64xf32>, vector<64x80xf32>, vector<704x80xf32> -> vector<704x80xf32>
    %c0_5 = arith.constant 0 : index
    %c1 = arith.constant 1 : index
    %c0_6 = arith.constant 0 : index
    %c0_7 = arith.constant 0 : index
    %4 = vector.load %arg1[%c0_5, %c1, %c0_6, %c0_7] : memref<1x4x704x64xf32, #tpu.memory_space<vmem>>, vector<1x1x704x64xf32>
    %5 = vector.shape_cast %4 : vector<1x1x704x64xf32> to vector<704x64xf32>
    %cst_8 = arith.constant dense<0.000000e+00> : vector<704x80xf32>
    %6 = tpu.matmul %5, %0, %cst_8 {dimension_numbers = #tpu.dot_dimension_numbers<[1], [0], [0], [1], [0, 0, 1, 1], [], []>} : vector<704x64xf32>, vector<64x80xf32>, vector<704x80xf32> -> vector<704x80xf32>
    %7 = arith.maximumf %3, %6 : vector<704x80xf32>
    %c0_9 = arith.constant 0 : index
    %c2 = arith.constant 2 : index
    %c0_10 = arith.constant 0 : index
    %c0_11 = arith.constant 0 : index
    %8 = vector.load %arg1[%c0_9, %c2, %c0_10, %c0_11] : memref<1x4x704x64xf32, #tpu.memory_space<vmem>>, vector<1x1x704x64xf32>
    %9 = vector.shape_cast %8 : vector<1x1x704x64xf32> to vector<704x64xf32>
    %cst_12 = arith.constant dense<0.000000e+00> : vector<704x80xf32>
    %10 = tpu.matmul %9, %0, %cst_12 {dimension_numbers = #tpu.dot_dimension_numbers<[1], [0], [0], [1], [0, 0, 1, 1], [], []>} : vector<704x64xf32>, vector<64x80xf32>, vector<704x80xf32> -> vector<704x80xf32>
    %11 = arith.maximumf %7, %10 : vector<704x80xf32>
    %c0_13 = arith.constant 0 : index
    %c3 = arith.constant 3 : index
    %c0_14 = arith.constant 0 : index
    %c0_15 = arith.constant 0 : index
    %12 = vector.load %arg1[%c0_13, %c3, %c0_14, %c0_15] : memref<1x4x704x64xf32, #tpu.memory_space<vmem>>, vector<1x1x704x64xf32>
    %13 = vector.shape_cast %12 : vector<1x1x704x64xf32> to vector<704x64xf32>
    %cst_16 = arith.constant dense<0.000000e+00> : vector<704x80xf32>
    %14 = tpu.matmul %13, %0, %cst_16 {dimension_numbers = #tpu.dot_dimension_numbers<[1], [0], [0], [1], [0, 0, 1, 1], [], []>} : vector<704x64xf32>, vector<64x80xf32>, vector<704x80xf32> -> vector<704x80xf32>
    %15 = arith.maximumf %11, %14 : vector<704x80xf32>
    %c0_17 = arith.constant 0 : index
    %c0_18 = arith.constant 0 : index
    %16 = vector.load %arg3[%c0_17, %c0_18] : memref<1x80xf32, #tpu.memory_space<vmem>>, vector<1x80xf32>
    %17 = vector.broadcast %16 : vector<1x80xf32> to vector<704x80xf32>
    %18 = arith.addf %15, %17 : vector<704x80xf32>
    %cst_19 = arith.constant 0.000000e+00 : f32
    %19 = vector.broadcast %cst_19 : f32 to vector<704x80xf32>
    %20 = arith.maximumf %18, %19 : vector<704x80xf32>
    %c0_20 = arith.constant 0 : index
    %c0_21 = arith.constant 0 : index
    %21 = vector.load %arg11[%c0_20, %c0_21] : memref<704x80xf32, #tpu.memory_space<vmem>>, vector<704x80xf32>
    tpu.vector_store %arg11[%c0_20, %c0_21], %20 {strides = array<i32>} : memref<704x80xf32, #tpu.memory_space<vmem>>, vector<704x80xf32>,
    %c0_22 = arith.constant 0 : index
    %c0_23 = arith.constant 0 : index
    %22 = vector.load %arg5[%c0_22, %c0_23] : memref<1x20xf32, #tpu.memory_space<vmem>>, vector<1x20xf32>
    %cst_24 = arith.constant 0.000000e+00 : f32
    %23 = vector.broadcast %cst_24 : f32 to vector<8x60xf32>
    %c0_25 = arith.constant 0 : index
    %c0_26 = arith.constant 0 : index
    %24 = vector.load %arg11[%c0_25, %c0_26] : memref<704x80xf32, #tpu.memory_space<vmem>>, vector<64x80xf32>
    %c0_27 = arith.constant 0 : index
    %c0_28 = arith.constant 0 : index
    %c0_29 = arith.constant 0 : index
    %25 = vector.load %arg4[%c0_27, %c0_28, %c0_29] : memref<4x80x20xf32, #tpu.memory_space<vmem>>, vector<1x80x20xf32>
    %26 = vector.shape_cast %25 : vector<1x80x20xf32> to vector<80x20xf32>
    %cst_30 = arith.constant dense<0.000000e+00> : vector<64x20xf32>
    %27 = tpu.matmul %24, %26, %cst_30 {dimension_numbers = #tpu.dot_dimension_numbers<[1], [0], [0], [1], [0, 0, 1, 1], [], []>} : vector<64x80xf32>, vector<80x20xf32>, vector<64x20xf32> -> vector<64x20xf32>
    %c64 = arith.constant 64 : index
    %c0_31 = arith.constant 0 : index
    %28 = vector.load %arg11[%c64, %c0_31] : memref<704x80xf32, #tpu.memory_space<vmem>>, vector<64x80xf32>
    %c1_32 = arith.constant 1 : index
    %c0_33 = arith.constant 0 : index
    %c0_34 = arith.constant 0 : index
    %29 = vector.load %arg4[%c1_32, %c0_33, %c0_34] : memref<4x80x20xf32, #tpu.memory_space<vmem>>, vector<1x80x20xf32>
    %30 = vector.shape_cast %29 : vector<1x80x20xf32> to vector<80x20xf32>
    %cst_35 = arith.constant dense<0.000000e+00> : vector<64x20xf32>
    %31 = tpu.matmul %28, %30, %cst_35 {dimension_numbers = #tpu.dot_dimension_numbers<[1], [0], [0], [1], [0, 0, 1, 1], [], []>} : vector<64x80xf32>, vector<80x20xf32>, vector<64x20xf32> -> vector<64x20xf32>
    %32 = arith.addf %27, %31 : vector<64x20xf32>
    %c128 = arith.constant 128 : index
    %c0_36 = arith.constant 0 : index
    %33 = vector.load %arg11[%c128, %c0_36] : memref<704x80xf32, #tpu.memory_space<vmem>>, vector<64x80xf32>
    %c2_37 = arith.constant 2 : index
    %c0_38 = arith.constant 0 : index
    %c0_39 = arith.constant 0 : index
    %34 = vector.load %arg4[%c2_37, %c0_38, %c0_39] : memref<4x80x20xf32, #tpu.memory_space<vmem>>, vector<1x80x20xf32>
    %35 = vector.shape_cast %34 : vector<1x80x20xf32> to vector<80x20xf32>
    %cst_40 = arith.constant dense<0.000000e+00> : vector<64x20xf32>
    %36 = tpu.matmul %33, %35, %cst_40 {dimension_numbers = #tpu.dot_dimension_numbers<[1], [0], [0], [1], [0, 0, 1, 1], [], []>} : vector<64x80xf32>, vector<80x20xf32>, vector<64x20xf32> -> vector<64x20xf32>
    %37 = arith.addf %32, %36 : vector<64x20xf32>
    %c192 = arith.constant 192 : index
    %c0_41 = arith.constant 0 : index
    %38 = vector.load %arg11[%c192, %c0_41] : memref<704x80xf32, #tpu.memory_space<vmem>>, vector<64x80xf32>
    %c3_42 = arith.constant 3 : index
    %c0_43 = arith.constant 0 : index
    %c0_44 = arith.constant 0 : index
    %39 = vector.load %arg4[%c3_42, %c0_43, %c0_44] : memref<4x80x20xf32, #tpu.memory_space<vmem>>, vector<1x80x20xf32>
    %40 = vector.shape_cast %39 : vector<1x80x20xf32> to vector<80x20xf32>
    %cst_45 = arith.constant dense<0.000000e+00> : vector<64x20xf32>
    %41 = tpu.matmul %38, %40, %cst_45 {dimension_numbers = #tpu.dot_dimension_numbers<[1], [0], [0], [1], [0, 0, 1, 1], [], []>} : vector<64x80xf32>, vector<80x20xf32>, vector<64x20xf32> -> vector<64x20xf32>
    %42 = arith.addf %37, %41 : vector<64x20xf32>
    %43 = vector.broadcast %22 : vector<1x20xf32> to vector<64x20xf32>
    %44 = arith.addf %42, %43 : vector<64x20xf32>
    %cst_46 = arith.constant 0.000000e+00 : f32
    %45 = vector.broadcast %cst_46 : f32 to vector<64x20xf32>
    %46 = arith.maximumf %44, %45 : vector<64x20xf32>
    %c64_47 = arith.constant 64 : index
    %c0_48 = arith.constant 0 : index
    %47 = vector.load %arg11[%c64_47, %c0_48] : memref<704x80xf32, #tpu.memory_space<vmem>>, vector<64x80xf32>
    %c0_49 = arith.constant 0 : index
    %c0_50 = arith.constant 0 : index
    %c0_51 = arith.constant 0 : index
    %48 = vector.load %arg4[%c0_49, %c0_50, %c0_51] : memref<4x80x20xf32, #tpu.memory_space<vmem>>, vector<1x80x20xf32>
    %49 = vector.shape_cast %48 : vector<1x80x20xf32> to vector<80x20xf32>
    %cst_52 = arith.constant dense<0.000000e+00> : vector<64x20xf32>
    %50 = tpu.matmul %47, %49, %cst_52 {dimension_numbers = #tpu.dot_dimension_numbers<[1], [0], [0], [1], [0, 0, 1, 1], [], []>} : vector<64x80xf32>, vector<80x20xf32>, vector<64x20xf32> -> vector<64x20xf32>
    %c128_53 = arith.constant 128 : index
    %c0_54 = arith.constant 0 : index
    %51 = vector.load %arg11[%c128_53, %c0_54] : memref<704x80xf32, #tpu.memory_space<vmem>>, vector<64x80xf32>
    %c1_55 = arith.constant 1 : index
    %c0_56 = arith.constant 0 : index
    %c0_57 = arith.constant 0 : index
    %52 = vector.load %arg4[%c1_55, %c0_56, %c0_57] : memref<4x80x20xf32, #tpu.memory_space<vmem>>, vector<1x80x20xf32>
    %53 = vector.shape_cast %52 : vector<1x80x20xf32> to vector<80x20xf32>
    %cst_58 = arith.constant dense<0.000000e+00> : vector<64x20xf32>
    %54 = tpu.matmul %51, %53, %cst_58 {dimension_numbers = #tpu.dot_dimension_numbers<[1], [0], [0], [1], [0, 0, 1, 1], [], []>} : vector<64x80xf32>, vector<80x20xf32>, vector<64x20xf32> -> vector<64x20xf32>
    %55 = arith.addf %50, %54 : vector<64x20xf32>
    %c192_59 = arith.constant 192 : index
    %c0_60 = arith.constant 0 : index
    %56 = vector.load %arg11[%c192_59, %c0_60] : memref<704x80xf32, #tpu.memory_space<vmem>>, vector<64x80xf32>
    %c2_61 = arith.constant 2 : index
    %c0_62 = arith.constant 0 : index
    %c0_63 = arith.constant 0 : index
    %57 = vector.load %arg4[%c2_61, %c0_62, %c0_63] : memref<4x80x20xf32, #tpu.memory_space<vmem>>, vector<1x80x20xf32>
    %58 = vector.shape_cast %57 : vector<1x80x20xf32> to vector<80x20xf32>
    %cst_64 = arith.constant dense<0.000000e+00> : vector<64x20xf32>
    %59 = tpu.matmul %56, %58, %cst_64 {dimension_numbers = #tpu.dot_dimension_numbers<[1], [0], [0], [1], [0, 0, 1, 1], [], []>} : vector<64x80xf32>, vector<80x20xf32>, vector<64x20xf32> -> vector<64x20xf32>
    %60 = arith.addf %55, %59 : vector<64x20xf32>
    %c256 = arith.constant 256 : index
    %c0_65 = arith.constant 0 : index
    %61 = vector.load %arg11[%c256, %c0_65] : memref<704x80xf32, #tpu.memory_space<vmem>>, vector<64x80xf32>
    %c3_66 = arith.constant 3 : index
    %c0_67 = arith.constant 0 : index
    %c0_68 = arith.constant 0 : index
    %62 = vector.load %arg4[%c3_66, %c0_67, %c0_68] : memref<4x80x20xf32, #tpu.memory_space<vmem>>, vector<1x80x20xf32>
    %63 = vector.shape_cast %62 : vector<1x80x20xf32> to vector<80x20xf32>
    %cst_69 = arith.constant dense<0.000000e+00> : vector<64x20xf32>
    %64 = tpu.matmul %61, %63, %cst_69 {dimension_numbers = #tpu.dot_dimension_numbers<[1], [0], [0], [1], [0, 0, 1, 1], [], []>} : vector<64x80xf32>, vector<80x20xf32>, vector<64x20xf32> -> vector<64x20xf32>
    %65 = arith.addf %60, %64 : vector<64x20xf32>
    %66 = vector.broadcast %22 : vector<1x20xf32> to vector<64x20xf32>
    %67 = arith.addf %65, %66 : vector<64x20xf32>
    %cst_70 = arith.constant 0.000000e+00 : f32
    %68 = vector.broadcast %cst_70 : f32 to vector<64x20xf32>
    %69 = arith.maximumf %67, %68 : vector<64x20xf32>
    %70 = arith.maximumf %46, %69 : vector<64x20xf32>
    %71 = vector.extract_strided_slice %70 {offsets = [0, 0], sizes = [8, 20], strides = [1, 1]} : vector<64x20xf32> to vector<8x20xf32>
    %72 = vector.extract_strided_slice %70 {offsets = [8, 0], sizes = [8, 20], strides = [1, 1]} : vector<64x20xf32> to vector<8x20xf32>
    %73 = arith.maximumf %71, %72 : vector<8x20xf32>
    %c0_71 = arith.constant 0 : index
    %c0_72 = arith.constant 0 : index
    %c0_73 = arith.constant 0 : index
    %74 = vector.load %arg6[%c0_71, %c0_72, %c0_73] : memref<16x20x60xf32, #tpu.memory_space<vmem>>, vector<1x20x60xf32>
    %75 = vector.shape_cast %74 : vector<1x20x60xf32> to vector<20x60xf32>
    %cst_74 = arith.constant dense<0.000000e+00> : vector<8x60xf32>
    %76 = tpu.matmul %73, %75, %cst_74 {dimension_numbers = #tpu.dot_dimension_numbers<[1], [0], [0], [1], [0, 0, 1, 1], [], []>} : vector<8x20xf32>, vector<20x60xf32>, vector<8x60xf32> -> vector<8x60xf32>
    %77 = arith.addf %23, %76 : vector<8x60xf32>
    %78 = vector.extract_strided_slice %70 {offsets = [16, 0], sizes = [8, 20], strides = [1, 1]} : vector<64x20xf32> to vector<8x20xf32>
    %79 = vector.extract_strided_slice %70 {offsets = [24, 0], sizes = [8, 20], strides = [1, 1]} : vector<64x20xf32> to vector<8x20xf32>
    %80 = arith.maximumf %78, %79 : vector<8x20xf32>
    %c1_75 = arith.constant 1 : index
    %c0_76 = arith.constant 0 : index
    %c0_77 = arith.constant 0 : index
    %81 = vector.load %arg6[%c1_75, %c0_76, %c0_77] : memref<16x20x60xf32, #tpu.memory_space<vmem>>, vector<1x20x60xf32>
    %82 = vector.shape_cast %81 : vector<1x20x60xf32> to vector<20x60xf32>
    %cst_78 = arith.constant dense<0.000000e+00> : vector<8x60xf32>
    %83 = tpu.matmul %80, %82, %cst_78 {dimension_numbers = #tpu.dot_dimension_numbers<[1], [0], [0], [1], [0, 0, 1, 1], [], []>} : vector<8x20xf32>, vector<20x60xf32>, vector<8x60xf32> -> vector<8x60xf32>
    %84 = arith.addf %77, %83 : vector<8x60xf32>
    %85 = vector.extract_strided_slice %70 {offsets = [32, 0], sizes = [8, 20], strides = [1, 1]} : vector<64x20xf32> to vector<8x20xf32>
    %86 = vector.extract_strided_slice %70 {offsets = [40, 0], sizes = [8, 20], strides = [1, 1]} : vector<64x20xf32> to vector<8x20xf32>
    %87 = arith.maximumf %85, %86 : vector<8x20xf32>
    %c2_79 = arith.constant 2 : index
    %c0_80 = arith.constant 0 : index
    %c0_81 = arith.constant 0 : index
    %88 = vector.load %arg6[%c2_79, %c0_80, %c0_81] : memref<16x20x60xf32, #tpu.memory_space<vmem>>, vector<1x20x60xf32>
    %89 = vector.shape_cast %88 : vector<1x20x60xf32> to vector<20x60xf32>
    %cst_82 = arith.constant dense<0.000000e+00> : vector<8x60xf32>
    %90 = tpu.matmul %87, %89, %cst_82 {dimension_numbers = #tpu.dot_dimension_numbers<[1], [0], [0], [1], [0, 0, 1, 1], [], []>} : vector<8x20xf32>, vector<20x60xf32>, vector<8x60xf32> -> vector<8x60xf32>
    %91 = arith.addf %84, %90 : vector<8x60xf32>
    %92 = vector.extract_strided_slice %70 {offsets = [48, 0], sizes = [8, 20], strides = [1, 1]} : vector<64x20xf32> to vector<8x20xf32>
    %93 = vector.extract_strided_slice %70 {offsets = [56, 0], sizes = [8, 20], strides = [1, 1]} : vector<64x20xf32> to vector<8x20xf32>
    %94 = arith.maximumf %92, %93 : vector<8x20xf32>
    %c3_83 = arith.constant 3 : index
    %c0_84 = arith.constant 0 : index
    %c0_85 = arith.constant 0 : index
    %95 = vector.load %arg6[%c3_83, %c0_84, %c0_85] : memref<16x20x60xf32, #tpu.memory_space<vmem>>, vector<1x20x60xf32>
    %96 = vector.shape_cast %95 : vector<1x20x60xf32> to vector<20x60xf32>
    %cst_86 = arith.constant dense<0.000000e+00> : vector<8x60xf32>
    %97 = tpu.matmul %94, %96, %cst_86 {dimension_numbers = #tpu.dot_dimension_numbers<[1], [0], [0], [1], [0, 0, 1, 1], [], []>} : vector<8x20xf32>, vector<20x60xf32>, vector<8x60xf32> -> vector<8x60xf32>
    %98 = arith.addf %91, %97 : vector<8x60xf32>
    %c128_87 = arith.constant 128 : index
    %c0_88 = arith.constant 0 : index
    %99 = vector.load %arg11[%c128_87, %c0_88] : memref<704x80xf32, #tpu.memory_space<vmem>>, vector<64x80xf32>
    %c0_89 = arith.constant 0 : index
    %c0_90 = arith.constant 0 : index
    %c0_91 = arith.constant 0 : index
    %100 = vector.load %arg4[%c0_89, %c0_90, %c0_91] : memref<4x80x20xf32, #tpu.memory_space<vmem>>, vector<1x80x20xf32>
    %101 = vector.shape_cast %100 : vector<1x80x20xf32> to vector<80x20xf32>
    %cst_92 = arith.constant dense<0.000000e+00> : vector<64x20xf32>
    %102 = tpu.matmul %99, %101, %cst_92 {dimension_numbers = #tpu.dot_dimension_numbers<[1], [0], [0], [1], [0, 0, 1, 1], [], []>} : vector<64x80xf32>, vector<80x20xf32>, vector<64x20xf32> -> vector<64x20xf32>
    %c192_93 = arith.constant 192 : index
    %c0_94 = arith.constant 0 : index
    %103 = vector.load %arg11[%c192_93, %c0_94] : memref<704x80xf32, #tpu.memory_space<vmem>>, vector<64x80xf32>
    %c1_95 = arith.constant 1 : index
    %c0_96 = arith.constant 0 : index
    %c0_97 = arith.constant 0 : index
    %104 = vector.load %arg4[%c1_95, %c0_96, %c0_97] : memref<4x80x20xf32, #tpu.memory_space<vmem>>, vector<1x80x20xf32>
    %105 = vector.shape_cast %104 : vector<1x80x20xf32> to vector<80x20xf32>
    %cst_98 = arith.constant dense<0.000000e+00> : vector<64x20xf32>
    %106 = tpu.matmul %103, %105, %cst_98 {dimension_numbers = #tpu.dot_dimension_numbers<[1], [0], [0], [1], [0, 0, 1, 1], [], []>} : vector<64x80xf32>, vector<80x20xf32>, vector<64x20xf32> -> vector<64x20xf32>
    %107 = arith.addf %102, %106 : vector<64x20xf32>
    %c256_99 = arith.constant 256 : index
    %c0_100 = arith.constant 0 : index
    %108 = vector.load %arg11[%c256_99, %c0_100] : memref<704x80xf32, #tpu.memory_space<vmem>>, vector<64x80xf32>
    %c2_101 = arith.constant 2 : index
    %c0_102 = arith.constant 0 : index
    %c0_103 = arith.constant 0 : index
    %109 = vector.load %arg4[%c2_101, %c0_102, %c0_103] : memref<4x80x20xf32, #tpu.memory_space<vmem>>, vector<1x80x20xf32>
    %110 = vector.shape_cast %109 : vector<1x80x20xf32> to vector<80x20xf32>
    %cst_104 = arith.constant dense<0.000000e+00> : vector<64x20xf32>
    %111 = tpu.matmul %108, %110, %cst_104 {dimension_numbers = #tpu.dot_dimension_numbers<[1], [0], [0], [1], [0, 0, 1, 1], [], []>} : vector<64x80xf32>, vector<80x20xf32>, vector<64x20xf32> -> vector<64x20xf32>
    %112 = arith.addf %107, %111 : vector<64x20xf32>
    %c320 = arith.constant 320 : index
    %c0_105 = arith.constant 0 : index
    %113 = vector.load %arg11[%c320, %c0_105] : memref<704x80xf32, #tpu.memory_space<vmem>>, vector<64x80xf32>
    %c3_106 = arith.constant 3 : index
    %c0_107 = arith.constant 0 : index
    %c0_108 = arith.constant 0 : index
    %114 = vector.load %arg4[%c3_106, %c0_107, %c0_108] : memref<4x80x20xf32, #tpu.memory_space<vmem>>, vector<1x80x20xf32>
    %115 = vector.shape_cast %114 : vector<1x80x20xf32> to vector<80x20xf32>
    %cst_109 = arith.constant dense<0.000000e+00> : vector<64x20xf32>
    %116 = tpu.matmul %113, %115, %cst_109 {dimension_numbers = #tpu.dot_dimension_numbers<[1], [0], [0], [1], [0, 0, 1, 1], [], []>} : vector<64x80xf32>, vector<80x20xf32>, vector<64x20xf32> -> vector<64x20xf32>
    %117 = arith.addf %112, %116 : vector<64x20xf32>
    %118 = vector.broadcast %22 : vector<1x20xf32> to vector<64x20xf32>
    %119 = arith.addf %117, %118 : vector<64x20xf32>
    %cst_110 = arith.constant 0.000000e+00 : f32
    %120 = vector.broadcast %cst_110 : f32 to vector<64x20xf32>
    %121 = arith.maximumf %119, %120 : vector<64x20xf32>
    %c192_111 = arith.constant 192 : index
    %c0_112 = arith.constant 0 : index
    %122 = vector.load %arg11[%c192_111, %c0_112] : memref<704x80xf32, #tpu.memory_space<vmem>>, vector<64x80xf32>
    %c0_113 = arith.constant 0 : index
    %c0_114 = arith.constant 0 : index
    %c0_115 = arith.constant 0 : index
    %123 = vector.load %arg4[%c0_113, %c0_114, %c0_115] : memref<4x80x20xf32, #tpu.memory_space<vmem>>, vector<1x80x20xf32>
    %124 = vector.shape_cast %123 : vector<1x80x20xf32> to vector<80x20xf32>
    %cst_116 = arith.constant dense<0.000000e+00> : vector<64x20xf32>
    %125 = tpu.matmul %122, %124, %cst_116 {dimension_numbers = #tpu.dot_dimension_numbers<[1], [0], [0], [1], [0, 0, 1, 1], [], []>} : vector<64x80xf32>, vector<80x20xf32>, vector<64x20xf32> -> vector<64x20xf32>
    %c256_117 = arith.constant 256 : index
    %c0_118 = arith.constant 0 : index
    %126 = vector.load %arg11[%c256_117, %c0_118] : memref<704x80xf32, #tpu.memory_space<vmem>>, vector<64x80xf32>
    %c1_119 = arith.constant 1 : index
    %c0_120 = arith.constant 0 : index
    %c0_121 = arith.constant 0 : index
    %127 = vector.load %arg4[%c1_119, %c0_120, %c0_121] : memref<4x80x20xf32, #tpu.memory_space<vmem>>, vector<1x80x20xf32>
    %128 = vector.shape_cast %127 : vector<1x80x20xf32> to vector<80x20xf32>
    %cst_122 = arith.constant dense<0.000000e+00> : vector<64x20xf32>
    %129 = tpu.matmul %126, %128, %cst_122 {dimension_numbers = #tpu.dot_dimension_numbers<[1], [0], [0], [1], [0, 0, 1, 1], [], []>} : vector<64x80xf32>, vector<80x20xf32>, vector<64x20xf32> -> vector<64x20xf32>
    %130 = arith.addf %125, %129 : vector<64x20xf32>
    %c320_123 = arith.constant 320 : index
    %c0_124 = arith.constant 0 : index
    %131 = vector.load %arg11[%c320_123, %c0_124] : memref<704x80xf32, #tpu.memory_space<vmem>>, vector<64x80xf32>
    %c2_125 = arith.constant 2 : index
    %c0_126 = arith.constant 0 : index
    %c0_127 = arith.constant 0 : index
    %132 = vector.load %arg4[%c2_125, %c0_126, %c0_127] : memref<4x80x20xf32, #tpu.memory_space<vmem>>, vector<1x80x20xf32>
    %133 = vector.shape_cast %132 : vector<1x80x20xf32> to vector<80x20xf32>
    %cst_128 = arith.constant dense<0.000000e+00> : vector<64x20xf32>
    %134 = tpu.matmul %131, %133, %cst_128 {dimension_numbers = #tpu.dot_dimension_numbers<[1], [0], [0], [1], [0, 0, 1, 1], [], []>} : vector<64x80xf32>, vector<80x20xf32>, vector<64x20xf32> -> vector<64x20xf32>
    %135 = arith.addf %130, %134 : vector<64x20xf32>
    %c384 = arith.constant 384 : index
    %c0_129 = arith.constant 0 : index
    %136 = vector.load %arg11[%c384, %c0_129] : memref<704x80xf32, #tpu.memory_space<vmem>>, vector<64x80xf32>
    %c3_130 = arith.constant 3 : index
    %c0_131 = arith.constant 0 : index
    %c0_132 = arith.constant 0 : index
    %137 = vector.load %arg4[%c3_130, %c0_131, %c0_132] : memref<4x80x20xf32, #tpu.memory_space<vmem>>, vector<1x80x20xf32>
    %138 = vector.shape_cast %137 : vector<1x80x20xf32> to vector<80x20xf32>
    %cst_133 = arith.constant dense<0.000000e+00> : vector<64x20xf32>
    %139 = tpu.matmul %136, %138, %cst_133 {dimension_numbers = #tpu.dot_dimension_numbers<[1], [0], [0], [1], [0, 0, 1, 1], [], []>} : vector<64x80xf32>, vector<80x20xf32>, vector<64x20xf32> -> vector<64x20xf32>
    %140 = arith.addf %135, %139 : vector<64x20xf32>
    %141 = vector.broadcast %22 : vector<1x20xf32> to vector<64x20xf32>
    %142 = arith.addf %140, %141 : vector<64x20xf32>
    %cst_134 = arith.constant 0.000000e+00 : f32
    %143 = vector.broadcast %cst_134 : f32 to vector<64x20xf32>
    %144 = arith.maximumf %142, %143 : vector<64x20xf32>
    %145 = arith.maximumf %121, %144 : vector<64x20xf32>
    %146 = vector.extract_strided_slice %145 {offsets = [0, 0], sizes = [8, 20], strides = [1, 1]} : vector<64x20xf32> to vector<8x20xf32>
    %147 = vector.extract_strided_slice %145 {offsets = [8, 0], sizes = [8, 20], strides = [1, 1]} : vector<64x20xf32> to vector<8x20xf32>
    %148 = arith.maximumf %146, %147 : vector<8x20xf32>
    %c4 = arith.constant 4 : index
    %c0_135 = arith.constant 0 : index
    %c0_136 = arith.constant 0 : index
    %149 = vector.load %arg6[%c4, %c0_135, %c0_136] : memref<16x20x60xf32, #tpu.memory_space<vmem>>, vector<1x20x60xf32>
    %150 = vector.shape_cast %149 : vector<1x20x60xf32> to vector<20x60xf32>
    %cst_137 = arith.constant dense<0.000000e+00> : vector<8x60xf32>
    %151 = tpu.matmul %148, %150, %cst_137 {dimension_numbers = #tpu.dot_dimension_numbers<[1], [0], [0], [1], [0, 0, 1, 1], [], []>} : vector<8x20xf32>, vector<20x60xf32>, vector<8x60xf32> -> vector<8x60xf32>
    %152 = arith.addf %98, %151 : vector<8x60xf32>
    %153 = vector.extract_strided_slice %145 {offsets = [16, 0], sizes = [8, 20], strides = [1, 1]} : vector<64x20xf32> to vector<8x20xf32>
    %154 = vector.extract_strided_slice %145 {offsets = [24, 0], sizes = [8, 20], strides = [1, 1]} : vector<64x20xf32> to vector<8x20xf32>
    %155 = arith.maximumf %153, %154 : vector<8x20xf32>
    %c5 = arith.constant 5 : index
    %c0_138 = arith.constant 0 : index
    %c0_139 = arith.constant 0 : index
    %156 = vector.load %arg6[%c5, %c0_138, %c0_139] : memref<16x20x60xf32, #tpu.memory_space<vmem>>, vector<1x20x60xf32>
    %157 = vector.shape_cast %156 : vector<1x20x60xf32> to vector<20x60xf32>
    %cst_140 = arith.constant dense<0.000000e+00> : vector<8x60xf32>
    %158 = tpu.matmul %155, %157, %cst_140 {dimension_numbers = #tpu.dot_dimension_numbers<[1], [0], [0], [1], [0, 0, 1, 1], [], []>} : vector<8x20xf32>, vector<20x60xf32>, vector<8x60xf32> -> vector<8x60xf32>
    %159 = arith.addf %152, %158 : vector<8x60xf32>
    %160 = vector.extract_strided_slice %145 {offsets = [32, 0], sizes = [8, 20], strides = [1, 1]} : vector<64x20xf32> to vector<8x20xf32>
    %161 = vector.extract_strided_slice %145 {offsets = [40, 0], sizes = [8, 20], strides = [1, 1]} : vector<64x20xf32> to vector<8x20xf32>
    %162 = arith.maximumf %160, %161 : vector<8x20xf32>
    %c6 = arith.constant 6 : index
    %c0_141 = arith.constant 0 : index
    %c0_142 = arith.constant 0 : index
    %163 = vector.load %arg6[%c6, %c0_141, %c0_142] : memref<16x20x60xf32, #tpu.memory_space<vmem>>, vector<1x20x60xf32>
    %164 = vector.shape_cast %163 : vector<1x20x60xf32> to vector<20x60xf32>
    %cst_143 = arith.constant dense<0.000000e+00> : vector<8x60xf32>
    %165 = tpu.matmul %162, %164, %cst_143 {dimension_numbers = #tpu.dot_dimension_numbers<[1], [0], [0], [1], [0, 0, 1, 1], [], []>} : vector<8x20xf32>, vector<20x60xf32>, vector<8x60xf32> -> vector<8x60xf32>
    %166 = arith.addf %159, %165 : vector<8x60xf32>
    %167 = vector.extract_strided_slice %145 {offsets = [48, 0], sizes = [8, 20], strides = [1, 1]} : vector<64x20xf32> to vector<8x20xf32>
    %168 = vector.extract_strided_slice %145 {offsets = [56, 0], sizes = [8, 20], strides = [1, 1]} : vector<64x20xf32> to vector<8x20xf32>
    %169 = arith.maximumf %167, %168 : vector<8x20xf32>
    %c7 = arith.constant 7 : index
    %c0_144 = arith.constant 0 : index
    %c0_145 = arith.constant 0 : index
    %170 = vector.load %arg6[%c7, %c0_144, %c0_145] : memref<16x20x60xf32, #tpu.memory_space<vmem>>, vector<1x20x60xf32>
    %171 = vector.shape_cast %170 : vector<1x20x60xf32> to vector<20x60xf32>
    %cst_146 = arith.constant dense<0.000000e+00> : vector<8x60xf32>
    %172 = tpu.matmul %169, %171, %cst_146 {dimension_numbers = #tpu.dot_dimension_numbers<[1], [0], [0], [1], [0, 0, 1, 1], [], []>} : vector<8x20xf32>, vector<20x60xf32>, vector<8x60xf32> -> vector<8x60xf32>
    %173 = arith.addf %166, %172 : vector<8x60xf32>
    %c256_147 = arith.constant 256 : index
    %c0_148 = arith.constant 0 : index
    %174 = vector.load %arg11[%c256_147, %c0_148] : memref<704x80xf32, #tpu.memory_space<vmem>>, vector<64x80xf32>
    %c0_149 = arith.constant 0 : index
    %c0_150 = arith.constant 0 : index
    %c0_151 = arith.constant 0 : index
    %175 = vector.load %arg4[%c0_149, %c0_150, %c0_151] : memref<4x80x20xf32, #tpu.memory_space<vmem>>, vector<1x80x20xf32>
    %176 = vector.shape_cast %175 : vector<1x80x20xf32> to vector<80x20xf32>
    %cst_152 = arith.constant dense<0.000000e+00> : vector<64x20xf32>
    %177 = tpu.matmul %174, %176, %cst_152 {dimension_numbers = #tpu.dot_dimension_numbers<[1], [0], [0], [1], [0, 0, 1, 1], [], []>} : vector<64x80xf32>, vector<80x20xf32>, vector<64x20xf32> -> vector<64x20xf32>
    %c320_153 = arith.constant 320 : index
    %c0_154 = arith.constant 0 : index
    %178 = vector.load %arg11[%c320_153, %c0_154] : memref<704x80xf32, #tpu.memory_space<vmem>>, vector<64x80xf32>
    %c1_155 = arith.constant 1 : index
    %c0_156 = arith.constant 0 : index
    %c0_157 = arith.constant 0 : index
    %179 = vector.load %arg4[%c1_155, %c0_156, %c0_157] : memref<4x80x20xf32, #tpu.memory_space<vmem>>, vector<1x80x20xf32>
    %180 = vector.shape_cast %179 : vector<1x80x20xf32> to vector<80x20xf32>
    %cst_158 = arith.constant dense<0.000000e+00> : vector<64x20xf32>
    %181 = tpu.matmul %178, %180, %cst_158 {dimension_numbers = #tpu.dot_dimension_numbers<[1], [0], [0], [1], [0, 0, 1, 1], [], []>} : vector<64x80xf32>, vector<80x20xf32>, vector<64x20xf32> -> vector<64x20xf32>
    %182 = arith.addf %177, %181 : vector<64x20xf32>
    %c384_159 = arith.constant 384 : index
    %c0_160 = arith.constant 0 : index
    %183 = vector.load %arg11[%c384_159, %c0_160] : memref<704x80xf32, #tpu.memory_space<vmem>>, vector<64x80xf32>
    %c2_161 = arith.constant 2 : index
    %c0_162 = arith.constant 0 : index
    %c0_163 = arith.constant 0 : index
    %184 = vector.load %arg4[%c2_161, %c0_162, %c0_163] : memref<4x80x20xf32, #tpu.memory_space<vmem>>, vector<1x80x20xf32>
    %185 = vector.shape_cast %184 : vector<1x80x20xf32> to vector<80x20xf32>
    %cst_164 = arith.constant dense<0.000000e+00> : vector<64x20xf32>
    %186 = tpu.matmul %183, %185, %cst_164 {dimension_numbers = #tpu.dot_dimension_numbers<[1], [0], [0], [1], [0, 0, 1, 1], [], []>} : vector<64x80xf32>, vector<80x20xf32>, vector<64x20xf32> -> vector<64x20xf32>
    %187 = arith.addf %182, %186 : vector<64x20xf32>
    %c448 = arith.constant 448 : index
    %c0_165 = arith.constant 0 : index
    %188 = vector.load %arg11[%c448, %c0_165] : memref<704x80xf32, #tpu.memory_space<vmem>>, vector<64x80xf32>
    %c3_166 = arith.constant 3 : index
    %c0_167 = arith.constant 0 : index
    %c0_168 = arith.constant 0 : index
    %189 = vector.load %arg4[%c3_166, %c0_167, %c0_168] : memref<4x80x20xf32, #tpu.memory_space<vmem>>, vector<1x80x20xf32>
    %190 = vector.shape_cast %189 : vector<1x80x20xf32> to vector<80x20xf32>
    %cst_169 = arith.constant dense<0.000000e+00> : vector<64x20xf32>
    %191 = tpu.matmul %188, %190, %cst_169 {dimension_numbers = #tpu.dot_dimension_numbers<[1], [0], [0], [1], [0, 0, 1, 1], [], []>} : vector<64x80xf32>, vector<80x20xf32>, vector<64x20xf32> -> vector<64x20xf32>
    %192 = arith.addf %187, %191 : vector<64x20xf32>
    %193 = vector.broadcast %22 : vector<1x20xf32> to vector<64x20xf32>
    %194 = arith.addf %192, %193 : vector<64x20xf32>
    %cst_170 = arith.constant 0.000000e+00 : f32
    %195 = vector.broadcast %cst_170 : f32 to vector<64x20xf32>
    %196 = arith.maximumf %194, %195 : vector<64x20xf32>
    %c320_171 = arith.constant 320 : index
    %c0_172 = arith.constant 0 : index
    %197 = vector.load %arg11[%c320_171, %c0_172] : memref<704x80xf32, #tpu.memory_space<vmem>>, vector<64x80xf32>
    %c0_173 = arith.constant 0 : index
    %c0_174 = arith.constant 0 : index
    %c0_175 = arith.constant 0 : index
    %198 = vector.load %arg4[%c0_173, %c0_174, %c0_175] : memref<4x80x20xf32, #tpu.memory_space<vmem>>, vector<1x80x20xf32>
    %199 = vector.shape_cast %198 : vector<1x80x20xf32> to vector<80x20xf32>
    %cst_176 = arith.constant dense<0.000000e+00> : vector<64x20xf32>
    %200 = tpu.matmul %197, %199, %cst_176 {dimension_numbers = #tpu.dot_dimension_numbers<[1], [0], [0], [1], [0, 0, 1, 1], [], []>} : vector<64x80xf32>, vector<80x20xf32>, vector<64x20xf32> -> vector<64x20xf32>
    %c384_177 = arith.constant 384 : index
    %c0_178 = arith.constant 0 : index
    %201 = vector.load %arg11[%c384_177, %c0_178] : memref<704x80xf32, #tpu.memory_space<vmem>>, vector<64x80xf32>
    %c1_179 = arith.constant 1 : index
    %c0_180 = arith.constant 0 : index
    %c0_181 = arith.constant 0 : index
    %202 = vector.load %arg4[%c1_179, %c0_180, %c0_181] : memref<4x80x20xf32, #tpu.memory_space<vmem>>, vector<1x80x20xf32>
    %203 = vector.shape_cast %202 : vector<1x80x20xf32> to vector<80x20xf32>
    %cst_182 = arith.constant dense<0.000000e+00> : vector<64x20xf32>
    %204 = tpu.matmul %201, %203, %cst_182 {dimension_numbers = #tpu.dot_dimension_numbers<[1], [0], [0], [1], [0, 0, 1, 1], [], []>} : vector<64x80xf32>, vector<80x20xf32>, vector<64x20xf32> -> vector<64x20xf32>
    %205 = arith.addf %200, %204 : vector<64x20xf32>
    %c448_183 = arith.constant 448 : index
    %c0_184 = arith.constant 0 : index
    %206 = vector.load %arg11[%c448_183, %c0_184] : memref<704x80xf32, #tpu.memory_space<vmem>>, vector<64x80xf32>
    %c2_185 = arith.constant 2 : index
    %c0_186 = arith.constant 0 : index
    %c0_187 = arith.constant 0 : index
    %207 = vector.load %arg4[%c2_185, %c0_186, %c0_187] : memref<4x80x20xf32, #tpu.memory_space<vmem>>, vector<1x80x20xf32>
    %208 = vector.shape_cast %207 : vector<1x80x20xf32> to vector<80x20xf32>
    %cst_188 = arith.constant dense<0.000000e+00> : vector<64x20xf32>
    %209 = tpu.matmul %206, %208, %cst_188 {dimension_numbers = #tpu.dot_dimension_numbers<[1], [0], [0], [1], [0, 0, 1, 1], [], []>} : vector<64x80xf32>, vector<80x20xf32>, vector<64x20xf32> -> vector<64x20xf32>
    %210 = arith.addf %205, %209 : vector<64x20xf32>
    %c512 = arith.constant 512 : index
    %c0_189 = arith.constant 0 : index
    %211 = vector.load %arg11[%c512, %c0_189] : memref<704x80xf32, #tpu.memory_space<vmem>>, vector<64x80xf32>
    %c3_190 = arith.constant 3 : index
    %c0_191 = arith.constant 0 : index
    %c0_192 = arith.constant 0 : index
    %212 = vector.load %arg4[%c3_190, %c0_191, %c0_192] : memref<4x80x20xf32, #tpu.memory_space<vmem>>, vector<1x80x20xf32>
    %213 = vector.shape_cast %212 : vector<1x80x20xf32> to vector<80x20xf32>
    %cst_193 = arith.constant dense<0.000000e+00> : vector<64x20xf32>
    %214 = tpu.matmul %211, %213, %cst_193 {dimension_numbers = #tpu.dot_dimension_numbers<[1], [0], [0], [1], [0, 0, 1, 1], [], []>} : vector<64x80xf32>, vector<80x20xf32>, vector<64x20xf32> -> vector<64x20xf32>
    %215 = arith.addf %210, %214 : vector<64x20xf32>
    %216 = vector.broadcast %22 : vector<1x20xf32> to vector<64x20xf32>
    %217 = arith.addf %215, %216 : vector<64x20xf32>
    %cst_194 = arith.constant 0.000000e+00 : f32
    %218 = vector.broadcast %cst_194 : f32 to vector<64x20xf32>
    %219 = arith.maximumf %217, %218 : vector<64x20xf32>
    %220 = arith.maximumf %196, %219 : vector<64x20xf32>
    %221 = vector.extract_strided_slice %220 {offsets = [0, 0], sizes = [8, 20], strides = [1, 1]} : vector<64x20xf32> to vector<8x20xf32>
    %222 = vector.extract_strided_slice %220 {offsets = [8, 0], sizes = [8, 20], strides = [1, 1]} : vector<64x20xf32> to vector<8x20xf32>
    %223 = arith.maximumf %221, %222 : vector<8x20xf32>
    %c8 = arith.constant 8 : index
    %c0_195 = arith.constant 0 : index
    %c0_196 = arith.constant 0 : index
    %224 = vector.load %arg6[%c8, %c0_195, %c0_196] : memref<16x20x60xf32, #tpu.memory_space<vmem>>, vector<1x20x60xf32>
    %225 = vector.shape_cast %224 : vector<1x20x60xf32> to vector<20x60xf32>
    %cst_197 = arith.constant dense<0.000000e+00> : vector<8x60xf32>
    %226 = tpu.matmul %223, %225, %cst_197 {dimension_numbers = #tpu.dot_dimension_numbers<[1], [0], [0], [1], [0, 0, 1, 1], [], []>} : vector<8x20xf32>, vector<20x60xf32>, vector<8x60xf32> -> vector<8x60xf32>
    %227 = arith.addf %173, %226 : vector<8x60xf32>
    %228 = vector.extract_strided_slice %220 {offsets = [16, 0], sizes = [8, 20], strides = [1, 1]} : vector<64x20xf32> to vector<8x20xf32>
    %229 = vector.extract_strided_slice %220 {offsets = [24, 0], sizes = [8, 20], strides = [1, 1]} : vector<64x20xf32> to vector<8x20xf32>
    %230 = arith.maximumf %228, %229 : vector<8x20xf32>
    %c9 = arith.constant 9 : index
    %c0_198 = arith.constant 0 : index
    %c0_199 = arith.constant 0 : index
    %231 = vector.load %arg6[%c9, %c0_198, %c0_199] : memref<16x20x60xf32, #tpu.memory_space<vmem>>, vector<1x20x60xf32>
    %232 = vector.shape_cast %231 : vector<1x20x60xf32> to vector<20x60xf32>
    %cst_200 = arith.constant dense<0.000000e+00> : vector<8x60xf32>
    %233 = tpu.matmul %230, %232, %cst_200 {dimension_numbers = #tpu.dot_dimension_numbers<[1], [0], [0], [1], [0, 0, 1, 1], [], []>} : vector<8x20xf32>, vector<20x60xf32>, vector<8x60xf32> -> vector<8x60xf32>
    %234 = arith.addf %227, %233 : vector<8x60xf32>
    %235 = vector.extract_strided_slice %220 {offsets = [32, 0], sizes = [8, 20], strides = [1, 1]} : vector<64x20xf32> to vector<8x20xf32>
    %236 = vector.extract_strided_slice %220 {offsets = [40, 0], sizes = [8, 20], strides = [1, 1]} : vector<64x20xf32> to vector<8x20xf32>
    %237 = arith.maximumf %235, %236 : vector<8x20xf32>
    %c10 = arith.constant 10 : index
    %c0_201 = arith.constant 0 : index
    %c0_202 = arith.constant 0 : index
    %238 = vector.load %arg6[%c10, %c0_201, %c0_202] : memref<16x20x60xf32, #tpu.memory_space<vmem>>, vector<1x20x60xf32>
    %239 = vector.shape_cast %238 : vector<1x20x60xf32> to vector<20x60xf32>
    %cst_203 = arith.constant dense<0.000000e+00> : vector<8x60xf32>
    %240 = tpu.matmul %237, %239, %cst_203 {dimension_numbers = #tpu.dot_dimension_numbers<[1], [0], [0], [1], [0, 0, 1, 1], [], []>} : vector<8x20xf32>, vector<20x60xf32>, vector<8x60xf32> -> vector<8x60xf32>
    %241 = arith.addf %234, %240 : vector<8x60xf32>
    %242 = vector.extract_strided_slice %220 {offsets = [48, 0], sizes = [8, 20], strides = [1, 1]} : vector<64x20xf32> to vector<8x20xf32>
    %243 = vector.extract_strided_slice %220 {offsets = [56, 0], sizes = [8, 20], strides = [1, 1]} : vector<64x20xf32> to vector<8x20xf32>
    %244 = arith.maximumf %242, %243 : vector<8x20xf32>
    %c11 = arith.constant 11 : index
    %c0_204 = arith.constant 0 : index
    %c0_205 = arith.constant 0 : index
    %245 = vector.load %arg6[%c11, %c0_204, %c0_205] : memref<16x20x60xf32, #tpu.memory_space<vmem>>, vector<1x20x60xf32>
    %246 = vector.shape_cast %245 : vector<1x20x60xf32> to vector<20x60xf32>
    %cst_206 = arith.constant dense<0.000000e+00> : vector<8x60xf32>
    %247 = tpu.matmul %244, %246, %cst_206 {dimension_numbers = #tpu.dot_dimension_numbers<[1], [0], [0], [1], [0, 0, 1, 1], [], []>} : vector<8x20xf32>, vector<20x60xf32>, vector<8x60xf32> -> vector<8x60xf32>
    %248 = arith.addf %241, %247 : vector<8x60xf32>
    %c384_207 = arith.constant 384 : index
    %c0_208 = arith.constant 0 : index
    %249 = vector.load %arg11[%c384_207, %c0_208] : memref<704x80xf32, #tpu.memory_space<vmem>>, vector<64x80xf32>
    %c0_209 = arith.constant 0 : index
    %c0_210 = arith.constant 0 : index
    %c0_211 = arith.constant 0 : index
    %250 = vector.load %arg4[%c0_209, %c0_210, %c0_211] : memref<4x80x20xf32, #tpu.memory_space<vmem>>, vector<1x80x20xf32>
    %251 = vector.shape_cast %250 : vector<1x80x20xf32> to vector<80x20xf32>
    %cst_212 = arith.constant dense<0.000000e+00> : vector<64x20xf32>
    %252 = tpu.matmul %249, %251, %cst_212 {dimension_numbers = #tpu.dot_dimension_numbers<[1], [0], [0], [1], [0, 0, 1, 1], [], []>} : vector<64x80xf32>, vector<80x20xf32>, vector<64x20xf32> -> vector<64x20xf32>
    %c448_213 = arith.constant 448 : index
    %c0_214 = arith.constant 0 : index
    %253 = vector.load %arg11[%c448_213, %c0_214] : memref<704x80xf32, #tpu.memory_space<vmem>>, vector<64x80xf32>
    %c1_215 = arith.constant 1 : index
    %c0_216 = arith.constant 0 : index
    %c0_217 = arith.constant 0 : index
    %254 = vector.load %arg4[%c1_215, %c0_216, %c0_217] : memref<4x80x20xf32, #tpu.memory_space<vmem>>, vector<1x80x20xf32>
    %255 = vector.shape_cast %254 : vector<1x80x20xf32> to vector<80x20xf32>
    %cst_218 = arith.constant dense<0.000000e+00> : vector<64x20xf32>
    %256 = tpu.matmul %253, %255, %cst_218 {dimension_numbers = #tpu.dot_dimension_numbers<[1], [0], [0], [1], [0, 0, 1, 1], [], []>} : vector<64x80xf32>, vector<80x20xf32>, vector<64x20xf32> -> vector<64x20xf32>
    %257 = arith.addf %252, %256 : vector<64x20xf32>
    %c512_219 = arith.constant 512 : index
    %c0_220 = arith.constant 0 : index
    %258 = vector.load %arg11[%c512_219, %c0_220] : memref<704x80xf32, #tpu.memory_space<vmem>>, vector<64x80xf32>
    %c2_221 = arith.constant 2 : index
    %c0_222 = arith.constant 0 : index
    %c0_223 = arith.constant 0 : index
    %259 = vector.load %arg4[%c2_221, %c0_222, %c0_223] : memref<4x80x20xf32, #tpu.memory_space<vmem>>, vector<1x80x20xf32>
    %260 = vector.shape_cast %259 : vector<1x80x20xf32> to vector<80x20xf32>
    %cst_224 = arith.constant dense<0.000000e+00> : vector<64x20xf32>
    %261 = tpu.matmul %258, %260, %cst_224 {dimension_numbers = #tpu.dot_dimension_numbers<[1], [0], [0], [1], [0, 0, 1, 1], [], []>} : vector<64x80xf32>, vector<80x20xf32>, vector<64x20xf32> -> vector<64x20xf32>
    %262 = arith.addf %257, %261 : vector<64x20xf32>
    %c576 = arith.constant 576 : index
    %c0_225 = arith.constant 0 : index
    %263 = vector.load %arg11[%c576, %c0_225] : memref<704x80xf32, #tpu.memory_space<vmem>>, vector<64x80xf32>
    %c3_226 = arith.constant 3 : index
    %c0_227 = arith.constant 0 : index
    %c0_228 = arith.constant 0 : index
    %264 = vector.load %arg4[%c3_226, %c0_227, %c0_228] : memref<4x80x20xf32, #tpu.memory_space<vmem>>, vector<1x80x20xf32>
    %265 = vector.shape_cast %264 : vector<1x80x20xf32> to vector<80x20xf32>
    %cst_229 = arith.constant dense<0.000000e+00> : vector<64x20xf32>
    %266 = tpu.matmul %263, %265, %cst_229 {dimension_numbers = #tpu.dot_dimension_numbers<[1], [0], [0], [1], [0, 0, 1, 1], [], []>} : vector<64x80xf32>, vector<80x20xf32>, vector<64x20xf32> -> vector<64x20xf32>
    %267 = arith.addf %262, %266 : vector<64x20xf32>
    %268 = vector.broadcast %22 : vector<1x20xf32> to vector<64x20xf32>
    %269 = arith.addf %267, %268 : vector<64x20xf32>
    %cst_230 = arith.constant 0.000000e+00 : f32
    %270 = vector.broadcast %cst_230 : f32 to vector<64x20xf32>
    %271 = arith.maximumf %269, %270 : vector<64x20xf32>
    %c448_231 = arith.constant 448 : index
    %c0_232 = arith.constant 0 : index
    %272 = vector.load %arg11[%c448_231, %c0_232] : memref<704x80xf32, #tpu.memory_space<vmem>>, vector<64x80xf32>
    %c0_233 = arith.constant 0 : index
    %c0_234 = arith.constant 0 : index
    %c0_235 = arith.constant 0 : index
    %273 = vector.load %arg4[%c0_233, %c0_234, %c0_235] : memref<4x80x20xf32, #tpu.memory_space<vmem>>, vector<1x80x20xf32>
    %274 = vector.shape_cast %273 : vector<1x80x20xf32> to vector<80x20xf32>
    %cst_236 = arith.constant dense<0.000000e+00> : vector<64x20xf32>
    %275 = tpu.matmul %272, %274, %cst_236 {dimension_numbers = #tpu.dot_dimension_numbers<[1], [0], [0], [1], [0, 0, 1, 1], [], []>} : vector<64x80xf32>, vector<80x20xf32>, vector<64x20xf32> -> vector<64x20xf32>
    %c512_237 = arith.constant 512 : index
    %c0_238 = arith.constant 0 : index
    %276 = vector.load %arg11[%c512_237, %c0_238] : memref<704x80xf32, #tpu.memory_space<vmem>>, vector<64x80xf32>
    %c1_239 = arith.constant 1 : index
    %c0_240 = arith.constant 0 : index
    %c0_241 = arith.constant 0 : index
    %277 = vector.load %arg4[%c1_239, %c0_240, %c0_241] : memref<4x80x20xf32, #tpu.memory_space<vmem>>, vector<1x80x20xf32>
    %278 = vector.shape_cast %277 : vector<1x80x20xf32> to vector<80x20xf32>
    %cst_242 = arith.constant dense<0.000000e+00> : vector<64x20xf32>
    %279 = tpu.matmul %276, %278, %cst_242 {dimension_numbers = #tpu.dot_dimension_numbers<[1], [0], [0], [1], [0, 0, 1, 1], [], []>} : vector<64x80xf32>, vector<80x20xf32>, vector<64x20xf32> -> vector<64x20xf32>
    %280 = arith.addf %275, %279 : vector<64x20xf32>
    %c576_243 = arith.constant 576 : index
    %c0_244 = arith.constant 0 : index
    %281 = vector.load %arg11[%c576_243, %c0_244] : memref<704x80xf32, #tpu.memory_space<vmem>>, vector<64x80xf32>
    %c2_245 = arith.constant 2 : index
    %c0_246 = arith.constant 0 : index
    %c0_247 = arith.constant 0 : index
    %282 = vector.load %arg4[%c2_245, %c0_246, %c0_247] : memref<4x80x20xf32, #tpu.memory_space<vmem>>, vector<1x80x20xf32>
    %283 = vector.shape_cast %282 : vector<1x80x20xf32> to vector<80x20xf32>
    %cst_248 = arith.constant dense<0.000000e+00> : vector<64x20xf32>
    %284 = tpu.matmul %281, %283, %cst_248 {dimension_numbers = #tpu.dot_dimension_numbers<[1], [0], [0], [1], [0, 0, 1, 1], [], []>} : vector<64x80xf32>, vector<80x20xf32>, vector<64x20xf32> -> vector<64x20xf32>
    %285 = arith.addf %280, %284 : vector<64x20xf32>
    %c640 = arith.constant 640 : index
    %c0_249 = arith.constant 0 : index
    %286 = vector.load %arg11[%c640, %c0_249] : memref<704x80xf32, #tpu.memory_space<vmem>>, vector<64x80xf32>
    %c3_250 = arith.constant 3 : index
    %c0_251 = arith.constant 0 : index
    %c0_252 = arith.constant 0 : index
    %287 = vector.load %arg4[%c3_250, %c0_251, %c0_252] : memref<4x80x20xf32, #tpu.memory_space<vmem>>, vector<1x80x20xf32>
    %288 = vector.shape_cast %287 : vector<1x80x20xf32> to vector<80x20xf32>
    %cst_253 = arith.constant dense<0.000000e+00> : vector<64x20xf32>
    %289 = tpu.matmul %286, %288, %cst_253 {dimension_numbers = #tpu.dot_dimension_numbers<[1], [0], [0], [1], [0, 0, 1, 1], [], []>} : vector<64x80xf32>, vector<80x20xf32>, vector<64x20xf32> -> vector<64x20xf32>
    %290 = arith.addf %285, %289 : vector<64x20xf32>
    %291 = vector.broadcast %22 : vector<1x20xf32> to vector<64x20xf32>
    %292 = arith.addf %290, %291 : vector<64x20xf32>
    %cst_254 = arith.constant 0.000000e+00 : f32
    %293 = vector.broadcast %cst_254 : f32 to vector<64x20xf32>
    %294 = arith.maximumf %292, %293 : vector<64x20xf32>
    %295 = arith.maximumf %271, %294 : vector<64x20xf32>
    %296 = vector.extract_strided_slice %295 {offsets = [0, 0], sizes = [8, 20], strides = [1, 1]} : vector<64x20xf32> to vector<8x20xf32>
    %297 = vector.extract_strided_slice %295 {offsets = [8, 0], sizes = [8, 20], strides = [1, 1]} : vector<64x20xf32> to vector<8x20xf32>
    %298 = arith.maximumf %296, %297 : vector<8x20xf32>
    %c12 = arith.constant 12 : index
    %c0_255 = arith.constant 0 : index
    %c0_256 = arith.constant 0 : index
    %299 = vector.load %arg6[%c12, %c0_255, %c0_256] : memref<16x20x60xf32, #tpu.memory_space<vmem>>, vector<1x20x60xf32>
    %300 = vector.shape_cast %299 : vector<1x20x60xf32> to vector<20x60xf32>
    %cst_257 = arith.constant dense<0.000000e+00> : vector<8x60xf32>
    %301 = tpu.matmul %298, %300, %cst_257 {dimension_numbers = #tpu.dot_dimension_numbers<[1], [0], [0], [1], [0, 0, 1, 1], [], []>} : vector<8x20xf32>, vector<20x60xf32>, vector<8x60xf32> -> vector<8x60xf32>
    %302 = arith.addf %248, %301 : vector<8x60xf32>
    %303 = vector.extract_strided_slice %295 {offsets = [16, 0], sizes = [8, 20], strides = [1, 1]} : vector<64x20xf32> to vector<8x20xf32>
    %304 = vector.extract_strided_slice %295 {offsets = [24, 0], sizes = [8, 20], strides = [1, 1]} : vector<64x20xf32> to vector<8x20xf32>
    %305 = arith.maximumf %303, %304 : vector<8x20xf32>
    %c13 = arith.constant 13 : index
    %c0_258 = arith.constant 0 : index
    %c0_259 = arith.constant 0 : index
    %306 = vector.load %arg6[%c13, %c0_258, %c0_259] : memref<16x20x60xf32, #tpu.memory_space<vmem>>, vector<1x20x60xf32>
    %307 = vector.shape_cast %306 : vector<1x20x60xf32> to vector<20x60xf32>
    %cst_260 = arith.constant dense<0.000000e+00> : vector<8x60xf32>
    %308 = tpu.matmul %305, %307, %cst_260 {dimension_numbers = #tpu.dot_dimension_numbers<[1], [0], [0], [1], [0, 0, 1, 1], [], []>} : vector<8x20xf32>, vector<20x60xf32>, vector<8x60xf32> -> vector<8x60xf32>
    %309 = arith.addf %302, %308 : vector<8x60xf32>
    %310 = vector.extract_strided_slice %295 {offsets = [32, 0], sizes = [8, 20], strides = [1, 1]} : vector<64x20xf32> to vector<8x20xf32>
    %311 = vector.extract_strided_slice %295 {offsets = [40, 0], sizes = [8, 20], strides = [1, 1]} : vector<64x20xf32> to vector<8x20xf32>
    %312 = arith.maximumf %310, %311 : vector<8x20xf32>
    %c14 = arith.constant 14 : index
    %c0_261 = arith.constant 0 : index
    %c0_262 = arith.constant 0 : index
    %313 = vector.load %arg6[%c14, %c0_261, %c0_262] : memref<16x20x60xf32, #tpu.memory_space<vmem>>, vector<1x20x60xf32>
    %314 = vector.shape_cast %313 : vector<1x20x60xf32> to vector<20x60xf32>
    %cst_263 = arith.constant dense<0.000000e+00> : vector<8x60xf32>
    %315 = tpu.matmul %312, %314, %cst_263 {dimension_numbers = #tpu.dot_dimension_numbers<[1], [0], [0], [1], [0, 0, 1, 1], [], []>} : vector<8x20xf32>, vector<20x60xf32>, vector<8x60xf32> -> vector<8x60xf32>
    %316 = arith.addf %309, %315 : vector<8x60xf32>
    %317 = vector.extract_strided_slice %295 {offsets = [48, 0], sizes = [8, 20], strides = [1, 1]} : vector<64x20xf32> to vector<8x20xf32>
    %318 = vector.extract_strided_slice %295 {offsets = [56, 0], sizes = [8, 20], strides = [1, 1]} : vector<64x20xf32> to vector<8x20xf32>
    %319 = arith.maximumf %317, %318 : vector<8x20xf32>
    %c15 = arith.constant 15 : index
    %c0_264 = arith.constant 0 : index
    %c0_265 = arith.constant 0 : index
    %320 = vector.load %arg6[%c15, %c0_264, %c0_265] : memref<16x20x60xf32, #tpu.memory_space<vmem>>, vector<1x20x60xf32>
    %321 = vector.shape_cast %320 : vector<1x20x60xf32> to vector<20x60xf32>
    %cst_266 = arith.constant dense<0.000000e+00> : vector<8x60xf32>
    %322 = tpu.matmul %319, %321, %cst_266 {dimension_numbers = #tpu.dot_dimension_numbers<[1], [0], [0], [1], [0, 0, 1, 1], [], []>} : vector<8x20xf32>, vector<20x60xf32>, vector<8x60xf32> -> vector<8x60xf32>
    %323 = arith.addf %316, %322 : vector<8x60xf32>
    %c0_267 = arith.constant 0 : index
    %c0_268 = arith.constant 0 : index
    %324 = vector.load %arg7[%c0_267, %c0_268] : memref<1x60xf32, #tpu.memory_space<vmem>>, vector<1x60xf32>
    %325 = vector.broadcast %324 : vector<1x60xf32> to vector<8x60xf32>
    %326 = arith.addf %323, %325 : vector<8x60xf32>
    %cst_269 = arith.constant 0.000000e+00 : f32
    %327 = vector.broadcast %cst_269 : f32 to vector<8x60xf32>
    %328 = arith.maximumf %326, %327 : vector<8x60xf32>
    %c0_270 = arith.constant 0 : index
    %c0_271 = arith.constant 0 : index
    %329 = vector.load %arg8[%c0_270, %c0_271] : memref<60x10xf32, #tpu.memory_space<vmem>>, vector<60x10xf32>
    %cst_272 = arith.constant dense<0.000000e+00> : vector<8x10xf32>
    %330 = tpu.matmul %328, %329, %cst_272 {dimension_numbers = #tpu.dot_dimension_numbers<[1], [0], [0], [1], [0, 0, 1, 1], [], []>} : vector<8x60xf32>, vector<60x10xf32>, vector<8x10xf32> -> vector<8x10xf32>
    %c0_273 = arith.constant 0 : index
    %c0_274 = arith.constant 0 : index
    %331 = vector.load %arg9[%c0_273, %c0_274] : memref<1x10xf32, #tpu.memory_space<vmem>>, vector<1x10xf32>
    %332 = vector.broadcast %331 : vector<1x10xf32> to vector<8x10xf32>
    %333 = arith.addf %330, %332 : vector<8x10xf32>
    %cst_275 = arith.constant dense<0xFF800000> : vector<8xf32>
    %334 = vector.multi_reduction <maximumf>, %333, %cst_275 [1] : vector<8x10xf32> to vector<8xf32>
    %335 = vector.shape_cast %334 : vector<8xf32> to vector<8x1xf32>
    %336 = vector.broadcast %335 : vector<8x1xf32> to vector<8x10xf32>
    %337 = arith.subf %333, %336 : vector<8x10xf32>
    %338 = math.exp %337 : vector<8x10xf32>
    %cst_276 = arith.constant dense<0.000000e+00> : vector<8xf32>
    %339 = vector.multi_reduction <add>, %338, %cst_276 [1] : vector<8x10xf32> to vector<8xf32>
    %340 = vector.shape_cast %339 : vector<8xf32> to vector<8x1xf32>
    %341 = math.log %340 : vector<8x1xf32>
    %342 = vector.broadcast %341 : vector<8x1xf32> to vector<8x10xf32>
    %343 = arith.subf %337, %342 : vector<8x10xf32>
    %c0_277 = arith.constant 0 : index
    %c0_278 = arith.constant 0 : index
    %c0_279 = arith.constant 0 : index
    %344 = vector.load %arg10[%c0_277, %c0_278, %c0_279] : memref<1x8x10xf32, #tpu.memory_space<vmem>>, vector<1x8x10xf32>
    %345 = vector.shape_cast %344 : vector<1x8x10xf32> to vector<8x10xf32>
    %346 = vector.shape_cast %343 : vector<8x10xf32> to vector<1x8x10xf32>
    tpu.vector_store %arg10[%c0_277, %c0_278, %c0_279], %346 {strides = array<i32>} : memref<1x8x10xf32, #tpu.memory_space<vmem>>, vector<1x8x10xf32>,
    return
  }
  func.func @transform_0(%arg0: i32) -> (i32, i32, i32, i32) {
    %c0_i32 = arith.constant 0 : i32
    %c0_i32_0 = arith.constant 0 : i32
    %c0_i32_1 = arith.constant 0 : i32
    %c0_i32_2 = arith.constant 0 : i32
    return %arg0, %c0_i32, %c0_i32_0, %c0_i32_1 : i32, i32, i32, i32
  }
  func.func @transform_1(%arg0: i32) -> (i32, i32) {
    %c0_i32 = arith.constant 0 : i32
    %c0_i32_0 = arith.constant 0 : i32
    %c0_i32_1 = arith.constant 0 : i32
    return %c0_i32, %c0_i32_0 : i32, i32
  }
  func.func @transform_2(%arg0: i32) -> (i32, i32) {
    %c0_i32 = arith.constant 0 : i32
    %c0_i32_0 = arith.constant 0 : i32
    %c0_i32_1 = arith.constant 0 : i32
    return %c0_i32, %c0_i32_0 : i32, i32
  }
  func.func @transform_3(%arg0: i32) -> (i32, i32, i32) {
    %c0_i32 = arith.constant 0 : i32
    %c0_i32_0 = arith.constant 0 : i32
    %c0_i32_1 = arith.constant 0 : i32
    %c0_i32_2 = arith.constant 0 : i32
    return %c0_i32, %c0_i32_0, %c0_i32_1 : i32, i32, i32
  }
  func.func @transform_4(%arg0: i32) -> (i32, i32) {
    %c0_i32 = arith.constant 0 : i32
    %c0_i32_0 = arith.constant 0 : i32
    %c0_i32_1 = arith.constant 0 : i32
    return %c0_i32, %c0_i32_0 : i32, i32
  }
  func.func @transform_5(%arg0: i32) -> (i32, i32, i32) {
    %c0_i32 = arith.constant 0 : i32
    %c0_i32_0 = arith.constant 0 : i32
    %c0_i32_1 = arith.constant 0 : i32
    %c0_i32_2 = arith.constant 0 : i32
    return %c0_i32, %c0_i32_0, %c0_i32_1 : i32, i32, i32
  }
  func.func @transform_6(%arg0: i32) -> (i32, i32) {
    %c0_i32 = arith.constant 0 : i32
    %c0_i32_0 = arith.constant 0 : i32
    %c0_i32_1 = arith.constant 0 : i32
    return %c0_i32, %c0_i32_0 : i32, i32
  }
  func.func @transform_7(%arg0: i32) -> (i32, i32) {
    %c0_i32 = arith.constant 0 : i32
    %c0_i32_0 = arith.constant 0 : i32
    %c0_i32_1 = arith.constant 0 : i32
    return %c0_i32, %c0_i32_0 : i32, i32
  }
  func.func @transform_8(%arg0: i32) -> (i32, i32) {
    %c0_i32 = arith.constant 0 : i32
    %c0_i32_0 = arith.constant 0 : i32
    %c0_i32_1 = arith.constant 0 : i32
    return %c0_i32, %c0_i32_0 : i32, i32
  }
  func.func @transform_9(%arg0: i32) -> (i32, i32, i32) {
    %c0_i32 = arith.constant 0 : i32
    %c0_i32_0 = arith.constant 0 : i32
    %c0_i32_1 = arith.constant 0 : i32
    return %arg0, %c0_i32, %c0_i32_0 : i32, i32, i32
  }
}

</mosaic_0001>

<llo_original>
// kernel: the_net_forward.1
$region0: #{the_net_forward.1}
  #allocation0 [shape = 'u32[]', space=smem, size = 0x4, offset = 0x4, fixed_abs, tag = 'smem constant byte address 0x4 - core index']
  #allocation1 [shape = 'u32[144,128]{1,0:T(1,128)}', space=vmem, size = 0x12000, scoped, tag = 'internal scratch']
  #allocation2 [shape = 'f32[704,80]{1,0:T(8,128)}', space=vmem, size = 0x58000, scoped, tag = 'scratch operand']
  %s0 = inlined_call_operand.vmem [shape: f32[1,4,704,64], index: 0, kind: input, shape index: {}]
  %s1 = inlined_call_operand.vmem [shape: f32[64,80], index: 1, kind: input, shape index: {}]
  %s2 = inlined_call_operand.vmem [shape: f32[1,80], index: 2, kind: input, shape index: {}]
  %s3 = inlined_call_operand.vmem [shape: f32[4,80,20], index: 3, kind: input, shape index: {}]
  %s4 = inlined_call_operand.vmem [shape: f32[1,20], index: 4, kind: input, shape index: {}]
  %s5 = inlined_call_operand.vmem [shape: f32[16,20,60], index: 5, kind: input, shape index: {}]
  %s6 = inlined_call_operand.vmem [shape: f32[1,60], index: 6, kind: input, shape index: {}]
  %s7 = inlined_call_operand.vmem [shape: f32[60,10], index: 7, kind: input, shape index: {}]
  %s8 = inlined_call_operand.vmem [shape: f32[1,10], index: 8, kind: input, shape index: {}]
  %s9 = inlined_call_operand.vmem [shape: f32[1,8,10], index: 9, kind: output, shape index: {}]
  %s10 = sld [smem:[#allocation0]]
  $region46: #{the_net_forward.1} parent=0
    _
  %s12 = ssub.s32 1, %s10
  %s13 = scalar_select 0, %s12, %s10
  // Predicated region
  $region2: #{the_net_forward.1} parent=0 // pred_check
    _
  $region3: #{the_net_forward.1} parent=0 // pred_check_branch
    %15 = sbr.rel (0) target = $region5
  $region4: #{the_net_forward.1} parent=0 // pred_region
    _
  $region5: #{the_net_forward.1} parent=0 // pred_fallthru
    _
  // Predicated region
  $region6: #{the_net_forward.1} parent=0 // pred_check
    _
  $region7: #{the_net_forward.1} parent=0 // pred_check_branch
    %17 = sbr.rel (0) target = $region9
  $region8: #{the_net_forward.1} parent=0 // pred_region
    _
  $region9: #{the_net_forward.1} parent=0 // pred_fallthru
    _
  // Predicated region
  $region10: #{the_net_forward.1} parent=0 // pred_check
    _
  $region11: #{the_net_forward.1} parent=0 // pred_check_branch
    %19 = sbr.rel (0) target = $region13
  $region12: #{the_net_forward.1} parent=0 // pred_region
    _
  $region13: #{the_net_forward.1} parent=0 // pred_fallthru
    _
  // Predicated region
  $region14: #{the_net_forward.1} parent=0 // pred_check
    _
  $region15: #{the_net_forward.1} parent=0 // pred_check_branch
    %21 = sbr.rel (0) target = $region17
  $region16: #{the_net_forward.1} parent=0 // pred_region
    _
  $region17: #{the_net_forward.1} parent=0 // pred_fallthru
    _
  // Predicated region
  $region18: #{the_net_forward.1} parent=0 // pred_check
    _
  $region19: #{the_net_forward.1} parent=0 // pred_check_branch
    %23 = sbr.rel (0) target = $region21
  $region20: #{the_net_forward.1} parent=0 // pred_region
    _
  $region21: #{the_net_forward.1} parent=0 // pred_fallthru
    _
  // Predicated region
  $region22: #{the_net_forward.1} parent=0 // pred_check
    _
  $region23: #{the_net_forward.1} parent=0 // pred_check_branch
    %25 = sbr.rel (0) target = $region25
  $region24: #{the_net_forward.1} parent=0 // pred_region
    _
  $region25: #{the_net_forward.1} parent=0 // pred_fallthru
    _
  // Predicated region
  $region26: #{the_net_forward.1} parent=0 // pred_check
    _
  $region27: #{the_net_forward.1} parent=0 // pred_check_branch
    %27 = sbr.rel (0) target = $region29
  $region28: #{the_net_forward.1} parent=0 // pred_region
    _
  $region29: #{the_net_forward.1} parent=0 // pred_fallthru
    _
  // Predicated region
  $region30: #{the_net_forward.1} parent=0 // pred_check
    _
  $region31: #{the_net_forward.1} parent=0 // pred_check_branch
    %29 = sbr.rel (0) target = $region33
  $region32: #{the_net_forward.1} parent=0 // pred_region
    _
  $region33: #{the_net_forward.1} parent=0 // pred_fallthru
    _
  // Predicated region
  $region34: #{the_net_forward.1} parent=0 // pred_check
    _
  $region35: #{the_net_forward.1} parent=0 // pred_check_branch
    %31 = sbr.rel (0) target = $region37
  $region36: #{the_net_forward.1} parent=0 // pred_region
    _
  $region37: #{the_net_forward.1} parent=0 // pred_fallthru
    _
  %v32 = vld [vmem:[%s1] sm:$0xff]
  %v33 = vld [vmem:[%s1 + $0x8] sm:$0xff]
  %v34 = vld [vmem:[%s1 + $0x10] sm:$0xff]
  %v35 = vld [vmem:[%s1 + $0x18] sm:$0xff]
  %v36 = vld [vmem:[%s1 + $0x20] sm:$0xff]
  %v37 = vld [vmem:[%s1 + $0x28] sm:$0xff]
  %v38 = vld [vmem:[%s1 + $0x30] sm:$0xff]
  %v39 = vld [vmem:[%s1 + $0x38] sm:$0xff]
  %v40 = vld [vmem:[%s0] sm:$0xff]
  %v41 = vld [vmem:[%s0 + $0x8] sm:$0xff]
  %v42 = vld [vmem:[%s0 + $0x10] sm:$0xff]
  %v43 = vld [vmem:[%s0 + $0x18] sm:$0xff]
  %v44 = vld [vmem:[%s0 + $0x20] sm:$0xff]
  %v45 = vld [vmem:[%s0 + $0x28] sm:$0xff]
  %v46 = vld [vmem:[%s0 + $0x30] sm:$0xff]
  %v47 = vld [vmem:[%s0 + $0x38] sm:$0xff]
  %v48 = vld [vmem:[%s0 + $0x40] sm:$0xff]
  %v49 = vld [vmem:[%s0 + $0x48] sm:$0xff]
  %v50 = vld [vmem:[%s0 + $0x50] sm:$0xff]
  %v51 = vld [vmem:[%s0 + $0x58] sm:$0xff]
  %v52 = vld [vmem:[%s0 + $0x60] sm:$0xff]
  %v53 = vld [vmem:[%s0 + $0x68] sm:$0xff]
  %v54 = vld [vmem:[%s0 + $0x70] sm:$0xff]
  %v55 = vld [vmem:[%s0 + $0x78] sm:$0xff]
  %v56 = vld [vmem:[%s0 + $0x80] sm:$0xff]
  %v57 = vld [vmem:[%s0 + $0x88] sm:$0xff]
  %v58 = vld [vmem:[%s0 + $0x90] sm:$0xff]
  %v59 = vld [vmem:[%s0 + $0x98] sm:$0xff]
  %v60 = vld [vmem:[%s0 + $0xa0] sm:$0xff]
  %v61 = vld [vmem:[%s0 + $0xa8] sm:$0xff]
  %v62 = vld [vmem:[%s0 + $0xb0] sm:$0xff]
  %v63 = vld [vmem:[%s0 + $0xb8] sm:$0xff]
  %v64 = vld [vmem:[%s0 + $0xc0] sm:$0xff]
  %v65 = vld [vmem:[%s0 + $0xc8] sm:$0xff]
  %v66 = vld [vmem:[%s0 + $0xd0] sm:$0xff]
  %v67 = vld [vmem:[%s0 + $0xd8] sm:$0xff]
  %v68 = vld [vmem:[%s0 + $0xe0] sm:$0xff]
  %v69 = vld [vmem:[%s0 + $0xe8] sm:$0xff]
  %v70 = vld [vmem:[%s0 + $0xf0] sm:$0xff]
  %v71 = vld [vmem:[%s0 + $0xf8] sm:$0xff]
  %v72 = vld [vmem:[%s0 + $0x100] sm:$0xff]
  %v73 = vld [vmem:[%s0 + $0x108] sm:$0xff]
  %v74 = vld [vmem:[%s0 + $0x110] sm:$0xff]
  %v75 = vld [vmem:[%s0 + $0x118] sm:$0xff]
  %v76 = vld [vmem:[%s0 + $0x120] sm:$0xff]
  %v77 = vld [vmem:[%s0 + $0x128] sm:$0xff]
  %v78 = vld [vmem:[%s0 + $0x130] sm:$0xff]
  %v79 = vld [vmem:[%s0 + $0x138] sm:$0xff]
  %v80 = vld [vmem:[%s0 + $0x140] sm:$0xff]
  %v81 = vld [vmem:[%s0 + $0x148] sm:$0xff]
  %v82 = vld [vmem:[%s0 + $0x150] sm:$0xff]
  %v83 = vld [vmem:[%s0 + $0x158] sm:$0xff]
  %v84 = vld [vmem:[%s0 + $0x160] sm:$0xff]
  %v85 = vld [vmem:[%s0 + $0x168] sm:$0xff]
  %v86 = vld [vmem:[%s0 + $0x170] sm:$0xff]
  %v87 = vld [vmem:[%s0 + $0x178] sm:$0xff]
  %v88 = vld [vmem:[%s0 + $0x180] sm:$0xff]
  %v89 = vld [vmem:[%s0 + $0x188] sm:$0xff]
  %v90 = vld [vmem:[%s0 + $0x190] sm:$0xff]
  %v91 = vld [vmem:[%s0 + $0x198] sm:$0xff]
  %v92 = vld [vmem:[%s0 + $0x1a0] sm:$0xff]
  %v93 = vld [vmem:[%s0 + $0x1a8] sm:$0xff]
  %v94 = vld [vmem:[%s0 + $0x1b0] sm:$0xff]
  %v95 = vld [vmem:[%s0 + $0x1b8] sm:$0xff]
  %v96 = vld [vmem:[%s0 + $0x1c0] sm:$0xff]
  %v97 = vld [vmem:[%s0 + $0x1c8] sm:$0xff]
  %v98 = vld [vmem:[%s0 + $0x1d0] sm:$0xff]
  %v99 = vld [vmem:[%s0 + $0x1d8] sm:$0xff]
  %v100 = vld [vmem:[%s0 + $0x1e0] sm:$0xff]
  %v101 = vld [vmem:[%s0 + $0x1e8] sm:$0xff]
  %v102 = vld [vmem:[%s0 + $0x1f0] sm:$0xff]
  %v103 = vld [vmem:[%s0 + $0x1f8] sm:$0xff]
  %v104 = vld [vmem:[%s0 + $0x200] sm:$0xff]
  %v105 = vld [vmem:[%s0 + $0x208] sm:$0xff]
  %v106 = vld [vmem:[%s0 + $0x210] sm:$0xff]
  %v107 = vld [vmem:[%s0 + $0x218] sm:$0xff]
  %v108 = vld [vmem:[%s0 + $0x220] sm:$0xff]
  %v109 = vld [vmem:[%s0 + $0x228] sm:$0xff]
  %v110 = vld [vmem:[%s0 + $0x230] sm:$0xff]
  %v111 = vld [vmem:[%s0 + $0x238] sm:$0xff]
  %v112 = vld [vmem:[%s0 + $0x240] sm:$0xff]
  %v113 = vld [vmem:[%s0 + $0x248] sm:$0xff]
  %v114 = vld [vmem:[%s0 + $0x250] sm:$0xff]
  %v115 = vld [vmem:[%s0 + $0x258] sm:$0xff]
  %v116 = vld [vmem:[%s0 + $0x260] sm:$0xff]
  %v117 = vld [vmem:[%s0 + $0x268] sm:$0xff]
  %v118 = vld [vmem:[%s0 + $0x270] sm:$0xff]
  %v119 = vld [vmem:[%s0 + $0x278] sm:$0xff]
  %v120 = vld [vmem:[%s0 + $0x280] sm:$0xff]
  %v121 = vld [vmem:[%s0 + $0x288] sm:$0xff]
  %v122 = vld [vmem:[%s0 + $0x290] sm:$0xff]
  %v123 = vld [vmem:[%s0 + $0x298] sm:$0xff]
  %v124 = vld [vmem:[%s0 + $0x2a0] sm:$0xff]
  %v125 = vld [vmem:[%s0 + $0x2a8] sm:$0xff]
  %v126 = vld [vmem:[%s0 + $0x2b0] sm:$0xff]
  %v127 = vld [vmem:[%s0 + $0x2b8] sm:$0xff]
  %vm128 = vcmask 523264
  %v130 = vsel %vm128, %v40, 0
  %v133 = vsel %vm128, %v41, 0
  %v136 = vsel %vm128, %v42, 0
  %v139 = vsel %vm128, %v43, 0
  %v142 = vsel %vm128, %v44, 0
  %v145 = vsel %vm128, %v45, 0
  %v148 = vsel %vm128, %v46, 0
  %v151 = vsel %vm128, %v47, 0
  %v154 = vsel %vm128, %v48, 0
  %v157 = vsel %vm128, %v49, 0
  %v160 = vsel %vm128, %v50, 0
  %v163 = vsel %vm128, %v51, 0
  %v166 = vsel %vm128, %v52, 0
  %v169 = vsel %vm128, %v53, 0
  %v172 = vsel %vm128, %v54, 0
  %v175 = vsel %vm128, %v55, 0
  %v178 = vsel %vm128, %v56, 0
  %v181 = vsel %vm128, %v57, 0
  %v184 = vsel %vm128, %v58, 0
  %v187 = vsel %vm128, %v59, 0
  %v190 = vsel %vm128, %v60, 0
  %v193 = vsel %vm128, %v61, 0
  %v196 = vsel %vm128, %v62, 0
  %v199 = vsel %vm128, %v63, 0
  %v202 = vsel %vm128, %v64, 0
  %v205 = vsel %vm128, %v65, 0
  %v208 = vsel %vm128, %v66, 0
  %v211 = vsel %vm128, %v67, 0
  %v214 = vsel %vm128, %v68, 0
  %v217 = vsel %vm128, %v69, 0
  %v220 = vsel %vm128, %v70, 0
  %v223 = vsel %vm128, %v71, 0
  %v226 = vsel %vm128, %v72, 0
  %v229 = vsel %vm128, %v73, 0
  %v232 = vsel %vm128, %v74, 0
  %v235 = vsel %vm128, %v75, 0
  %v238 = vsel %vm128, %v76, 0
  %v241 = vsel %vm128, %v77, 0
  %v244 = vsel %vm128, %v78, 0
  %v247 = vsel %vm128, %v79, 0
  %v250 = vsel %vm128, %v80, 0
  %v253 = vsel %vm128, %v81, 0
  %v256 = vsel %vm128, %v82, 0
  %v259 = vsel %vm128, %v83, 0
  %v262 = vsel %vm128, %v84, 0
  %v265 = vsel %vm128, %v85, 0
  %v268 = vsel %vm128, %v86, 0
  %v271 = vsel %vm128, %v87, 0
  %v274 = vsel %vm128, %v88, 0
  %v277 = vsel %vm128, %v89, 0
  %v280 = vsel %vm128, %v90, 0
  %v283 = vsel %vm128, %v91, 0
  %v286 = vsel %vm128, %v92, 0
  %v289 = vsel %vm128, %v93, 0
  %v292 = vsel %vm128, %v94, 0
  %v295 = vsel %vm128, %v95, 0
  %v298 = vsel %vm128, %v96, 0
  %v301 = vsel %vm128, %v97, 0
  %v304 = vsel %vm128, %v98, 0
  %v307 = vsel %vm128, %v99, 0
  %v310 = vsel %vm128, %v100, 0
  %v313 = vsel %vm128, %v101, 0
  %v316 = vsel %vm128, %v102, 0
  %v319 = vsel %vm128, %v103, 0
  %v322 = vsel %vm128, %v104, 0
  %v325 = vsel %vm128, %v105, 0
  %v328 = vsel %vm128, %v106, 0
  %v331 = vsel %vm128, %v107, 0
  %v334 = vsel %vm128, %v108, 0
  %v337 = vsel %vm128, %v109, 0
  %v340 = vsel %vm128, %v110, 0
  %v343 = vsel %vm128, %v111, 0
  %v346 = vsel %vm128, %v112, 0
  %v349 = vsel %vm128, %v113, 0
  %v352 = vsel %vm128, %v114, 0
  %v355 = vsel %vm128, %v115, 0
  %v358 = vsel %vm128, %v116, 0
  %v361 = vsel %vm128, %v117, 0
  %v364 = vsel %vm128, %v118, 0
  %v367 = vsel %vm128, %v119, 0
  %v370 = vsel %vm128, %v120, 0
  %v373 = vsel %vm128, %v121, 0
  %v376 = vsel %vm128, %v122, 0
  %v379 = vsel %vm128, %v123, 0
  %v382 = vsel %vm128, %v124, 0
  %v385 = vsel %vm128, %v125, 0
  %v388 = vsel %vm128, %v126, 0
  %v391 = vsel %vm128, %v127, 0
  %393 = vmatprep.subr.mxu0 0.0
  %394 = vmatpush1.msra.mxu0 %v32
  %395 = vmatprep.subr.mxu0 0.0
  %396 = vmatpush1.msra.mxu0 %v33
  %397 = vmatprep.subr.mxu0 0.0
  %398 = vmatpush1.msra.mxu0 %v34
  %399 = vmatprep.subr.mxu0 0.0
  %400 = vmatpush1.msra.mxu0 %v35
  %401 = vmatprep.subr.mxu0 0.0
  %402 = vmatpush1.msra.mxu0 %v36
  %403 = vmatprep.subr.mxu0 0.0
  %404 = vmatpush1.msra.mxu0 %v37
  %405 = vmatprep.subr.mxu0 0.0
  %406 = vmatpush1.msra.mxu0 %v38
  %407 = vmatprep.subr.mxu0 0.0
  %408 = vmatpush1.msra.mxu0 %v39
  %409 = vmatprep.subr.mxu0 0.0
  %410 = vmatpush1.msra.mxu0 0.0
  %411 = vmatprep.subr.mxu0 0.0
  %412 = vmatpush1.msra.mxu0 0.0
  %413 = vmatprep.subr.mxu0 0.0
  %414 = vmatpush1.msra.mxu0 0.0
  %415 = vmatprep.subr.mxu0 0.0
  %416 = vmatpush1.msra.mxu0 0.0
  %417 = vmatprep.subr.mxu0 0.0
  %418 = vmatpush1.msra.mxu0 0.0
  %419 = vmatprep.subr.mxu0 0.0
  %420 = vmatpush1.msra.mxu0 0.0
  %421 = vmatprep.subr.mxu0 0.0
  %422 = vmatpush1.msra.mxu0 0.0
  %423 = vmatprep.subr.mxu0 0.0
  %424 = vmatpush1.msra.mxu0 0.0
  %425 = vmatprep.subr.mxu0 0.0
  %426 = vmatpush1.msra.mxu0 0.0
  %427 = vmatprep.subr.mxu0 0.0
  %428 = vmatpush1.msra.mxu0 0.0
  %429 = vmatprep.subr.mxu0 0.0
  %430 = vmatpush1.msra.mxu0 0.0
  %431 = vmatprep.subr.mxu0 0.0
  %432 = vmatpush1.msra.mxu0 0.0
  %433 = vmatprep.subr.mxu0 0.0
  %434 = vmatpush1.msra.mxu0 0.0
  %435 = vmatprep.subr.mxu0 0.0
  %436 = vmatpush1.msra.mxu0 0.0
  %437 = vmatprep.subr.mxu0 0.0
  %438 = vmatpush1.msra.mxu0 0.0
  %439 = vmatprep.subr.mxu0 0.0
  %440 = vmatpush1.msra.mxu0 0.0
  %441 = vmatprep.subr.mxu0 0.0
  %442 = vmatpush1.msra.mxu0 0.0
  %443 = vmatprep.subr.mxu0 0.0
  %444 = vmatpush1.msra.mxu0 0.0
  %445 = vmatprep.subr.mxu0 0.0
  %446 = vmatpush1.msra.mxu0 0.0
  %447 = vmatprep.subr.mxu0 0.0
  %448 = vmatpush1.msra.mxu0 0.0
  %449 = vmatprep.subr.mxu0 0.0
  %450 = vmatpush1.msra.mxu0 0.0
  %451 = vmatprep.subr.mxu0 0.0
  %452 = vmatpush1.msra.mxu0 0.0
  %453 = vmatprep.subr.mxu0 0.0
  %454 = vmatpush1.msra.mxu0 0.0
  %455 = vmatprep.subr.mxu0 0.0
  %456 = vmatpush1.msra.mxu0 0.0
  %457 = vmatprep.mubr.f32.mxu0 0.0
  %458 = vmatmul.mubr.f32.gmra.mrb[0].mxu0 %v130
  %v459 = vpop.f32.mrb[0].mxu0
  %v460 = vadd.f32 0.0, %v459
  %v461 = vpop.f32.mrb[0].mxu0
  %462 = vmatprep.mubr.f32.mxu0 0.0
  %463 = vmatmul.mubr.f32.gmra.mrb[0].mxu0 %v133
  %v464 = vpop.f32.mrb[0].mxu0
  %v465 = vadd.f32 0.0, %v464
  %v466 = vpop.f32.mrb[0].mxu0
  %467 = vmatprep.mubr.f32.mxu0 0.0
  %468 = vmatmul.mubr.f32.gmra.mrb[0].mxu0 %v136
  %v469 = vpop.f32.mrb[0].mxu0
  %v470 = vadd.f32 0.0, %v469
  %v471 = vpop.f32.mrb[0].mxu0
  %472 = vmatprep.mubr.f32.mxu0 0.0
  %473 = vmatmul.mubr.f32.gmra.mrb[0].mxu0 %v139
  %v474 = vpop.f32.mrb[0].mxu0
  %v475 = vadd.f32 0.0, %v474
  %v476 = vpop.f32.mrb[0].mxu0
  %477 = vmatprep.mubr.f32.mxu0 0.0
  %478 = vmatmul.mubr.f32.gmra.mrb[0].mxu0 %v142
  %v479 = vpop.f32.mrb[0].mxu0
  %v480 = vadd.f32 0.0, %v479
  %v481 = vpop.f32.mrb[0].mxu0
  %482 = vmatprep.mubr.f32.mxu0 0.0
  %483 = vmatmul.mubr.f32.gmra.mrb[0].mxu0 %v145
  %v484 = vpop.f32.mrb[0].mxu0
  %v485 = vadd.f32 0.0, %v484
  %v486 = vpop.f32.mrb[0].mxu0
  %487 = vmatprep.mubr.f32.mxu0 0.0
  %488 = vmatmul.mubr.f32.gmra.mrb[0].mxu0 %v148
  %v489 = vpop.f32.mrb[0].mxu0
  %v490 = vadd.f32 0.0, %v489
  %v491 = vpop.f32.mrb[0].mxu0
  %492 = vmatprep.mubr.f32.mxu0 0.0
  %493 = vmatmul.mubr.f32.gmra.mrb[0].mxu0 %v151
  %v494 = vpop.f32.mrb[0].mxu0
  %v495 = vadd.f32 0.0, %v494
  %v496 = vpop.f32.mrb[0].mxu0
  %497 = vmatprep.mubr.f32.mxu0 0.0
  %498 = vmatmul.mubr.f32.gmra.mrb[0].mxu0 %v154
  %v499 = vpop.f32.mrb[0].mxu0
  %v500 = vadd.f32 0.0, %v499
  %v501 = vpop.f32.mrb[0].mxu0
  %502 = vmatprep.mubr.f32.mxu0 0.0
  %503 = vmatmul.mubr.f32.gmra.mrb[0].mxu0 %v157
  %v504 = vpop.f32.mrb[0].mxu0
  %v505 = vadd.f32 0.0, %v504
  %v506 = vpop.f32.mrb[0].mxu0
  %507 = vmatprep.mubr.f32.mxu0 0.0
  %508 = vmatmul.mubr.f32.gmra.mrb[0].mxu0 %v160
  %v509 = vpop.f32.mrb[0].mxu0
  %v510 = vadd.f32 0.0, %v509
  %v511 = vpop.f32.mrb[0].mxu0
  %512 = vmatprep.mubr.f32.mxu0 0.0
  %513 = vmatmul.mubr.f32.gmra.mrb[0].mxu0 %v163
  %v514 = vpop.f32.mrb[0].mxu0
  %v515 = vadd.f32 0.0, %v514
  %v516 = vpop.f32.mrb[0].mxu0
  %517 = vmatprep.mubr.f32.mxu0 0.0
  %518 = vmatmul.mubr.f32.gmra.mrb[0].mxu0 %v166
  %v519 = vpop.f32.mrb[0].mxu0
  %v520 = vadd.f32 0.0, %v519
  %v521 = vpop.f32.mrb[0].mxu0
  %522 = vmatprep.mubr.f32.mxu0 0.0
  %523 = vmatmul.mubr.f32.gmra.mrb[0].mxu0 %v169
  %v524 = vpop.f32.mrb[0].mxu0
  %v525 = vadd.f32 0.0, %v524
  %v526 = vpop.f32.mrb[0].mxu0
  %527 = vmatprep.mubr.f32.mxu0 0.0
  %528 = vmatmul.mubr.f32.gmra.mrb[0].mxu0 %v172
  %v529 = vpop.f32.mrb[0].mxu0
  %v530 = vadd.f32 0.0, %v529
  %v531 = vpop.f32.mrb[0].mxu0
  %532 = vmatprep.mubr.f32.mxu0 0.0
  %533 = vmatmul.mubr.f32.gmra.mrb[0].mxu0 %v175
  %v534 = vpop.f32.mrb[0].mxu0
  %v535 = vadd.f32 0.0, %v534
  %v536 = vpop.f32.mrb[0].mxu0
  %537 = vmatprep.mubr.f32.mxu0 0.0
  %538 = vmatmul.mubr.f32.gmra.mrb[0].mxu0 %v178
  %v539 = vpop.f32.mrb[0].mxu0
  %v540 = vadd.f32 0.0, %v539
  %v541 = vpop.f32.mrb[0].mxu0
  %542 = vmatprep.mubr.f32.mxu0 0.0
  %543 = vmatmul.mubr.f32.gmra.mrb[0].mxu0 %v181
  %v544 = vpop.f32.mrb[0].mxu0
  %v545 = vadd.f32 0.0, %v544
  %v546 = vpop.f32.mrb[0].mxu0
  %547 = vmatprep.mubr.f32.mxu0 0.0
  %548 = vmatmul.mubr.f32.gmra.mrb[0].mxu0 %v184
  %v549 = vpop.f32.mrb[0].mxu0
  %v550 = vadd.f32 0.0, %v549
  %v551 = vpop.f32.mrb[0].mxu0
  %552 = vmatprep.mubr.f32.mxu0 0.0
  %553 = vmatmul.mubr.f32.gmra.mrb[0].mxu0 %v187
  %v554 = vpop.f32.mrb[0].mxu0
  %v555 = vadd.f32 0.0, %v554
  %v556 = vpop.f32.mrb[0].mxu0
  %557 = vmatprep.mubr.f32.mxu0 0.0
  %558 = vmatmul.mubr.f32.gmra.mrb[0].mxu0 %v190
  %v559 = vpop.f32.mrb[0].mxu0
  %v560 = vadd.f32 0.0, %v559
  %v561 = vpop.f32.mrb[0].mxu0
  %562 = vmatprep.mubr.f32.mxu0 0.0
  %563 = vmatmul.mubr.f32.gmra.mrb[0].mxu0 %v193
  %v564 = vpop.f32.mrb[0].mxu0
  %v565 = vadd.f32 0.0, %v564
  %v566 = vpop.f32.mrb[0].mxu0
  %567 = vmatprep.mubr.f32.mxu0 0.0
  %568 = vmatmul.mubr.f32.gmra.mrb[0].mxu0 %v196
  %v569 = vpop.f32.mrb[0].mxu0
  %v570 = vadd.f32 0.0, %v569
  %v571 = vpop.f32.mrb[0].mxu0
  %572 = vmatprep.mubr.f32.mxu0 0.0
  %573 = vmatmul.mubr.f32.gmra.mrb[0].mxu0 %v199
  %v574 = vpop.f32.mrb[0].mxu0
  %v575 = vadd.f32 0.0, %v574
  %v576 = vpop.f32.mrb[0].mxu0
  %577 = vmatprep.mubr.f32.mxu0 0.0
  %578 = vmatmul.mubr.f32.gmra.mrb[0].mxu0 %v202
  %v579 = vpop.f32.mrb[0].mxu0
  %v580 = vadd.f32 0.0, %v579
  %v581 = vpop.f32.mrb[0].mxu0
  %582 = vmatprep.mubr.f32.mxu0 0.0
  %583 = vmatmul.mubr.f32.gmra.mrb[0].mxu0 %v205
  %v584 = vpop.f32.mrb[0].mxu0
  %v585 = vadd.f32 0.0, %v584
  %v586 = vpop.f32.mrb[0].mxu0
  %587 = vmatprep.mubr.f32.mxu0 0.0
  %588 = vmatmul.mubr.f32.gmra.mrb[0].mxu0 %v208
  %v589 = vpop.f32.mrb[0].mxu0
  %v590 = vadd.f32 0.0, %v589
  %v591 = vpop.f32.mrb[0].mxu0
  %592 = vmatprep.mubr.f32.mxu0 0.0
  %593 = vmatmul.mubr.f32.gmra.mrb[0].mxu0 %v211
  %v594 = vpop.f32.mrb[0].mxu0
  %v595 = vadd.f32 0.0, %v594
  %v596 = vpop.f32.mrb[0].mxu0
  %597 = vmatprep.mubr.f32.mxu0 0.0
  %598 = vmatmul.mubr.f32.gmra.mrb[0].mxu0 %v214
  %v599 = vpop.f32.mrb[0].mxu0
  %v600 = vadd.f32 0.0, %v599
  %v601 = vpop.f32.mrb[0].mxu0
  %602 = vmatprep.mubr.f32.mxu0 0.0
  %603 = vmatmul.mubr.f32.gmra.mrb[0].mxu0 %v217
  %v604 = vpop.f32.mrb[0].mxu0
  %v605 = vadd.f32 0.0, %v604
  %v606 = vpop.f32.mrb[0].mxu0
  %607 = vmatprep.mubr.f32.mxu0 0.0
  %608 = vmatmul.mubr.f32.gmra.mrb[0].mxu0 %v220
  %v609 = vpop.f32.mrb[0].mxu0
  %v610 = vadd.f32 0.0, %v609
  %v611 = vpop.f32.mrb[0].mxu0
  %612 = vmatprep.mubr.f32.mxu0 0.0
  %613 = vmatmul.mubr.f32.gmra.mrb[0].mxu0 %v223
  %v614 = vpop.f32.mrb[0].mxu0
  %v615 = vadd.f32 0.0, %v614
  %v616 = vpop.f32.mrb[0].mxu0
  %617 = vmatprep.mubr.f32.mxu0 0.0
  %618 = vmatmul.mubr.f32.gmra.mrb[0].mxu0 %v226
  %v619 = vpop.f32.mrb[0].mxu0
  %v620 = vadd.f32 0.0, %v619
  %v621 = vpop.f32.mrb[0].mxu0
  %622 = vmatprep.mubr.f32.mxu0 0.0
  %623 = vmatmul.mubr.f32.gmra.mrb[0].mxu0 %v229
  %v624 = vpop.f32.mrb[0].mxu0
  %v625 = vadd.f32 0.0, %v624
  %v626 = vpop.f32.mrb[0].mxu0
  %627 = vmatprep.mubr.f32.mxu0 0.0
  %628 = vmatmul.mubr.f32.gmra.mrb[0].mxu0 %v232
  %v629 = vpop.f32.mrb[0].mxu0
  %v630 = vadd.f32 0.0, %v629
  %v631 = vpop.f32.mrb[0].mxu0
  %632 = vmatprep.mubr.f32.mxu0 0.0
  %633 = vmatmul.mubr.f32.gmra.mrb[0].mxu0 %v235
  %v634 = vpop.f32.mrb[0].mxu0
  %v635 = vadd.f32 0.0, %v634
  %v636 = vpop.f32.mrb[0].mxu0
  %637 = vmatprep.mubr.f32.mxu0 0.0
  %638 = vmatmul.mubr.f32.gmra.mrb[0].mxu0 %v238
  %v639 = vpop.f32.mrb[0].mxu0
  %v640 = vadd.f32 0.0, %v639
  %v641 = vpop.f32.mrb[0].mxu0
  %642 = vmatprep.mubr.f32.mxu0 0.0
  %643 = vmatmul.mubr.f32.gmra.mrb[0].mxu0 %v241
  %v644 = vpop.f32.mrb[0].mxu0
  %v645 = vadd.f32 0.0, %v644
  %v646 = vpop.f32.mrb[0].mxu0
  %647 = vmatprep.mubr.f32.mxu0 0.0
  %648 = vmatmul.mubr.f32.gmra.mrb[0].mxu0 %v244
  %v649 = vpop.f32.mrb[0].mxu0
  %v650 = vadd.f32 0.0, %v649
  %v651 = vpop.f32.mrb[0].mxu0
  %652 = vmatprep.mubr.f32.mxu0 0.0
  %653 = vmatmul.mubr.f32.gmra.mrb[0].mxu0 %v247
  %v654 = vpop.f32.mrb[0].mxu0
  %v655 = vadd.f32 0.0, %v654
  %v656 = vpop.f32.mrb[0].mxu0
  %657 = vmatprep.mubr.f32.mxu0 0.0
  %658 = vmatmul.mubr.f32.gmra.mrb[0].mxu0 %v250
  %v659 = vpop.f32.mrb[0].mxu0
  %v660 = vadd.f32 0.0, %v659
  %v661 = vpop.f32.mrb[0].mxu0
  %662 = vmatprep.mubr.f32.mxu0 0.0
  %663 = vmatmul.mubr.f32.gmra.mrb[0].mxu0 %v253
  %v664 = vpop.f32.mrb[0].mxu0
  %v665 = vadd.f32 0.0, %v664
  %v666 = vpop.f32.mrb[0].mxu0
  %667 = vmatprep.mubr.f32.mxu0 0.0
  %668 = vmatmul.mubr.f32.gmra.mrb[0].mxu0 %v256
  %v669 = vpop.f32.mrb[0].mxu0
  %v670 = vadd.f32 0.0, %v669
  %v671 = vpop.f32.mrb[0].mxu0
  %672 = vmatprep.mubr.f32.mxu0 0.0
  %673 = vmatmul.mubr.f32.gmra.mrb[0].mxu0 %v259
  %v674 = vpop.f32.mrb[0].mxu0
  %v675 = vadd.f32 0.0, %v674
  %v676 = vpop.f32.mrb[0].mxu0
  %677 = vmatprep.mubr.f32.mxu0 0.0
  %678 = vmatmul.mubr.f32.gmra.mrb[0].mxu0 %v262
  %v679 = vpop.f32.mrb[0].mxu0
  %v680 = vadd.f32 0.0, %v679
  %v681 = vpop.f32.mrb[0].mxu0
  %682 = vmatprep.mubr.f32.mxu0 0.0
  %683 = vmatmul.mubr.f32.gmra.mrb[0].mxu0 %v265
  %v684 = vpop.f32.mrb[0].mxu0
  %v685 = vadd.f32 0.0, %v684
  %v686 = vpop.f32.mrb[0].mxu0
  %687 = vmatprep.mubr.f32.mxu0 0.0
  %688 = vmatmul.mubr.f32.gmra.mrb[0].mxu0 %v268
  %v689 = vpop.f32.mrb[0].mxu0
  %v690 = vadd.f32 0.0, %v689
  %v691 = vpop.f32.mrb[0].mxu0
  %692 = vmatprep.mubr.f32.mxu0 0.0
  %693 = vmatmul.mubr.f32.gmra.mrb[0].mxu0 %v271
  %v694 = vpop.f32.mrb[0].mxu0
  %v695 = vadd.f32 0.0, %v694
  %v696 = vpop.f32.mrb[0].mxu0
  %697 = vmatprep.mubr.f32.mxu0 0.0
  %698 = vmatmul.mubr.f32.gmra.mrb[0].mxu0 %v274
  %v699 = vpop.f32.mrb[0].mxu0
  %v700 = vadd.f32 0.0, %v699
  %v701 = vpop.f32.mrb[0].mxu0
  %702 = vmatprep.mubr.f32.mxu0 0.0
  %703 = vmatmul.mubr.f32.gmra.mrb[0].mxu0 %v277
  %v704 = vpop.f32.mrb[0].mxu0
  %v705 = vadd.f32 0.0, %v704
  %v706 = vpop.f32.mrb[0].mxu0
  %707 = vmatprep.mubr.f32.mxu0 0.0
  %708 = vmatmul.mubr.f32.gmra.mrb[0].mxu0 %v280
  %v709 = vpop.f32.mrb[0].mxu0
  %v710 = vadd.f32 0.0, %v709
  %v711 = vpop.f32.mrb[0].mxu0
  %712 = vmatprep.mubr.f32.mxu0 0.0
  %713 = vmatmul.mubr.f32.gmra.mrb[0].mxu0 %v283
  %v714 = vpop.f32.mrb[0].mxu0
  %v715 = vadd.f32 0.0, %v714
  %v716 = vpop.f32.mrb[0].mxu0
  %717 = vmatprep.mubr.f32.mxu0 0.0
  %718 = vmatmul.mubr.f32.gmra.mrb[0].mxu0 %v286
  %v719 = vpop.f32.mrb[0].mxu0
  %v720 = vadd.f32 0.0, %v719
  %v721 = vpop.f32.mrb[0].mxu0
  %722 = vmatprep.mubr.f32.mxu0 0.0
  %723 = vmatmul.mubr.f32.gmra.mrb[0].mxu0 %v289
  %v724 = vpop.f32.mrb[0].mxu0
  %v725 = vadd.f32 0.0, %v724
  %v726 = vpop.f32.mrb[0].mxu0
  %727 = vmatprep.mubr.f32.mxu0 0.0
  %728 = vmatmul.mubr.f32.gmra.mrb[0].mxu0 %v292
  %v729 = vpop.f32.mrb[0].mxu0
  %v730 = vadd.f32 0.0, %v729
  %v731 = vpop.f32.mrb[0].mxu0
  %732 = vmatprep.mubr.f32.mxu0 0.0
  %733 = vmatmul.mubr.f32.gmra.mrb[0].mxu0 %v295
  %v734 = vpop.f32.mrb[0].mxu0
  %v735 = vadd.f32 0.0, %v734
  %v736 = vpop.f32.mrb[0].mxu0
  %737 = vmatprep.mubr.f32.mxu0 0.0
  %738 = vmatmul.mubr.f32.gmra.mrb[0].mxu0 %v298
  %v739 = vpop.f32.mrb[0].mxu0
  %v740 = vadd.f32 0.0, %v739
  %v741 = vpop.f32.mrb[0].mxu0
  %742 = vmatprep.mubr.f32.mxu0 0.0
  %743 = vmatmul.mubr.f32.gmra.mrb[0].mxu0 %v301
  %v744 = vpop.f32.mrb[0].mxu0
  %v745 = vadd.f32 0.0, %v744
  %v746 = vpop.f32.mrb[0].mxu0
  %747 = vmatprep.mubr.f32.mxu0 0.0
  %748 = vmatmul.mubr.f32.gmra.mrb[0].mxu0 %v304
  %v749 = vpop.f32.mrb[0].mxu0
  %v750 = vadd.f32 0.0, %v749
  %v751 = vpop.f32.mrb[0].mxu0
  %752 = vmatprep.mubr.f32.mxu0 0.0
  %753 = vmatmul.mubr.f32.gmra.mrb[0].mxu0 %v307
  %v754 = vpop.f32.mrb[0].mxu0
  %v755 = vadd.f32 0.0, %v754
  %v756 = vpop.f32.mrb[0].mxu0
  %757 = vmatprep.mubr.f32.mxu0 0.0
  %758 = vmatmul.mubr.f32.gmra.mrb[0].mxu0 %v310
  %v759 = vpop.f32.mrb[0].mxu0
  %v760 = vadd.f32 0.0, %v759
  %v761 = vpop.f32.mrb[0].mxu0
  %762 = vmatprep.mubr.f32.mxu0 0.0
  %763 = vmatmul.mubr.f32.gmra.mrb[0].mxu0 %v313
  %v764 = vpop.f32.mrb[0].mxu0
  %v765 = vadd.f32 0.0, %v764
  %v766 = vpop.f32.mrb[0].mxu0
  %767 = vmatprep.mubr.f32.mxu0 0.0
  %768 = vmatmul.mubr.f32.gmra.mrb[0].mxu0 %v316
  %v769 = vpop.f32.mrb[0].mxu0
  %v770 = vadd.f32 0.0, %v769
  %v771 = vpop.f32.mrb[0].mxu0
  %772 = vmatprep.mubr.f32.mxu0 0.0
  %773 = vmatmul.mubr.f32.gmra.mrb[0].mxu0 %v319
  %v774 = vpop.f32.mrb[0].mxu0
  %v775 = vadd.f32 0.0, %v774
  %v776 = vpop.f32.mrb[0].mxu0
  %777 = vmatprep.mubr.f32.mxu0 0.0
  %778 = vmatmul.mubr.f32.gmra.mrb[0].mxu0 %v322
  %v779 = vpop.f32.mrb[0].mxu0
  %v780 = vadd.f32 0.0, %v779
  %v781 = vpop.f32.mrb[0].mxu0
  %782 = vmatprep.mubr.f32.mxu0 0.0
  %783 = vmatmul.mubr.f32.gmra.mrb[0].mxu0 %v325
  %v784 = vpop.f32.mrb[0].mxu0
  %v785 = vadd.f32 0.0, %v784
  %v786 = vpop.f32.mrb[0].mxu0
  %787 = vmatprep.mubr.f32.mxu0 0.0
  %788 = vmatmul.mubr.f32.gmra.mrb[0].mxu0 %v328
  %v789 = vpop.f32.mrb[0].mxu0
  %v790 = vadd.f32 0.0, %v789
  %v791 = vpop.f32.mrb[0].mxu0
  %792 = vmatprep.mubr.f32.mxu0 0.0
  %793 = vmatmul.mubr.f32.gmra.mrb[0].mxu0 %v331
  %v794 = vpop.f32.mrb[0].mxu0
  %v795 = vadd.f32 0.0, %v794
  %v796 = vpop.f32.mrb[0].mxu0
  %797 = vmatprep.mubr.f32.mxu0 0.0
  %798 = vmatmul.mubr.f32.gmra.mrb[0].mxu0 %v334
  %v799 = vpop.f32.mrb[0].mxu0
  %v800 = vadd.f32 0.0, %v799
  %v801 = vpop.f32.mrb[0].mxu0
  %802 = vmatprep.mubr.f32.mxu0 0.0
  %803 = vmatmul.mubr.f32.gmra.mrb[0].mxu0 %v337
  %v804 = vpop.f32.mrb[0].mxu0
  %v805 = vadd.f32 0.0, %v804
  %v806 = vpop.f32.mrb[0].mxu0
  %807 = vmatprep.mubr.f32.mxu0 0.0
  %808 = vmatmul.mubr.f32.gmra.mrb[0].mxu0 %v340
  %v809 = vpop.f32.mrb[0].mxu0
  %v810 = vadd.f32 0.0, %v809
  %v811 = vpop.f32.mrb[0].mxu0
  %812 = vmatprep.mubr.f32.mxu0 0.0
  %813 = vmatmul.mubr.f32.gmra.mrb[0].mxu0 %v343
  %v814 = vpop.f32.mrb[0].mxu0
  %v815 = vadd.f32 0.0, %v814
  %v816 = vpop.f32.mrb[0].mxu0
  %817 = vmatprep.mubr.f32.mxu0 0.0
  %818 = vmatmul.mubr.f32.gmra.mrb[0].mxu0 %v346
  %v819 = vpop.f32.mrb[0].mxu0
  %v820 = vadd.f32 0.0, %v819
  %v821 = vpop.f32.mrb[0].mxu0
  %822 = vmatprep.mubr.f32.mxu0 0.0
  %823 = vmatmul.mubr.f32.gmra.mrb[0].mxu0 %v349
  %v824 = vpop.f32.mrb[0].mxu0
  %v825 = vadd.f32 0.0, %v824
  %v826 = vpop.f32.mrb[0].mxu0
  %827 = vmatprep.mubr.f32.mxu0 0.0
  %828 = vmatmul.mubr.f32.gmra.mrb[0].mxu0 %v352
  %v829 = vpop.f32.mrb[0].mxu0
  %v830 = vadd.f32 0.0, %v829
  %v831 = vpop.f32.mrb[0].mxu0
  %832 = vmatprep.mubr.f32.mxu0 0.0
  %833 = vmatmul.mubr.f32.gmra.mrb[0].mxu0 %v355
  %v834 = vpop.f32.mrb[0].mxu0
  %v835 = vadd.f32 0.0, %v834
  %v836 = vpop.f32.mrb[0].mxu0
  %837 = vmatprep.mubr.f32.mxu0 0.0
  %838 = vmatmul.mubr.f32.gmra.mrb[0].mxu0 %v358
  %v839 = vpop.f32.mrb[0].mxu0
  %v840 = vadd.f32 0.0, %v839
  %v841 = vpop.f32.mrb[0].mxu0
  %842 = vmatprep.mubr.f32.mxu0 0.0
  %843 = vmatmul.mubr.f32.gmra.mrb[0].mxu0 %v361
  %v844 = vpop.f32.mrb[0].mxu0
  %v845 = vadd.f32 0.0, %v844
  %v846 = vpop.f32.mrb[0].mxu0
  %847 = vmatprep.mubr.f32.mxu0 0.0
  %848 = vmatmul.mubr.f32.gmra.mrb[0].mxu0 %v364
  %v849 = vpop.f32.mrb[0].mxu0
  %v850 = vadd.f32 0.0, %v849
  %v851 = vpop.f32.mrb[0].mxu0
  %852 = vmatprep.mubr.f32.mxu0 0.0
  %853 = vmatmul.mubr.f32.gmra.mrb[0].mxu0 %v367
  %v854 = vpop.f32.mrb[0].mxu0
  %v855 = vadd.f32 0.0, %v854
  %v856 = vpop.f32.mrb[0].mxu0
  %857 = vmatprep.mubr.f32.mxu0 0.0
  %858 = vmatmul.mubr.f32.gmra.mrb[0].mxu0 %v370
  %v859 = vpop.f32.mrb[0].mxu0
  %v860 = vadd.f32 0.0, %v859
  %v861 = vpop.f32.mrb[0].mxu0
  %862 = vmatprep.mubr.f32.mxu0 0.0
  %863 = vmatmul.mubr.f32.gmra.mrb[0].mxu0 %v373
  %v864 = vpop.f32.mrb[0].mxu0
  %v865 = vadd.f32 0.0, %v864
  %v866 = vpop.f32.mrb[0].mxu0
  %867 = vmatprep.mubr.f32.mxu0 0.0
  %868 = vmatmul.mubr.f32.gmra.mrb[0].mxu0 %v376
  %v869 = vpop.f32.mrb[0].mxu0
  %v870 = vadd.f32 0.0, %v869
  %v871 = vpop.f32.mrb[0].mxu0
  %872 = vmatprep.mubr.f32.mxu0 0.0
  %873 = vmatmul.mubr.f32.gmra.mrb[0].mxu0 %v379
  %v874 = vpop.f32.mrb[0].mxu0
  %v875 = vadd.f32 0.0, %v874
  %v876 = vpop.f32.mrb[0].mxu0
  %877 = vmatprep.mubr.f32.mxu0 0.0
  %878 = vmatmul.mubr.f32.gmra.mrb[0].mxu0 %v382
  %v879 = vpop.f32.mrb[0].mxu0
  %v880 = vadd.f32 0.0, %v879
  %v881 = vpop.f32.mrb[0].mxu0
  %882 = vmatprep.mubr.f32.mxu0 0.0
  %883 = vmatmul.mubr.f32.gmra.mrb[0].mxu0 %v385
  %v884 = vpop.f32.mrb[0].mxu0
  %v885 = vadd.f32 0.0, %v884
  %v886 = vpop.f32.mrb[0].mxu0
  %887 = vmatprep.mubr.f32.mxu0 0.0
  %888 = vmatmul.mubr.f32.gmra.mrb[0].mxu0 %v388
  %v889 = vpop.f32.mrb[0].mxu0
  %v890 = vadd.f32 0.0, %v889
  %v891 = vpop.f32.mrb[0].mxu0
  %892 = vmatprep.mubr.f32.mxu0 0.0
  %893 = vmatmul.mubr.f32.gmra.mrb[0].mxu0 %v391
  %v894 = vpop.f32.mrb[0].mxu0
  %v895 = vadd.f32 0.0, %v894
  %v896 = vpop.f32.mrb[0].mxu0
  %897 = vdwg.mxu0
  %s898 = scalar_lea.vmem %s0, 704
  %v899 = vld [vmem:[%s898] sm:$0xff]
  %v900 = vld [vmem:[%s898 + $0x8] sm:$0xff]
  %v901 = vld [vmem:[%s898 + $0x10] sm:$0xff]
  %v902 = vld [vmem:[%s898 + $0x18] sm:$0xff]
  %v903 = vld [vmem:[%s898 + $0x20] sm:$0xff]
  %v904 = vld [vmem:[%s898 + $0x28] sm:$0xff]
  %v905 = vld [vmem:[%s898 + $0x30] sm:$0xff]
  %v906 = vld [vmem:[%s898 + $0x38] sm:$0xff]
  %v907 = vld [vmem:[%s898 + $0x40] sm:$0xff]
  %v908 = vld [vmem:[%s898 + $0x48] sm:$0xff]
  %v909 = vld [vmem:[%s898 + $0x50] sm:$0xff]
  %v910 = vld [vmem:[%s898 + $0x58] sm:$0xff]
  %v911 = vld [vmem:[%s898 + $0x60] sm:$0xff]
  %v912 = vld [vmem:[%s898 + $0x68] sm:$0xff]
  %v913 = vld [vmem:[%s898 + $0x70] sm:$0xff]
  %v914 = vld [vmem:[%s898 + $0x78] sm:$0xff]
  %v915 = vld [vmem:[%s898 + $0x80] sm:$0xff]
  %v916 = vld [vmem:[%s898 + $0x88] sm:$0xff]
  %v917 = vld [vmem:[%s898 + $0x90] sm:$0xff]
  %v918 = vld [vmem:[%s898 + $0x98] sm:$0xff]
  %v919 = vld [vmem:[%s898 + $0xa0] sm:$0xff]
  %v920 = vld [vmem:[%s898 + $0xa8] sm:$0xff]
  %v921 = vld [vmem:[%s898 + $0xb0] sm:$0xff]
  %v922 = vld [vmem:[%s898 + $0xb8] sm:$0xff]
  %v923 = vld [vmem:[%s898 + $0xc0] sm:$0xff]
  %v924 = vld [vmem:[%s898 + $0xc8] sm:$0xff]
  %v925 = vld [vmem:[%s898 + $0xd0] sm:$0xff]
  %v926 = vld [vmem:[%s898 + $0xd8] sm:$0xff]
  %v927 = vld [vmem:[%s898 + $0xe0] sm:$0xff]
  %v928 = vld [vmem:[%s898 + $0xe8] sm:$0xff]
  %v929 = vld [vmem:[%s898 + $0xf0] sm:$0xff]
  %v930 = vld [vmem:[%s898 + $0xf8] sm:$0xff]
  %v931 = vld [vmem:[%s898 + $0x100] sm:$0xff]
  %v932 = vld [vmem:[%s898 + $0x108] sm:$0xff]
  %v933 = vld [vmem:[%s898 + $0x110] sm:$0xff]
  %v934 = vld [vmem:[%s898 + $0x118] sm:$0xff]
  %v935 = vld [vmem:[%s898 + $0x120] sm:$0xff]
  %v936 = vld [vmem:[%s898 + $0x128] sm:$0xff]
  %v937 = vld [vmem:[%s898 + $0x130] sm:$0xff]
  %v938 = vld [vmem:[%s898 + $0x138] sm:$0xff]
  %v939 = vld [vmem:[%s898 + $0x140] sm:$0xff]
  %v940 = vld [vmem:[%s898 + $0x148] sm:$0xff]
  %v941 = vld [vmem:[%s898 + $0x150] sm:$0xff]
  %v942 = vld [vmem:[%s898 + $0x158] sm:$0xff]
  %v943 = vld [vmem:[%s898 + $0x160] sm:$0xff]
  %v944 = vld [vmem:[%s898 + $0x168] sm:$0xff]
  %v945 = vld [vmem:[%s898 + $0x170] sm:$0xff]
  %v946 = vld [vmem:[%s898 + $0x178] sm:$0xff]
  %v947 = vld [vmem:[%s898 + $0x180] sm:$0xff]
  %v948 = vld [vmem:[%s898 + $0x188] sm:$0xff]
  %v949 = vld [vmem:[%s898 + $0x190] sm:$0xff]
  %v950 = vld [vmem:[%s898 + $0x198] sm:$0xff]
  %v951 = vld [vmem:[%s898 + $0x1a0] sm:$0xff]
  %v952 = vld [vmem:[%s898 + $0x1a8] sm:$0xff]
  %v953 = vld [vmem:[%s898 + $0x1b0] sm:$0xff]
  %v954 = vld [vmem:[%s898 + $0x1b8] sm:$0xff]
  %v955 = vld [vmem:[%s898 + $0x1c0] sm:$0xff]
  %v956 = vld [vmem:[%s898 + $0x1c8] sm:$0xff]
  %v957 = vld [vmem:[%s898 + $0x1d0] sm:$0xff]
  %v958 = vld [vmem:[%s898 + $0x1d8] sm:$0xff]
  %v959 = vld [vmem:[%s898 + $0x1e0] sm:$0xff]
  %v960 = vld [vmem:[%s898 + $0x1e8] sm:$0xff]
  %v961 = vld [vmem:[%s898 + $0x1f0] sm:$0xff]
  %v962 = vld [vmem:[%s898 + $0x1f8] sm:$0xff]
  %v963 = vld [vmem:[%s898 + $0x200] sm:$0xff]
  %v964 = vld [vmem:[%s898 + $0x208] sm:$0xff]
  %v965 = vld [vmem:[%s898 + $0x210] sm:$0xff]
  %v966 = vld [vmem:[%s898 + $0x218] sm:$0xff]
  %v967 = vld [vmem:[%s898 + $0x220] sm:$0xff]
  %v968 = vld [vmem:[%s898 + $0x228] sm:$0xff]
  %v969 = vld [vmem:[%s898 + $0x230] sm:$0xff]
  %v970 = vld [vmem:[%s898 + $0x238] sm:$0xff]
  %v971 = vld [vmem:[%s898 + $0x240] sm:$0xff]
  %v972 = vld [vmem:[%s898 + $0x248] sm:$0xff]
  %v973 = vld [vmem:[%s898 + $0x250] sm:$0xff]
  %v974 = vld [vmem:[%s898 + $0x258] sm:$0xff]
  %v975 = vld [vmem:[%s898 + $0x260] sm:$0xff]
  %v976 = vld [vmem:[%s898 + $0x268] sm:$0xff]
  %v977 = vld [vmem:[%s898 + $0x270] sm:$0xff]
  %v978 = vld [vmem:[%s898 + $0x278] sm:$0xff]
  %v979 = vld [vmem:[%s898 + $0x280] sm:$0xff]
  %v980 = vld [vmem:[%s898 + $0x288] sm:$0xff]
  %v981 = vld [vmem:[%s898 + $0x290] sm:$0xff]
  %v982 = vld [vmem:[%s898 + $0x298] sm:$0xff]
  %v983 = vld [vmem:[%s898 + $0x2a0] sm:$0xff]
  %v984 = vld [vmem:[%s898 + $0x2a8] sm:$0xff]
  %v985 = vld [vmem:[%s898 + $0x2b0] sm:$0xff]
  %v986 = vld [vmem:[%s898 + $0x2b8] sm:$0xff]
  %v988 = vsel %vm128, %v899, 0
  %v991 = vsel %vm128, %v900, 0
  %v994 = vsel %vm128, %v901, 0
  %v997 = vsel %vm128, %v902, 0
  %v1000 = vsel %vm128, %v903, 0
  %v1003 = vsel %vm128, %v904, 0
  %v1006 = vsel %vm128, %v905, 0
  %v1009 = vsel %vm128, %v906, 0
  %v1012 = vsel %vm128, %v907, 0
  %v1015 = vsel %vm128, %v908, 0
  %v1018 = vsel %vm128, %v909, 0
  %v1021 = vsel %vm128, %v910, 0
  %v1024 = vsel %vm128, %v911, 0
  %v1027 = vsel %vm128, %v912, 0
  %v1030 = vsel %vm128, %v913, 0
  %v1033 = vsel %vm128, %v914, 0
  %v1036 = vsel %vm128, %v915, 0
  %v1039 = vsel %vm128, %v916, 0
  %v1042 = vsel %vm128, %v917, 0
  %v1045 = vsel %vm128, %v918, 0
  %v1048 = vsel %vm128, %v919, 0
  %v1051 = vsel %vm128, %v920, 0
  %v1054 = vsel %vm128, %v921, 0
  %v1057 = vsel %vm128, %v922, 0
  %v1060 = vsel %vm128, %v923, 0
  %v1063 = vsel %vm128, %v924, 0
  %v1066 = vsel %vm128, %v925, 0
  %v1069 = vsel %vm128, %v926, 0
  %v1072 = vsel %vm128, %v927, 0
  %v1075 = vsel %vm128, %v928, 0
  %v1078 = vsel %vm128, %v929, 0
  %v1081 = vsel %vm128, %v930, 0
  %v1084 = vsel %vm128, %v931, 0
  %v1087 = vsel %vm128, %v932, 0
  %v1090 = vsel %vm128, %v933, 0
  %v1093 = vsel %vm128, %v934, 0
  %v1096 = vsel %vm128, %v935, 0
  %v1099 = vsel %vm128, %v936, 0
  %v1102 = vsel %vm128, %v937, 0
  %v1105 = vsel %vm128, %v938, 0
  %v1108 = vsel %vm128, %v939, 0
  %v1111 = vsel %vm128, %v940, 0
  %v1114 = vsel %vm128, %v941, 0
  %v1117 = vsel %vm128, %v942, 0
  %v1120 = vsel %vm128, %v943, 0
  %v1123 = vsel %vm128, %v944, 0
  %v1126 = vsel %vm128, %v945, 0
  %v1129 = vsel %vm128, %v946, 0
  %v1132 = vsel %vm128, %v947, 0
  %v1135 = vsel %vm128, %v948, 0
  %v1138 = vsel %vm128, %v949, 0
  %v1141 = vsel %vm128, %v950, 0
  %v1144 = vsel %vm128, %v951, 0
  %v1147 = vsel %vm128, %v952, 0
  %v1150 = vsel %vm128, %v953, 0
  %v1153 = vsel %vm128, %v954, 0
  %v1156 = vsel %vm128, %v955, 0
  %v1159 = vsel %vm128, %v956, 0
  %v1162 = vsel %vm128, %v957, 0
  %v1165 = vsel %vm128, %v958, 0
  %v1168 = vsel %vm128, %v959, 0
  %v1171 = vsel %vm128, %v960, 0
  %v1174 = vsel %vm128, %v961, 0
  %v1177 = vsel %vm128, %v962, 0
  %v1180 = vsel %vm128, %v963, 0
  %v1183 = vsel %vm128, %v964, 0
  %v1186 = vsel %vm128, %v965, 0
  %v1189 = vsel %vm128, %v966, 0
  %v1192 = vsel %vm128, %v967, 0
  %v1195 = vsel %vm128, %v968, 0
  %v1198 = vsel %vm128, %v969, 0
  %v1201 = vsel %vm128, %v970, 0
  %v1204 = vsel %vm128, %v971, 0
  %v1207 = vsel %vm128, %v972, 0
  %v1210 = vsel %vm128, %v973, 0
  %v1213 = vsel %vm128, %v974, 0
  %v1216 = vsel %vm128, %v975, 0
  %v1219 = vsel %vm128, %v976, 0
  %v1222 = vsel %vm128, %v977, 0
  %v1225 = vsel %vm128, %v978, 0
  %v1228 = vsel %vm128, %v979, 0
  %v1231 = vsel %vm128, %v980, 0
  %v1234 = vsel %vm128, %v981, 0
  %v1237 = vsel %vm128, %v982, 0
  %v1240 = vsel %vm128, %v983, 0
  %v1243 = vsel %vm128, %v984, 0
  %v1246 = vsel %vm128, %v985, 0
  %v1249 = vsel %vm128, %v986, 0
  %1251 = vmatprep.subr.mxu0 0.0
  %1252 = vmatpush1.msra.mxu0 %v32
  %1253 = vmatprep.subr.mxu0 0.0
  %1254 = vmatpush1.msra.mxu0 %v33
  %1255 = vmatprep.subr.mxu0 0.0
  %1256 = vmatpush1.msra.mxu0 %v34
  %1257 = vmatprep.subr.mxu0 0.0
  %1258 = vmatpush1.msra.mxu0 %v35
  %1259 = vmatprep.subr.mxu0 0.0
  %1260 = vmatpush1.msra.mxu0 %v36
  %1261 = vmatprep.subr.mxu0 0.0
  %1262 = vmatpush1.msra.mxu0 %v37
  %1263 = vmatprep.subr.mxu0 0.0
  %1264 = vmatpush1.msra.mxu0 %v38
  %1265 = vmatprep.subr.mxu0 0.0
  %1266 = vmatpush1.msra.mxu0 %v39
  %1267 = vmatprep.subr.mxu0 0.0
  %1268 = vmatpush1.msra.mxu0 0.0
  %1269 = vmatprep.subr.mxu0 0.0
  %1270 = vmatpush1.msra.mxu0 0.0
  %1271 = vmatprep.subr.mxu0 0.0
  %1272 = vmatpush1.msra.mxu0 0.0
  %1273 = vmatprep.subr.mxu0 0.0
  %1274 = vmatpush1.msra.mxu0 0.0
  %1275 = vmatprep.subr.mxu0 0.0
  %1276 = vmatpush1.msra.mxu0 0.0
  %1277 = vmatprep.subr.mxu0 0.0
  %1278 = vmatpush1.msra.mxu0 0.0
  %1279 = vmatprep.subr.mxu0 0.0
  %1280 = vmatpush1.msra.mxu0 0.0
  %1281 = vmatprep.subr.mxu0 0.0
  %1282 = vmatpush1.msra.mxu0 0.0
  %1283 = vmatprep.subr.mxu0 0.0
  %1284 = vmatpush1.msra.mxu0 0.0
  %1285 = vmatprep.subr.mxu0 0.0
  %1286 = vmatpush1.msra.mxu0 0.0
  %1287 = vmatprep.subr.mxu0 0.0
  %1288 = vmatpush1.msra.mxu0 0.0
  %1289 = vmatprep.subr.mxu0 0.0
  %1290 = vmatpush1.msra.mxu0 0.0
  %1291 = vmatprep.subr.mxu0 0.0
  %1292 = vmatpush1.msra.mxu0 0.0
  %1293 = vmatprep.subr.mxu0 0.0
  %1294 = vmatpush1.msra.mxu0 0.0
  %1295 = vmatprep.subr.mxu0 0.0
  %1296 = vmatpush1.msra.mxu0 0.0
  %1297 = vmatprep.subr.mxu0 0.0
  %1298 = vmatpush1.msra.mxu0 0.0
  %1299 = vmatprep.subr.mxu0 0.0
  %1300 = vmatpush1.msra.mxu0 0.0
  %1301 = vmatprep.subr.mxu0 0.0
  %1302 = vmatpush1.msra.mxu0 0.0
  %1303 = vmatprep.subr.mxu0 0.0
  %1304 = vmatpush1.msra.mxu0 0.0
  %1305 = vmatprep.subr.mxu0 0.0
  %1306 = vmatpush1.msra.mxu0 0.0
  %1307 = vmatprep.subr.mxu0 0.0
  %1308 = vmatpush1.msra.mxu0 0.0
  %1309 = vmatprep.subr.mxu0 0.0
  %1310 = vmatpush1.msra.mxu0 0.0
  %1311 = vmatprep.subr.mxu0 0.0
  %1312 = vmatpush1.msra.mxu0 0.0
  %1313 = vmatprep.subr.mxu0 0.0
  %1314 = vmatpush1.msra.mxu0 0.0
  %1315 = vmatprep.mubr.f32.mxu0 0.0
  %1316 = vmatmul.mubr.f32.gmra.mrb[0].mxu0 %v988
  %v1317 = vpop.f32.mrb[0].mxu0
  %v1318 = vadd.f32 0.0, %v1317
  %v1319 = vpop.f32.mrb[0].mxu0
  %1320 = vmatprep.mubr.f32.mxu0 0.0
  %1321 = vmatmul.mubr.f32.gmra.mrb[0].mxu0 %v991
  %v1322 = vpop.f32.mrb[0].mxu0
  %v1323 = vadd.f32 0.0, %v1322
  %v1324 = vpop.f32.mrb[0].mxu0
  %1325 = vmatprep.mubr.f32.mxu0 0.0
  %1326 = vmatmul.mubr.f32.gmra.mrb[0].mxu0 %v994
  %v1327 = vpop.f32.mrb[0].mxu0
  %v1328 = vadd.f32 0.0, %v1327
  %v1329 = vpop.f32.mrb[0].mxu0
  %1330 = vmatprep.mubr.f32.mxu0 0.0
  %1331 = vmatmul.mubr.f32.gmra.mrb[0].mxu0 %v997
  %v1332 = vpop.f32.mrb[0].mxu0
  %v1333 = vadd.f32 0.0, %v1332
  %v1334 = vpop.f32.mrb[0].mxu0
  %1335 = vmatprep.mubr.f32.mxu0 0.0
  %1336 = vmatmul.mubr.f32.gmra.mrb[0].mxu0 %v1000
  %v1337 = vpop.f32.mrb[0].mxu0
  %v1338 = vadd.f32 0.0, %v1337
  %v1339 = vpop.f32.mrb[0].mxu0
  %1340 = vmatprep.mubr.f32.mxu0 0.0
  %1341 = vmatmul.mubr.f32.gmra.mrb[0].mxu0 %v1003
  %v1342 = vpop.f32.mrb[0].mxu0
  %v1343 = vadd.f32 0.0, %v1342
  %v1344 = vpop.f32.mrb[0].mxu0
  %1345 = vmatprep.mubr.f32.mxu0 0.0
  %1346 = vmatmul.mubr.f32.gmra.mrb[0].mxu0 %v1006
  %v1347 = vpop.f32.mrb[0].mxu0
  %v1348 = vadd.f32 0.0, %v1347
  %v1349 = vpop.f32.mrb[0].mxu0
  %1350 = vmatprep.mubr.f32.mxu0 0.0
  %1351 = vmatmul.mubr.f32.gmra.mrb[0].mxu0 %v1009
  %v1352 = vpop.f32.mrb[0].mxu0
  %v1353 = vadd.f32 0.0, %v1352
  %v1354 = vpop.f32.mrb[0].mxu0
  %1355 = vmatprep.mubr.f32.mxu0 0.0
  %1356 = vmatmul.mubr.f32.gmra.mrb[0].mxu0 %v1012
  %v1357 = vpop.f32.mrb[0].mxu0
  %v1358 = vadd.f32 0.0, %v1357
  %v1359 = vpop.f32.mrb[0].mxu0
  %1360 = vmatprep.mubr.f32.mxu0 0.0
  %1361 = vmatmul.mubr.f32.gmra.mrb[0].mxu0 %v1015
  %v1362 = vpop.f32.mrb[0].mxu0
  %v1363 = vadd.f32 0.0, %v1362
  %v1364 = vpop.f32.mrb[0].mxu0
  %1365 = vmatprep.mubr.f32.mxu0 0.0
  %1366 = vmatmul.mubr.f32.gmra.mrb[0].mxu0 %v1018
  %v1367 = vpop.f32.mrb[0].mxu0
  %v1368 = vadd.f32 0.0, %v1367
  %v1369 = vpop.f32.mrb[0].mxu0
  %1370 = vmatprep.mubr.f32.mxu0 0.0
  %1371 = vmatmul.mubr.f32.gmra.mrb[0].mxu0 %v1021
  %v1372 = vpop.f32.mrb[0].mxu0
  %v1373 = vadd.f32 0.0, %v1372
  %v1374 = vpop.f32.mrb[0].mxu0
  %1375 = vmatprep.mubr.f32.mxu0 0.0
  %1376 = vmatmul.mubr.f32.gmra.mrb[0].mxu0 %v1024
  %v1377 = vpop.f32.mrb[0].mxu0
  %v1378 = vadd.f32 0.0, %v1377
  %v1379 = vpop.f32.mrb[0].mxu0
  %1380 = vmatprep.mubr.f32.mxu0 0.0
  %1381 = vmatmul.mubr.f32.gmra.mrb[0].mxu0 %v1027
  %v1382 = vpop.f32.mrb[0].mxu0
  %v1383 = vadd.f32 0.0, %v1382
  %v1384 = vpop.f32.mrb[0].mxu0
  %1385 = vmatprep.mubr.f32.mxu0 0.0
  %1386 = vmatmul.mubr.f32.gmra.mrb[0].mxu0 %v1030
  %v1387 = vpop.f32.mrb[0].mxu0
  %v1388 = vadd.f32 0.0, %v1387
  %v1389 = vpop.f32.mrb[0].mxu0
  %1390 = vmatprep.mubr.f32.mxu0 0.0
  %1391 = vmatmul.mubr.f32.gmra.mrb[0].mxu0 %v1033
  %v1392 = vpop.f32.mrb[0].mxu0
  %v1393 = vadd.f32 0.0, %v1392
  %v1394 = vpop.f32.mrb[0].mxu0
  %1395 = vmatprep.mubr.f32.mxu0 0.0
  %1396 = vmatmul.mubr.f32.gmra.mrb[0].mxu0 %v1036
  %v1397 = vpop.f32.mrb[0].mxu0
  %v1398 = vadd.f32 0.0, %v1397
  %v1399 = vpop.f32.mrb[0].mxu0
  %1400 = vmatprep.mubr.f32.mxu0 0.0
  %1401 = vmatmul.mubr.f32.gmra.mrb[0].mxu0 %v1039
  %v1402 = vpop.f32.mrb[0].mxu0
  %v1403 = vadd.f32 0.0, %v1402
  %v1404 = vpop.f32.mrb[0].mxu0
  %1405 = vmatprep.mubr.f32.mxu0 0.0
  %1406 = vmatmul.mubr.f32.gmra.mrb[0].mxu0 %v1042
  %v1407 = vpop.f32.mrb[0].mxu0
  %v1408 = vadd.f32 0.0, %v1407
  %v1409 = vpop.f32.mrb[0].mxu0
  %1410 = vmatprep.mubr.f32.mxu0 0.0
  %1411 = vmatmul.mubr.f32.gmra.mrb[0].mxu0 %v1045
  %v1412 = vpop.f32.mrb[0].mxu0
  %v1413 = vadd.f32 0.0, %v1412
  %v1414 = vpop.f32.mrb[0].mxu0
  %1415 = vmatprep.mubr.f32.mxu0 0.0
  %1416 = vmatmul.mubr.f32.gmra.mrb[0].mxu0 %v1048
  %v1417 = vpop.f32.mrb[0].mxu0
  %v1418 = vadd.f32 0.0, %v1417
  %v1419 = vpop.f32.mrb[0].mxu0
  %1420 = vmatprep.mubr.f32.mxu0 0.0
  %1421 = vmatmul.mubr.f32.gmra.mrb[0].mxu0 %v1051
  %v1422 = vpop.f32.mrb[0].mxu0
  %v1423 = vadd.f32 0.0, %v1422
  %v1424 = vpop.f32.mrb[0].mxu0
  %1425 = vmatprep.mubr.f32.mxu0 0.0
  %1426 = vmatmul.mubr.f32.gmra.mrb[0].mxu0 %v1054
  %v1427 = vpop.f32.mrb[0].mxu0
  %v1428 = vadd.f32 0.0, %v1427
  %v1429 = vpop.f32.mrb[0].mxu0
  %1430 = vmatprep.mubr.f32.mxu0 0.0
  %1431 = vmatmul.mubr.f32.gmra.mrb[0].mxu0 %v1057
  %v1432 = vpop.f32.mrb[0].mxu0
  %v1433 = vadd.f32 0.0, %v1432
  %v1434 = vpop.f32.mrb[0].mxu0
  %1435 = vmatprep.mubr.f32.mxu0 0.0
  %1436 = vmatmul.mubr.f32.gmra.mrb[0].mxu0 %v1060
  %v1437 = vpop.f32.mrb[0].mxu0
  %v1438 = vadd.f32 0.0, %v1437
  %v1439 = vpop.f32.mrb[0].mxu0
  %1440 = vmatprep.mubr.f32.mxu0 0.0
  %1441 = vmatmul.mubr.f32.gmra.mrb[0].mxu0 %v1063
  %v1442 = vpop.f32.mrb[0].mxu0
  %v1443 = vadd.f32 0.0, %v1442
  %v1444 = vpop.f32.mrb[0].mxu0
  %1445 = vmatprep.mubr.f32.mxu0 0.0
  %1446 = vmatmul.mubr.f32.gmra.mrb[0].mxu0 %v1066
  %v1447 = vpop.f32.mrb[0].mxu0
  %v1448 = vadd.f32 0.0, %v1447
  %v1449 = vpop.f32.mrb[0].mxu0
  %1450 = vmatprep.mubr.f32.mxu0 0.0
  %1451 = vmatmul.mubr.f32.gmra.mrb[0].mxu0 %v1069
  %v1452 = vpop.f32.mrb[0].mxu0
  %v1453 = vadd.f32 0.0, %v1452
  %v1454 = vpop.f32.mrb[0].mxu0
  %1455 = vmatprep.mubr.f32.mxu0 0.0
  %1456 = vmatmul.mubr.f32.gmra.mrb[0].mxu0 %v1072
  %v1457 = vpop.f32.mrb[0].mxu0
  %v1458 = vadd.f32 0.0, %v1457
  %v1459 = vpop.f32.mrb[0].mxu0
  %1460 = vmatprep.mubr.f32.mxu0 0.0
  %1461 = vmatmul.mubr.f32.gmra.mrb[0].mxu0 %v1075
  %v1462 = vpop.f32.mrb[0].mxu0
  %v1463 = vadd.f32 0.0, %v1462
  %v1464 = vpop.f32.mrb[0].mxu0
  %1465 = vmatprep.mubr.f32.mxu0 0.0
  %1466 = vmatmul.mubr.f32.gmra.mrb[0].mxu0 %v1078
  %v1467 = vpop.f32.mrb[0].mxu0
  %v1468 = vadd.f32 0.0, %v1467
  %v1469 = vpop.f32.mrb[0].mxu0
  %1470 = vmatprep.mubr.f32.mxu0 0.0
  %1471 = vmatmul.mubr.f32.gmra.mrb[0].mxu0 %v1081
  %v1472 = vpop.f32.mrb[0].mxu0
  %v1473 = vadd.f32 0.0, %v1472
  %v1474 = vpop.f32.mrb[0].mxu0
  %1475 = vmatprep.mubr.f32.mxu0 0.0
  %1476 = vmatmul.mubr.f32.gmra.mrb[0].mxu0 %v1084
  %v1477 = vpop.f32.mrb[0].mxu0
  %v1478 = vadd.f32 0.0, %v1477
  %v1479 = vpop.f32.mrb[0].mxu0
  %1480 = vmatprep.mubr.f32.mxu0 0.0
  %1481 = vmatmul.mubr.f32.gmra.mrb[0].mxu0 %v1087
  %v1482 = vpop.f32.mrb[0].mxu0
  %v1483 = vadd.f32 0.0, %v1482
  %v1484 = vpop.f32.mrb[0].mxu0
  %1485 = vmatprep.mubr.f32.mxu0 0.0
  %1486 = vmatmul.mubr.f32.gmra.mrb[0].mxu0 %v1090
  %v1487 = vpop.f32.mrb[0].mxu0
  %v1488 = vadd.f32 0.0, %v1487
  %v1489 = vpop.f32.mrb[0].mxu0
  %1490 = vmatprep.mubr.f32.mxu0 0.0
  %1491 = vmatmul.mubr.f32.gmra.mrb[0].mxu0 %v1093
  %v1492 = vpop.f32.mrb[0].mxu0
  %v1493 = vadd.f32 0.0, %v1492
  %v1494 = vpop.f32.mrb[0].mxu0
  %1495 = vmatprep.mubr.f32.mxu0 0.0
  %1496 = vmatmul.mubr.f32.gmra.mrb[0].mxu0 %v1096
  %v1497 = vpop.f32.mrb[0].mxu0
  %v1498 = vadd.f32 0.0, %v1497
  %v1499 = vpop.f32.mrb[0].mxu0
  %1500 = vmatprep.mubr.f32.mxu0 0.0
  %1501 = vmatmul.mubr.f32.gmra.mrb[0].mxu0 %v1099
  %v1502 = vpop.f32.mrb[0].mxu0
  %v1503 = vadd.f32 0.0, %v1502
  %v1504 = vpop.f32.mrb[0].mxu0
  %1505 = vmatprep.mubr.f32.mxu0 0.0
  %1506 = vmatmul.mubr.f32.gmra.mrb[0].mxu0 %v1102
  %v1507 = vpop.f32.mrb[0].mxu0
  %v1508 = vadd.f32 0.0, %v1507
  %v1509 = vpop.f32.mrb[0].mxu0
  %1510 = vmatprep.mubr.f32.mxu0 0.0
  %1511 = vmatmul.mubr.f32.gmra.mrb[0].mxu0 %v1105
  %v1512 = vpop.f32.mrb[0].mxu0
  %v1513 = vadd.f32 0.0, %v1512
  %v1514 = vpop.f32.mrb[0].mxu0
  %1515 = vmatprep.mubr.f32.mxu0 0.0
  %1516 = vmatmul.mubr.f32.gmra.mrb[0].mxu0 %v1108
  %v1517 = vpop.f32.mrb[0].mxu0
  %v1518 = vadd.f32 0.0, %v1517
  %v1519 = vpop.f32.mrb[0].mxu0
  %1520 = vmatprep.mubr.f32.mxu0 0.0
  %1521 = vmatmul.mubr.f32.gmra.mrb[0].mxu0 %v1111
  %v1522 = vpop.f32.mrb[0].mxu0
  %v1523 = vadd.f32 0.0, %v1522
  %v1524 = vpop.f32.mrb[0].mxu0
  %1525 = vmatprep.mubr.f32.mxu0 0.0
  %1526 = vmatmul.mubr.f32.gmra.mrb[0].mxu0 %v1114
  %v1527 = vpop.f32.mrb[0].mxu0
  %v1528 = vadd.f32 0.0, %v1527
  %v1529 = vpop.f32.mrb[0].mxu0
  %1530 = vmatprep.mubr.f32.mxu0 0.0
  %1531 = vmatmul.mubr.f32.gmra.mrb[0].mxu0 %v1117
  %v1532 = vpop.f32.mrb[0].mxu0
  %v1533 = vadd.f32 0.0, %v1532
  %v1534 = vpop.f32.mrb[0].mxu0
  %1535 = vmatprep.mubr.f32.mxu0 0.0
  %1536 = vmatmul.mubr.f32.gmra.mrb[0].mxu0 %v1120
  %v1537 = vpop.f32.mrb[0].mxu0
  %v1538 = vadd.f32 0.0, %v1537
  %v1539 = vpop.f32.mrb[0].mxu0
  %1540 = vmatprep.mubr.f32.mxu0 0.0
  %1541 = vmatmul.mubr.f32.gmra.mrb[0].mxu0 %v1123
  %v1542 = vpop.f32.mrb[0].mxu0
  %v1543 = vadd.f32 0.0, %v1542
  %v1544 = vpop.f32.mrb[0].mxu0
  %1545 = vmatprep.mubr.f32.mxu0 0.0
  %1546 = vmatmul.mubr.f32.gmra.mrb[0].mxu0 %v1126
  %v1547 = vpop.f32.mrb[0].mxu0
  %v1548 = vadd.f32 0.0, %v1547
  %v1549 = vpop.f32.mrb[0].mxu0
  %1550 = vmatprep.mubr.f32.mxu0 0.0
  %1551 = vmatmul.mubr.f32.gmra.mrb[0].mxu0 %v1129
  %v1552 = vpop.f32.mrb[0].mxu0
  %v1553 = vadd.f32 0.0, %v1552
  %v1554 = vpop.f32.mrb[0].mxu0
  %1555 = vmatprep.mubr.f32.mxu0 0.0
  %1556 = vmatmul.mubr.f32.gmra.mrb[0].mxu0 %v1132
  %v1557 = vpop.f32.mrb[0].mxu0
  %v1558 = vadd.f32 0.0, %v1557
  %v1559 = vpop.f32.mrb[0].mxu0
  %1560 = vmatprep.mubr.f32.mxu0 0.0
  %1561 = vmatmul.mubr.f32.gmra.mrb[0].mxu0 %v1135
  %v1562 = vpop.f32.mrb[0].mxu0
  %v1563 = vadd.f32 0.0, %v1562
  %v1564 = vpop.f32.mrb[0].mxu0
  %1565 = vmatprep.mubr.f32.mxu0 0.0
  %1566 = vmatmul.mubr.f32.gmra.mrb[0].mxu0 %v1138
  %v1567 = vpop.f32.mrb[0].mxu0
  %v1568 = vadd.f32 0.0, %v1567
  %v1569 = vpop.f32.mrb[0].mxu0
  %1570 = vmatprep.mubr.f32.mxu0 0.0
  %1571 = vmatmul.mubr.f32.gmra.mrb[0].mxu0 %v1141
  %v1572 = vpop.f32.mrb[0].mxu0
  %v1573 = vadd.f32 0.0, %v1572
  %v1574 = vpop.f32.mrb[0].mxu0
  %1575 = vmatprep.mubr.f32.mxu0 0.0
  %1576 = vmatmul.mubr.f32.gmra.mrb[0].mxu0 %v1144
  %v1577 = vpop.f32.mrb[0].mxu0
  %v1578 = vadd.f32 0.0, %v1577
  %v1579 = vpop.f32.mrb[0].mxu0
  %1580 = vmatprep.mubr.f32.mxu0 0.0
  %1581 = vmatmul.mubr.f32.gmra.mrb[0].mxu0 %v1147
  %v1582 = vpop.f32.mrb[0].mxu0
  %v1583 = vadd.f32 0.0, %v1582
  %v1584 = vpop.f32.mrb[0].mxu0
  %1585 = vmatprep.mubr.f32.mxu0 0.0
  %1586 = vmatmul.mubr.f32.gmra.mrb[0].mxu0 %v1150
  %v1587 = vpop.f32.mrb[0].mxu0
  %v1588 = vadd.f32 0.0, %v1587
  %v1589 = vpop.f32.mrb[0].mxu0
  %1590 = vmatprep.mubr.f32.mxu0 0.0
  %1591 = vmatmul.mubr.f32.gmra.mrb[0].mxu0 %v1153
  %v1592 = vpop.f32.mrb[0].mxu0
  %v1593 = vadd.f32 0.0, %v1592
  %v1594 = vpop.f32.mrb[0].mxu0
  %1595 = vmatprep.mubr.f32.mxu0 0.0
  %1596 = vmatmul.mubr.f32.gmra.mrb[0].mxu0 %v1156
  %v1597 = vpop.f32.mrb[0].mxu0
  %v1598 = vadd.f32 0.0, %v1597
  %v1599 = vpop.f32.mrb[0].mxu0
  %1600 = vmatprep.mubr.f32.mxu0 0.0
  %1601 = vmatmul.mubr.f32.gmra.mrb[0].mxu0 %v1159
  %v1602 = vpop.f32.mrb[0].mxu0
  %v1603 = vadd.f32 0.0, %v1602
  %v1604 = vpop.f32.mrb[0].mxu0
  %1605 = vmatprep.mubr.f32.mxu0 0.0
  %1606 = vmatmul.mubr.f32.gmra.mrb[0].mxu0 %v1162
  %v1607 = vpop.f32.mrb[0].mxu0
  %v1608 = vadd.f32 0.0, %v1607
  %v1609 = vpop.f32.mrb[0].mxu0
  %1610 = vmatprep.mubr.f32.mxu0 0.0
  %1611 = vmatmul.mubr.f32.gmra.mrb[0].mxu0 %v1165
  %v1612 = vpop.f32.mrb[0].mxu0
  %v1613 = vadd.f32 0.0, %v1612
  %v1614 = vpop.f32.mrb[0].mxu0
  %1615 = vmatprep.mubr.f32.mxu0 0.0
  %1616 = vmatmul.mubr.f32.gmra.mrb[0].mxu0 %v1168
  %v1617 = vpop.f32.mrb[0].mxu0
  %v1618 = vadd.f32 0.0, %v1617
  %v1619 = vpop.f32.mrb[0].mxu0
  %1620 = vmatprep.mubr.f32.mxu0 0.0
  %1621 = vmatmul.mubr.f32.gmra.mrb[0].mxu0 %v1171
  %v1622 = vpop.f32.mrb[0].mxu0
  %v1623 = vadd.f32 0.0, %v1622
  %v1624 = vpop.f32.mrb[0].mxu0
  %1625 = vmatprep.mubr.f32.mxu0 0.0
  %1626 = vmatmul.mubr.f32.gmra.mrb[0].mxu0 %v1174
  %v1627 = vpop.f32.mrb[0].mxu0
  %v1628 = vadd.f32 0.0, %v1627
  %v1629 = vpop.f32.mrb[0].mxu0
  %1630 = vmatprep.mubr.f32.mxu0 0.0
  %1631 = vmatmul.mubr.f32.gmra.mrb[0].mxu0 %v1177
  %v1632 = vpop.f32.mrb[0].mxu0
  %v1633 = vadd.f32 0.0, %v1632
  %v1634 = vpop.f32.mrb[0].mxu0
  %1635 = vmatprep.mubr.f32.mxu0 0.0
  %1636 = vmatmul.mubr.f32.gmra.mrb[0].mxu0 %v1180
  %v1637 = vpop.f32.mrb[0].mxu0
  %v1638 = vadd.f32 0.0, %v1637
  %v1639 = vpop.f32.mrb[0].mxu0
  %1640 = vmatprep.mubr.f32.mxu0 0.0
  %1641 = vmatmul.mubr.f32.gmra.mrb[0].mxu0 %v1183
  %v1642 = vpop.f32.mrb[0].mxu0
  %v1643 = vadd.f32 0.0, %v1642
  %v1644 = vpop.f32.mrb[0].mxu0
  %1645 = vmatprep.mubr.f32.mxu0 0.0
  %1646 = vmatmul.mubr.f32.gmra.mrb[0].mxu0 %v1186
  %v1647 = vpop.f32.mrb[0].mxu0
  %v1648 = vadd.f32 0.0, %v1647
  %v1649 = vpop.f32.mrb[0].mxu0
  %1650 = vmatprep.mubr.f32.mxu0 0.0
  %1651 = vmatmul.mubr.f32.gmra.mrb[0].mxu0 %v1189
  %v1652 = vpop.f32.mrb[0].mxu0
  %v1653 = vadd.f32 0.0, %v1652
  %v1654 = vpop.f32.mrb[0].mxu0
  %1655 = vmatprep.mubr.f32.mxu0 0.0
  %1656 = vmatmul.mubr.f32.gmra.mrb[0].mxu0 %v1192
  %v1657 = vpop.f32.mrb[0].mxu0
  %v1658 = vadd.f32 0.0, %v1657
  %v1659 = vpop.f32.mrb[0].mxu0
  %1660 = vmatprep.mubr.f32.mxu0 0.0
  %1661 = vmatmul.mubr.f32.gmra.mrb[0].mxu0 %v1195
  %v1662 = vpop.f32.mrb[0].mxu0
  %v1663 = vadd.f32 0.0, %v1662
  %v1664 = vpop.f32.mrb[0].mxu0
  %1665 = vmatprep.mubr.f32.mxu0 0.0
  %1666 = vmatmul.mubr.f32.gmra.mrb[0].mxu0 %v1198
  %v1667 = vpop.f32.mrb[0].mxu0
  %v1668 = vadd.f32 0.0, %v1667
  %v1669 = vpop.f32.mrb[0].mxu0
  %1670 = vmatprep.mubr.f32.mxu0 0.0
  %1671 = vmatmul.mubr.f32.gmra.mrb[0].mxu0 %v1201
  %v1672 = vpop.f32.mrb[0].mxu0
  %v1673 = vadd.f32 0.0, %v1672
  %v1674 = vpop.f32.mrb[0].mxu0
  %1675 = vmatprep.mubr.f32.mxu0 0.0
  %1676 = vmatmul.mubr.f32.gmra.mrb[0].mxu0 %v1204
  %v1677 = vpop.f32.mrb[0].mxu0
  %v1678 = vadd.f32 0.0, %v1677
  %v1679 = vpop.f32.mrb[0].mxu0
  %1680 = vmatprep.mubr.f32.mxu0 0.0
  %1681 = vmatmul.mubr.f32.gmra.mrb[0].mxu0 %v1207
  %v1682 = vpop.f32.mrb[0].mxu0
  %v1683 = vadd.f32 0.0, %v1682
  %v1684 = vpop.f32.mrb[0].mxu0
  %1685 = vmatprep.mubr.f32.mxu0 0.0
  %1686 = vmatmul.mubr.f32.gmra.mrb[0].mxu0 %v1210
  %v1687 = vpop.f32.mrb[0].mxu0
  %v1688 = vadd.f32 0.0, %v1687
  %v1689 = vpop.f32.mrb[0].mxu0
  %1690 = vmatprep.mubr.f32.mxu0 0.0
  %1691 = vmatmul.mubr.f32.gmra.mrb[0].mxu0 %v1213
  %v1692 = vpop.f32.mrb[0].mxu0
  %v1693 = vadd.f32 0.0, %v1692
  %v1694 = vpop.f32.mrb[0].mxu0
  %1695 = vmatprep.mubr.f32.mxu0 0.0
  %1696 = vmatmul.mubr.f32.gmra.mrb[0].mxu0 %v1216
  %v1697 = vpop.f32.mrb[0].mxu0
  %v1698 = vadd.f32 0.0, %v1697
  %v1699 = vpop.f32.mrb[0].mxu0
  %1700 = vmatprep.mubr.f32.mxu0 0.0
  %1701 = vmatmul.mubr.f32.gmra.mrb[0].mxu0 %v1219
  %v1702 = vpop.f32.mrb[0].mxu0
  %v1703 = vadd.f32 0.0, %v1702
  %v1704 = vpop.f32.mrb[0].mxu0
  %1705 = vmatprep.mubr.f32.mxu0 0.0
  %1706 = vmatmul.mubr.f32.gmra.mrb[0].mxu0 %v1222
  %v1707 = vpop.f32.mrb[0].mxu0
  %v1708 = vadd.f32 0.0, %v1707
  %v1709 = vpop.f32.mrb[0].mxu0
  %1710 = vmatprep.mubr.f32.mxu0 0.0
  %1711 = vmatmul.mubr.f32.gmra.mrb[0].mxu0 %v1225
  %v1712 = vpop.f32.mrb[0].mxu0
  %v1713 = vadd.f32 0.0, %v1712
  %v1714 = vpop.f32.mrb[0].mxu0
  %1715 = vmatprep.mubr.f32.mxu0 0.0
  %1716 = vmatmul.mubr.f32.gmra.mrb[0].mxu0 %v1228
  %v1717 = vpop.f32.mrb[0].mxu0
  %v1718 = vadd.f32 0.0, %v1717
  %v1719 = vpop.f32.mrb[0].mxu0
  %1720 = vmatprep.mubr.f32.mxu0 0.0
  %1721 = vmatmul.mubr.f32.gmra.mrb[0].mxu0 %v1231
  %v1722 = vpop.f32.mrb[0].mxu0
  %v1723 = vadd.f32 0.0, %v1722
  %v1724 = vpop.f32.mrb[0].mxu0
  %1725 = vmatprep.mubr.f32.mxu0 0.0
  %1726 = vmatmul.mubr.f32.gmra.mrb[0].mxu0 %v1234
  %v1727 = vpop.f32.mrb[0].mxu0
  %v1728 = vadd.f32 0.0, %v1727
  %v1729 = vpop.f32.mrb[0].mxu0
  %1730 = vmatprep.mubr.f32.mxu0 0.0
  %1731 = vmatmul.mubr.f32.gmra.mrb[0].mxu0 %v1237
  %v1732 = vpop.f32.mrb[0].mxu0
  %v1733 = vadd.f32 0.0, %v1732
  %v1734 = vpop.f32.mrb[0].mxu0
  %1735 = vmatprep.mubr.f32.mxu0 0.0
  %1736 = vmatmul.mubr.f32.gmra.mrb[0].mxu0 %v1240
  %v1737 = vpop.f32.mrb[0].mxu0
  %v1738 = vadd.f32 0.0, %v1737
  %v1739 = vpop.f32.mrb[0].mxu0
  %1740 = vmatprep.mubr.f32.mxu0 0.0
  %1741 = vmatmul.mubr.f32.gmra.mrb[0].mxu0 %v1243
  %v1742 = vpop.f32.mrb[0].mxu0
  %v1743 = vadd.f32 0.0, %v1742
  %v1744 = vpop.f32.mrb[0].mxu0
  %1745 = vmatprep.mubr.f32.mxu0 0.0
  %1746 = vmatmul.mubr.f32.gmra.mrb[0].mxu0 %v1246
  %v1747 = vpop.f32.mrb[0].mxu0
  %v1748 = vadd.f32 0.0, %v1747
  %v1749 = vpop.f32.mrb[0].mxu0
  %1750 = vmatprep.mubr.f32.mxu0 0.0
  %1751 = vmatmul.mubr.f32.gmra.mrb[0].mxu0 %v1249
  %v1752 = vpop.f32.mrb[0].mxu0
  %v1753 = vadd.f32 0.0, %v1752
  %v1754 = vpop.f32.mrb[0].mxu0
  %1755 = vdwg.mxu0
  %v1756 = vmax.f32 %v460, %v1318
  %v1757 = vmax.f32 %v465, %v1323
  %v1758 = vmax.f32 %v470, %v1328
  %v1759 = vmax.f32 %v475, %v1333
  %v1760 = vmax.f32 %v480, %v1338
  %v1761 = vmax.f32 %v485, %v1343
  %v1762 = vmax.f32 %v490, %v1348
  %v1763 = vmax.f32 %v495, %v1353
  %v1764 = vmax.f32 %v500, %v1358
  %v1765 = vmax.f32 %v505, %v1363
  %v1766 = vmax.f32 %v510, %v1368
  %v1767 = vmax.f32 %v515, %v1373
  %v1768 = vmax.f32 %v520, %v1378
  %v1769 = vmax.f32 %v525, %v1383
  %v1770 = vmax.f32 %v530, %v1388
  %v1771 = vmax.f32 %v535, %v1393
  %v1772 = vmax.f32 %v540, %v1398
  %v1773 = vmax.f32 %v545, %v1403
  %v1774 = vmax.f32 %v550, %v1408
  %v1775 = vmax.f32 %v555, %v1413
  %v1776 = vmax.f32 %v560, %v1418
  %v1777 = vmax.f32 %v565, %v1423
  %v1778 = vmax.f32 %v570, %v1428
  %v1779 = vmax.f32 %v575, %v1433
  %v1780 = vmax.f32 %v580, %v1438
  %v1781 = vmax.f32 %v585, %v1443
  %v1782 = vmax.f32 %v590, %v1448
  %v1783 = vmax.f32 %v595, %v1453
  %v1784 = vmax.f32 %v600, %v1458
  %v1785 = vmax.f32 %v605, %v1463
  %v1786 = vmax.f32 %v610, %v1468
  %v1787 = vmax.f32 %v615, %v1473
  %v1788 = vmax.f32 %v620, %v1478
  %v1789 = vmax.f32 %v625, %v1483
  %v1790 = vmax.f32 %v630, %v1488
  %v1791 = vmax.f32 %v635, %v1493
  %v1792 = vmax.f32 %v640, %v1498
  %v1793 = vmax.f32 %v645, %v1503
  %v1794 = vmax.f32 %v650, %v1508
  %v1795 = vmax.f32 %v655, %v1513
  %v1796 = vmax.f32 %v660, %v1518
  %v1797 = vmax.f32 %v665, %v1523
  %v1798 = vmax.f32 %v670, %v1528
  %v1799 = vmax.f32 %v675, %v1533
  %v1800 = vmax.f32 %v680, %v1538
  %v1801 = vmax.f32 %v685, %v1543
  %v1802 = vmax.f32 %v690, %v1548
  %v1803 = vmax.f32 %v695, %v1553
  %v1804 = vmax.f32 %v700, %v1558
  %v1805 = vmax.f32 %v705, %v1563
  %v1806 = vmax.f32 %v710, %v1568
  %v1807 = vmax.f32 %v715, %v1573
  %v1808 = vmax.f32 %v720, %v1578
  %v1809 = vmax.f32 %v725, %v1583
  %v1810 = vmax.f32 %v730, %v1588
  %v1811 = vmax.f32 %v735, %v1593
  %v1812 = vmax.f32 %v740, %v1598
  %v1813 = vmax.f32 %v745, %v1603
  %v1814 = vmax.f32 %v750, %v1608
  %v1815 = vmax.f32 %v755, %v1613
  %v1816 = vmax.f32 %v760, %v1618
  %v1817 = vmax.f32 %v765, %v1623
  %v1818 = vmax.f32 %v770, %v1628
  %v1819 = vmax.f32 %v775, %v1633
  %v1820 = vmax.f32 %v780, %v1638
  %v1821 = vmax.f32 %v785, %v1643
  %v1822 = vmax.f32 %v790, %v1648
  %v1823 = vmax.f32 %v795, %v1653
  %v1824 = vmax.f32 %v800, %v1658
  %v1825 = vmax.f32 %v805, %v1663
  %v1826 = vmax.f32 %v810, %v1668
  %v1827 = vmax.f32 %v815, %v1673
  %v1828 = vmax.f32 %v820, %v1678
  %v1829 = vmax.f32 %v825, %v1683
  %v1830 = vmax.f32 %v830, %v1688
  %v1831 = vmax.f32 %v835, %v1693
  %v1832 = vmax.f32 %v840, %v1698
  %v1833 = vmax.f32 %v845, %v1703
  %v1834 = vmax.f32 %v850, %v1708
  %v1835 = vmax.f32 %v855, %v1713
  %v1836 = vmax.f32 %v860, %v1718
  %v1837 = vmax.f32 %v865, %v1723
  %v1838 = vmax.f32 %v870, %v1728
  %v1839 = vmax.f32 %v875, %v1733
  %v1840 = vmax.f32 %v880, %v1738
  %v1841 = vmax.f32 %v885, %v1743
  %v1842 = vmax.f32 %v890, %v1748
  %v1843 = vmax.f32 %v895, %v1753
  %s1844 = scalar_lea.vmem %s0, 1408
  %v1845 = vld [vmem:[%s1844] sm:$0xff]
  %v1846 = vld [vmem:[%s1844 + $0x8] sm:$0xff]
  %v1847 = vld [vmem:[%s1844 + $0x10] sm:$0xff]
  %v1848 = vld [vmem:[%s1844 + $0x18] sm:$0xff]
  %v1849 = vld [vmem:[%s1844 + $0x20] sm:$0xff]
  %v1850 = vld [vmem:[%s1844 + $0x28] sm:$0xff]
  %v1851 = vld [vmem:[%s1844 + $0x30] sm:$0xff]
  %v1852 = vld [vmem:[%s1844 + $0x38] sm:$0xff]
  %v1853 = vld [vmem:[%s1844 + $0x40] sm:$0xff]
  %v1854 = vld [vmem:[%s1844 + $0x48] sm:$0xff]
  %v1855 = vld [vmem:[%s1844 + $0x50] sm:$0xff]
  %v1856 = vld [vmem:[%s1844 + $0x58] sm:$0xff]
  %v1857 = vld [vmem:[%s1844 + $0x60] sm:$0xff]
  %v1858 = vld [vmem:[%s1844 + $0x68] sm:$0xff]
  %v1859 = vld [vmem:[%s1844 + $0x70] sm:$0xff]
  %v1860 = vld [vmem:[%s1844 + $0x78] sm:$0xff]
  %v1861 = vld [vmem:[%s1844 + $0x80] sm:$0xff]
  %v1862 = vld [vmem:[%s1844 + $0x88] sm:$0xff]
  %v1863 = vld [vmem:[%s1844 + $0x90] sm:$0xff]
  %v1864 = vld [vmem:[%s1844 + $0x98] sm:$0xff]
  %v1865 = vld [vmem:[%s1844 + $0xa0] sm:$0xff]
  %v1866 = vld [vmem:[%s1844 + $0xa8] sm:$0xff]
  %v1867 = vld [vmem:[%s1844 + $0xb0] sm:$0xff]
  %v1868 = vld [vmem:[%s1844 + $0xb8] sm:$0xff]
  %v1869 = vld [vmem:[%s1844 + $0xc0] sm:$0xff]
  %v1870 = vld [vmem:[%s1844 + $0xc8] sm:$0xff]
  %v1871 = vld [vmem:[%s1844 + $0xd0] sm:$0xff]
  %v1872 = vld [vmem:[%s1844 + $0xd8] sm:$0xff]
  %v1873 = vld [vmem:[%s1844 + $0xe0] sm:$0xff]
  %v1874 = vld [vmem:[%s1844 + $0xe8] sm:$0xff]
  %v1875 = vld [vmem:[%s1844 + $0xf0] sm:$0xff]
  %v1876 = vld [vmem:[%s1844 + $0xf8] sm:$0xff]
  %v1877 = vld [vmem:[%s1844 + $0x100] sm:$0xff]
  %v1878 = vld [vmem:[%s1844 + $0x108] sm:$0xff]
  %v1879 = vld [vmem:[%s1844 + $0x110] sm:$0xff]
  %v1880 = vld [vmem:[%s1844 + $0x118] sm:$0xff]
  %v1881 = vld [vmem:[%s1844 + $0x120] sm:$0xff]
  %v1882 = vld [vmem:[%s1844 + $0x128] sm:$0xff]
  %v1883 = vld [vmem:[%s1844 + $0x130] sm:$0xff]
  %v1884 = vld [vmem:[%s1844 + $0x138] sm:$0xff]
  %v1885 = vld [vmem:[%s1844 + $0x140] sm:$0xff]
  %v1886 = vld [vmem:[%s1844 + $0x148] sm:$0xff]
  %v1887 = vld [vmem:[%s1844 + $0x150] sm:$0xff]
  %v1888 = vld [vmem:[%s1844 + $0x158] sm:$0xff]
  %v1889 = vld [vmem:[%s1844 + $0x160] sm:$0xff]
  %v1890 = vld [vmem:[%s1844 + $0x168] sm:$0xff]
  %v1891 = vld [vmem:[%s1844 + $0x170] sm:$0xff]
  %v1892 = vld [vmem:[%s1844 + $0x178] sm:$0xff]
  %v1893 = vld [vmem:[%s1844 + $0x180] sm:$0xff]
  %v1894 = vld [vmem:[%s1844 + $0x188] sm:$0xff]
  %v1895 = vld [vmem:[%s1844 + $0x190] sm:$0xff]
  %v1896 = vld [vmem:[%s1844 + $0x198] sm:$0xff]
  %v1897 = vld [vmem:[%s1844 + $0x1a0] sm:$0xff]
  %v1898 = vld [vmem:[%s1844 + $0x1a8] sm:$0xff]
  %v1899 = vld [vmem:[%s1844 + $0x1b0] sm:$0xff]
  %v1900 = vld [vmem:[%s1844 + $0x1b8] sm:$0xff]
  %v1901 = vld [vmem:[%s1844 + $0x1c0] sm:$0xff]
  %v1902 = vld [vmem:[%s1844 + $0x1c8] sm:$0xff]
  %v1903 = vld [vmem:[%s1844 + $0x1d0] sm:$0xff]
  %v1904 = vld [vmem:[%s1844 + $0x1d8] sm:$0xff]
  %v1905 = vld [vmem:[%s1844 + $0x1e0] sm:$0xff]
  %v1906 = vld [vmem:[%s1844 + $0x1e8] sm:$0xff]
  %v1907 = vld [vmem:[%s1844 + $0x1f0] sm:$0xff]
  %v1908 = vld [vmem:[%s1844 + $0x1f8] sm:$0xff]
  %v1909 = vld [vmem:[%s1844 + $0x200] sm:$0xff]
  %v1910 = vld [vmem:[%s1844 + $0x208] sm:$0xff]
  %v1911 = vld [vmem:[%s1844 + $0x210] sm:$0xff]
  %v1912 = vld [vmem:[%s1844 + $0x218] sm:$0xff]
  %v1913 = vld [vmem:[%s1844 + $0x220] sm:$0xff]
  %v1914 = vld [vmem:[%s1844 + $0x228] sm:$0xff]
  %v1915 = vld [vmem:[%s1844 + $0x230] sm:$0xff]
  %v1916 = vld [vmem:[%s1844 + $0x238] sm:$0xff]
  %v1917 = vld [vmem:[%s1844 + $0x240] sm:$0xff]
  %v1918 = vld [vmem:[%s1844 + $0x248] sm:$0xff]
  %v1919 = vld [vmem:[%s1844 + $0x250] sm:$0xff]
  %v1920 = vld [vmem:[%s1844 + $0x258] sm:$0xff]
  %v1921 = vld [vmem:[%s1844 + $0x260] sm:$0xff]
  %v1922 = vld [vmem:[%s1844 + $0x268] sm:$0xff]
  %v1923 = vld [vmem:[%s1844 + $0x270] sm:$0xff]
  %v1924 = vld [vmem:[%s1844 + $0x278] sm:$0xff]
  %v1925 = vld [vmem:[%s1844 + $0x280] sm:$0xff]
  %v1926 = vld [vmem:[%s1844 + $0x288] sm:$0xff]
  %v1927 = vld [vmem:[%s1844 + $0x290] sm:$0xff]
  %v1928 = vld [vmem:[%s1844 + $0x298] sm:$0xff]
  %v1929 = vld [vmem:[%s1844 + $0x2a0] sm:$0xff]
  %v1930 = vld [vmem:[%s1844 + $0x2a8] sm:$0xff]
  %v1931 = vld [vmem:[%s1844 + $0x2b0] sm:$0xff]
  %v1932 = vld [vmem:[%s1844 + $0x2b8] sm:$0xff]
  %v1934 = vsel %vm128, %v1845, 0
  %v1937 = vsel %vm128, %v1846, 0
  %v1940 = vsel %vm128, %v1847, 0
  %v1943 = vsel %vm128, %v1848, 0
  %v1946 = vsel %vm128, %v1849, 0
  %v1949 = vsel %vm128, %v1850, 0
  %v1952 = vsel %vm128, %v1851, 0
  %v1955 = vsel %vm128, %v1852, 0
  %v1958 = vsel %vm128, %v1853, 0
  %v1961 = vsel %vm128, %v1854, 0
  %v1964 = vsel %vm128, %v1855, 0
  %v1967 = vsel %vm128, %v1856, 0
  %v1970 = vsel %vm128, %v1857, 0
  %v1973 = vsel %vm128, %v1858, 0
  %v1976 = vsel %vm128, %v1859, 0
  %v1979 = vsel %vm128, %v1860, 0
  %v1982 = vsel %vm128, %v1861, 0
  %v1985 = vsel %vm128, %v1862, 0
  %v1988 = vsel %vm128, %v1863, 0
  %v1991 = vsel %vm128, %v1864, 0
  %v1994 = vsel %vm128, %v1865, 0
  %v1997 = vsel %vm128, %v1866, 0
  %v2000 = vsel %vm128, %v1867, 0
  %v2003 = vsel %vm128, %v1868, 0
  %v2006 = vsel %vm128, %v1869, 0
  %v2009 = vsel %vm128, %v1870, 0
  %v2012 = vsel %vm128, %v1871, 0
  %v2015 = vsel %vm128, %v1872, 0
  %v2018 = vsel %vm128, %v1873, 0
  %v2021 = vsel %vm128, %v1874, 0
  %v2024 = vsel %vm128, %v1875, 0
  %v2027 = vsel %vm128, %v1876, 0
  %v2030 = vsel %vm128, %v1877, 0
  %v2033 = vsel %vm128, %v1878, 0
  %v2036 = vsel %vm128, %v1879, 0
  %v2039 = vsel %vm128, %v1880, 0
  %v2042 = vsel %vm128, %v1881, 0
  %v2045 = vsel %vm128, %v1882, 0
  %v2048 = vsel %vm128, %v1883, 0
  %v2051 = vsel %vm128, %v1884, 0
  %v2054 = vsel %vm128, %v1885, 0
  %v2057 = vsel %vm128, %v1886, 0
  %v2060 = vsel %vm128, %v1887, 0
  %v2063 = vsel %vm128, %v1888, 0
  %v2066 = vsel %vm128, %v1889, 0
  %v2069 = vsel %vm128, %v1890, 0
  %v2072 = vsel %vm128, %v1891, 0
  %v2075 = vsel %vm128, %v1892, 0
  %v2078 = vsel %vm128, %v1893, 0
  %v2081 = vsel %vm128, %v1894, 0
  %v2084 = vsel %vm128, %v1895, 0
  %v2087 = vsel %vm128, %v1896, 0
  %v2090 = vsel %vm128, %v1897, 0
  %v2093 = vsel %vm128, %v1898, 0
  %v2096 = vsel %vm128, %v1899, 0
  %v2099 = vsel %vm128, %v1900, 0
  %v2102 = vsel %vm128, %v1901, 0
  %v2105 = vsel %vm128, %v1902, 0
  %v2108 = vsel %vm128, %v1903, 0
  %v2111 = vsel %vm128, %v1904, 0
  %v2114 = vsel %vm128, %v1905, 0
  %v2117 = vsel %vm128, %v1906, 0
  %v2120 = vsel %vm128, %v1907, 0
  %v2123 = vsel %vm128, %v1908, 0
  %v2126 = vsel %vm128, %v1909, 0
  %v2129 = vsel %vm128, %v1910, 0
  %v2132 = vsel %vm128, %v1911, 0
  %v2135 = vsel %vm128, %v1912, 0
  %v2138 = vsel %vm128, %v1913, 0
  %v2141 = vsel %vm128, %v1914, 0
  %v2144 = vsel %vm128, %v1915, 0
  %v2147 = vsel %vm128, %v1916, 0
  %v2150 = vsel %vm128, %v1917, 0
  %v2153 = vsel %vm128, %v1918, 0
  %v2156 = vsel %vm128, %v1919, 0
  %v2159 = vsel %vm128, %v1920, 0
  %v2162 = vsel %vm128, %v1921, 0
  %v2165 = vsel %vm128, %v1922, 0
  %v2168 = vsel %vm128, %v1923, 0
  %v2171 = vsel %vm128, %v1924, 0
  %v2174 = vsel %vm128, %v1925, 0
  %v2177 = vsel %vm128, %v1926, 0
  %v2180 = vsel %vm128, %v1927, 0
  %v2183 = vsel %vm128, %v1928, 0
  %v2186 = vsel %vm128, %v1929, 0
  %v2189 = vsel %vm128, %v1930, 0
  %v2192 = vsel %vm128, %v1931, 0
  %v2195 = vsel %vm128, %v1932, 0
  %2197 = vmatprep.subr.mxu0 0.0
  %2198 = vmatpush1.msra.mxu0 %v32
  %2199 = vmatprep.subr.mxu0 0.0
  %2200 = vmatpush1.msra.mxu0 %v33
  %2201 = vmatprep.subr.mxu0 0.0
  %2202 = vmatpush1.msra.mxu0 %v34
  %2203 = vmatprep.subr.mxu0 0.0
  %2204 = vmatpush1.msra.mxu0 %v35
  %2205 = vmatprep.subr.mxu0 0.0
  %2206 = vmatpush1.msra.mxu0 %v36
  %2207 = vmatprep.subr.mxu0 0.0
  %2208 = vmatpush1.msra.mxu0 %v37
  %2209 = vmatprep.subr.mxu0 0.0
  %2210 = vmatpush1.msra.mxu0 %v38
  %2211 = vmatprep.subr.mxu0 0.0
  %2212 = vmatpush1.msra.mxu0 %v39
  %2213 = vmatprep.subr.mxu0 0.0
  %2214 = vmatpush1.msra.mxu0 0.0
  %2215 = vmatprep.subr.mxu0 0.0
  %2216 = vmatpush1.msra.mxu0 0.0
  %2217 = vmatprep.subr.mxu0 0.0
  %2218 = vmatpush1.msra.mxu0 0.0
  %2219 = vmatprep.subr.mxu0 0.0
  %2220 = vmatpush1.msra.mxu0 0.0
  %2221 = vmatprep.subr.mxu0 0.0
  %2222 = vmatpush1.msra.mxu0 0.0
  %2223 = vmatprep.subr.mxu0 0.0
  %2224 = vmatpush1.msra.mxu0 0.0
  %2225 = vmatprep.subr.mxu0 0.0
  %2226 = vmatpush1.msra.mxu0 0.0
  %2227 = vmatprep.subr.mxu0 0.0
  %2228 = vmatpush1.msra.mxu0 0.0
  %2229 = vmatprep.subr.mxu0 0.0
  %2230 = vmatpush1.msra.mxu0 0.0
  %2231 = vmatprep.subr.mxu0 0.0
  %2232 = vmatpush1.msra.mxu0 0.0
  %2233 = vmatprep.subr.mxu0 0.0
  %2234 = vmatpush1.msra.mxu0 0.0
  %2235 = vmatprep.subr.mxu0 0.0
  %2236 = vmatpush1.msra.mxu0 0.0
  %2237 = vmatprep.subr.mxu0 0.0
  %2238 = vmatpush1.msra.mxu0 0.0
  %2239 = vmatprep.subr.mxu0 0.0
  %2240 = vmatpush1.msra.mxu0 0.0
  %2241 = vmatprep.subr.mxu0 0.0
  %2242 = vmatpush1.msra.mxu0 0.0
  %2243 = vmatprep.subr.mxu0 0.0
  %2244 = vmatpush1.msra.mxu0 0.0
  %2245 = vmatprep.subr.mxu0 0.0
  %2246 = vmatpush1.msra.mxu0 0.0
  %2247 = vmatprep.subr.mxu0 0.0
  %2248 = vmatpush1.msra.mxu0 0.0
  %2249 = vmatprep.subr.mxu0 0.0
  %2250 = vmatpush1.msra.mxu0 0.0
  %2251 = vmatprep.subr.mxu0 0.0
  %2252 = vmatpush1.msra.mxu0 0.0
  %2253 = vmatprep.subr.mxu0 0.0
  %2254 = vmatpush1.msra.mxu0 0.0
  %2255 = vmatprep.subr.mxu0 0.0
  %2256 = vmatpush1.msra.mxu0 0.0
  %2257 = vmatprep.subr.mxu0 0.0
  %2258 = vmatpush1.msra.mxu0 0.0
  %2259 = vmatprep.subr.mxu0 0.0
  %2260 = vmatpush1.msra.mxu0 0.0
  %2261 = vmatprep.mubr.f32.mxu0 0.0
  %2262 = vmatmul.mubr.f32.gmra.mrb[0].mxu0 %v1934
  %v2263 = vpop.f32.mrb[0].mxu0
  %v2264 = vadd.f32 0.0, %v2263
  %v2265 = vpop.f32.mrb[0].mxu0
  %2266 = vmatprep.mubr.f32.mxu0 0.0
  %2267 = vmatmul.mubr.f32.gmra.mrb[0].mxu0 %v1937
  %v2268 = vpop.f32.mrb[0].mxu0
  %v2269 = vadd.f32 0.0, %v2268
  %v2270 = vpop.f32.mrb[0].mxu0
  %2271 = vmatprep.mubr.f32.mxu0 0.0
  %2272 = vmatmul.mubr.f32.gmra.mrb[0].mxu0 %v1940
  %v2273 = vpop.f32.mrb[0].mxu0
  %v2274 = vadd.f32 0.0, %v2273
  %v2275 = vpop.f32.mrb[0].mxu0
  %2276 = vmatprep.mubr.f32.mxu0 0.0
  %2277 = vmatmul.mubr.f32.gmra.mrb[0].mxu0 %v1943
  %v2278 = vpop.f32.mrb[0].mxu0
  %v2279 = vadd.f32 0.0, %v2278
  %v2280 = vpop.f32.mrb[0].mxu0
  %2281 = vmatprep.mubr.f32.mxu0 0.0
  %2282 = vmatmul.mubr.f32.gmra.mrb[0].mxu0 %v1946
  %v2283 = vpop.f32.mrb[0].mxu0
  %v2284 = vadd.f32 0.0, %v2283
  %v2285 = vpop.f32.mrb[0].mxu0
  %2286 = vmatprep.mubr.f32.mxu0 0.0
  %2287 = vmatmul.mubr.f32.gmra.mrb[0].mxu0 %v1949
  %v2288 = vpop.f32.mrb[0].mxu0
  %v2289 = vadd.f32 0.0, %v2288
  %v2290 = vpop.f32.mrb[0].mxu0
  %2291 = vmatprep.mubr.f32.mxu0 0.0
  %2292 = vmatmul.mubr.f32.gmra.mrb[0].mxu0 %v1952
  %v2293 = vpop.f32.mrb[0].mxu0
  %v2294 = vadd.f32 0.0, %v2293
  %v2295 = vpop.f32.mrb[0].mxu0
  %2296 = vmatprep.mubr.f32.mxu0 0.0
  %2297 = vmatmul.mubr.f32.gmra.mrb[0].mxu0 %v1955
  %v2298 = vpop.f32.mrb[0].mxu0
  %v2299 = vadd.f32 0.0, %v2298
  %v2300 = vpop.f32.mrb[0].mxu0
  %2301 = vmatprep.mubr.f32.mxu0 0.0
  %2302 = vmatmul.mubr.f32.gmra.mrb[0].mxu0 %v1958
  %v2303 = vpop.f32.mrb[0].mxu0
  %v2304 = vadd.f32 0.0, %v2303
  %v2305 = vpop.f32.mrb[0].mxu0
  %2306 = vmatprep.mubr.f32.mxu0 0.0
  %2307 = vmatmul.mubr.f32.gmra.mrb[0].mxu0 %v1961
  %v2308 = vpop.f32.mrb[0].mxu0
  %v2309 = vadd.f32 0.0, %v2308
  %v2310 = vpop.f32.mrb[0].mxu0
  %2311 = vmatprep.mubr.f32.mxu0 0.0
  %2312 = vmatmul.mubr.f32.gmra.mrb[0].mxu0 %v1964
  %v2313 = vpop.f32.mrb[0].mxu0
  %v2314 = vadd.f32 0.0, %v2313
  %v2315 = vpop.f32.mrb[0].mxu0
  %2316 = vmatprep.mubr.f32.mxu0 0.0
  %2317 = vmatmul.mubr.f32.gmra.mrb[0].mxu0 %v1967
  %v2318 = vpop.f32.mrb[0].mxu0
  %v2319 = vadd.f32 0.0, %v2318
  %v2320 = vpop.f32.mrb[0].mxu0
  %2321 = vmatprep.mubr.f32.mxu0 0.0
  %2322 = vmatmul.mubr.f32.gmra.mrb[0].mxu0 %v1970
  %v2323 = vpop.f32.mrb[0].mxu0
  %v2324 = vadd.f32 0.0, %v2323
  %v2325 = vpop.f32.mrb[0].mxu0
  %2326 = vmatprep.mubr.f32.mxu0 0.0
  %2327 = vmatmul.mubr.f32.gmra.mrb[0].mxu0 %v1973
  %v2328 = vpop.f32.mrb[0].mxu0
  %v2329 = vadd.f32 0.0, %v2328
  %v2330 = vpop.f32.mrb[0].mxu0
  %2331 = vmatprep.mubr.f32.mxu0 0.0
  %2332 = vmatmul.mubr.f32.gmra.mrb[0].mxu0 %v1976
  %v2333 = vpop.f32.mrb[0].mxu0
  %v2334 = vadd.f32 0.0, %v2333
  %v2335 = vpop.f32.mrb[0].mxu0
  %2336 = vmatprep.mubr.f32.mxu0 0.0
  %2337 = vmatmul.mubr.f32.gmra.mrb[0].mxu0 %v1979
  %v2338 = vpop.f32.mrb[0].mxu0
  %v2339 = vadd.f32 0.0, %v2338
  %v2340 = vpop.f32.mrb[0].mxu0
  %2341 = vmatprep.mubr.f32.mxu0 0.0
  %2342 = vmatmul.mubr.f32.gmra.mrb[0].mxu0 %v1982
  %v2343 = vpop.f32.mrb[0].mxu0
  %v2344 = vadd.f32 0.0, %v2343
  %v2345 = vpop.f32.mrb[0].mxu0
  %2346 = vmatprep.mubr.f32.mxu0 0.0
  %2347 = vmatmul.mubr.f32.gmra.mrb[0].mxu0 %v1985
  %v2348 = vpop.f32.mrb[0].mxu0
  %v2349 = vadd.f32 0.0, %v2348
  %v2350 = vpop.f32.mrb[0].mxu0
  %2351 = vmatprep.mubr.f32.mxu0 0.0
  %2352 = vmatmul.mubr.f32.gmra.mrb[0].mxu0 %v1988
  %v2353 = vpop.f32.mrb[0].mxu0
  %v2354 = vadd.f32 0.0, %v2353
  %v2355 = vpop.f32.mrb[0].mxu0
  %2356 = vmatprep.mubr.f32.mxu0 0.0
  %2357 = vmatmul.mubr.f32.gmra.mrb[0].mxu0 %v1991
  %v2358 = vpop.f32.mrb[0].mxu0
  %v2359 = vadd.f32 0.0, %v2358
  %v2360 = vpop.f32.mrb[0].mxu0
  %2361 = vmatprep.mubr.f32.mxu0 0.0
  %2362 = vmatmul.mubr.f32.gmra.mrb[0].mxu0 %v1994
  %v2363 = vpop.f32.mrb[0].mxu0
  %v2364 = vadd.f32 0.0, %v2363
  %v2365 = vpop.f32.mrb[0].mxu0
  %2366 = vmatprep.mubr.f32.mxu0 0.0
  %2367 = vmatmul.mubr.f32.gmra.mrb[0].mxu0 %v1997
  %v2368 = vpop.f32.mrb[0].mxu0
  %v2369 = vadd.f32 0.0, %v2368
  %v2370 = vpop.f32.mrb[0].mxu0
  %2371 = vmatprep.mubr.f32.mxu0 0.0
  %2372 = vmatmul.mubr.f32.gmra.mrb[0].mxu0 %v2000
  %v2373 = vpop.f32.mrb[0].mxu0
  %v2374 = vadd.f32 0.0, %v2373
  %v2375 = vpop.f32.mrb[0].mxu0
  %2376 = vmatprep.mubr.f32.mxu0 0.0
  %2377 = vmatmul.mubr.f32.gmra.mrb[0].mxu0 %v2003
  %v2378 = vpop.f32.mrb[0].mxu0
  %v2379 = vadd.f32 0.0, %v2378
  %v2380 = vpop.f32.mrb[0].mxu0
  %2381 = vmatprep.mubr.f32.mxu0 0.0
  %2382 = vmatmul.mubr.f32.gmra.mrb[0].mxu0 %v2006
  %v2383 = vpop.f32.mrb[0].mxu0
  %v2384 = vadd.f32 0.0, %v2383
  %v2385 = vpop.f32.mrb[0].mxu0
  %2386 = vmatprep.mubr.f32.mxu0 0.0
  %2387 = vmatmul.mubr.f32.gmra.mrb[0].mxu0 %v2009
  %v2388 = vpop.f32.mrb[0].mxu0
  %v2389 = vadd.f32 0.0, %v2388
  %v2390 = vpop.f32.mrb[0].mxu0
  %2391 = vmatprep.mubr.f32.mxu0 0.0
  %2392 = vmatmul.mubr.f32.gmra.mrb[0].mxu0 %v2012
  %v2393 = vpop.f32.mrb[0].mxu0
  %v2394 = vadd.f32 0.0, %v2393
  %v2395 = vpop.f32.mrb[0].mxu0
  %2396 = vmatprep.mubr.f32.mxu0 0.0
  %2397 = vmatmul.mubr.f32.gmra.mrb[0].mxu0 %v2015
  %v2398 = vpop.f32.mrb[0].mxu0
  %v2399 = vadd.f32 0.0, %v2398
  %v2400 = vpop.f32.mrb[0].mxu0
  %2401 = vmatprep.mubr.f32.mxu0 0.0
  %2402 = vmatmul.mubr.f32.gmra.mrb[0].mxu0 %v2018
  %v2403 = vpop.f32.mrb[0].mxu0
  %v2404 = vadd.f32 0.0, %v2403
  %v2405 = vpop.f32.mrb[0].mxu0
  %2406 = vmatprep.mubr.f32.mxu0 0.0
  %2407 = vmatmul.mubr.f32.gmra.mrb[0].mxu0 %v2021
  %v2408 = vpop.f32.mrb[0].mxu0
  %v2409 = vadd.f32 0.0, %v2408
  %v2410 = vpop.f32.mrb[0].mxu0
  %2411 = vmatprep.mubr.f32.mxu0 0.0
  %2412 = vmatmul.mubr.f32.gmra.mrb[0].mxu0 %v2024
  %v2413 = vpop.f32.mrb[0].mxu0
  %v2414 = vadd.f32 0.0, %v2413
  %v2415 = vpop.f32.mrb[0].mxu0
  %2416 = vmatprep.mubr.f32.mxu0 0.0
  %2417 = vmatmul.mubr.f32.gmra.mrb[0].mxu0 %v2027
  %v2418 = vpop.f32.mrb[0].mxu0
  %v2419 = vadd.f32 0.0, %v2418
  %v2420 = vpop.f32.mrb[0].mxu0
  %2421 = vmatprep.mubr.f32.mxu0 0.0
  %2422 = vmatmul.mubr.f32.gmra.mrb[0].mxu0 %v2030
  %v2423 = vpop.f32.mrb[0].mxu0
  %v2424 = vadd.f32 0.0, %v2423
  %v2425 = vpop.f32.mrb[0].mxu0
  %2426 = vmatprep.mubr.f32.mxu0 0.0
  %2427 = vmatmul.mubr.f32.gmra.mrb[0].mxu0 %v2033
  %v2428 = vpop.f32.mrb[0].mxu0
  %v2429 = vadd.f32 0.0, %v2428
  %v2430 = vpop.f32.mrb[0].mxu0
  %2431 = vmatprep.mubr.f32.mxu0 0.0
  %2432 = vmatmul.mubr.f32.gmra.mrb[0].mxu0 %v2036
  %v2433 = vpop.f32.mrb[0].mxu0
  %v2434 = vadd.f32 0.0, %v2433
  %v2435 = vpop.f32.mrb[0].mxu0
  %2436 = vmatprep.mubr.f32.mxu0 0.0
  %2437 = vmatmul.mubr.f32.gmra.mrb[0].mxu0 %v2039
  %v2438 = vpop.f32.mrb[0].mxu0
  %v2439 = vadd.f32 0.0, %v2438
  %v2440 = vpop.f32.mrb[0].mxu0
  %2441 = vmatprep.mubr.f32.mxu0 0.0
  %2442 = vmatmul.mubr.f32.gmra.mrb[0].mxu0 %v2042
  %v2443 = vpop.f32.mrb[0].mxu0
  %v2444 = vadd.f32 0.0, %v2443
  %v2445 = vpop.f32.mrb[0].mxu0
  %2446 = vmatprep.mubr.f32.mxu0 0.0
  %2447 = vmatmul.mubr.f32.gmra.mrb[0].mxu0 %v2045
  %v2448 = vpop.f32.mrb[0].mxu0
  %v2449 = vadd.f32 0.0, %v2448
  %v2450 = vpop.f32.mrb[0].mxu0
  %2451 = vmatprep.mubr.f32.mxu0 0.0
  %2452 = vmatmul.mubr.f32.gmra.mrb[0].mxu0 %v2048
  %v2453 = vpop.f32.mrb[0].mxu0
  %v2454 = vadd.f32 0.0, %v2453
  %v2455 = vpop.f32.mrb[0].mxu0
  %2456 = vmatprep.mubr.f32.mxu0 0.0
  %2457 = vmatmul.mubr.f32.gmra.mrb[0].mxu0 %v2051
  %v2458 = vpop.f32.mrb[0].mxu0
  %v2459 = vadd.f32 0.0, %v2458
  %v2460 = vpop.f32.mrb[0].mxu0
  %2461 = vmatprep.mubr.f32.mxu0 0.0
  %2462 = vmatmul.mubr.f32.gmra.mrb[0].mxu0 %v2054
  %v2463 = vpop.f32.mrb[0].mxu0
  %v2464 = vadd.f32 0.0, %v2463
  %v2465 = vpop.f32.mrb[0].mxu0
  %2466 = vmatprep.mubr.f32.mxu0 0.0
  %2467 = vmatmul.mubr.f32.gmra.mrb[0].mxu0 %v2057
  %v2468 = vpop.f32.mrb[0].mxu0
  %v2469 = vadd.f32 0.0, %v2468
  %v2470 = vpop.f32.mrb[0].mxu0
  %2471 = vmatprep.mubr.f32.mxu0 0.0
  %2472 = vmatmul.mubr.f32.gmra.mrb[0].mxu0 %v2060
  %v2473 = vpop.f32.mrb[0].mxu0
  %v2474 = vadd.f32 0.0, %v2473
  %v2475 = vpop.f32.mrb[0].mxu0
  %2476 = vmatprep.mubr.f32.mxu0 0.0
  %2477 = vmatmul.mubr.f32.gmra.mrb[0].mxu0 %v2063
  %v2478 = vpop.f32.mrb[0].mxu0
  %v2479 = vadd.f32 0.0, %v2478
  %v2480 = vpop.f32.mrb[0].mxu0
  %2481 = vmatprep.mubr.f32.mxu0 0.0
  %2482 = vmatmul.mubr.f32.gmra.mrb[0].mxu0 %v2066
  %v2483 = vpop.f32.mrb[0].mxu0
  %v2484 = vadd.f32 0.0, %v2483
  %v2485 = vpop.f32.mrb[0].mxu0
  %2486 = vmatprep.mubr.f32.mxu0 0.0
  %2487 = vmatmul.mubr.f32.gmra.mrb[0].mxu0 %v2069
  %v2488 = vpop.f32.mrb[0].mxu0
  %v2489 = vadd.f32 0.0, %v2488
  %v2490 = vpop.f32.mrb[0].mxu0
  %2491 = vmatprep.mubr.f32.mxu0 0.0
  %2492 = vmatmul.mubr.f32.gmra.mrb[0].mxu0 %v2072
  %v2493 = vpop.f32.mrb[0].mxu0
  %v2494 = vadd.f32 0.0, %v2493
  %v2495 = vpop.f32.mrb[0].mxu0
  %2496 = vmatprep.mubr.f32.mxu0 0.0
  %2497 = vmatmul.mubr.f32.gmra.mrb[0].mxu0 %v2075
  %v2498 = vpop.f32.mrb[0].mxu0
  %v2499 = vadd.f32 0.0, %v2498
  %v2500 = vpop.f32.mrb[0].mxu0
  %2501 = vmatprep.mubr.f32.mxu0 0.0
  %2502 = vmatmul.mubr.f32.gmra.mrb[0].mxu0 %v2078
  %v2503 = vpop.f32.mrb[0].mxu0
  %v2504 = vadd.f32 0.0, %v2503
  %v2505 = vpop.f32.mrb[0].mxu0
  %2506 = vmatprep.mubr.f32.mxu0 0.0
  %2507 = vmatmul.mubr.f32.gmra.mrb[0].mxu0 %v2081
  %v2508 = vpop.f32.mrb[0].mxu0
  %v2509 = vadd.f32 0.0, %v2508
  %v2510 = vpop.f32.mrb[0].mxu0
  %2511 = vmatprep.mubr.f32.mxu0 0.0
  %2512 = vmatmul.mubr.f32.gmra.mrb[0].mxu0 %v2084
  %v2513 = vpop.f32.mrb[0].mxu0
  %v2514 = vadd.f32 0.0, %v2513
  %v2515 = vpop.f32.mrb[0].mxu0
  %2516 = vmatprep.mubr.f32.mxu0 0.0
  %2517 = vmatmul.mubr.f32.gmra.mrb[0].mxu0 %v2087
  %v2518 = vpop.f32.mrb[0].mxu0
  %v2519 = vadd.f32 0.0, %v2518
  %v2520 = vpop.f32.mrb[0].mxu0
  %2521 = vmatprep.mubr.f32.mxu0 0.0
  %2522 = vmatmul.mubr.f32.gmra.mrb[0].mxu0 %v2090
  %v2523 = vpop.f32.mrb[0].mxu0
  %v2524 = vadd.f32 0.0, %v2523
  %v2525 = vpop.f32.mrb[0].mxu0
  %2526 = vmatprep.mubr.f32.mxu0 0.0
  %2527 = vmatmul.mubr.f32.gmra.mrb[0].mxu0 %v2093
  %v2528 = vpop.f32.mrb[0].mxu0
  %v2529 = vadd.f32 0.0, %v2528
  %v2530 = vpop.f32.mrb[0].mxu0
  %2531 = vmatprep.mubr.f32.mxu0 0.0
  %2532 = vmatmul.mubr.f32.gmra.mrb[0].mxu0 %v2096
  %v2533 = vpop.f32.mrb[0].mxu0
  %v2534 = vadd.f32 0.0, %v2533
  %v2535 = vpop.f32.mrb[0].mxu0
  %2536 = vmatprep.mubr.f32.mxu0 0.0
  %2537 = vmatmul.mubr.f32.gmra.mrb[0].mxu0 %v2099
  %v2538 = vpop.f32.mrb[0].mxu0
  %v2539 = vadd.f32 0.0, %v2538
  %v2540 = vpop.f32.mrb[0].mxu0
  %2541 = vmatprep.mubr.f32.mxu0 0.0
  %2542 = vmatmul.mubr.f32.gmra.mrb[0].mxu0 %v2102
  %v2543 = vpop.f32.mrb[0].mxu0
  %v2544 = vadd.f32 0.0, %v2543
  %v2545 = vpop.f32.mrb[0].mxu0
  %2546 = vmatprep.mubr.f32.mxu0 0.0
  %2547 = vmatmul.mubr.f32.gmra.mrb[0].mxu0 %v2105
  %v2548 = vpop.f32.mrb[0].mxu0
  %v2549 = vadd.f32 0.0, %v2548
  %v2550 = vpop.f32.mrb[0].mxu0
  %2551 = vmatprep.mubr.f32.mxu0 0.0
  %2552 = vmatmul.mubr.f32.gmra.mrb[0].mxu0 %v2108
  %v2553 = vpop.f32.mrb[0].mxu0
  %v2554 = vadd.f32 0.0, %v2553
  %v2555 = vpop.f32.mrb[0].mxu0
  %2556 = vmatprep.mubr.f32.mxu0 0.0
  %2557 = vmatmul.mubr.f32.gmra.mrb[0].mxu0 %v2111
  %v2558 = vpop.f32.mrb[0].mxu0
  %v2559 = vadd.f32 0.0, %v2558
  %v2560 = vpop.f32.mrb[0].mxu0
  %2561 = vmatprep.mubr.f32.mxu0 0.0
  %2562 = vmatmul.mubr.f32.gmra.mrb[0].mxu0 %v2114
  %v2563 = vpop.f32.mrb[0].mxu0
  %v2564 = vadd.f32 0.0, %v2563
  %v2565 = vpop.f32.mrb[0].mxu0
  %2566 = vmatprep.mubr.f32.mxu0 0.0
  %2567 = vmatmul.mubr.f32.gmra.mrb[0].mxu0 %v2117
  %v2568 = vpop.f32.mrb[0].mxu0
  %v2569 = vadd.f32 0.0, %v2568
  %v2570 = vpop.f32.mrb[0].mxu0
  %2571 = vmatprep.mubr.f32.mxu0 0.0
  %2572 = vmatmul.mubr.f32.gmra.mrb[0].mxu0 %v2120
  %v2573 = vpop.f32.mrb[0].mxu0
  %v2574 = vadd.f32 0.0, %v2573
  %v2575 = vpop.f32.mrb[0].mxu0
  %2576 = vmatprep.mubr.f32.mxu0 0.0
  %2577 = vmatmul.mubr.f32.gmra.mrb[0].mxu0 %v2123
  %v2578 = vpop.f32.mrb[0].mxu0
  %v2579 = vadd.f32 0.0, %v2578
  %v2580 = vpop.f32.mrb[0].mxu0
  %2581 = vmatprep.mubr.f32.mxu0 0.0
  %2582 = vmatmul.mubr.f32.gmra.mrb[0].mxu0 %v2126
  %v2583 = vpop.f32.mrb[0].mxu0
  %v2584 = vadd.f32 0.0, %v2583
  %v2585 = vpop.f32.mrb[0].mxu0
  %2586 = vmatprep.mubr.f32.mxu0 0.0
  %2587 = vmatmul.mubr.f32.gmra.mrb[0].mxu0 %v2129
  %v2588 = vpop.f32.mrb[0].mxu0
  %v2589 = vadd.f32 0.0, %v2588
  %v2590 = vpop.f32.mrb[0].mxu0
  %2591 = vmatprep.mubr.f32.mxu0 0.0
  %2592 = vmatmul.mubr.f32.gmra.mrb[0].mxu0 %v2132
  %v2593 = vpop.f32.mrb[0].mxu0
  %v2594 = vadd.f32 0.0, %v2593
  %v2595 = vpop.f32.mrb[0].mxu0
  %2596 = vmatprep.mubr.f32.mxu0 0.0
  %2597 = vmatmul.mubr.f32.gmra.mrb[0].mxu0 %v2135
  %v2598 = vpop.f32.mrb[0].mxu0
  %v2599 = vadd.f32 0.0, %v2598
  %v2600 = vpop.f32.mrb[0].mxu0
  %2601 = vmatprep.mubr.f32.mxu0 0.0
  %2602 = vmatmul.mubr.f32.gmra.mrb[0].mxu0 %v2138
  %v2603 = vpop.f32.mrb[0].mxu0
  %v2604 = vadd.f32 0.0, %v2603
  %v2605 = vpop.f32.mrb[0].mxu0
  %2606 = vmatprep.mubr.f32.mxu0 0.0
  %2607 = vmatmul.mubr.f32.gmra.mrb[0].mxu0 %v2141
  %v2608 = vpop.f32.mrb[0].mxu0
  %v2609 = vadd.f32 0.0, %v2608
  %v2610 = vpop.f32.mrb[0].mxu0
  %2611 = vmatprep.mubr.f32.mxu0 0.0
  %2612 = vmatmul.mubr.f32.gmra.mrb[0].mxu0 %v2144
  %v2613 = vpop.f32.mrb[0].mxu0
  %v2614 = vadd.f32 0.0, %v2613
  %v2615 = vpop.f32.mrb[0].mxu0
  %2616 = vmatprep.mubr.f32.mxu0 0.0
  %2617 = vmatmul.mubr.f32.gmra.mrb[0].mxu0 %v2147
  %v2618 = vpop.f32.mrb[0].mxu0
  %v2619 = vadd.f32 0.0, %v2618
  %v2620 = vpop.f32.mrb[0].mxu0
  %2621 = vmatprep.mubr.f32.mxu0 0.0
  %2622 = vmatmul.mubr.f32.gmra.mrb[0].mxu0 %v2150
  %v2623 = vpop.f32.mrb[0].mxu0
  %v2624 = vadd.f32 0.0, %v2623
  %v2625 = vpop.f32.mrb[0].mxu0
  %2626 = vmatprep.mubr.f32.mxu0 0.0
  %2627 = vmatmul.mubr.f32.gmra.mrb[0].mxu0 %v2153
  %v2628 = vpop.f32.mrb[0].mxu0
  %v2629 = vadd.f32 0.0, %v2628
  %v2630 = vpop.f32.mrb[0].mxu0
  %2631 = vmatprep.mubr.f32.mxu0 0.0
  %2632 = vmatmul.mubr.f32.gmra.mrb[0].mxu0 %v2156
  %v2633 = vpop.f32.mrb[0].mxu0
  %v2634 = vadd.f32 0.0, %v2633
  %v2635 = vpop.f32.mrb[0].mxu0
  %2636 = vmatprep.mubr.f32.mxu0 0.0
  %2637 = vmatmul.mubr.f32.gmra.mrb[0].mxu0 %v2159
  %v2638 = vpop.f32.mrb[0].mxu0
  %v2639 = vadd.f32 0.0, %v2638
  %v2640 = vpop.f32.mrb[0].mxu0
  %2641 = vmatprep.mubr.f32.mxu0 0.0
  %2642 = vmatmul.mubr.f32.gmra.mrb[0].mxu0 %v2162
  %v2643 = vpop.f32.mrb[0].mxu0
  %v2644 = vadd.f32 0.0, %v2643
  %v2645 = vpop.f32.mrb[0].mxu0
  %2646 = vmatprep.mubr.f32.mxu0 0.0
  %2647 = vmatmul.mubr.f32.gmra.mrb[0].mxu0 %v2165
  %v2648 = vpop.f32.mrb[0].mxu0
  %v2649 = vadd.f32 0.0, %v2648
  %v2650 = vpop.f32.mrb[0].mxu0
  %2651 = vmatprep.mubr.f32.mxu0 0.0
  %2652 = vmatmul.mubr.f32.gmra.mrb[0].mxu0 %v2168
  %v2653 = vpop.f32.mrb[0].mxu0
  %v2654 = vadd.f32 0.0, %v2653
  %v2655 = vpop.f32.mrb[0].mxu0
  %2656 = vmatprep.mubr.f32.mxu0 0.0
  %2657 = vmatmul.mubr.f32.gmra.mrb[0].mxu0 %v2171
  %v2658 = vpop.f32.mrb[0].mxu0
  %v2659 = vadd.f32 0.0, %v2658
  %v2660 = vpop.f32.mrb[0].mxu0
  %2661 = vmatprep.mubr.f32.mxu0 0.0
  %2662 = vmatmul.mubr.f32.gmra.mrb[0].mxu0 %v2174
  %v2663 = vpop.f32.mrb[0].mxu0
  %v2664 = vadd.f32 0.0, %v2663
  %v2665 = vpop.f32.mrb[0].mxu0
  %2666 = vmatprep.mubr.f32.mxu0 0.0
  %2667 = vmatmul.mubr.f32.gmra.mrb[0].mxu0 %v2177
  %v2668 = vpop.f32.mrb[0].mxu0
  %v2669 = vadd.f32 0.0, %v2668
  %v2670 = vpop.f32.mrb[0].mxu0
  %2671 = vmatprep.mubr.f32.mxu0 0.0
  %2672 = vmatmul.mubr.f32.gmra.mrb[0].mxu0 %v2180
  %v2673 = vpop.f32.mrb[0].mxu0
  %v2674 = vadd.f32 0.0, %v2673
  %v2675 = vpop.f32.mrb[0].mxu0
  %2676 = vmatprep.mubr.f32.mxu0 0.0
  %2677 = vmatmul.mubr.f32.gmra.mrb[0].mxu0 %v2183
  %v2678 = vpop.f32.mrb[0].mxu0
  %v2679 = vadd.f32 0.0, %v2678
  %v2680 = vpop.f32.mrb[0].mxu0
  %2681 = vmatprep.mubr.f32.mxu0 0.0
  %2682 = vmatmul.mubr.f32.gmra.mrb[0].mxu0 %v2186
  %v2683 = vpop.f32.mrb[0].mxu0
  %v2684 = vadd.f32 0.0, %v2683
  %v2685 = vpop.f32.mrb[0].mxu0
  %2686 = vmatprep.mubr.f32.mxu0 0.0
  %2687 = vmatmul.mubr.f32.gmra.mrb[0].mxu0 %v2189
  %v2688 = vpop.f32.mrb[0].mxu0
  %v2689 = vadd.f32 0.0, %v2688
  %v2690 = vpop.f32.mrb[0].mxu0
  %2691 = vmatprep.mubr.f32.mxu0 0.0
  %2692 = vmatmul.mubr.f32.gmra.mrb[0].mxu0 %v2192
  %v2693 = vpop.f32.mrb[0].mxu0
  %v2694 = vadd.f32 0.0, %v2693
  %v2695 = vpop.f32.mrb[0].mxu0
  %2696 = vmatprep.mubr.f32.mxu0 0.0
  %2697 = vmatmul.mubr.f32.gmra.mrb[0].mxu0 %v2195
  %v2698 = vpop.f32.mrb[0].mxu0
  %v2699 = vadd.f32 0.0, %v2698
  %v2700 = vpop.f32.mrb[0].mxu0
  %2701 = vdwg.mxu0
  %v2702 = vmax.f32 %v1756, %v2264
  %v2703 = vmax.f32 %v1757, %v2269
  %v2704 = vmax.f32 %v1758, %v2274
  %v2705 = vmax.f32 %v1759, %v2279
  %v2706 = vmax.f32 %v1760, %v2284
  %v2707 = vmax.f32 %v1761, %v2289
  %v2708 = vmax.f32 %v1762, %v2294
  %v2709 = vmax.f32 %v1763, %v2299
  %v2710 = vmax.f32 %v1764, %v2304
  %v2711 = vmax.f32 %v1765, %v2309
  %v2712 = vmax.f32 %v1766, %v2314
  %v2713 = vmax.f32 %v1767, %v2319
  %v2714 = vmax.f32 %v1768, %v2324
  %v2715 = vmax.f32 %v1769, %v2329
  %v2716 = vmax.f32 %v1770, %v2334
  %v2717 = vmax.f32 %v1771, %v2339
  %v2718 = vmax.f32 %v1772, %v2344
  %v2719 = vmax.f32 %v1773, %v2349
  %v2720 = vmax.f32 %v1774, %v2354
  %v2721 = vmax.f32 %v1775, %v2359
  %v2722 = vmax.f32 %v1776, %v2364
  %v2723 = vmax.f32 %v1777, %v2369
  %v2724 = vmax.f32 %v1778, %v2374
  %v2725 = vmax.f32 %v1779, %v2379
  %v2726 = vmax.f32 %v1780, %v2384
  %v2727 = vmax.f32 %v1781, %v2389
  %v2728 = vmax.f32 %v1782, %v2394
  %v2729 = vmax.f32 %v1783, %v2399
  %v2730 = vmax.f32 %v1784, %v2404
  %v2731 = vmax.f32 %v1785, %v2409
  %v2732 = vmax.f32 %v1786, %v2414
  %v2733 = vmax.f32 %v1787, %v2419
  %v2734 = vmax.f32 %v1788, %v2424
  %v2735 = vmax.f32 %v1789, %v2429
  %v2736 = vmax.f32 %v1790, %v2434
  %v2737 = vmax.f32 %v1791, %v2439
  %v2738 = vmax.f32 %v1792, %v2444
  %v2739 = vmax.f32 %v1793, %v2449
  %v2740 = vmax.f32 %v1794, %v2454
  %v2741 = vmax.f32 %v1795, %v2459
  %v2742 = vmax.f32 %v1796, %v2464
  %v2743 = vmax.f32 %v1797, %v2469
  %v2744 = vmax.f32 %v1798, %v2474
  %v2745 = vmax.f32 %v1799, %v2479
  %v2746 = vmax.f32 %v1800, %v2484
  %v2747 = vmax.f32 %v1801, %v2489
  %v2748 = vmax.f32 %v1802, %v2494
  %v2749 = vmax.f32 %v1803, %v2499
  %v2750 = vmax.f32 %v1804, %v2504
  %v2751 = vmax.f32 %v1805, %v2509
  %v2752 = vmax.f32 %v1806, %v2514
  %v2753 = vmax.f32 %v1807, %v2519
  %v2754 = vmax.f32 %v1808, %v2524
  %v2755 = vmax.f32 %v1809, %v2529
  %v2756 = vmax.f32 %v1810, %v2534
  %v2757 = vmax.f32 %v1811, %v2539
  %v2758 = vmax.f32 %v1812, %v2544
  %v2759 = vmax.f32 %v1813, %v2549
  %v2760 = vmax.f32 %v1814, %v2554
  %v2761 = vmax.f32 %v1815, %v2559
  %v2762 = vmax.f32 %v1816, %v2564
  %v2763 = vmax.f32 %v1817, %v2569
  %v2764 = vmax.f32 %v1818, %v2574
  %v2765 = vmax.f32 %v1819, %v2579
  %v2766 = vmax.f32 %v1820, %v2584
  %v2767 = vmax.f32 %v1821, %v2589
  %v2768 = vmax.f32 %v1822, %v2594
  %v2769 = vmax.f32 %v1823, %v2599
  %v2770 = vmax.f32 %v1824, %v2604
  %v2771 = vmax.f32 %v1825, %v2609
  %v2772 = vmax.f32 %v1826, %v2614
  %v2773 = vmax.f32 %v1827, %v2619
  %v2774 = vmax.f32 %v1828, %v2624
  %v2775 = vmax.f32 %v1829, %v2629
  %v2776 = vmax.f32 %v1830, %v2634
  %v2777 = vmax.f32 %v1831, %v2639
  %v2778 = vmax.f32 %v1832, %v2644
  %v2779 = vmax.f32 %v1833, %v2649
  %v2780 = vmax.f32 %v1834, %v2654
  %v2781 = vmax.f32 %v1835, %v2659
  %v2782 = vmax.f32 %v1836, %v2664
  %v2783 = vmax.f32 %v1837, %v2669
  %v2784 = vmax.f32 %v1838, %v2674
  %v2785 = vmax.f32 %v1839, %v2679
  %v2786 = vmax.f32 %v1840, %v2684
  %v2787 = vmax.f32 %v1841, %v2689
  %v2788 = vmax.f32 %v1842, %v2694
  %v2789 = vmax.f32 %v1843, %v2699
  %s2790 = scalar_lea.vmem %s0, 2112
  %v2791 = vld [vmem:[%s2790] sm:$0xff]
  %v2792 = vld [vmem:[%s2790 + $0x8] sm:$0xff]
  %v2793 = vld [vmem:[%s2790 + $0x10] sm:$0xff]
  %v2794 = vld [vmem:[%s2790 + $0x18] sm:$0xff]
  %v2795 = vld [vmem:[%s2790 + $0x20] sm:$0xff]
  %v2796 = vld [vmem:[%s2790 + $0x28] sm:$0xff]
  %v2797 = vld [vmem:[%s2790 + $0x30] sm:$0xff]
  %v2798 = vld [vmem:[%s2790 + $0x38] sm:$0xff]
  %v2799 = vld [vmem:[%s2790 + $0x40] sm:$0xff]
  %v2800 = vld [vmem:[%s2790 + $0x48] sm:$0xff]
  %v2801 = vld [vmem:[%s2790 + $0x50] sm:$0xff]
  %v2802 = vld [vmem:[%s2790 + $0x58] sm:$0xff]
  %v2803 = vld [vmem:[%s2790 + $0x60] sm:$0xff]
  %v2804 = vld [vmem:[%s2790 + $0x68] sm:$0xff]
  %v2805 = vld [vmem:[%s2790 + $0x70] sm:$0xff]
  %v2806 = vld [vmem:[%s2790 + $0x78] sm:$0xff]
  %v2807 = vld [vmem:[%s2790 + $0x80] sm:$0xff]
  %v2808 = vld [vmem:[%s2790 + $0x88] sm:$0xff]
  %v2809 = vld [vmem:[%s2790 + $0x90] sm:$0xff]
  %v2810 = vld [vmem:[%s2790 + $0x98] sm:$0xff]
  %v2811 = vld [vmem:[%s2790 + $0xa0] sm:$0xff]
  %v2812 = vld [vmem:[%s2790 + $0xa8] sm:$0xff]
  %v2813 = vld [vmem:[%s2790 + $0xb0] sm:$0xff]
  %v2814 = vld [vmem:[%s2790 + $0xb8] sm:$0xff]
  %v2815 = vld [vmem:[%s2790 + $0xc0] sm:$0xff]
  %v2816 = vld [vmem:[%s2790 + $0xc8] sm:$0xff]
  %v2817 = vld [vmem:[%s2790 + $0xd0] sm:$0xff]
  %v2818 = vld [vmem:[%s2790 + $0xd8] sm:$0xff]
  %v2819 = vld [vmem:[%s2790 + $0xe0] sm:$0xff]
  %v2820 = vld [vmem:[%s2790 + $0xe8] sm:$0xff]
  %v2821 = vld [vmem:[%s2790 + $0xf0] sm:$0xff]
  %v2822 = vld [vmem:[%s2790 + $0xf8] sm:$0xff]
  %v2823 = vld [vmem:[%s2790 + $0x100] sm:$0xff]
  %v2824 = vld [vmem:[%s2790 + $0x108] sm:$0xff]
  %v2825 = vld [vmem:[%s2790 + $0x110] sm:$0xff]
  %v2826 = vld [vmem:[%s2790 + $0x118] sm:$0xff]
  %v2827 = vld [vmem:[%s2790 + $0x120] sm:$0xff]
  %v2828 = vld [vmem:[%s2790 + $0x128] sm:$0xff]
  %v2829 = vld [vmem:[%s2790 + $0x130] sm:$0xff]
  %v2830 = vld [vmem:[%s2790 + $0x138] sm:$0xff]
  %v2831 = vld [vmem:[%s2790 + $0x140] sm:$0xff]
  %v2832 = vld [vmem:[%s2790 + $0x148] sm:$0xff]
  %v2833 = vld [vmem:[%s2790 + $0x150] sm:$0xff]
  %v2834 = vld [vmem:[%s2790 + $0x158] sm:$0xff]
  %v2835 = vld [vmem:[%s2790 + $0x160] sm:$0xff]
  %v2836 = vld [vmem:[%s2790 + $0x168] sm:$0xff]
  %v2837 = vld [vmem:[%s2790 + $0x170] sm:$0xff]
  %v2838 = vld [vmem:[%s2790 + $0x178] sm:$0xff]
  %v2839 = vld [vmem:[%s2790 + $0x180] sm:$0xff]
  %v2840 = vld [vmem:[%s2790 + $0x188] sm:$0xff]
  %v2841 = vld [vmem:[%s2790 + $0x190] sm:$0xff]
  %v2842 = vld [vmem:[%s2790 + $0x198] sm:$0xff]
  %v2843 = vld [vmem:[%s2790 + $0x1a0] sm:$0xff]
  %v2844 = vld [vmem:[%s2790 + $0x1a8] sm:$0xff]
  %v2845 = vld [vmem:[%s2790 + $0x1b0] sm:$0xff]
  %v2846 = vld [vmem:[%s2790 + $0x1b8] sm:$0xff]
  %v2847 = vld [vmem:[%s2790 + $0x1c0] sm:$0xff]
  %v2848 = vld [vmem:[%s2790 + $0x1c8] sm:$0xff]
  %v2849 = vld [vmem:[%s2790 + $0x1d0] sm:$0xff]
  %v2850 = vld [vmem:[%s2790 + $0x1d8] sm:$0xff]
  %v2851 = vld [vmem:[%s2790 + $0x1e0] sm:$0xff]
  %v2852 = vld [vmem:[%s2790 + $0x1e8] sm:$0xff]
  %v2853 = vld [vmem:[%s2790 + $0x1f0] sm:$0xff]
  %v2854 = vld [vmem:[%s2790 + $0x1f8] sm:$0xff]
  %v2855 = vld [vmem:[%s2790 + $0x200] sm:$0xff]
  %v2856 = vld [vmem:[%s2790 + $0x208] sm:$0xff]
  %v2857 = vld [vmem:[%s2790 + $0x210] sm:$0xff]
  %v2858 = vld [vmem:[%s2790 + $0x218] sm:$0xff]
  %v2859 = vld [vmem:[%s2790 + $0x220] sm:$0xff]
  %v2860 = vld [vmem:[%s2790 + $0x228] sm:$0xff]
  %v2861 = vld [vmem:[%s2790 + $0x230] sm:$0xff]
  %v2862 = vld [vmem:[%s2790 + $0x238] sm:$0xff]
  %v2863 = vld [vmem:[%s2790 + $0x240] sm:$0xff]
  %v2864 = vld [vmem:[%s2790 + $0x248] sm:$0xff]
  %v2865 = vld [vmem:[%s2790 + $0x250] sm:$0xff]
  %v2866 = vld [vmem:[%s2790 + $0x258] sm:$0xff]
  %v2867 = vld [vmem:[%s2790 + $0x260] sm:$0xff]
  %v2868 = vld [vmem:[%s2790 + $0x268] sm:$0xff]
  %v2869 = vld [vmem:[%s2790 + $0x270] sm:$0xff]
  %v2870 = vld [vmem:[%s2790 + $0x278] sm:$0xff]
  %v2871 = vld [vmem:[%s2790 + $0x280] sm:$0xff]
  %v2872 = vld [vmem:[%s2790 + $0x288] sm:$0xff]
  %v2873 = vld [vmem:[%s2790 + $0x290] sm:$0xff]
  %v2874 = vld [vmem:[%s2790 + $0x298] sm:$0xff]
  %v2875 = vld [vmem:[%s2790 + $0x2a0] sm:$0xff]
  %v2876 = vld [vmem:[%s2790 + $0x2a8] sm:$0xff]
  %v2877 = vld [vmem:[%s2790 + $0x2b0] sm:$0xff]
  %v2878 = vld [vmem:[%s2790 + $0x2b8] sm:$0xff]
  %v2880 = vsel %vm128, %v2791, 0
  %v2883 = vsel %vm128, %v2792, 0
  %v2886 = vsel %vm128, %v2793, 0
  %v2889 = vsel %vm128, %v2794, 0
  %v2892 = vsel %vm128, %v2795, 0
  %v2895 = vsel %vm128, %v2796, 0
  %v2898 = vsel %vm128, %v2797, 0
  %v2901 = vsel %vm128, %v2798, 0
  %v2904 = vsel %vm128, %v2799, 0
  %v2907 = vsel %vm128, %v2800, 0
  %v2910 = vsel %vm128, %v2801, 0
  %v2913 = vsel %vm128, %v2802, 0
  %v2916 = vsel %vm128, %v2803, 0
  %v2919 = vsel %vm128, %v2804, 0
  %v2922 = vsel %vm128, %v2805, 0
  %v2925 = vsel %vm128, %v2806, 0
  %v2928 = vsel %vm128, %v2807, 0
  %v2931 = vsel %vm128, %v2808, 0
  %v2934 = vsel %vm128, %v2809, 0
  %v2937 = vsel %vm128, %v2810, 0
  %v2940 = vsel %vm128, %v2811, 0
  %v2943 = vsel %vm128, %v2812, 0
  %v2946 = vsel %vm128, %v2813, 0
  %v2949 = vsel %vm128, %v2814, 0
  %v2952 = vsel %vm128, %v2815, 0
  %v2955 = vsel %vm128, %v2816, 0
  %v2958 = vsel %vm128, %v2817, 0
  %v2961 = vsel %vm128, %v2818, 0
  %v2964 = vsel %vm128, %v2819, 0
  %v2967 = vsel %vm128, %v2820, 0
  %v2970 = vsel %vm128, %v2821, 0
  %v2973 = vsel %vm128, %v2822, 0
  %v2976 = vsel %vm128, %v2823, 0
  %v2979 = vsel %vm128, %v2824, 0
  %v2982 = vsel %vm128, %v2825, 0
  %v2985 = vsel %vm128, %v2826, 0
  %v2988 = vsel %vm128, %v2827, 0
  %v2991 = vsel %vm128, %v2828, 0
  %v2994 = vsel %vm128, %v2829, 0
  %v2997 = vsel %vm128, %v2830, 0
  %v3000 = vsel %vm128, %v2831, 0
  %v3003 = vsel %vm128, %v2832, 0
  %v3006 = vsel %vm128, %v2833, 0
  %v3009 = vsel %vm128, %v2834, 0
  %v3012 = vsel %vm128, %v2835, 0
  %v3015 = vsel %vm128, %v2836, 0
  %v3018 = vsel %vm128, %v2837, 0
  %v3021 = vsel %vm128, %v2838, 0
  %v3024 = vsel %vm128, %v2839, 0
  %v3027 = vsel %vm128, %v2840, 0
  %v3030 = vsel %vm128, %v2841, 0
  %v3033 = vsel %vm128, %v2842, 0
  %v3036 = vsel %vm128, %v2843, 0
  %v3039 = vsel %vm128, %v2844, 0
  %v3042 = vsel %vm128, %v2845, 0
  %v3045 = vsel %vm128, %v2846, 0
  %v3048 = vsel %vm128, %v2847, 0
  %v3051 = vsel %vm128, %v2848, 0
  %v3054 = vsel %vm128, %v2849, 0
  %v3057 = vsel %vm128, %v2850, 0
  %v3060 = vsel %vm128, %v2851, 0
  %v3063 = vsel %vm128, %v2852, 0
  %v3066 = vsel %vm128, %v2853, 0
  %v3069 = vsel %vm128, %v2854, 0
  %v3072 = vsel %vm128, %v2855, 0
  %v3075 = vsel %vm128, %v2856, 0
  %v3078 = vsel %vm128, %v2857, 0
  %v3081 = vsel %vm128, %v2858, 0
  %v3084 = vsel %vm128, %v2859, 0
  %v3087 = vsel %vm128, %v2860, 0
  %v3090 = vsel %vm128, %v2861, 0
  %v3093 = vsel %vm128, %v2862, 0
  %v3096 = vsel %vm128, %v2863, 0
  %v3099 = vsel %vm128, %v2864, 0
  %v3102 = vsel %vm128, %v2865, 0
  %v3105 = vsel %vm128, %v2866, 0
  %v3108 = vsel %vm128, %v2867, 0
  %v3111 = vsel %vm128, %v2868, 0
  %v3114 = vsel %vm128, %v2869, 0
  %v3117 = vsel %vm128, %v2870, 0
  %v3120 = vsel %vm128, %v2871, 0
  %v3123 = vsel %vm128, %v2872, 0
  %v3126 = vsel %vm128, %v2873, 0
  %v3129 = vsel %vm128, %v2874, 0
  %v3132 = vsel %vm128, %v2875, 0
  %v3135 = vsel %vm128, %v2876, 0
  %v3138 = vsel %vm128, %v2877, 0
  %v3141 = vsel %vm128, %v2878, 0
  %3143 = vmatprep.subr.mxu0 0.0
  %3144 = vmatpush1.msra.mxu0 %v32
  %3145 = vmatprep.subr.mxu0 0.0
  %3146 = vmatpush1.msra.mxu0 %v33
  %3147 = vmatprep.subr.mxu0 0.0
  %3148 = vmatpush1.msra.mxu0 %v34
  %3149 = vmatprep.subr.mxu0 0.0
  %3150 = vmatpush1.msra.mxu0 %v35
  %3151 = vmatprep.subr.mxu0 0.0
  %3152 = vmatpush1.msra.mxu0 %v36
  %3153 = vmatprep.subr.mxu0 0.0
  %3154 = vmatpush1.msra.mxu0 %v37
  %3155 = vmatprep.subr.mxu0 0.0
  %3156 = vmatpush1.msra.mxu0 %v38
  %3157 = vmatprep.subr.mxu0 0.0
  %3158 = vmatpush1.msra.mxu0 %v39
  %3159 = vmatprep.subr.mxu0 0.0
  %3160 = vmatpush1.msra.mxu0 0.0
  %3161 = vmatprep.subr.mxu0 0.0
  %3162 = vmatpush1.msra.mxu0 0.0
  %3163 = vmatprep.subr.mxu0 0.0
  %3164 = vmatpush1.msra.mxu0 0.0
  %3165 = vmatprep.subr.mxu0 0.0
  %3166 = vmatpush1.msra.mxu0 0.0
  %3167 = vmatprep.subr.mxu0 0.0
  %3168 = vmatpush1.msra.mxu0 0.0
  %3169 = vmatprep.subr.mxu0 0.0
  %3170 = vmatpush1.msra.mxu0 0.0
  %3171 = vmatprep.subr.mxu0 0.0
  %3172 = vmatpush1.msra.mxu0 0.0
  %3173 = vmatprep.subr.mxu0 0.0
  %3174 = vmatpush1.msra.mxu0 0.0
  %3175 = vmatprep.subr.mxu0 0.0
  %3176 = vmatpush1.msra.mxu0 0.0
  %3177 = vmatprep.subr.mxu0 0.0
  %3178 = vmatpush1.msra.mxu0 0.0
  %3179 = vmatprep.subr.mxu0 0.0
  %3180 = vmatpush1.msra.mxu0 0.0
  %3181 = vmatprep.subr.mxu0 0.0
  %3182 = vmatpush1.msra.mxu0 0.0
  %3183 = vmatprep.subr.mxu0 0.0
  %3184 = vmatpush1.msra.mxu0 0.0
  %3185 = vmatprep.subr.mxu0 0.0
  %3186 = vmatpush1.msra.mxu0 0.0
  %3187 = vmatprep.subr.mxu0 0.0
  %3188 = vmatpush1.msra.mxu0 0.0
  %3189 = vmatprep.subr.mxu0 0.0
  %3190 = vmatpush1.msra.mxu0 0.0
  %3191 = vmatprep.subr.mxu0 0.0
  %3192 = vmatpush1.msra.mxu0 0.0
  %3193 = vmatprep.subr.mxu0 0.0
  %3194 = vmatpush1.msra.mxu0 0.0
  %3195 = vmatprep.subr.mxu0 0.0
  %3196 = vmatpush1.msra.mxu0 0.0
  %3197 = vmatprep.subr.mxu0 0.0
  %3198 = vmatpush1.msra.mxu0 0.0
  %3199 = vmatprep.subr.mxu0 0.0
  %3200 = vmatpush1.msra.mxu0 0.0
  %3201 = vmatprep.subr.mxu0 0.0
  %3202 = vmatpush1.msra.mxu0 0.0
  %3203 = vmatprep.subr.mxu0 0.0
  %3204 = vmatpush1.msra.mxu0 0.0
  %3205 = vmatprep.subr.mxu0 0.0
  %3206 = vmatpush1.msra.mxu0 0.0
  %3207 = vmatprep.mubr.f32.mxu0 0.0
  %3208 = vmatmul.mubr.f32.gmra.mrb[0].mxu0 %v2880
  %v3209 = vpop.f32.mrb[0].mxu0
  %v3210 = vadd.f32 0.0, %v3209
  %v3211 = vpop.f32.mrb[0].mxu0
  %3212 = vmatprep.mubr.f32.mxu0 0.0
  %3213 = vmatmul.mubr.f32.gmra.mrb[0].mxu0 %v2883
  %v3214 = vpop.f32.mrb[0].mxu0
  %v3215 = vadd.f32 0.0, %v3214
  %v3216 = vpop.f32.mrb[0].mxu0
  %3217 = vmatprep.mubr.f32.mxu0 0.0
  %3218 = vmatmul.mubr.f32.gmra.mrb[0].mxu0 %v2886
  %v3219 = vpop.f32.mrb[0].mxu0
  %v3220 = vadd.f32 0.0, %v3219
  %v3221 = vpop.f32.mrb[0].mxu0
  %3222 = vmatprep.mubr.f32.mxu0 0.0
  %3223 = vmatmul.mubr.f32.gmra.mrb[0].mxu0 %v2889
  %v3224 = vpop.f32.mrb[0].mxu0
  %v3225 = vadd.f32 0.0, %v3224
  %v3226 = vpop.f32.mrb[0].mxu0
  %3227 = vmatprep.mubr.f32.mxu0 0.0
  %3228 = vmatmul.mubr.f32.gmra.mrb[0].mxu0 %v2892
  %v3229 = vpop.f32.mrb[0].mxu0
  %v3230 = vadd.f32 0.0, %v3229
  %v3231 = vpop.f32.mrb[0].mxu0
  %3232 = vmatprep.mubr.f32.mxu0 0.0
  %3233 = vmatmul.mubr.f32.gmra.mrb[0].mxu0 %v2895
  %v3234 = vpop.f32.mrb[0].mxu0
  %v3235 = vadd.f32 0.0, %v3234
  %v3236 = vpop.f32.mrb[0].mxu0
  %3237 = vmatprep.mubr.f32.mxu0 0.0
  %3238 = vmatmul.mubr.f32.gmra.mrb[0].mxu0 %v2898
  %v3239 = vpop.f32.mrb[0].mxu0
  %v3240 = vadd.f32 0.0, %v3239
  %v3241 = vpop.f32.mrb[0].mxu0
  %3242 = vmatprep.mubr.f32.mxu0 0.0
  %3243 = vmatmul.mubr.f32.gmra.mrb[0].mxu0 %v2901
  %v3244 = vpop.f32.mrb[0].mxu0
  %v3245 = vadd.f32 0.0, %v3244
  %v3246 = vpop.f32.mrb[0].mxu0
  %3247 = vmatprep.mubr.f32.mxu0 0.0
  %3248 = vmatmul.mubr.f32.gmra.mrb[0].mxu0 %v2904
  %v3249 = vpop.f32.mrb[0].mxu0
  %v3250 = vadd.f32 0.0, %v3249
  %v3251 = vpop.f32.mrb[0].mxu0
  %3252 = vmatprep.mubr.f32.mxu0 0.0
  %3253 = vmatmul.mubr.f32.gmra.mrb[0].mxu0 %v2907
  %v3254 = vpop.f32.mrb[0].mxu0
  %v3255 = vadd.f32 0.0, %v3254
  %v3256 = vpop.f32.mrb[0].mxu0
  %3257 = vmatprep.mubr.f32.mxu0 0.0
  %3258 = vmatmul.mubr.f32.gmra.mrb[0].mxu0 %v2910
  %v3259 = vpop.f32.mrb[0].mxu0
  %v3260 = vadd.f32 0.0, %v3259
  %v3261 = vpop.f32.mrb[0].mxu0
  %3262 = vmatprep.mubr.f32.mxu0 0.0
  %3263 = vmatmul.mubr.f32.gmra.mrb[0].mxu0 %v2913
  %v3264 = vpop.f32.mrb[0].mxu0
  %v3265 = vadd.f32 0.0, %v3264
  %v3266 = vpop.f32.mrb[0].mxu0
  %3267 = vmatprep.mubr.f32.mxu0 0.0
  %3268 = vmatmul.mubr.f32.gmra.mrb[0].mxu0 %v2916
  %v3269 = vpop.f32.mrb[0].mxu0
  %v3270 = vadd.f32 0.0, %v3269
  %v3271 = vpop.f32.mrb[0].mxu0
  %3272 = vmatprep.mubr.f32.mxu0 0.0
  %3273 = vmatmul.mubr.f32.gmra.mrb[0].mxu0 %v2919
  %v3274 = vpop.f32.mrb[0].mxu0
  %v3275 = vadd.f32 0.0, %v3274
  %v3276 = vpop.f32.mrb[0].mxu0
  %3277 = vmatprep.mubr.f32.mxu0 0.0
  %3278 = vmatmul.mubr.f32.gmra.mrb[0].mxu0 %v2922
  %v3279 = vpop.f32.mrb[0].mxu0
  %v3280 = vadd.f32 0.0, %v3279
  %v3281 = vpop.f32.mrb[0].mxu0
  %3282 = vmatprep.mubr.f32.mxu0 0.0
  %3283 = vmatmul.mubr.f32.gmra.mrb[0].mxu0 %v2925
  %v3284 = vpop.f32.mrb[0].mxu0
  %v3285 = vadd.f32 0.0, %v3284
  %v3286 = vpop.f32.mrb[0].mxu0
  %3287 = vmatprep.mubr.f32.mxu0 0.0
  %3288 = vmatmul.mubr.f32.gmra.mrb[0].mxu0 %v2928
  %v3289 = vpop.f32.mrb[0].mxu0
  %v3290 = vadd.f32 0.0, %v3289
  %v3291 = vpop.f32.mrb[0].mxu0
  %3292 = vmatprep.mubr.f32.mxu0 0.0
  %3293 = vmatmul.mubr.f32.gmra.mrb[0].mxu0 %v2931
  %v3294 = vpop.f32.mrb[0].mxu0
  %v3295 = vadd.f32 0.0, %v3294
  %v3296 = vpop.f32.mrb[0].mxu0
  %3297 = vmatprep.mubr.f32.mxu0 0.0
  %3298 = vmatmul.mubr.f32.gmra.mrb[0].mxu0 %v2934
  %v3299 = vpop.f32.mrb[0].mxu0
  %v3300 = vadd.f32 0.0, %v3299
  %v3301 = vpop.f32.mrb[0].mxu0
  %3302 = vmatprep.mubr.f32.mxu0 0.0
  %3303 = vmatmul.mubr.f32.gmra.mrb[0].mxu0 %v2937
  %v3304 = vpop.f32.mrb[0].mxu0
  %v3305 = vadd.f32 0.0, %v3304
  %v3306 = vpop.f32.mrb[0].mxu0
  %3307 = vmatprep.mubr.f32.mxu0 0.0
  %3308 = vmatmul.mubr.f32.gmra.mrb[0].mxu0 %v2940
  %v3309 = vpop.f32.mrb[0].mxu0
  %v3310 = vadd.f32 0.0, %v3309
  %v3311 = vpop.f32.mrb[0].mxu0
  %3312 = vmatprep.mubr.f32.mxu0 0.0
  %3313 = vmatmul.mubr.f32.gmra.mrb[0].mxu0 %v2943
  %v3314 = vpop.f32.mrb[0].mxu0
  %v3315 = vadd.f32 0.0, %v3314
  %v3316 = vpop.f32.mrb[0].mxu0
  %3317 = vmatprep.mubr.f32.mxu0 0.0
  %3318 = vmatmul.mubr.f32.gmra.mrb[0].mxu0 %v2946
  %v3319 = vpop.f32.mrb[0].mxu0
  %v3320 = vadd.f32 0.0, %v3319
  %v3321 = vpop.f32.mrb[0].mxu0
  %3322 = vmatprep.mubr.f32.mxu0 0.0
  %3323 = vmatmul.mubr.f32.gmra.mrb[0].mxu0 %v2949
  %v3324 = vpop.f32.mrb[0].mxu0
  %v3325 = vadd.f32 0.0, %v3324
  %v3326 = vpop.f32.mrb[0].mxu0
  %3327 = vmatprep.mubr.f32.mxu0 0.0
  %3328 = vmatmul.mubr.f32.gmra.mrb[0].mxu0 %v2952
  %v3329 = vpop.f32.mrb[0].mxu0
  %v3330 = vadd.f32 0.0, %v3329
  %v3331 = vpop.f32.mrb[0].mxu0
  %3332 = vmatprep.mubr.f32.mxu0 0.0
  %3333 = vmatmul.mubr.f32.gmra.mrb[0].mxu0 %v2955
  %v3334 = vpop.f32.mrb[0].mxu0
  %v3335 = vadd.f32 0.0, %v3334
  %v3336 = vpop.f32.mrb[0].mxu0
  %3337 = vmatprep.mubr.f32.mxu0 0.0
  %3338 = vmatmul.mubr.f32.gmra.mrb[0].mxu0 %v2958
  %v3339 = vpop.f32.mrb[0].mxu0
  %v3340 = vadd.f32 0.0, %v3339
  %v3341 = vpop.f32.mrb[0].mxu0
  %3342 = vmatprep.mubr.f32.mxu0 0.0
  %3343 = vmatmul.mubr.f32.gmra.mrb[0].mxu0 %v2961
  %v3344 = vpop.f32.mrb[0].mxu0
  %v3345 = vadd.f32 0.0, %v3344
  %v3346 = vpop.f32.mrb[0].mxu0
  %3347 = vmatprep.mubr.f32.mxu0 0.0
  %3348 = vmatmul.mubr.f32.gmra.mrb[0].mxu0 %v2964
  %v3349 = vpop.f32.mrb[0].mxu0
  %v3350 = vadd.f32 0.0, %v3349
  %v3351 = vpop.f32.mrb[0].mxu0
  %3352 = vmatprep.mubr.f32.mxu0 0.0
  %3353 = vmatmul.mubr.f32.gmra.mrb[0].mxu0 %v2967
  %v3354 = vpop.f32.mrb[0].mxu0
  %v3355 = vadd.f32 0.0, %v3354
  %v3356 = vpop.f32.mrb[0].mxu0
  %3357 = vmatprep.mubr.f32.mxu0 0.0
  %3358 = vmatmul.mubr.f32.gmra.mrb[0].mxu0 %v2970
  %v3359 = vpop.f32.mrb[0].mxu0
  %v3360 = vadd.f32 0.0, %v3359
  %v3361 = vpop.f32.mrb[0].mxu0
  %3362 = vmatprep.mubr.f32.mxu0 0.0
  %3363 = vmatmul.mubr.f32.gmra.mrb[0].mxu0 %v2973
  %v3364 = vpop.f32.mrb[0].mxu0
  %v3365 = vadd.f32 0.0, %v3364
  %v3366 = vpop.f32.mrb[0].mxu0
  %3367 = vmatprep.mubr.f32.mxu0 0.0
  %3368 = vmatmul.mubr.f32.gmra.mrb[0].mxu0 %v2976
  %v3369 = vpop.f32.mrb[0].mxu0
  %v3370 = vadd.f32 0.0, %v3369
  %v3371 = vpop.f32.mrb[0].mxu0
  %3372 = vmatprep.mubr.f32.mxu0 0.0
  %3373 = vmatmul.mubr.f32.gmra.mrb[0].mxu0 %v2979
  %v3374 = vpop.f32.mrb[0].mxu0
  %v3375 = vadd.f32 0.0, %v3374
  %v3376 = vpop.f32.mrb[0].mxu0
  %3377 = vmatprep.mubr.f32.mxu0 0.0
  %3378 = vmatmul.mubr.f32.gmra.mrb[0].mxu0 %v2982
  %v3379 = vpop.f32.mrb[0].mxu0
  %v3380 = vadd.f32 0.0, %v3379
  %v3381 = vpop.f32.mrb[0].mxu0
  %3382 = vmatprep.mubr.f32.mxu0 0.0
  %3383 = vmatmul.mubr.f32.gmra.mrb[0].mxu0 %v2985
  %v3384 = vpop.f32.mrb[0].mxu0
  %v3385 = vadd.f32 0.0, %v3384
  %v3386 = vpop.f32.mrb[0].mxu0
  %3387 = vmatprep.mubr.f32.mxu0 0.0
  %3388 = vmatmul.mubr.f32.gmra.mrb[0].mxu0 %v2988
  %v3389 = vpop.f32.mrb[0].mxu0
  %v3390 = vadd.f32 0.0, %v3389
  %v3391 = vpop.f32.mrb[0].mxu0
  %3392 = vmatprep.mubr.f32.mxu0 0.0
  %3393 = vmatmul.mubr.f32.gmra.mrb[0].mxu0 %v2991
  %v3394 = vpop.f32.mrb[0].mxu0
  %v3395 = vadd.f32 0.0, %v3394
  %v3396 = vpop.f32.mrb[0].mxu0
  %3397 = vmatprep.mubr.f32.mxu0 0.0
  %3398 = vmatmul.mubr.f32.gmra.mrb[0].mxu0 %v2994
  %v3399 = vpop.f32.mrb[0].mxu0
  %v3400 = vadd.f32 0.0, %v3399
  %v3401 = vpop.f32.mrb[0].mxu0
  %3402 = vmatprep.mubr.f32.mxu0 0.0
  %3403 = vmatmul.mubr.f32.gmra.mrb[0].mxu0 %v2997
  %v3404 = vpop.f32.mrb[0].mxu0
  %v3405 = vadd.f32 0.0, %v3404
  %v3406 = vpop.f32.mrb[0].mxu0
  %3407 = vmatprep.mubr.f32.mxu0 0.0
  %3408 = vmatmul.mubr.f32.gmra.mrb[0].mxu0 %v3000
  %v3409 = vpop.f32.mrb[0].mxu0
  %v3410 = vadd.f32 0.0, %v3409
  %v3411 = vpop.f32.mrb[0].mxu0
  %3412 = vmatprep.mubr.f32.mxu0 0.0
  %3413 = vmatmul.mubr.f32.gmra.mrb[0].mxu0 %v3003
  %v3414 = vpop.f32.mrb[0].mxu0
  %v3415 = vadd.f32 0.0, %v3414
  %v3416 = vpop.f32.mrb[0].mxu0
  %3417 = vmatprep.mubr.f32.mxu0 0.0
  %3418 = vmatmul.mubr.f32.gmra.mrb[0].mxu0 %v3006
  %v3419 = vpop.f32.mrb[0].mxu0
  %v3420 = vadd.f32 0.0, %v3419
  %v3421 = vpop.f32.mrb[0].mxu0
  %3422 = vmatprep.mubr.f32.mxu0 0.0
  %3423 = vmatmul.mubr.f32.gmra.mrb[0].mxu0 %v3009
  %v3424 = vpop.f32.mrb[0].mxu0
  %v3425 = vadd.f32 0.0, %v3424
  %v3426 = vpop.f32.mrb[0].mxu0
  %3427 = vmatprep.mubr.f32.mxu0 0.0
  %3428 = vmatmul.mubr.f32.gmra.mrb[0].mxu0 %v3012
  %v3429 = vpop.f32.mrb[0].mxu0
  %v3430 = vadd.f32 0.0, %v3429
  %v3431 = vpop.f32.mrb[0].mxu0
  %3432 = vmatprep.mubr.f32.mxu0 0.0
  %3433 = vmatmul.mubr.f32.gmra.mrb[0].mxu0 %v3015
  %v3434 = vpop.f32.mrb[0].mxu0
  %v3435 = vadd.f32 0.0, %v3434
  %v3436 = vpop.f32.mrb[0].mxu0
  %3437 = vmatprep.mubr.f32.mxu0 0.0
  %3438 = vmatmul.mubr.f32.gmra.mrb[0].mxu0 %v3018
  %v3439 = vpop.f32.mrb[0].mxu0
  %v3440 = vadd.f32 0.0, %v3439
  %v3441 = vpop.f32.mrb[0].mxu0
  %3442 = vmatprep.mubr.f32.mxu0 0.0
  %3443 = vmatmul.mubr.f32.gmra.mrb[0].mxu0 %v3021
  %v3444 = vpop.f32.mrb[0].mxu0
  %v3445 = vadd.f32 0.0, %v3444
  %v3446 = vpop.f32.mrb[0].mxu0
  %3447 = vmatprep.mubr.f32.mxu0 0.0
  %3448 = vmatmul.mubr.f32.gmra.mrb[0].mxu0 %v3024
  %v3449 = vpop.f32.mrb[0].mxu0
  %v3450 = vadd.f32 0.0, %v3449
  %v3451 = vpop.f32.mrb[0].mxu0
  %3452 = vmatprep.mubr.f32.mxu0 0.0
  %3453 = vmatmul.mubr.f32.gmra.mrb[0].mxu0 %v3027
  %v3454 = vpop.f32.mrb[0].mxu0
  %v3455 = vadd.f32 0.0, %v3454
  %v3456 = vpop.f32.mrb[0].mxu0
  %3457 = vmatprep.mubr.f32.mxu0 0.0
  %3458 = vmatmul.mubr.f32.gmra.mrb[0].mxu0 %v3030
  %v3459 = vpop.f32.mrb[0].mxu0
  %v3460 = vadd.f32 0.0, %v3459
  %v3461 = vpop.f32.mrb[0].mxu0
  %3462 = vmatprep.mubr.f32.mxu0 0.0
  %3463 = vmatmul.mubr.f32.gmra.mrb[0].mxu0 %v3033
  %v3464 = vpop.f32.mrb[0].mxu0
  %v3465 = vadd.f32 0.0, %v3464
  %v3466 = vpop.f32.mrb[0].mxu0
  %3467 = vmatprep.mubr.f32.mxu0 0.0
  %3468 = vmatmul.mubr.f32.gmra.mrb[0].mxu0 %v3036
  %v3469 = vpop.f32.mrb[0].mxu0
  %v3470 = vadd.f32 0.0, %v3469
  %v3471 = vpop.f32.mrb[0].mxu0
  %3472 = vmatprep.mubr.f32.mxu0 0.0
  %3473 = vmatmul.mubr.f32.gmra.mrb[0].mxu0 %v3039
  %v3474 = vpop.f32.mrb[0].mxu0
  %v3475 = vadd.f32 0.0, %v3474
  %v3476 = vpop.f32.mrb[0].mxu0
  %3477 = vmatprep.mubr.f32.mxu0 0.0
  %3478 = vmatmul.mubr.f32.gmra.mrb[0].mxu0 %v3042
  %v3479 = vpop.f32.mrb[0].mxu0
  %v3480 = vadd.f32 0.0, %v3479
  %v3481 = vpop.f32.mrb[0].mxu0
  %3482 = vmatprep.mubr.f32.mxu0 0.0
  %3483 = vmatmul.mubr.f32.gmra.mrb[0].mxu0 %v3045
  %v3484 = vpop.f32.mrb[0].mxu0
  %v3485 = vadd.f32 0.0, %v3484
  %v3486 = vpop.f32.mrb[0].mxu0
  %3487 = vmatprep.mubr.f32.mxu0 0.0
  %3488 = vmatmul.mubr.f32.gmra.mrb[0].mxu0 %v3048
  %v3489 = vpop.f32.mrb[0].mxu0
  %v3490 = vadd.f32 0.0, %v3489
  %v3491 = vpop.f32.mrb[0].mxu0
  %3492 = vmatprep.mubr.f32.mxu0 0.0
  %3493 = vmatmul.mubr.f32.gmra.mrb[0].mxu0 %v3051
  %v3494 = vpop.f32.mrb[0].mxu0
  %v3495 = vadd.f32 0.0, %v3494
  %v3496 = vpop.f32.mrb[0].mxu0
  %3497 = vmatprep.mubr.f32.mxu0 0.0
  %3498 = vmatmul.mubr.f32.gmra.mrb[0].mxu0 %v3054
  %v3499 = vpop.f32.mrb[0].mxu0
  %v3500 = vadd.f32 0.0, %v3499
  %v3501 = vpop.f32.mrb[0].mxu0
  %3502 = vmatprep.mubr.f32.mxu0 0.0
  %3503 = vmatmul.mubr.f32.gmra.mrb[0].mxu0 %v3057
  %v3504 = vpop.f32.mrb[0].mxu0
  %v3505 = vadd.f32 0.0, %v3504
  %v3506 = vpop.f32.mrb[0].mxu0
  %3507 = vmatprep.mubr.f32.mxu0 0.0
  %3508 = vmatmul.mubr.f32.gmra.mrb[0].mxu0 %v3060
  %v3509 = vpop.f32.mrb[0].mxu0
  %v3510 = vadd.f32 0.0, %v3509
  %v3511 = vpop.f32.mrb[0].mxu0
  %3512 = vmatprep.mubr.f32.mxu0 0.0
  %3513 = vmatmul.mubr.f32.gmra.mrb[0].mxu0 %v3063
  %v3514 = vpop.f32.mrb[0].mxu0
  %v3515 = vadd.f32 0.0, %v3514
  %v3516 = vpop.f32.mrb[0].mxu0
  %3517 = vmatprep.mubr.f32.mxu0 0.0
  %3518 = vmatmul.mubr.f32.gmra.mrb[0].mxu0 %v3066
  %v3519 = vpop.f32.mrb[0].mxu0
  %v3520 = vadd.f32 0.0, %v3519
  %v3521 = vpop.f32.mrb[0].mxu0
  %3522 = vmatprep.mubr.f32.mxu0 0.0
  %3523 = vmatmul.mubr.f32.gmra.mrb[0].mxu0 %v3069
  %v3524 = vpop.f32.mrb[0].mxu0
  %v3525 = vadd.f32 0.0, %v3524
  %v3526 = vpop.f32.mrb[0].mxu0
  %3527 = vmatprep.mubr.f32.mxu0 0.0
  %3528 = vmatmul.mubr.f32.gmra.mrb[0].mxu0 %v3072
  %v3529 = vpop.f32.mrb[0].mxu0
  %v3530 = vadd.f32 0.0, %v3529
  %v3531 = vpop.f32.mrb[0].mxu0
  %3532 = vmatprep.mubr.f32.mxu0 0.0
  %3533 = vmatmul.mubr.f32.gmra.mrb[0].mxu0 %v3075
  %v3534 = vpop.f32.mrb[0].mxu0
  %v3535 = vadd.f32 0.0, %v3534
  %v3536 = vpop.f32.mrb[0].mxu0
  %3537 = vmatprep.mubr.f32.mxu0 0.0
  %3538 = vmatmul.mubr.f32.gmra.mrb[0].mxu0 %v3078
  %v3539 = vpop.f32.mrb[0].mxu0
  %v3540 = vadd.f32 0.0, %v3539
  %v3541 = vpop.f32.mrb[0].mxu0
  %3542 = vmatprep.mubr.f32.mxu0 0.0
  %3543 = vmatmul.mubr.f32.gmra.mrb[0].mxu0 %v3081
  %v3544 = vpop.f32.mrb[0].mxu0
  %v3545 = vadd.f32 0.0, %v3544
  %v3546 = vpop.f32.mrb[0].mxu0
  %3547 = vmatprep.mubr.f32.mxu0 0.0
  %3548 = vmatmul.mubr.f32.gmra.mrb[0].mxu0 %v3084
  %v3549 = vpop.f32.mrb[0].mxu0
  %v3550 = vadd.f32 0.0, %v3549
  %v3551 = vpop.f32.mrb[0].mxu0
  %3552 = vmatprep.mubr.f32.mxu0 0.0
  %3553 = vmatmul.mubr.f32.gmra.mrb[0].mxu0 %v3087
  %v3554 = vpop.f32.mrb[0].mxu0
  %v3555 = vadd.f32 0.0, %v3554
  %v3556 = vpop.f32.mrb[0].mxu0
  %3557 = vmatprep.mubr.f32.mxu0 0.0
  %3558 = vmatmul.mubr.f32.gmra.mrb[0].mxu0 %v3090
  %v3559 = vpop.f32.mrb[0].mxu0
  %v3560 = vadd.f32 0.0, %v3559
  %v3561 = vpop.f32.mrb[0].mxu0
  %3562 = vmatprep.mubr.f32.mxu0 0.0
  %3563 = vmatmul.mubr.f32.gmra.mrb[0].mxu0 %v3093
  %v3564 = vpop.f32.mrb[0].mxu0
  %v3565 = vadd.f32 0.0, %v3564
  %v3566 = vpop.f32.mrb[0].mxu0
  %3567 = vmatprep.mubr.f32.mxu0 0.0
  %3568 = vmatmul.mubr.f32.gmra.mrb[0].mxu0 %v3096
  %v3569 = vpop.f32.mrb[0].mxu0
  %v3570 = vadd.f32 0.0, %v3569
  %v3571 = vpop.f32.mrb[0].mxu0
  %3572 = vmatprep.mubr.f32.mxu0 0.0
  %3573 = vmatmul.mubr.f32.gmra.mrb[0].mxu0 %v3099
  %v3574 = vpop.f32.mrb[0].mxu0
  %v3575 = vadd.f32 0.0, %v3574
  %v3576 = vpop.f32.mrb[0].mxu0
  %3577 = vmatprep.mubr.f32.mxu0 0.0
  %3578 = vmatmul.mubr.f32.gmra.mrb[0].mxu0 %v3102
  %v3579 = vpop.f32.mrb[0].mxu0
  %v3580 = vadd.f32 0.0, %v3579
  %v3581 = vpop.f32.mrb[0].mxu0
  %3582 = vmatprep.mubr.f32.mxu0 0.0
  %3583 = vmatmul.mubr.f32.gmra.mrb[0].mxu0 %v3105
  %v3584 = vpop.f32.mrb[0].mxu0
  %v3585 = vadd.f32 0.0, %v3584
  %v3586 = vpop.f32.mrb[0].mxu0
  %3587 = vmatprep.mubr.f32.mxu0 0.0
  %3588 = vmatmul.mubr.f32.gmra.mrb[0].mxu0 %v3108
  %v3589 = vpop.f32.mrb[0].mxu0
  %v3590 = vadd.f32 0.0, %v3589
  %v3591 = vpop.f32.mrb[0].mxu0
  %3592 = vmatprep.mubr.f32.mxu0 0.0
  %3593 = vmatmul.mubr.f32.gmra.mrb[0].mxu0 %v3111
  %v3594 = vpop.f32.mrb[0].mxu0
  %v3595 = vadd.f32 0.0, %v3594
  %v3596 = vpop.f32.mrb[0].mxu0
  %3597 = vmatprep.mubr.f32.mxu0 0.0
  %3598 = vmatmul.mubr.f32.gmra.mrb[0].mxu0 %v3114
  %v3599 = vpop.f32.mrb[0].mxu0
  %v3600 = vadd.f32 0.0, %v3599
  %v3601 = vpop.f32.mrb[0].mxu0
  %3602 = vmatprep.mubr.f32.mxu0 0.0
  %3603 = vmatmul.mubr.f32.gmra.mrb[0].mxu0 %v3117
  %v3604 = vpop.f32.mrb[0].mxu0
  %v3605 = vadd.f32 0.0, %v3604
  %v3606 = vpop.f32.mrb[0].mxu0
  %3607 = vmatprep.mubr.f32.mxu0 0.0
  %3608 = vmatmul.mubr.f32.gmra.mrb[0].mxu0 %v3120
  %v3609 = vpop.f32.mrb[0].mxu0
  %v3610 = vadd.f32 0.0, %v3609
  %v3611 = vpop.f32.mrb[0].mxu0
  %3612 = vmatprep.mubr.f32.mxu0 0.0
  %3613 = vmatmul.mubr.f32.gmra.mrb[0].mxu0 %v3123
  %v3614 = vpop.f32.mrb[0].mxu0
  %v3615 = vadd.f32 0.0, %v3614
  %v3616 = vpop.f32.mrb[0].mxu0
  %3617 = vmatprep.mubr.f32.mxu0 0.0
  %3618 = vmatmul.mubr.f32.gmra.mrb[0].mxu0 %v3126
  %v3619 = vpop.f32.mrb[0].mxu0
  %v3620 = vadd.f32 0.0, %v3619
  %v3621 = vpop.f32.mrb[0].mxu0
  %3622 = vmatprep.mubr.f32.mxu0 0.0
  %3623 = vmatmul.mubr.f32.gmra.mrb[0].mxu0 %v3129
  %v3624 = vpop.f32.mrb[0].mxu0
  %v3625 = vadd.f32 0.0, %v3624
  %v3626 = vpop.f32.mrb[0].mxu0
  %3627 = vmatprep.mubr.f32.mxu0 0.0
  %3628 = vmatmul.mubr.f32.gmra.mrb[0].mxu0 %v3132
  %v3629 = vpop.f32.mrb[0].mxu0
  %v3630 = vadd.f32 0.0, %v3629
  %v3631 = vpop.f32.mrb[0].mxu0
  %3632 = vmatprep.mubr.f32.mxu0 0.0
  %3633 = vmatmul.mubr.f32.gmra.mrb[0].mxu0 %v3135
  %v3634 = vpop.f32.mrb[0].mxu0
  %v3635 = vadd.f32 0.0, %v3634
  %v3636 = vpop.f32.mrb[0].mxu0
  %3637 = vmatprep.mubr.f32.mxu0 0.0
  %3638 = vmatmul.mubr.f32.gmra.mrb[0].mxu0 %v3138
  %v3639 = vpop.f32.mrb[0].mxu0
  %v3640 = vadd.f32 0.0, %v3639
  %v3641 = vpop.f32.mrb[0].mxu0
  %3642 = vmatprep.mubr.f32.mxu0 0.0
  %3643 = vmatmul.mubr.f32.gmra.mrb[0].mxu0 %v3141
  %v3644 = vpop.f32.mrb[0].mxu0
  %v3645 = vadd.f32 0.0, %v3644
  %v3646 = vpop.f32.mrb[0].mxu0
  %3647 = vdwg.mxu0
  %v3648 = vmax.f32 %v2702, %v3210
  %v3649 = vmax.f32 %v2703, %v3215
  %v3650 = vmax.f32 %v2704, %v3220
  %v3651 = vmax.f32 %v2705, %v3225
  %v3652 = vmax.f32 %v2706, %v3230
  %v3653 = vmax.f32 %v2707, %v3235
  %v3654 = vmax.f32 %v2708, %v3240
  %v3655 = vmax.f32 %v2709, %v3245
  %v3656 = vmax.f32 %v2710, %v3250
  %v3657 = vmax.f32 %v2711, %v3255
  %v3658 = vmax.f32 %v2712, %v3260
  %v3659 = vmax.f32 %v2713, %v3265
  %v3660 = vmax.f32 %v2714, %v3270
  %v3661 = vmax.f32 %v2715, %v3275
  %v3662 = vmax.f32 %v2716, %v3280
  %v3663 = vmax.f32 %v2717, %v3285
  %v3664 = vmax.f32 %v2718, %v3290
  %v3665 = vmax.f32 %v2719, %v3295
  %v3666 = vmax.f32 %v2720, %v3300
  %v3667 = vmax.f32 %v2721, %v3305
  %v3668 = vmax.f32 %v2722, %v3310
  %v3669 = vmax.f32 %v2723, %v3315
  %v3670 = vmax.f32 %v2724, %v3320
  %v3671 = vmax.f32 %v2725, %v3325
  %v3672 = vmax.f32 %v2726, %v3330
  %v3673 = vmax.f32 %v2727, %v3335
  %v3674 = vmax.f32 %v2728, %v3340
  %v3675 = vmax.f32 %v2729, %v3345
  %v3676 = vmax.f32 %v2730, %v3350
  %v3677 = vmax.f32 %v2731, %v3355
  %v3678 = vmax.f32 %v2732, %v3360
  %v3679 = vmax.f32 %v2733, %v3365
  %v3680 = vmax.f32 %v2734, %v3370
  %v3681 = vmax.f32 %v2735, %v3375
  %v3682 = vmax.f32 %v2736, %v3380
  %v3683 = vmax.f32 %v2737, %v3385
  %v3684 = vmax.f32 %v2738, %v3390
  %v3685 = vmax.f32 %v2739, %v3395
  %v3686 = vmax.f32 %v2740, %v3400
  %v3687 = vmax.f32 %v2741, %v3405
  %v3688 = vmax.f32 %v2742, %v3410
  %v3689 = vmax.f32 %v2743, %v3415
  %v3690 = vmax.f32 %v2744, %v3420
  %v3691 = vmax.f32 %v2745, %v3425
  %v3692 = vmax.f32 %v2746, %v3430
  %v3693 = vmax.f32 %v2747, %v3435
  %v3694 = vmax.f32 %v2748, %v3440
  %v3695 = vmax.f32 %v2749, %v3445
  %v3696 = vmax.f32 %v2750, %v3450
  %v3697 = vmax.f32 %v2751, %v3455
  %v3698 = vmax.f32 %v2752, %v3460
  %v3699 = vmax.f32 %v2753, %v3465
  %v3700 = vmax.f32 %v2754, %v3470
  %v3701 = vmax.f32 %v2755, %v3475
  %v3702 = vmax.f32 %v2756, %v3480
  %v3703 = vmax.f32 %v2757, %v3485
  %v3704 = vmax.f32 %v2758, %v3490
  %v3705 = vmax.f32 %v2759, %v3495
  %v3706 = vmax.f32 %v2760, %v3500
  %v3707 = vmax.f32 %v2761, %v3505
  %v3708 = vmax.f32 %v2762, %v3510
  %v3709 = vmax.f32 %v2763, %v3515
  %v3710 = vmax.f32 %v2764, %v3520
  %v3711 = vmax.f32 %v2765, %v3525
  %v3712 = vmax.f32 %v2766, %v3530
  %v3713 = vmax.f32 %v2767, %v3535
  %v3714 = vmax.f32 %v2768, %v3540
  %v3715 = vmax.f32 %v2769, %v3545
  %v3716 = vmax.f32 %v2770, %v3550
  %v3717 = vmax.f32 %v2771, %v3555
  %v3718 = vmax.f32 %v2772, %v3560
  %v3719 = vmax.f32 %v2773, %v3565
  %v3720 = vmax.f32 %v2774, %v3570
  %v3721 = vmax.f32 %v2775, %v3575
  %v3722 = vmax.f32 %v2776, %v3580
  %v3723 = vmax.f32 %v2777, %v3585
  %v3724 = vmax.f32 %v2778, %v3590
  %v3725 = vmax.f32 %v2779, %v3595
  %v3726 = vmax.f32 %v2780, %v3600
  %v3727 = vmax.f32 %v2781, %v3605
  %v3728 = vmax.f32 %v2782, %v3610
  %v3729 = vmax.f32 %v2783, %v3615
  %v3730 = vmax.f32 %v2784, %v3620
  %v3731 = vmax.f32 %v2785, %v3625
  %v3732 = vmax.f32 %v2786, %v3630
  %v3733 = vmax.f32 %v2787, %v3635
  %v3734 = vmax.f32 %v2788, %v3640
  %v3735 = vmax.f32 %v2789, %v3645
  %v3736 = vld [vmem:[%s2] sm:$0x1]
  %v3738 = vlaneseq
  %v3739 = vshrl.u32 %v3738, 7
  %v3740 = vsub.s32 0, %v3739
  %v3741 = vrot.slane %v3736, %v3740
  %v3743 = vadd.f32 %v3648, %v3741
  %v3744 = vadd.f32 %v3649, %v3741
  %v3745 = vadd.f32 %v3650, %v3741
  %v3746 = vadd.f32 %v3651, %v3741
  %v3747 = vadd.f32 %v3652, %v3741
  %v3748 = vadd.f32 %v3653, %v3741
  %v3749 = vadd.f32 %v3654, %v3741
  %v3750 = vadd.f32 %v3655, %v3741
  %v3751 = vadd.f32 %v3656, %v3741
  %v3752 = vadd.f32 %v3657, %v3741
  %v3753 = vadd.f32 %v3658, %v3741
  %v3754 = vadd.f32 %v3659, %v3741
  %v3755 = vadd.f32 %v3660, %v3741
  %v3756 = vadd.f32 %v3661, %v3741
  %v3757 = vadd.f32 %v3662, %v3741
  %v3758 = vadd.f32 %v3663, %v3741
  %v3759 = vadd.f32 %v3664, %v3741
  %v3760 = vadd.f32 %v3665, %v3741
  %v3761 = vadd.f32 %v3666, %v3741
  %v3762 = vadd.f32 %v3667, %v3741
  %v3763 = vadd.f32 %v3668, %v3741
  %v3764 = vadd.f32 %v3669, %v3741
  %v3765 = vadd.f32 %v3670, %v3741
  %v3766 = vadd.f32 %v3671, %v3741
  %v3767 = vadd.f32 %v3672, %v3741
  %v3768 = vadd.f32 %v3673, %v3741
  %v3769 = vadd.f32 %v3674, %v3741
  %v3770 = vadd.f32 %v3675, %v3741
  %v3771 = vadd.f32 %v3676, %v3741
  %v3772 = vadd.f32 %v3677, %v3741
  %v3773 = vadd.f32 %v3678, %v3741
  %v3774 = vadd.f32 %v3679, %v3741
  %v3775 = vadd.f32 %v3680, %v3741
  %v3776 = vadd.f32 %v3681, %v3741
  %v3777 = vadd.f32 %v3682, %v3741
  %v3778 = vadd.f32 %v3683, %v3741
  %v3779 = vadd.f32 %v3684, %v3741
  %v3780 = vadd.f32 %v3685, %v3741
  %v3781 = vadd.f32 %v3686, %v3741
  %v3782 = vadd.f32 %v3687, %v3741
  %v3783 = vadd.f32 %v3688, %v3741
  %v3784 = vadd.f32 %v3689, %v3741
  %v3785 = vadd.f32 %v3690, %v3741
  %v3786 = vadd.f32 %v3691, %v3741
  %v3787 = vadd.f32 %v3692, %v3741
  %v3788 = vadd.f32 %v3693, %v3741
  %v3789 = vadd.f32 %v3694, %v3741
  %v3790 = vadd.f32 %v3695, %v3741
  %v3791 = vadd.f32 %v3696, %v3741
  %v3792 = vadd.f32 %v3697, %v3741
  %v3793 = vadd.f32 %v3698, %v3741
  %v3794 = vadd.f32 %v3699, %v3741
  %v3795 = vadd.f32 %v3700, %v3741
  %v3796 = vadd.f32 %v3701, %v3741
  %v3797 = vadd.f32 %v3702, %v3741
  %v3798 = vadd.f32 %v3703, %v3741
  %v3799 = vadd.f32 %v3704, %v3741
  %v3800 = vadd.f32 %v3705, %v3741
  %v3801 = vadd.f32 %v3706, %v3741
  %v3802 = vadd.f32 %v3707, %v3741
  %v3803 = vadd.f32 %v3708, %v3741
  %v3804 = vadd.f32 %v3709, %v3741
  %v3805 = vadd.f32 %v3710, %v3741
  %v3806 = vadd.f32 %v3711, %v3741
  %v3807 = vadd.f32 %v3712, %v3741
  %v3808 = vadd.f32 %v3713, %v3741
  %v3809 = vadd.f32 %v3714, %v3741
  %v3810 = vadd.f32 %v3715, %v3741
  %v3811 = vadd.f32 %v3716, %v3741
  %v3812 = vadd.f32 %v3717, %v3741
  %v3813 = vadd.f32 %v3718, %v3741
  %v3814 = vadd.f32 %v3719, %v3741
  %v3815 = vadd.f32 %v3720, %v3741
  %v3816 = vadd.f32 %v3721, %v3741
  %v3817 = vadd.f32 %v3722, %v3741
  %v3818 = vadd.f32 %v3723, %v3741
  %v3819 = vadd.f32 %v3724, %v3741
  %v3820 = vadd.f32 %v3725, %v3741
  %v3821 = vadd.f32 %v3726, %v3741
  %v3822 = vadd.f32 %v3727, %v3741
  %v3823 = vadd.f32 %v3728, %v3741
  %v3824 = vadd.f32 %v3729, %v3741
  %v3825 = vadd.f32 %v3730, %v3741
  %v3826 = vadd.f32 %v3731, %v3741
  %v3827 = vadd.f32 %v3732, %v3741
  %v3828 = vadd.f32 %v3733, %v3741
  %v3829 = vadd.f32 %v3734, %v3741
  %v3830 = vadd.f32 %v3735, %v3741
  %v3831 = vmax.f32 %v3743, 0.0
  %v3832 = vmax.f32 %v3744, 0.0
  %v3833 = vmax.f32 %v3745, 0.0
  %v3834 = vmax.f32 %v3746, 0.0
  %v3835 = vmax.f32 %v3747, 0.0
  %v3836 = vmax.f32 %v3748, 0.0
  %v3837 = vmax.f32 %v3749, 0.0
  %v3838 = vmax.f32 %v3750, 0.0
  %v3839 = vmax.f32 %v3751, 0.0
  %v3840 = vmax.f32 %v3752, 0.0
  %v3841 = vmax.f32 %v3753, 0.0
  %v3842 = vmax.f32 %v3754, 0.0
  %v3843 = vmax.f32 %v3755, 0.0
  %v3844 = vmax.f32 %v3756, 0.0
  %v3845 = vmax.f32 %v3757, 0.0
  %v3846 = vmax.f32 %v3758, 0.0
  %v3847 = vmax.f32 %v3759, 0.0
  %v3848 = vmax.f32 %v3760, 0.0
  %v3849 = vmax.f32 %v3761, 0.0
  %v3850 = vmax.f32 %v3762, 0.0
  %v3851 = vmax.f32 %v3763, 0.0
  %v3852 = vmax.f32 %v3764, 0.0
  %v3853 = vmax.f32 %v3765, 0.0
  %v3854 = vmax.f32 %v3766, 0.0
  %v3855 = vmax.f32 %v3767, 0.0
  %v3856 = vmax.f32 %v3768, 0.0
  %v3857 = vmax.f32 %v3769, 0.0
  %v3858 = vmax.f32 %v3770, 0.0
  %v3859 = vmax.f32 %v3771, 0.0
  %v3860 = vmax.f32 %v3772, 0.0
  %v3861 = vmax.f32 %v3773, 0.0
  %v3862 = vmax.f32 %v3774, 0.0
  %v3863 = vmax.f32 %v3775, 0.0
  %v3864 = vmax.f32 %v3776, 0.0
  %v3865 = vmax.f32 %v3777, 0.0
  %v3866 = vmax.f32 %v3778, 0.0
  %v3867 = vmax.f32 %v3779, 0.0
  %v3868 = vmax.f32 %v3780, 0.0
  %v3869 = vmax.f32 %v3781, 0.0
  %v3870 = vmax.f32 %v3782, 0.0
  %v3871 = vmax.f32 %v3783, 0.0
  %v3872 = vmax.f32 %v3784, 0.0
  %v3873 = vmax.f32 %v3785, 0.0
  %v3874 = vmax.f32 %v3786, 0.0
  %v3875 = vmax.f32 %v3787, 0.0
  %v3876 = vmax.f32 %v3788, 0.0
  %v3877 = vmax.f32 %v3789, 0.0
  %v3878 = vmax.f32 %v3790, 0.0
  %v3879 = vmax.f32 %v3791, 0.0
  %v3880 = vmax.f32 %v3792, 0.0
  %v3881 = vmax.f32 %v3793, 0.0
  %v3882 = vmax.f32 %v3794, 0.0
  %v3883 = vmax.f32 %v3795, 0.0
  %v3884 = vmax.f32 %v3796, 0.0
  %v3885 = vmax.f32 %v3797, 0.0
  %v3886 = vmax.f32 %v3798, 0.0
  %v3887 = vmax.f32 %v3799, 0.0
  %v3888 = vmax.f32 %v3800, 0.0
  %v3889 = vmax.f32 %v3801, 0.0
  %v3890 = vmax.f32 %v3802, 0.0
  %v3891 = vmax.f32 %v3803, 0.0
  %v3892 = vmax.f32 %v3804, 0.0
  %v3893 = vmax.f32 %v3805, 0.0
  %v3894 = vmax.f32 %v3806, 0.0
  %v3895 = vmax.f32 %v3807, 0.0
  %v3896 = vmax.f32 %v3808, 0.0
  %v3897 = vmax.f32 %v3809, 0.0
  %v3898 = vmax.f32 %v3810, 0.0
  %v3899 = vmax.f32 %v3811, 0.0
  %v3900 = vmax.f32 %v3812, 0.0
  %v3901 = vmax.f32 %v3813, 0.0
  %v3902 = vmax.f32 %v3814, 0.0
  %v3903 = vmax.f32 %v3815, 0.0
  %v3904 = vmax.f32 %v3816, 0.0
  %v3905 = vmax.f32 %v3817, 0.0
  %v3906 = vmax.f32 %v3818, 0.0
  %v3907 = vmax.f32 %v3819, 0.0
  %v3908 = vmax.f32 %v3820, 0.0
  %v3909 = vmax.f32 %v3821, 0.0
  %v3910 = vmax.f32 %v3822, 0.0
  %v3911 = vmax.f32 %v3823, 0.0
  %v3912 = vmax.f32 %v3824, 0.0
  %v3913 = vmax.f32 %v3825, 0.0
  %v3914 = vmax.f32 %v3826, 0.0
  %v3915 = vmax.f32 %v3827, 0.0
  %v3916 = vmax.f32 %v3828, 0.0
  %v3917 = vmax.f32 %v3829, 0.0
  %v3918 = vmax.f32 %v3830, 0.0
  %vm3919 = vcmask 654336
  %3920 = vst.msk [vmem:[#allocation2] sm:$0xff] %vm3919, %v3831
  %3921 = vst.msk [vmem:[#allocation2 + $0x8] sm:$0xff] %vm3919, %v3832
  %3922 = vst.msk [vmem:[#allocation2 + $0x10] sm:$0xff] %vm3919, %v3833
  %3923 = vst.msk [vmem:[#allocation2 + $0x18] sm:$0xff] %vm3919, %v3834
  %3924 = vst.msk [vmem:[#allocation2 + $0x20] sm:$0xff] %vm3919, %v3835
  %3925 = vst.msk [vmem:[#allocation2 + $0x28] sm:$0xff] %vm3919, %v3836
  %3926 = vst.msk [vmem:[#allocation2 + $0x30] sm:$0xff] %vm3919, %v3837
  %3927 = vst.msk [vmem:[#allocation2 + $0x38] sm:$0xff] %vm3919, %v3838
  %3928 = vst.msk [vmem:[#allocation2 + $0x40] sm:$0xff] %vm3919, %v3839
  %3929 = vst.msk [vmem:[#allocation2 + $0x48] sm:$0xff] %vm3919, %v3840
  %3930 = vst.msk [vmem:[#allocation2 + $0x50] sm:$0xff] %vm3919, %v3841
  %3931 = vst.msk [vmem:[#allocation2 + $0x58] sm:$0xff] %vm3919, %v3842
  %3932 = vst.msk [vmem:[#allocation2 + $0x60] sm:$0xff] %vm3919, %v3843
  %3933 = vst.msk [vmem:[#allocation2 + $0x68] sm:$0xff] %vm3919, %v3844
  %3934 = vst.msk [vmem:[#allocation2 + $0x70] sm:$0xff] %vm3919, %v3845
  %3935 = vst.msk [vmem:[#allocation2 + $0x78] sm:$0xff] %vm3919, %v3846
  %3936 = vst.msk [vmem:[#allocation2 + $0x80] sm:$0xff] %vm3919, %v3847
  %3937 = vst.msk [vmem:[#allocation2 + $0x88] sm:$0xff] %vm3919, %v3848
  %3938 = vst.msk [vmem:[#allocation2 + $0x90] sm:$0xff] %vm3919, %v3849
  %3939 = vst.msk [vmem:[#allocation2 + $0x98] sm:$0xff] %vm3919, %v3850
  %3940 = vst.msk [vmem:[#allocation2 + $0xa0] sm:$0xff] %vm3919, %v3851
  %3941 = vst.msk [vmem:[#allocation2 + $0xa8] sm:$0xff] %vm3919, %v3852
  %3942 = vst.msk [vmem:[#allocation2 + $0xb0] sm:$0xff] %vm3919, %v3853
  %3943 = vst.msk [vmem:[#allocation2 + $0xb8] sm:$0xff] %vm3919, %v3854
  %3944 = vst.msk [vmem:[#allocation2 + $0xc0] sm:$0xff] %vm3919, %v3855
  %3945 = vst.msk [vmem:[#allocation2 + $0xc8] sm:$0xff] %vm3919, %v3856
  %3946 = vst.msk [vmem:[#allocation2 + $0xd0] sm:$0xff] %vm3919, %v3857
  %3947 = vst.msk [vmem:[#allocation2 + $0xd8] sm:$0xff] %vm3919, %v3858
  %3948 = vst.msk [vmem:[#allocation2 + $0xe0] sm:$0xff] %vm3919, %v3859
  %3949 = vst.msk [vmem:[#allocation2 + $0xe8] sm:$0xff] %vm3919, %v3860
  %3950 = vst.msk [vmem:[#allocation2 + $0xf0] sm:$0xff] %vm3919, %v3861
  %3951 = vst.msk [vmem:[#allocation2 + $0xf8] sm:$0xff] %vm3919, %v3862
  %3952 = vst.msk [vmem:[#allocation2 + $0x100] sm:$0xff] %vm3919, %v3863
  %3953 = vst.msk [vmem:[#allocation2 + $0x108] sm:$0xff] %vm3919, %v3864
  %3954 = vst.msk [vmem:[#allocation2 + $0x110] sm:$0xff] %vm3919, %v3865
  %3955 = vst.msk [vmem:[#allocation2 + $0x118] sm:$0xff] %vm3919, %v3866
  %3956 = vst.msk [vmem:[#allocation2 + $0x120] sm:$0xff] %vm3919, %v3867
  %3957 = vst.msk [vmem:[#allocation2 + $0x128] sm:$0xff] %vm3919, %v3868
  %3958 = vst.msk [vmem:[#allocation2 + $0x130] sm:$0xff] %vm3919, %v3869
  %3959 = vst.msk [vmem:[#allocation2 + $0x138] sm:$0xff] %vm3919, %v3870
  %3960 = vst.msk [vmem:[#allocation2 + $0x140] sm:$0xff] %vm3919, %v3871
  %3961 = vst.msk [vmem:[#allocation2 + $0x148] sm:$0xff] %vm3919, %v3872
  %3962 = vst.msk [vmem:[#allocation2 + $0x150] sm:$0xff] %vm3919, %v3873
  %3963 = vst.msk [vmem:[#allocation2 + $0x158] sm:$0xff] %vm3919, %v3874
  %3964 = vst.msk [vmem:[#allocation2 + $0x160] sm:$0xff] %vm3919, %v3875
  %3965 = vst.msk [vmem:[#allocation2 + $0x168] sm:$0xff] %vm3919, %v3876
  %3966 = vst.msk [vmem:[#allocation2 + $0x170] sm:$0xff] %vm3919, %v3877
  %3967 = vst.msk [vmem:[#allocation2 + $0x178] sm:$0xff] %vm3919, %v3878
  %3968 = vst.msk [vmem:[#allocation2 + $0x180] sm:$0xff] %vm3919, %v3879
  %3969 = vst.msk [vmem:[#allocation2 + $0x188] sm:$0xff] %vm3919, %v3880
  %3970 = vst.msk [vmem:[#allocation2 + $0x190] sm:$0xff] %vm3919, %v3881
  %3971 = vst.msk [vmem:[#allocation2 + $0x198] sm:$0xff] %vm3919, %v3882
  %3972 = vst.msk [vmem:[#allocation2 + $0x1a0] sm:$0xff] %vm3919, %v3883
  %3973 = vst.msk [vmem:[#allocation2 + $0x1a8] sm:$0xff] %vm3919, %v3884
  %3974 = vst.msk [vmem:[#allocation2 + $0x1b0] sm:$0xff] %vm3919, %v3885
  %3975 = vst.msk [vmem:[#allocation2 + $0x1b8] sm:$0xff] %vm3919, %v3886
  %3976 = vst.msk [vmem:[#allocation2 + $0x1c0] sm:$0xff] %vm3919, %v3887
  %3977 = vst.msk [vmem:[#allocation2 + $0x1c8] sm:$0xff] %vm3919, %v3888
  %3978 = vst.msk [vmem:[#allocation2 + $0x1d0] sm:$0xff] %vm3919, %v3889
  %3979 = vst.msk [vmem:[#allocation2 + $0x1d8] sm:$0xff] %vm3919, %v3890
  %3980 = vst.msk [vmem:[#allocation2 + $0x1e0] sm:$0xff] %vm3919, %v3891
  %3981 = vst.msk [vmem:[#allocation2 + $0x1e8] sm:$0xff] %vm3919, %v3892
  %3982 = vst.msk [vmem:[#allocation2 + $0x1f0] sm:$0xff] %vm3919, %v3893
  %3983 = vst.msk [vmem:[#allocation2 + $0x1f8] sm:$0xff] %vm3919, %v3894
  %3984 = vst.msk [vmem:[#allocation2 + $0x200] sm:$0xff] %vm3919, %v3895
  %3985 = vst.msk [vmem:[#allocation2 + $0x208] sm:$0xff] %vm3919, %v3896
  %3986 = vst.msk [vmem:[#allocation2 + $0x210] sm:$0xff] %vm3919, %v3897
  %3987 = vst.msk [vmem:[#allocation2 + $0x218] sm:$0xff] %vm3919, %v3898
  %3988 = vst.msk [vmem:[#allocation2 + $0x220] sm:$0xff] %vm3919, %v3899
  %3989 = vst.msk [vmem:[#allocation2 + $0x228] sm:$0xff] %vm3919, %v3900
  %3990 = vst.msk [vmem:[#allocation2 + $0x230] sm:$0xff] %vm3919, %v3901
  %3991 = vst.msk [vmem:[#allocation2 + $0x238] sm:$0xff] %vm3919, %v3902
  %3992 = vst.msk [vmem:[#allocation2 + $0x240] sm:$0xff] %vm3919, %v3903
  %3993 = vst.msk [vmem:[#allocation2 + $0x248] sm:$0xff] %vm3919, %v3904
  %3994 = vst.msk [vmem:[#allocation2 + $0x250] sm:$0xff] %vm3919, %v3905
  %3995 = vst.msk [vmem:[#allocation2 + $0x258] sm:$0xff] %vm3919, %v3906
  %3996 = vst.msk [vmem:[#allocation2 + $0x260] sm:$0xff] %vm3919, %v3907
  %3997 = vst.msk [vmem:[#allocation2 + $0x268] sm:$0xff] %vm3919, %v3908
  %3998 = vst.msk [vmem:[#allocation2 + $0x270] sm:$0xff] %vm3919, %v3909
  %3999 = vst.msk [vmem:[#allocation2 + $0x278] sm:$0xff] %vm3919, %v3910
  %4000 = vst.msk [vmem:[#allocation2 + $0x280] sm:$0xff] %vm3919, %v3911
  %4001 = vst.msk [vmem:[#allocation2 + $0x288] sm:$0xff] %vm3919, %v3912
  %4002 = vst.msk [vmem:[#allocation2 + $0x290] sm:$0xff] %vm3919, %v3913
  %4003 = vst.msk [vmem:[#allocation2 + $0x298] sm:$0xff] %vm3919, %v3914
  %4004 = vst.msk [vmem:[#allocation2 + $0x2a0] sm:$0xff] %vm3919, %v3915
  %4005 = vst.msk [vmem:[#allocation2 + $0x2a8] sm:$0xff] %vm3919, %v3916
  %4006 = vst.msk [vmem:[#allocation2 + $0x2b0] sm:$0xff] %vm3919, %v3917
  %4007 = vst.msk [vmem:[#allocation2 + $0x2b8] sm:$0xff] %vm3919, %v3918
  %v4008 = vld [vmem:[%s4] sm:$0x1]
  %v4009 = vld [vmem:[#allocation2] sm:$0xff]
  %v4010 = vld [vmem:[#allocation2 + $0x8] sm:$0xff]
  %v4011 = vld [vmem:[#allocation2 + $0x10] sm:$0xff]
  %v4012 = vld [vmem:[#allocation2 + $0x18] sm:$0xff]
  %v4013 = vld [vmem:[#allocation2 + $0x20] sm:$0xff]
  %v4014 = vld [vmem:[#allocation2 + $0x28] sm:$0xff]
  %v4015 = vld [vmem:[#allocation2 + $0x30] sm:$0xff]
  %v4016 = vld [vmem:[#allocation2 + $0x38] sm:$0xff]
  %v4017 = vld [vmem:[%s3] sm:$0xff]
  %v4018 = vld [vmem:[%s3 + $0x8] sm:$0xff]
  %v4019 = vld [vmem:[%s3 + $0x10] sm:$0xff]
  %v4020 = vld [vmem:[%s3 + $0x18] sm:$0xff]
  %v4021 = vld [vmem:[%s3 + $0x20] sm:$0xff]
  %v4022 = vld [vmem:[%s3 + $0x28] sm:$0xff]
  %v4023 = vld [vmem:[%s3 + $0x30] sm:$0xff]
  %v4024 = vld [vmem:[%s3 + $0x38] sm:$0xff]
  %v4025 = vld [vmem:[%s3 + $0x40] sm:$0xff]
  %v4026 = vld [vmem:[%s3 + $0x48] sm:$0xff]
  %v4027 = vld [vmem:[#allocation2 + $0x40] sm:$0xff]
  %v4028 = vld [vmem:[#allocation2 + $0x48] sm:$0xff]
  %v4029 = vld [vmem:[#allocation2 + $0x50] sm:$0xff]
  %v4030 = vld [vmem:[#allocation2 + $0x58] sm:$0xff]
  %v4031 = vld [vmem:[#allocation2 + $0x60] sm:$0xff]
  %v4032 = vld [vmem:[#allocation2 + $0x68] sm:$0xff]
  %v4033 = vld [vmem:[#allocation2 + $0x70] sm:$0xff]
  %v4034 = vld [vmem:[#allocation2 + $0x78] sm:$0xff]
  %s4035 = scalar_lea.vmem %s3, 80
  %v4036 = vld [vmem:[%s4035] sm:$0xff]
  %v4037 = vld [vmem:[%s4035 + $0x8] sm:$0xff]
  %v4038 = vld [vmem:[%s4035 + $0x10] sm:$0xff]
  %v4039 = vld [vmem:[%s4035 + $0x18] sm:$0xff]
  %v4040 = vld [vmem:[%s4035 + $0x20] sm:$0xff]
  %v4041 = vld [vmem:[%s4035 + $0x28] sm:$0xff]
  %v4042 = vld [vmem:[%s4035 + $0x30] sm:$0xff]
  %v4043 = vld [vmem:[%s4035 + $0x38] sm:$0xff]
  %v4044 = vld [vmem:[%s4035 + $0x40] sm:$0xff]
  %v4045 = vld [vmem:[%s4035 + $0x48] sm:$0xff]
  %v4047 = vsel %vm3919, %v4027, 0
  %v4050 = vsel %vm3919, %v4028, 0
  %v4053 = vsel %vm3919, %v4029, 0
  %v4056 = vsel %vm3919, %v4030, 0
  %v4059 = vsel %vm3919, %v4031, 0
  %v4062 = vsel %vm3919, %v4032, 0
  %v4065 = vsel %vm3919, %v4033, 0
  %v4068 = vsel %vm3919, %v4034, 0
  %4070 = vmatprep.subr.mxu0 0.0
  %4071 = vmatpush1.msra.mxu0 %v4036
  %4072 = vmatprep.subr.mxu0 0.0
  %4073 = vmatpush1.msra.mxu0 %v4037
  %4074 = vmatprep.subr.mxu0 0.0
  %4075 = vmatpush1.msra.mxu0 %v4038
  %4076 = vmatprep.subr.mxu0 0.0
  %4077 = vmatpush1.msra.mxu0 %v4039
  %4078 = vmatprep.subr.mxu0 0.0
  %4079 = vmatpush1.msra.mxu0 %v4040
  %4080 = vmatprep.subr.mxu0 0.0
  %4081 = vmatpush1.msra.mxu0 %v4041
  %4082 = vmatprep.subr.mxu0 0.0
  %4083 = vmatpush1.msra.mxu0 %v4042
  %4084 = vmatprep.subr.mxu0 0.0
  %4085 = vmatpush1.msra.mxu0 %v4043
  %4086 = vmatprep.subr.mxu0 0.0
  %4087 = vmatpush1.msra.mxu0 %v4044
  %4088 = vmatprep.subr.mxu0 0.0
  %4089 = vmatpush1.msra.mxu0 %v4045
  %4090 = vmatprep.subr.mxu0 0.0
  %4091 = vmatpush1.msra.mxu0 0.0
  %4092 = vmatprep.subr.mxu0 0.0
  %4093 = vmatpush1.msra.mxu0 0.0
  %4094 = vmatprep.subr.mxu0 0.0
  %4095 = vmatpush1.msra.mxu0 0.0
  %4096 = vmatprep.subr.mxu0 0.0
  %4097 = vmatpush1.msra.mxu0 0.0
  %4098 = vmatprep.subr.mxu0 0.0
  %4099 = vmatpush1.msra.mxu0 0.0
  %4100 = vmatprep.subr.mxu0 0.0
  %4101 = vmatpush1.msra.mxu0 0.0
  %4102 = vmatprep.subr.mxu0 0.0
  %4103 = vmatpush1.msra.mxu0 0.0
  %4104 = vmatprep.subr.mxu0 0.0
  %4105 = vmatpush1.msra.mxu0 0.0
  %4106 = vmatprep.subr.mxu0 0.0
  %4107 = vmatpush1.msra.mxu0 0.0
  %4108 = vmatprep.subr.mxu0 0.0
  %4109 = vmatpush1.msra.mxu0 0.0
  %4110 = vmatprep.subr.mxu0 0.0
  %4111 = vmatpush1.msra.mxu0 0.0
  %4112 = vmatprep.subr.mxu0 0.0
  %4113 = vmatpush1.msra.mxu0 0.0
  %4114 = vmatprep.subr.mxu0 0.0
  %4115 = vmatpush1.msra.mxu0 0.0
  %4116 = vmatprep.subr.mxu0 0.0
  %4117 = vmatpush1.msra.mxu0 0.0
  %4118 = vmatprep.subr.mxu0 0.0
  %4119 = vmatpush1.msra.mxu0 0.0
  %4120 = vmatprep.subr.mxu0 0.0
  %4121 = vmatpush1.msra.mxu0 0.0
  %4122 = vmatprep.subr.mxu0 0.0
  %4123 = vmatpush1.msra.mxu0 0.0
  %4124 = vmatprep.subr.mxu0 0.0
  %4125 = vmatpush1.msra.mxu0 0.0
  %4126 = vmatprep.subr.mxu0 0.0
  %4127 = vmatpush1.msra.mxu0 0.0
  %4128 = vmatprep.subr.mxu0 0.0
  %4129 = vmatpush1.msra.mxu0 0.0
  %4130 = vmatprep.subr.mxu0 0.0
  %4131 = vmatpush1.msra.mxu0 0.0
  %4132 = vmatprep.subr.mxu0 0.0
  %4133 = vmatpush1.msra.mxu0 0.0
  %4134 = vmatprep.mubr.f32.mxu0 0.0
  %4135 = vmatmul.mubr.f32.gmra.mrb[0].mxu0 %v4047
  %v4136 = vpop.f32.mrb[0].mxu0
  %v4137 = vadd.f32 0.0, %v4136
  %v4138 = vpop.f32.mrb[0].mxu0
  %4139 = vmatprep.mubr.f32.mxu0 0.0
  %4140 = vmatmul.mubr.f32.gmra.mrb[0].mxu0 %v4050
  %v4141 = vpop.f32.mrb[0].mxu0
  %v4142 = vadd.f32 0.0, %v4141
  %v4143 = vpop.f32.mrb[0].mxu0
  %4144 = vmatprep.mubr.f32.mxu0 0.0
  %4145 = vmatmul.mubr.f32.gmra.mrb[0].mxu0 %v4053
  %v4146 = vpop.f32.mrb[0].mxu0
  %v4147 = vadd.f32 0.0, %v4146
  %v4148 = vpop.f32.mrb[0].mxu0
  %4149 = vmatprep.mubr.f32.mxu0 0.0
  %4150 = vmatmul.mubr.f32.gmra.mrb[0].mxu0 %v4056
  %v4151 = vpop.f32.mrb[0].mxu0
  %v4152 = vadd.f32 0.0, %v4151
  %v4153 = vpop.f32.mrb[0].mxu0
  %4154 = vmatprep.mubr.f32.mxu0 0.0
  %4155 = vmatmul.mubr.f32.gmra.mrb[0].mxu0 %v4059
  %v4156 = vpop.f32.mrb[0].mxu0
  %v4157 = vadd.f32 0.0, %v4156
  %v4158 = vpop.f32.mrb[0].mxu0
  %4159 = vmatprep.mubr.f32.mxu0 0.0
  %4160 = vmatmul.mubr.f32.gmra.mrb[0].mxu0 %v4062
  %v4161 = vpop.f32.mrb[0].mxu0
  %v4162 = vadd.f32 0.0, %v4161
  %v4163 = vpop.f32.mrb[0].mxu0
  %4164 = vmatprep.mubr.f32.mxu0 0.0
  %4165 = vmatmul.mubr.f32.gmra.mrb[0].mxu0 %v4065
  %v4166 = vpop.f32.mrb[0].mxu0
  %v4167 = vadd.f32 0.0, %v4166
  %v4168 = vpop.f32.mrb[0].mxu0
  %4169 = vmatprep.mubr.f32.mxu0 0.0
  %4170 = vmatmul.mubr.f32.gmra.mrb[0].mxu0 %v4068
  %v4171 = vpop.f32.mrb[0].mxu0
  %v4172 = vadd.f32 0.0, %v4171
  %v4173 = vpop.f32.mrb[0].mxu0
  %4174 = vdwg.mxu0
  %v4176 = vsel %vm3919, %v4009, 0
  %v4179 = vsel %vm3919, %v4010, 0
  %v4182 = vsel %vm3919, %v4011, 0
  %v4185 = vsel %vm3919, %v4012, 0
  %v4188 = vsel %vm3919, %v4013, 0
  %v4191 = vsel %vm3919, %v4014, 0
  %v4194 = vsel %vm3919, %v4015, 0
  %v4197 = vsel %vm3919, %v4016, 0
  %4199 = vmatprep.subr.mxu0 0.0
  %4200 = vmatpush1.msra.mxu0 %v4017
  %4201 = vmatprep.subr.mxu0 0.0
  %4202 = vmatpush1.msra.mxu0 %v4018
  %4203 = vmatprep.subr.mxu0 0.0
  %4204 = vmatpush1.msra.mxu0 %v4019
  %4205 = vmatprep.subr.mxu0 0.0
  %4206 = vmatpush1.msra.mxu0 %v4020
  %4207 = vmatprep.subr.mxu0 0.0
  %4208 = vmatpush1.msra.mxu0 %v4021
  %4209 = vmatprep.subr.mxu0 0.0
  %4210 = vmatpush1.msra.mxu0 %v4022
  %4211 = vmatprep.subr.mxu0 0.0
  %4212 = vmatpush1.msra.mxu0 %v4023
  %4213 = vmatprep.subr.mxu0 0.0
  %4214 = vmatpush1.msra.mxu0 %v4024
  %4215 = vmatprep.subr.mxu0 0.0
  %4216 = vmatpush1.msra.mxu0 %v4025
  %4217 = vmatprep.subr.mxu0 0.0
  %4218 = vmatpush1.msra.mxu0 %v4026
  %4219 = vmatprep.subr.mxu0 0.0
  %4220 = vmatpush1.msra.mxu0 0.0
  %4221 = vmatprep.subr.mxu0 0.0
  %4222 = vmatpush1.msra.mxu0 0.0
  %4223 = vmatprep.subr.mxu0 0.0
  %4224 = vmatpush1.msra.mxu0 0.0
  %4225 = vmatprep.subr.mxu0 0.0
  %4226 = vmatpush1.msra.mxu0 0.0
  %4227 = vmatprep.subr.mxu0 0.0
  %4228 = vmatpush1.msra.mxu0 0.0
  %4229 = vmatprep.subr.mxu0 0.0
  %4230 = vmatpush1.msra.mxu0 0.0
  %4231 = vmatprep.subr.mxu0 0.0
  %4232 = vmatpush1.msra.mxu0 0.0
  %4233 = vmatprep.subr.mxu0 0.0
  %4234 = vmatpush1.msra.mxu0 0.0
  %4235 = vmatprep.subr.mxu0 0.0
  %4236 = vmatpush1.msra.mxu0 0.0
  %4237 = vmatprep.subr.mxu0 0.0
  %4238 = vmatpush1.msra.mxu0 0.0
  %4239 = vmatprep.subr.mxu0 0.0
  %4240 = vmatpush1.msra.mxu0 0.0
  %4241 = vmatprep.subr.mxu0 0.0
  %4242 = vmatpush1.msra.mxu0 0.0
  %4243 = vmatprep.subr.mxu0 0.0
  %4244 = vmatpush1.msra.mxu0 0.0
  %4245 = vmatprep.subr.mxu0 0.0
  %4246 = vmatpush1.msra.mxu0 0.0
  %4247 = vmatprep.subr.mxu0 0.0
  %4248 = vmatpush1.msra.mxu0 0.0
  %4249 = vmatprep.subr.mxu0 0.0
  %4250 = vmatpush1.msra.mxu0 0.0
  %4251 = vmatprep.subr.mxu0 0.0
  %4252 = vmatpush1.msra.mxu0 0.0
  %4253 = vmatprep.subr.mxu0 0.0
  %4254 = vmatpush1.msra.mxu0 0.0
  %4255 = vmatprep.subr.mxu0 0.0
  %4256 = vmatpush1.msra.mxu0 0.0
  %4257 = vmatprep.subr.mxu0 0.0
  %4258 = vmatpush1.msra.mxu0 0.0
  %4259 = vmatprep.subr.mxu0 0.0
  %4260 = vmatpush1.msra.mxu0 0.0
  %4261 = vmatprep.subr.mxu0 0.0
  %4262 = vmatpush1.msra.mxu0 0.0
  %4263 = vmatprep.mubr.f32.mxu0 0.0
  %4264 = vmatmul.mubr.f32.gmra.mrb[0].mxu0 %v4176
  %v4265 = vpop.f32.mrb[0].mxu0
  %v4266 = vadd.f32 %v4137, %v4265
  %v4267 = vpop.f32.mrb[0].mxu0
  %4268 = vmatprep.mubr.f32.mxu0 0.0
  %4269 = vmatmul.mubr.f32.gmra.mrb[0].mxu0 %v4179
  %v4270 = vpop.f32.mrb[0].mxu0
  %v4271 = vadd.f32 %v4142, %v4270
  %v4272 = vpop.f32.mrb[0].mxu0
  %4273 = vmatprep.mubr.f32.mxu0 0.0
  %4274 = vmatmul.mubr.f32.gmra.mrb[0].mxu0 %v4182
  %v4275 = vpop.f32.mrb[0].mxu0
  %v4276 = vadd.f32 %v4147, %v4275
  %v4277 = vpop.f32.mrb[0].mxu0
  %4278 = vmatprep.mubr.f32.mxu0 0.0
  %4279 = vmatmul.mubr.f32.gmra.mrb[0].mxu0 %v4185
  %v4280 = vpop.f32.mrb[0].mxu0
  %v4281 = vadd.f32 %v4152, %v4280
  %v4282 = vpop.f32.mrb[0].mxu0
  %4283 = vmatprep.mubr.f32.mxu0 0.0
  %4284 = vmatmul.mubr.f32.gmra.mrb[0].mxu0 %v4188
  %v4285 = vpop.f32.mrb[0].mxu0
  %v4286 = vadd.f32 %v4157, %v4285
  %v4287 = vpop.f32.mrb[0].mxu0
  %4288 = vmatprep.mubr.f32.mxu0 0.0
  %4289 = vmatmul.mubr.f32.gmra.mrb[0].mxu0 %v4191
  %v4290 = vpop.f32.mrb[0].mxu0
  %v4291 = vadd.f32 %v4162, %v4290
  %v4292 = vpop.f32.mrb[0].mxu0
  %4293 = vmatprep.mubr.f32.mxu0 0.0
  %4294 = vmatmul.mubr.f32.gmra.mrb[0].mxu0 %v4194
  %v4295 = vpop.f32.mrb[0].mxu0
  %v4296 = vadd.f32 %v4167, %v4295
  %v4297 = vpop.f32.mrb[0].mxu0
  %4298 = vmatprep.mubr.f32.mxu0 0.0
  %4299 = vmatmul.mubr.f32.gmra.mrb[0].mxu0 %v4197
  %v4300 = vpop.f32.mrb[0].mxu0
  %v4301 = vadd.f32 %v4172, %v4300
  %v4302 = vpop.f32.mrb[0].mxu0
  %4303 = vdwg.mxu0
  %v4304 = vld [vmem:[#allocation2 + $0x80] sm:$0xff]
  %v4305 = vld [vmem:[#allocation2 + $0x88] sm:$0xff]
  %v4306 = vld [vmem:[#allocation2 + $0x90] sm:$0xff]
  %v4307 = vld [vmem:[#allocation2 + $0x98] sm:$0xff]
  %v4308 = vld [vmem:[#allocation2 + $0xa0] sm:$0xff]
  %v4309 = vld [vmem:[#allocation2 + $0xa8] sm:$0xff]
  %v4310 = vld [vmem:[#allocation2 + $0xb0] sm:$0xff]
  %v4311 = vld [vmem:[#allocation2 + $0xb8] sm:$0xff]
  %s4312 = scalar_lea.vmem %s3, 160
  %v4313 = vld [vmem:[%s4312] sm:$0xff]
  %v4314 = vld [vmem:[%s4312 + $0x8] sm:$0xff]
  %v4315 = vld [vmem:[%s4312 + $0x10] sm:$0xff]
  %v4316 = vld [vmem:[%s4312 + $0x18] sm:$0xff]
  %v4317 = vld [vmem:[%s4312 + $0x20] sm:$0xff]
  %v4318 = vld [vmem:[%s4312 + $0x28] sm:$0xff]
  %v4319 = vld [vmem:[%s4312 + $0x30] sm:$0xff]
  %v4320 = vld [vmem:[%s4312 + $0x38] sm:$0xff]
  %v4321 = vld [vmem:[%s4312 + $0x40] sm:$0xff]
  %v4322 = vld [vmem:[%s4312 + $0x48] sm:$0xff]
  %v4324 = vsel %vm3919, %v4304, 0
  %v4327 = vsel %vm3919, %v4305, 0
  %v4330 = vsel %vm3919, %v4306, 0
  %v4333 = vsel %vm3919, %v4307, 0
  %v4336 = vsel %vm3919, %v4308, 0
  %v4339 = vsel %vm3919, %v4309, 0
  %v4342 = vsel %vm3919, %v4310, 0
  %v4345 = vsel %vm3919, %v4311, 0
  %4347 = vmatprep.subr.mxu0 0.0
  %4348 = vmatpush1.msra.mxu0 %v4313
  %4349 = vmatprep.subr.mxu0 0.0
  %4350 = vmatpush1.msra.mxu0 %v4314
  %4351 = vmatprep.subr.mxu0 0.0
  %4352 = vmatpush1.msra.mxu0 %v4315
  %4353 = vmatprep.subr.mxu0 0.0
  %4354 = vmatpush1.msra.mxu0 %v4316
  %4355 = vmatprep.subr.mxu0 0.0
  %4356 = vmatpush1.msra.mxu0 %v4317
  %4357 = vmatprep.subr.mxu0 0.0
  %4358 = vmatpush1.msra.mxu0 %v4318
  %4359 = vmatprep.subr.mxu0 0.0
  %4360 = vmatpush1.msra.mxu0 %v4319
  %4361 = vmatprep.subr.mxu0 0.0
  %4362 = vmatpush1.msra.mxu0 %v4320
  %4363 = vmatprep.subr.mxu0 0.0
  %4364 = vmatpush1.msra.mxu0 %v4321
  %4365 = vmatprep.subr.mxu0 0.0
  %4366 = vmatpush1.msra.mxu0 %v4322
  %4367 = vmatprep.subr.mxu0 0.0
  %4368 = vmatpush1.msra.mxu0 0.0
  %4369 = vmatprep.subr.mxu0 0.0
  %4370 = vmatpush1.msra.mxu0 0.0
  %4371 = vmatprep.subr.mxu0 0.0
  %4372 = vmatpush1.msra.mxu0 0.0
  %4373 = vmatprep.subr.mxu0 0.0
  %4374 = vmatpush1.msra.mxu0 0.0
  %4375 = vmatprep.subr.mxu0 0.0
  %4376 = vmatpush1.msra.mxu0 0.0
  %4377 = vmatprep.subr.mxu0 0.0
  %4378 = vmatpush1.msra.mxu0 0.0
  %4379 = vmatprep.subr.mxu0 0.0
  %4380 = vmatpush1.msra.mxu0 0.0
  %4381 = vmatprep.subr.mxu0 0.0
  %4382 = vmatpush1.msra.mxu0 0.0
  %4383 = vmatprep.subr.mxu0 0.0
  %4384 = vmatpush1.msra.mxu0 0.0
  %4385 = vmatprep.subr.mxu0 0.0
  %4386 = vmatpush1.msra.mxu0 0.0
  %4387 = vmatprep.subr.mxu0 0.0
  %4388 = vmatpush1.msra.mxu0 0.0
  %4389 = vmatprep.subr.mxu0 0.0
  %4390 = vmatpush1.msra.mxu0 0.0
  %4391 = vmatprep.subr.mxu0 0.0
  %4392 = vmatpush1.msra.mxu0 0.0
  %4393 = vmatprep.subr.mxu0 0.0
  %4394 = vmatpush1.msra.mxu0 0.0
  %4395 = vmatprep.subr.mxu0 0.0
  %4396 = vmatpush1.msra.mxu0 0.0
  %4397 = vmatprep.subr.mxu0 0.0
  %4398 = vmatpush1.msra.mxu0 0.0
  %4399 = vmatprep.subr.mxu0 0.0
  %4400 = vmatpush1.msra.mxu0 0.0
  %4401 = vmatprep.subr.mxu0 0.0
  %4402 = vmatpush1.msra.mxu0 0.0
  %4403 = vmatprep.subr.mxu0 0.0
  %4404 = vmatpush1.msra.mxu0 0.0
  %4405 = vmatprep.subr.mxu0 0.0
  %4406 = vmatpush1.msra.mxu0 0.0
  %4407 = vmatprep.subr.mxu0 0.0
  %4408 = vmatpush1.msra.mxu0 0.0
  %4409 = vmatprep.subr.mxu0 0.0
  %4410 = vmatpush1.msra.mxu0 0.0
  %4411 = vmatprep.mubr.f32.mxu0 0.0
  %4412 = vmatmul.mubr.f32.gmra.mrb[0].mxu0 %v4324
  %v4413 = vpop.f32.mrb[0].mxu0
  %v4414 = vadd.f32 0.0, %v4413
  %v4415 = vpop.f32.mrb[0].mxu0
  %4416 = vmatprep.mubr.f32.mxu0 0.0
  %4417 = vmatmul.mubr.f32.gmra.mrb[0].mxu0 %v4327
  %v4418 = vpop.f32.mrb[0].mxu0
  %v4419 = vadd.f32 0.0, %v4418
  %v4420 = vpop.f32.mrb[0].mxu0
  %4421 = vmatprep.mubr.f32.mxu0 0.0
  %4422 = vmatmul.mubr.f32.gmra.mrb[0].mxu0 %v4330
  %v4423 = vpop.f32.mrb[0].mxu0
  %v4424 = vadd.f32 0.0, %v4423
  %v4425 = vpop.f32.mrb[0].mxu0
  %4426 = vmatprep.mubr.f32.mxu0 0.0
  %4427 = vmatmul.mubr.f32.gmra.mrb[0].mxu0 %v4333
  %v4428 = vpop.f32.mrb[0].mxu0
  %v4429 = vadd.f32 0.0, %v4428
  %v4430 = vpop.f32.mrb[0].mxu0
  %4431 = vmatprep.mubr.f32.mxu0 0.0
  %4432 = vmatmul.mubr.f32.gmra.mrb[0].mxu0 %v4336
  %v4433 = vpop.f32.mrb[0].mxu0
  %v4434 = vadd.f32 0.0, %v4433
  %v4435 = vpop.f32.mrb[0].mxu0
  %4436 = vmatprep.mubr.f32.mxu0 0.0
  %4437 = vmatmul.mubr.f32.gmra.mrb[0].mxu0 %v4339
  %v4438 = vpop.f32.mrb[0].mxu0
  %v4439 = vadd.f32 0.0, %v4438
  %v4440 = vpop.f32.mrb[0].mxu0
  %4441 = vmatprep.mubr.f32.mxu0 0.0
  %4442 = vmatmul.mubr.f32.gmra.mrb[0].mxu0 %v4342
  %v4443 = vpop.f32.mrb[0].mxu0
  %v4444 = vadd.f32 0.0, %v4443
  %v4445 = vpop.f32.mrb[0].mxu0
  %4446 = vmatprep.mubr.f32.mxu0 0.0
  %4447 = vmatmul.mubr.f32.gmra.mrb[0].mxu0 %v4345
  %v4448 = vpop.f32.mrb[0].mxu0
  %v4449 = vadd.f32 0.0, %v4448
  %v4450 = vpop.f32.mrb[0].mxu0
  %4451 = vdwg.mxu0
  %v4452 = vadd.f32 %v4266, %v4414
  %v4453 = vadd.f32 %v4271, %v4419
  %v4454 = vadd.f32 %v4276, %v4424
  %v4455 = vadd.f32 %v4281, %v4429
  %v4456 = vadd.f32 %v4286, %v4434
  %v4457 = vadd.f32 %v4291, %v4439
  %v4458 = vadd.f32 %v4296, %v4444
  %v4459 = vadd.f32 %v4301, %v4449
  %v4460 = vld [vmem:[#allocation2 + $0xc0] sm:$0xff]
  %v4461 = vld [vmem:[#allocation2 + $0xc8] sm:$0xff]
  %v4462 = vld [vmem:[#allocation2 + $0xd0] sm:$0xff]
  %v4463 = vld [vmem:[#allocation2 + $0xd8] sm:$0xff]
  %v4464 = vld [vmem:[#allocation2 + $0xe0] sm:$0xff]
  %v4465 = vld [vmem:[#allocation2 + $0xe8] sm:$0xff]
  %v4466 = vld [vmem:[#allocation2 + $0xf0] sm:$0xff]
  %v4467 = vld [vmem:[#allocation2 + $0xf8] sm:$0xff]
  %s4468 = scalar_lea.vmem %s3, 240
  %v4469 = vld [vmem:[%s4468] sm:$0xff]
  %v4470 = vld [vmem:[%s4468 + $0x8] sm:$0xff]
  %v4471 = vld [vmem:[%s4468 + $0x10] sm:$0xff]
  %v4472 = vld [vmem:[%s4468 + $0x18] sm:$0xff]
  %v4473 = vld [vmem:[%s4468 + $0x20] sm:$0xff]
  %v4474 = vld [vmem:[%s4468 + $0x28] sm:$0xff]
  %v4475 = vld [vmem:[%s4468 + $0x30] sm:$0xff]
  %v4476 = vld [vmem:[%s4468 + $0x38] sm:$0xff]
  %v4477 = vld [vmem:[%s4468 + $0x40] sm:$0xff]
  %v4478 = vld [vmem:[%s4468 + $0x48] sm:$0xff]
  %v4480 = vsel %vm3919, %v4460, 0
  %v4483 = vsel %vm3919, %v4461, 0
  %v4486 = vsel %vm3919, %v4462, 0
  %v4489 = vsel %vm3919, %v4463, 0
  %v4492 = vsel %vm3919, %v4464, 0
  %v4495 = vsel %vm3919, %v4465, 0
  %v4498 = vsel %vm3919, %v4466, 0
  %v4501 = vsel %vm3919, %v4467, 0
  %4503 = vmatprep.subr.mxu0 0.0
  %4504 = vmatpush1.msra.mxu0 %v4469
  %4505 = vmatprep.subr.mxu0 0.0
  %4506 = vmatpush1.msra.mxu0 %v4470
  %4507 = vmatprep.subr.mxu0 0.0
  %4508 = vmatpush1.msra.mxu0 %v4471
  %4509 = vmatprep.subr.mxu0 0.0
  %4510 = vmatpush1.msra.mxu0 %v4472
  %4511 = vmatprep.subr.mxu0 0.0
  %4512 = vmatpush1.msra.mxu0 %v4473
  %4513 = vmatprep.subr.mxu0 0.0
  %4514 = vmatpush1.msra.mxu0 %v4474
  %4515 = vmatprep.subr.mxu0 0.0
  %4516 = vmatpush1.msra.mxu0 %v4475
  %4517 = vmatprep.subr.mxu0 0.0
  %4518 = vmatpush1.msra.mxu0 %v4476
  %4519 = vmatprep.subr.mxu0 0.0
  %4520 = vmatpush1.msra.mxu0 %v4477
  %4521 = vmatprep.subr.mxu0 0.0
  %4522 = vmatpush1.msra.mxu0 %v4478
  %4523 = vmatprep.subr.mxu0 0.0
  %4524 = vmatpush1.msra.mxu0 0.0
  %4525 = vmatprep.subr.mxu0 0.0
  %4526 = vmatpush1.msra.mxu0 0.0
  %4527 = vmatprep.subr.mxu0 0.0
  %4528 = vmatpush1.msra.mxu0 0.0
  %4529 = vmatprep.subr.mxu0 0.0
  %4530 = vmatpush1.msra.mxu0 0.0
  %4531 = vmatprep.subr.mxu0 0.0
  %4532 = vmatpush1.msra.mxu0 0.0
  %4533 = vmatprep.subr.mxu0 0.0
  %4534 = vmatpush1.msra.mxu0 0.0
  %4535 = vmatprep.subr.mxu0 0.0
  %4536 = vmatpush1.msra.mxu0 0.0
  %4537 = vmatprep.subr.mxu0 0.0
  %4538 = vmatpush1.msra.mxu0 0.0
  %4539 = vmatprep.subr.mxu0 0.0
  %4540 = vmatpush1.msra.mxu0 0.0
  %4541 = vmatprep.subr.mxu0 0.0
  %4542 = vmatpush1.msra.mxu0 0.0
  %4543 = vmatprep.subr.mxu0 0.0
  %4544 = vmatpush1.msra.mxu0 0.0
  %4545 = vmatprep.subr.mxu0 0.0
  %4546 = vmatpush1.msra.mxu0 0.0
  %4547 = vmatprep.subr.mxu0 0.0
  %4548 = vmatpush1.msra.mxu0 0.0
  %4549 = vmatprep.subr.mxu0 0.0
  %4550 = vmatpush1.msra.mxu0 0.0
  %4551 = vmatprep.subr.mxu0 0.0
  %4552 = vmatpush1.msra.mxu0 0.0
  %4553 = vmatprep.subr.mxu0 0.0
  %4554 = vmatpush1.msra.mxu0 0.0
  %4555 = vmatprep.subr.mxu0 0.0
  %4556 = vmatpush1.msra.mxu0 0.0
  %4557 = vmatprep.subr.mxu0 0.0
  %4558 = vmatpush1.msra.mxu0 0.0
  %4559 = vmatprep.subr.mxu0 0.0
  %4560 = vmatpush1.msra.mxu0 0.0
  %4561 = vmatprep.subr.mxu0 0.0
  %4562 = vmatpush1.msra.mxu0 0.0
  %4563 = vmatprep.subr.mxu0 0.0
  %4564 = vmatpush1.msra.mxu0 0.0
  %4565 = vmatprep.subr.mxu0 0.0
  %4566 = vmatpush1.msra.mxu0 0.0
  %4567 = vmatprep.mubr.f32.mxu0 0.0
  %4568 = vmatmul.mubr.f32.gmra.mrb[0].mxu0 %v4480
  %v4569 = vpop.f32.mrb[0].mxu0
  %v4570 = vadd.f32 0.0, %v4569
  %v4571 = vpop.f32.mrb[0].mxu0
  %4572 = vmatprep.mubr.f32.mxu0 0.0
  %4573 = vmatmul.mubr.f32.gmra.mrb[0].mxu0 %v4483
  %v4574 = vpop.f32.mrb[0].mxu0
  %v4575 = vadd.f32 0.0, %v4574
  %v4576 = vpop.f32.mrb[0].mxu0
  %4577 = vmatprep.mubr.f32.mxu0 0.0
  %4578 = vmatmul.mubr.f32.gmra.mrb[0].mxu0 %v4486
  %v4579 = vpop.f32.mrb[0].mxu0
  %v4580 = vadd.f32 0.0, %v4579
  %v4581 = vpop.f32.mrb[0].mxu0
  %4582 = vmatprep.mubr.f32.mxu0 0.0
  %4583 = vmatmul.mubr.f32.gmra.mrb[0].mxu0 %v4489
  %v4584 = vpop.f32.mrb[0].mxu0
  %v4585 = vadd.f32 0.0, %v4584
  %v4586 = vpop.f32.mrb[0].mxu0
  %4587 = vmatprep.mubr.f32.mxu0 0.0
  %4588 = vmatmul.mubr.f32.gmra.mrb[0].mxu0 %v4492
  %v4589 = vpop.f32.mrb[0].mxu0
  %v4590 = vadd.f32 0.0, %v4589
  %v4591 = vpop.f32.mrb[0].mxu0
  %4592 = vmatprep.mubr.f32.mxu0 0.0
  %4593 = vmatmul.mubr.f32.gmra.mrb[0].mxu0 %v4495
  %v4594 = vpop.f32.mrb[0].mxu0
  %v4595 = vadd.f32 0.0, %v4594
  %v4596 = vpop.f32.mrb[0].mxu0
  %4597 = vmatprep.mubr.f32.mxu0 0.0
  %4598 = vmatmul.mubr.f32.gmra.mrb[0].mxu0 %v4498
  %v4599 = vpop.f32.mrb[0].mxu0
  %v4600 = vadd.f32 0.0, %v4599
  %v4601 = vpop.f32.mrb[0].mxu0
  %4602 = vmatprep.mubr.f32.mxu0 0.0
  %4603 = vmatmul.mubr.f32.gmra.mrb[0].mxu0 %v4501
  %v4604 = vpop.f32.mrb[0].mxu0
  %v4605 = vadd.f32 0.0, %v4604
  %v4606 = vpop.f32.mrb[0].mxu0
  %4607 = vdwg.mxu0
  %v4608 = vadd.f32 %v4452, %v4570
  %v4609 = vadd.f32 %v4453, %v4575
  %v4610 = vadd.f32 %v4454, %v4580
  %v4611 = vadd.f32 %v4455, %v4585
  %v4612 = vadd.f32 %v4456, %v4590
  %v4613 = vadd.f32 %v4457, %v4595
  %v4614 = vadd.f32 %v4458, %v4600
  %v4615 = vadd.f32 %v4459, %v4605
  %v4617 = vlaneseq
  %v4618 = vshrl.u32 %v4617, 7
  %v4619 = vsub.s32 0, %v4618
  %v4620 = vrot.slane %v4008, %v4619
  %v4622 = vadd.f32 %v4608, %v4620
  %v4623 = vadd.f32 %v4609, %v4620
  %v4624 = vadd.f32 %v4610, %v4620
  %v4625 = vadd.f32 %v4611, %v4620
  %v4626 = vadd.f32 %v4612, %v4620
  %v4627 = vadd.f32 %v4613, %v4620
  %v4628 = vadd.f32 %v4614, %v4620
  %v4629 = vadd.f32 %v4615, %v4620
  %v4630 = vmax.f32 %v4622, 0.0
  %v4631 = vmax.f32 %v4623, 0.0
  %v4632 = vmax.f32 %v4624, 0.0
  %v4633 = vmax.f32 %v4625, 0.0
  %v4634 = vmax.f32 %v4626, 0.0
  %v4635 = vmax.f32 %v4627, 0.0
  %v4636 = vmax.f32 %v4628, 0.0
  %v4637 = vmax.f32 %v4629, 0.0
  %4638 = vmatprep.subr.mxu0 0.0
  %4639 = vmatpush1.msra.mxu0 %v4036
  %4640 = vmatprep.subr.mxu0 0.0
  %4641 = vmatpush1.msra.mxu0 %v4037
  %4642 = vmatprep.subr.mxu0 0.0
  %4643 = vmatpush1.msra.mxu0 %v4038
  %4644 = vmatprep.subr.mxu0 0.0
  %4645 = vmatpush1.msra.mxu0 %v4039
  %4646 = vmatprep.subr.mxu0 0.0
  %4647 = vmatpush1.msra.mxu0 %v4040
  %4648 = vmatprep.subr.mxu0 0.0
  %4649 = vmatpush1.msra.mxu0 %v4041
  %4650 = vmatprep.subr.mxu0 0.0
  %4651 = vmatpush1.msra.mxu0 %v4042
  %4652 = vmatprep.subr.mxu0 0.0
  %4653 = vmatpush1.msra.mxu0 %v4043
  %4654 = vmatprep.subr.mxu0 0.0
  %4655 = vmatpush1.msra.mxu0 %v4044
  %4656 = vmatprep.subr.mxu0 0.0
  %4657 = vmatpush1.msra.mxu0 %v4045
  %4658 = vmatprep.subr.mxu0 0.0
  %4659 = vmatpush1.msra.mxu0 0.0
  %4660 = vmatprep.subr.mxu0 0.0
  %4661 = vmatpush1.msra.mxu0 0.0
  %4662 = vmatprep.subr.mxu0 0.0
  %4663 = vmatpush1.msra.mxu0 0.0
  %4664 = vmatprep.subr.mxu0 0.0
  %4665 = vmatpush1.msra.mxu0 0.0
  %4666 = vmatprep.subr.mxu0 0.0
  %4667 = vmatpush1.msra.mxu0 0.0
  %4668 = vmatprep.subr.mxu0 0.0
  %4669 = vmatpush1.msra.mxu0 0.0
  %4670 = vmatprep.subr.mxu0 0.0
  %4671 = vmatpush1.msra.mxu0 0.0
  %4672 = vmatprep.subr.mxu0 0.0
  %4673 = vmatpush1.msra.mxu0 0.0
  %4674 = vmatprep.subr.mxu0 0.0
  %4675 = vmatpush1.msra.mxu0 0.0
  %4676 = vmatprep.subr.mxu0 0.0
  %4677 = vmatpush1.msra.mxu0 0.0
  %4678 = vmatprep.subr.mxu0 0.0
  %4679 = vmatpush1.msra.mxu0 0.0
  %4680 = vmatprep.subr.mxu0 0.0
  %4681 = vmatpush1.msra.mxu0 0.0
  %4682 = vmatprep.subr.mxu0 0.0
  %4683 = vmatpush1.msra.mxu0 0.0
  %4684 = vmatprep.subr.mxu0 0.0
  %4685 = vmatpush1.msra.mxu0 0.0
  %4686 = vmatprep.subr.mxu0 0.0
  %4687 = vmatpush1.msra.mxu0 0.0
  %4688 = vmatprep.subr.mxu0 0.0
  %4689 = vmatpush1.msra.mxu0 0.0
  %4690 = vmatprep.subr.mxu0 0.0
  %4691 = vmatpush1.msra.mxu0 0.0
  %4692 = vmatprep.subr.mxu0 0.0
  %4693 = vmatpush1.msra.mxu0 0.0
  %4694 = vmatprep.subr.mxu0 0.0
  %4695 = vmatpush1.msra.mxu0 0.0
  %4696 = vmatprep.subr.mxu0 0.0
  %4697 = vmatpush1.msra.mxu0 0.0
  %4698 = vmatprep.subr.mxu0 0.0
  %4699 = vmatpush1.msra.mxu0 0.0
  %4700 = vmatprep.subr.mxu0 0.0
  %4701 = vmatpush1.msra.mxu0 0.0
  %4702 = vmatprep.mubr.f32.mxu0 0.0
  %4703 = vmatmul.mubr.f32.gmra.mrb[0].mxu0 %v4324
  %v4704 = vpop.f32.mrb[0].mxu0
  %v4705 = vadd.f32 0.0, %v4704
  %v4706 = vpop.f32.mrb[0].mxu0
  %4707 = vmatprep.mubr.f32.mxu0 0.0
  %4708 = vmatmul.mubr.f32.gmra.mrb[0].mxu0 %v4327
  %v4709 = vpop.f32.mrb[0].mxu0
  %v4710 = vadd.f32 0.0, %v4709
  %v4711 = vpop.f32.mrb[0].mxu0
  %4712 = vmatprep.mubr.f32.mxu0 0.0
  %4713 = vmatmul.mubr.f32.gmra.mrb[0].mxu0 %v4330
  %v4714 = vpop.f32.mrb[0].mxu0
  %v4715 = vadd.f32 0.0, %v4714
  %v4716 = vpop.f32.mrb[0].mxu0
  %4717 = vmatprep.mubr.f32.mxu0 0.0
  %4718 = vmatmul.mubr.f32.gmra.mrb[0].mxu0 %v4333
  %v4719 = vpop.f32.mrb[0].mxu0
  %v4720 = vadd.f32 0.0, %v4719
  %v4721 = vpop.f32.mrb[0].mxu0
  %4722 = vmatprep.mubr.f32.mxu0 0.0
  %4723 = vmatmul.mubr.f32.gmra.mrb[0].mxu0 %v4336
  %v4724 = vpop.f32.mrb[0].mxu0
  %v4725 = vadd.f32 0.0, %v4724
  %v4726 = vpop.f32.mrb[0].mxu0
  %4727 = vmatprep.mubr.f32.mxu0 0.0
  %4728 = vmatmul.mubr.f32.gmra.mrb[0].mxu0 %v4339
  %v4729 = vpop.f32.mrb[0].mxu0
  %v4730 = vadd.f32 0.0, %v4729
  %v4731 = vpop.f32.mrb[0].mxu0
  %4732 = vmatprep.mubr.f32.mxu0 0.0
  %4733 = vmatmul.mubr.f32.gmra.mrb[0].mxu0 %v4342
  %v4734 = vpop.f32.mrb[0].mxu0
  %v4735 = vadd.f32 0.0, %v4734
  %v4736 = vpop.f32.mrb[0].mxu0
  %4737 = vmatprep.mubr.f32.mxu0 0.0
  %4738 = vmatmul.mubr.f32.gmra.mrb[0].mxu0 %v4345
  %v4739 = vpop.f32.mrb[0].mxu0
  %v4740 = vadd.f32 0.0, %v4739
  %v4741 = vpop.f32.mrb[0].mxu0
  %4742 = vdwg.mxu0
  %4743 = vmatprep.subr.mxu0 0.0
  %4744 = vmatpush1.msra.mxu0 %v4017
  %4745 = vmatprep.subr.mxu0 0.0
  %4746 = vmatpush1.msra.mxu0 %v4018
  %4747 = vmatprep.subr.mxu0 0.0
  %4748 = vmatpush1.msra.mxu0 %v4019
  %4749 = vmatprep.subr.mxu0 0.0
  %4750 = vmatpush1.msra.mxu0 %v4020
  %4751 = vmatprep.subr.mxu0 0.0
  %4752 = vmatpush1.msra.mxu0 %v4021
  %4753 = vmatprep.subr.mxu0 0.0
  %4754 = vmatpush1.msra.mxu0 %v4022
  %4755 = vmatprep.subr.mxu0 0.0
  %4756 = vmatpush1.msra.mxu0 %v4023
  %4757 = vmatprep.subr.mxu0 0.0
  %4758 = vmatpush1.msra.mxu0 %v4024
  %4759 = vmatprep.subr.mxu0 0.0
  %4760 = vmatpush1.msra.mxu0 %v4025
  %4761 = vmatprep.subr.mxu0 0.0
  %4762 = vmatpush1.msra.mxu0 %v4026
  %4763 = vmatprep.subr.mxu0 0.0
  %4764 = vmatpush1.msra.mxu0 0.0
  %4765 = vmatprep.subr.mxu0 0.0
  %4766 = vmatpush1.msra.mxu0 0.0
  %4767 = vmatprep.subr.mxu0 0.0
  %4768 = vmatpush1.msra.mxu0 0.0
  %4769 = vmatprep.subr.mxu0 0.0
  %4770 = vmatpush1.msra.mxu0 0.0
  %4771 = vmatprep.subr.mxu0 0.0
  %4772 = vmatpush1.msra.mxu0 0.0
  %4773 = vmatprep.subr.mxu0 0.0
  %4774 = vmatpush1.msra.mxu0 0.0
  %4775 = vmatprep.subr.mxu0 0.0
  %4776 = vmatpush1.msra.mxu0 0.0
  %4777 = vmatprep.subr.mxu0 0.0
  %4778 = vmatpush1.msra.mxu0 0.0
  %4779 = vmatprep.subr.mxu0 0.0
  %4780 = vmatpush1.msra.mxu0 0.0
  %4781 = vmatprep.subr.mxu0 0.0
  %4782 = vmatpush1.msra.mxu0 0.0
  %4783 = vmatprep.subr.mxu0 0.0
  %4784 = vmatpush1.msra.mxu0 0.0
  %4785 = vmatprep.subr.mxu0 0.0
  %4786 = vmatpush1.msra.mxu0 0.0
  %4787 = vmatprep.subr.mxu0 0.0
  %4788 = vmatpush1.msra.mxu0 0.0
  %4789 = vmatprep.subr.mxu0 0.0
  %4790 = vmatpush1.msra.mxu0 0.0
  %4791 = vmatprep.subr.mxu0 0.0
  %4792 = vmatpush1.msra.mxu0 0.0
  %4793 = vmatprep.subr.mxu0 0.0
  %4794 = vmatpush1.msra.mxu0 0.0
  %4795 = vmatprep.subr.mxu0 0.0
  %4796 = vmatpush1.msra.mxu0 0.0
  %4797 = vmatprep.subr.mxu0 0.0
  %4798 = vmatpush1.msra.mxu0 0.0
  %4799 = vmatprep.subr.mxu0 0.0
  %4800 = vmatpush1.msra.mxu0 0.0
  %4801 = vmatprep.subr.mxu0 0.0
  %4802 = vmatpush1.msra.mxu0 0.0
  %4803 = vmatprep.subr.mxu0 0.0
  %4804 = vmatpush1.msra.mxu0 0.0
  %4805 = vmatprep.subr.mxu0 0.0
  %4806 = vmatpush1.msra.mxu0 0.0
  %4807 = vmatprep.mubr.f32.mxu0 0.0
  %4808 = vmatmul.mubr.f32.gmra.mrb[0].mxu0 %v4047
  %v4809 = vpop.f32.mrb[0].mxu0
  %v4810 = vadd.f32 %v4705, %v4809
  %v4811 = vpop.f32.mrb[0].mxu0
  %4812 = vmatprep.mubr.f32.mxu0 0.0
  %4813 = vmatmul.mubr.f32.gmra.mrb[0].mxu0 %v4050
  %v4814 = vpop.f32.mrb[0].mxu0
  %v4815 = vadd.f32 %v4710, %v4814
  %v4816 = vpop.f32.mrb[0].mxu0
  %4817 = vmatprep.mubr.f32.mxu0 0.0
  %4818 = vmatmul.mubr.f32.gmra.mrb[0].mxu0 %v4053
  %v4819 = vpop.f32.mrb[0].mxu0
  %v4820 = vadd.f32 %v4715, %v4819
  %v4821 = vpop.f32.mrb[0].mxu0
  %4822 = vmatprep.mubr.f32.mxu0 0.0
  %4823 = vmatmul.mubr.f32.gmra.mrb[0].mxu0 %v4056
  %v4824 = vpop.f32.mrb[0].mxu0
  %v4825 = vadd.f32 %v4720, %v4824
  %v4826 = vpop.f32.mrb[0].mxu0
  %4827 = vmatprep.mubr.f32.mxu0 0.0
  %4828 = vmatmul.mubr.f32.gmra.mrb[0].mxu0 %v4059
  %v4829 = vpop.f32.mrb[0].mxu0
  %v4830 = vadd.f32 %v4725, %v4829
  %v4831 = vpop.f32.mrb[0].mxu0
  %4832 = vmatprep.mubr.f32.mxu0 0.0
  %4833 = vmatmul.mubr.f32.gmra.mrb[0].mxu0 %v4062
  %v4834 = vpop.f32.mrb[0].mxu0
  %v4835 = vadd.f32 %v4730, %v4834
  %v4836 = vpop.f32.mrb[0].mxu0
  %4837 = vmatprep.mubr.f32.mxu0 0.0
  %4838 = vmatmul.mubr.f32.gmra.mrb[0].mxu0 %v4065
  %v4839 = vpop.f32.mrb[0].mxu0
  %v4840 = vadd.f32 %v4735, %v4839
  %v4841 = vpop.f32.mrb[0].mxu0
  %4842 = vmatprep.mubr.f32.mxu0 0.0
  %4843 = vmatmul.mubr.f32.gmra.mrb[0].mxu0 %v4068
  %v4844 = vpop.f32.mrb[0].mxu0
  %v4845 = vadd.f32 %v4740, %v4844
  %v4846 = vpop.f32.mrb[0].mxu0
  %4847 = vdwg.mxu0
  %4848 = vmatprep.subr.mxu0 0.0
  %4849 = vmatpush1.msra.mxu0 %v4313
  %4850 = vmatprep.subr.mxu0 0.0
  %4851 = vmatpush1.msra.mxu0 %v4314
  %4852 = vmatprep.subr.mxu0 0.0
  %4853 = vmatpush1.msra.mxu0 %v4315
  %4854 = vmatprep.subr.mxu0 0.0
  %4855 = vmatpush1.msra.mxu0 %v4316
  %4856 = vmatprep.subr.mxu0 0.0
  %4857 = vmatpush1.msra.mxu0 %v4317
  %4858 = vmatprep.subr.mxu0 0.0
  %4859 = vmatpush1.msra.mxu0 %v4318
  %4860 = vmatprep.subr.mxu0 0.0
  %4861 = vmatpush1.msra.mxu0 %v4319
  %4862 = vmatprep.subr.mxu0 0.0
  %4863 = vmatpush1.msra.mxu0 %v4320
  %4864 = vmatprep.subr.mxu0 0.0
  %4865 = vmatpush1.msra.mxu0 %v4321
  %4866 = vmatprep.subr.mxu0 0.0
  %4867 = vmatpush1.msra.mxu0 %v4322
  %4868 = vmatprep.subr.mxu0 0.0
  %4869 = vmatpush1.msra.mxu0 0.0
  %4870 = vmatprep.subr.mxu0 0.0
  %4871 = vmatpush1.msra.mxu0 0.0
  %4872 = vmatprep.subr.mxu0 0.0
  %4873 = vmatpush1.msra.mxu0 0.0
  %4874 = vmatprep.subr.mxu0 0.0
  %4875 = vmatpush1.msra.mxu0 0.0
  %4876 = vmatprep.subr.mxu0 0.0
  %4877 = vmatpush1.msra.mxu0 0.0
  %4878 = vmatprep.subr.mxu0 0.0
  %4879 = vmatpush1.msra.mxu0 0.0
  %4880 = vmatprep.subr.mxu0 0.0
  %4881 = vmatpush1.msra.mxu0 0.0
  %4882 = vmatprep.subr.mxu0 0.0
  %4883 = vmatpush1.msra.mxu0 0.0
  %4884 = vmatprep.subr.mxu0 0.0
  %4885 = vmatpush1.msra.mxu0 0.0
  %4886 = vmatprep.subr.mxu0 0.0
  %4887 = vmatpush1.msra.mxu0 0.0
  %4888 = vmatprep.subr.mxu0 0.0
  %4889 = vmatpush1.msra.mxu0 0.0
  %4890 = vmatprep.subr.mxu0 0.0
  %4891 = vmatpush1.msra.mxu0 0.0
  %4892 = vmatprep.subr.mxu0 0.0
  %4893 = vmatpush1.msra.mxu0 0.0
  %4894 = vmatprep.subr.mxu0 0.0
  %4895 = vmatpush1.msra.mxu0 0.0
  %4896 = vmatprep.subr.mxu0 0.0
  %4897 = vmatpush1.msra.mxu0 0.0
  %4898 = vmatprep.subr.mxu0 0.0
  %4899 = vmatpush1.msra.mxu0 0.0
  %4900 = vmatprep.subr.mxu0 0.0
  %4901 = vmatpush1.msra.mxu0 0.0
  %4902 = vmatprep.subr.mxu0 0.0
  %4903 = vmatpush1.msra.mxu0 0.0
  %4904 = vmatprep.subr.mxu0 0.0
  %4905 = vmatpush1.msra.mxu0 0.0
  %4906 = vmatprep.subr.mxu0 0.0
  %4907 = vmatpush1.msra.mxu0 0.0
  %4908 = vmatprep.subr.mxu0 0.0
  %4909 = vmatpush1.msra.mxu0 0.0
  %4910 = vmatprep.subr.mxu0 0.0
  %4911 = vmatpush1.msra.mxu0 0.0
  %4912 = vmatprep.mubr.f32.mxu0 0.0
  %4913 = vmatmul.mubr.f32.gmra.mrb[0].mxu0 %v4480
  %v4914 = vpop.f32.mrb[0].mxu0
  %v4915 = vadd.f32 0.0, %v4914
  %v4916 = vpop.f32.mrb[0].mxu0
  %4917 = vmatprep.mubr.f32.mxu0 0.0
  %4918 = vmatmul.mubr.f32.gmra.mrb[0].mxu0 %v4483
  %v4919 = vpop.f32.mrb[0].mxu0
  %v4920 = vadd.f32 0.0, %v4919
  %v4921 = vpop.f32.mrb[0].mxu0
  %4922 = vmatprep.mubr.f32.mxu0 0.0
  %4923 = vmatmul.mubr.f32.gmra.mrb[0].mxu0 %v4486
  %v4924 = vpop.f32.mrb[0].mxu0
  %v4925 = vadd.f32 0.0, %v4924
  %v4926 = vpop.f32.mrb[0].mxu0
  %4927 = vmatprep.mubr.f32.mxu0 0.0
  %4928 = vmatmul.mubr.f32.gmra.mrb[0].mxu0 %v4489
  %v4929 = vpop.f32.mrb[0].mxu0
  %v4930 = vadd.f32 0.0, %v4929
  %v4931 = vpop.f32.mrb[0].mxu0
  %4932 = vmatprep.mubr.f32.mxu0 0.0
  %4933 = vmatmul.mubr.f32.gmra.mrb[0].mxu0 %v4492
  %v4934 = vpop.f32.mrb[0].mxu0
  %v4935 = vadd.f32 0.0, %v4934
  %v4936 = vpop.f32.mrb[0].mxu0
  %4937 = vmatprep.mubr.f32.mxu0 0.0
  %4938 = vmatmul.mubr.f32.gmra.mrb[0].mxu0 %v4495
  %v4939 = vpop.f32.mrb[0].mxu0
  %v4940 = vadd.f32 0.0, %v4939
  %v4941 = vpop.f32.mrb[0].mxu0
  %4942 = vmatprep.mubr.f32.mxu0 0.0
  %4943 = vmatmul.mubr.f32.gmra.mrb[0].mxu0 %v4498
  %v4944 = vpop.f32.mrb[0].mxu0
  %v4945 = vadd.f32 0.0, %v4944
  %v4946 = vpop.f32.mrb[0].mxu0
  %4947 = vmatprep.mubr.f32.mxu0 0.0
  %4948 = vmatmul.mubr.f32.gmra.mrb[0].mxu0 %v4501
  %v4949 = vpop.f32.mrb[0].mxu0
  %v4950 = vadd.f32 0.0, %v4949
  %v4951 = vpop.f32.mrb[0].mxu0
  %4952 = vdwg.mxu0
  %v4953 = vadd.f32 %v4810, %v4915
  %v4954 = vadd.f32 %v4815, %v4920
  %v4955 = vadd.f32 %v4820, %v4925
  %v4956 = vadd.f32 %v4825, %v4930
  %v4957 = vadd.f32 %v4830, %v4935
  %v4958 = vadd.f32 %v4835, %v4940
  %v4959 = vadd.f32 %v4840, %v4945
  %v4960 = vadd.f32 %v4845, %v4950
  %v4961 = vld [vmem:[#allocation2 + $0x100] sm:$0xff]
  %v4962 = vld [vmem:[#allocation2 + $0x108] sm:$0xff]
  %v4963 = vld [vmem:[#allocation2 + $0x110] sm:$0xff]
  %v4964 = vld [vmem:[#allocation2 + $0x118] sm:$0xff]
  %v4965 = vld [vmem:[#allocation2 + $0x120] sm:$0xff]
  %v4966 = vld [vmem:[#allocation2 + $0x128] sm:$0xff]
  %v4967 = vld [vmem:[#allocation2 + $0x130] sm:$0xff]
  %v4968 = vld [vmem:[#allocation2 + $0x138] sm:$0xff]
  %v4970 = vsel %vm3919, %v4961, 0
  %v4973 = vsel %vm3919, %v4962, 0
  %v4976 = vsel %vm3919, %v4963, 0
  %v4979 = vsel %vm3919, %v4964, 0
  %v4982 = vsel %vm3919, %v4965, 0
  %v4985 = vsel %vm3919, %v4966, 0
  %v4988 = vsel %vm3919, %v4967, 0
  %v4991 = vsel %vm3919, %v4968, 0
  %4993 = vmatprep.subr.mxu0 0.0
  %4994 = vmatpush1.msra.mxu0 %v4469
  %4995 = vmatprep.subr.mxu0 0.0
  %4996 = vmatpush1.msra.mxu0 %v4470
  %4997 = vmatprep.subr.mxu0 0.0
  %4998 = vmatpush1.msra.mxu0 %v4471
  %4999 = vmatprep.subr.mxu0 0.0
  %5000 = vmatpush1.msra.mxu0 %v4472
  %5001 = vmatprep.subr.mxu0 0.0
  %5002 = vmatpush1.msra.mxu0 %v4473
  %5003 = vmatprep.subr.mxu0 0.0
  %5004 = vmatpush1.msra.mxu0 %v4474
  %5005 = vmatprep.subr.mxu0 0.0
  %5006 = vmatpush1.msra.mxu0 %v4475
  %5007 = vmatprep.subr.mxu0 0.0
  %5008 = vmatpush1.msra.mxu0 %v4476
  %5009 = vmatprep.subr.mxu0 0.0
  %5010 = vmatpush1.msra.mxu0 %v4477
  %5011 = vmatprep.subr.mxu0 0.0
  %5012 = vmatpush1.msra.mxu0 %v4478
  %5013 = vmatprep.subr.mxu0 0.0
  %5014 = vmatpush1.msra.mxu0 0.0
  %5015 = vmatprep.subr.mxu0 0.0
  %5016 = vmatpush1.msra.mxu0 0.0
  %5017 = vmatprep.subr.mxu0 0.0
  %5018 = vmatpush1.msra.mxu0 0.0
  %5019 = vmatprep.subr.mxu0 0.0
  %5020 = vmatpush1.msra.mxu0 0.0
  %5021 = vmatprep.subr.mxu0 0.0
  %5022 = vmatpush1.msra.mxu0 0.0
  %5023 = vmatprep.subr.mxu0 0.0
  %5024 = vmatpush1.msra.mxu0 0.0
  %5025 = vmatprep.subr.mxu0 0.0
  %5026 = vmatpush1.msra.mxu0 0.0
  %5027 = vmatprep.subr.mxu0 0.0
  %5028 = vmatpush1.msra.mxu0 0.0
  %5029 = vmatprep.subr.mxu0 0.0
  %5030 = vmatpush1.msra.mxu0 0.0
  %5031 = vmatprep.subr.mxu0 0.0
  %5032 = vmatpush1.msra.mxu0 0.0
  %5033 = vmatprep.subr.mxu0 0.0
  %5034 = vmatpush1.msra.mxu0 0.0
  %5035 = vmatprep.subr.mxu0 0.0
  %5036 = vmatpush1.msra.mxu0 0.0
  %5037 = vmatprep.subr.mxu0 0.0
  %5038 = vmatpush1.msra.mxu0 0.0
  %5039 = vmatprep.subr.mxu0 0.0
  %5040 = vmatpush1.msra.mxu0 0.0
  %5041 = vmatprep.subr.mxu0 0.0
  %5042 = vmatpush1.msra.mxu0 0.0
  %5043 = vmatprep.subr.mxu0 0.0
  %5044 = vmatpush1.msra.mxu0 0.0
  %5045 = vmatprep.subr.mxu0 0.0
  %5046 = vmatpush1.msra.mxu0 0.0
  %5047 = vmatprep.subr.mxu0 0.0
  %5048 = vmatpush1.msra.mxu0 0.0
  %5049 = vmatprep.subr.mxu0 0.0
  %5050 = vmatpush1.msra.mxu0 0.0
  %5051 = vmatprep.subr.mxu0 0.0
  %5052 = vmatpush1.msra.mxu0 0.0
  %5053 = vmatprep.subr.mxu0 0.0
  %5054 = vmatpush1.msra.mxu0 0.0
  %5055 = vmatprep.subr.mxu0 0.0
  %5056 = vmatpush1.msra.mxu0 0.0
  %5057 = vmatprep.mubr.f32.mxu0 0.0
  %5058 = vmatmul.mubr.f32.gmra.mrb[0].mxu0 %v4970
  %v5059 = vpop.f32.mrb[0].mxu0
  %v5060 = vadd.f32 0.0, %v5059
  %v5061 = vpop.f32.mrb[0].mxu0
  %5062 = vmatprep.mubr.f32.mxu0 0.0
  %5063 = vmatmul.mubr.f32.gmra.mrb[0].mxu0 %v4973
  %v5064 = vpop.f32.mrb[0].mxu0
  %v5065 = vadd.f32 0.0, %v5064
  %v5066 = vpop.f32.mrb[0].mxu0
  %5067 = vmatprep.mubr.f32.mxu0 0.0
  %5068 = vmatmul.mubr.f32.gmra.mrb[0].mxu0 %v4976
  %v5069 = vpop.f32.mrb[0].mxu0
  %v5070 = vadd.f32 0.0, %v5069
  %v5071 = vpop.f32.mrb[0].mxu0
  %5072 = vmatprep.mubr.f32.mxu0 0.0
  %5073 = vmatmul.mubr.f32.gmra.mrb[0].mxu0 %v4979
  %v5074 = vpop.f32.mrb[0].mxu0
  %v5075 = vadd.f32 0.0, %v5074
  %v5076 = vpop.f32.mrb[0].mxu0
  %5077 = vmatprep.mubr.f32.mxu0 0.0
  %5078 = vmatmul.mubr.f32.gmra.mrb[0].mxu0 %v4982
  %v5079 = vpop.f32.mrb[0].mxu0
  %v5080 = vadd.f32 0.0, %v5079
  %v5081 = vpop.f32.mrb[0].mxu0
  %5082 = vmatprep.mubr.f32.mxu0 0.0
  %5083 = vmatmul.mubr.f32.gmra.mrb[0].mxu0 %v4985
  %v5084 = vpop.f32.mrb[0].mxu0
  %v5085 = vadd.f32 0.0, %v5084
  %v5086 = vpop.f32.mrb[0].mxu0
  %5087 = vmatprep.mubr.f32.mxu0 0.0
  %5088 = vmatmul.mubr.f32.gmra.mrb[0].mxu0 %v4988
  %v5089 = vpop.f32.mrb[0].mxu0
  %v5090 = vadd.f32 0.0, %v5089
  %v5091 = vpop.f32.mrb[0].mxu0
  %5092 = vmatprep.mubr.f32.mxu0 0.0
  %5093 = vmatmul.mubr.f32.gmra.mrb[0].mxu0 %v4991
  %v5094 = vpop.f32.mrb[0].mxu0
  %v5095 = vadd.f32 0.0, %v5094
  %v5096 = vpop.f32.mrb[0].mxu0
  %5097 = vdwg.mxu0
  %v5098 = vadd.f32 %v4953, %v5060
  %v5099 = vadd.f32 %v4954, %v5065
  %v5100 = vadd.f32 %v4955, %v5070
  %v5101 = vadd.f32 %v4956, %v5075
  %v5102 = vadd.f32 %v4957, %v5080
  %v5103 = vadd.f32 %v4958, %v5085
  %v5104 = vadd.f32 %v4959, %v5090
  %v5105 = vadd.f32 %v4960, %v5095
  %v5106 = vadd.f32 %v5098, %v4620
  %v5107 = vadd.f32 %v5099, %v4620
  %v5108 = vadd.f32 %v5100, %v4620
  %v5109 = vadd.f32 %v5101, %v4620
  %v5110 = vadd.f32 %v5102, %v4620
  %v5111 = vadd.f32 %v5103, %v4620
  %v5112 = vadd.f32 %v5104, %v4620
  %v5113 = vadd.f32 %v5105, %v4620
  %v5114 = vmax.f32 %v5106, 0.0
  %v5115 = vmax.f32 %v5107, 0.0
  %v5116 = vmax.f32 %v5108, 0.0
  %v5117 = vmax.f32 %v5109, 0.0
  %v5118 = vmax.f32 %v5110, 0.0
  %v5119 = vmax.f32 %v5111, 0.0
  %v5120 = vmax.f32 %v5112, 0.0
  %v5121 = vmax.f32 %v5113, 0.0
  %v5122 = vmax.f32 %v4630, %v5114
  %v5123 = vmax.f32 %v4631, %v5115
  %v5124 = vmax.f32 %v4632, %v5116
  %v5125 = vmax.f32 %v4633, %v5117
  %v5126 = vmax.f32 %v4634, %v5118
  %v5127 = vmax.f32 %v4635, %v5119
  %v5128 = vmax.f32 %v4636, %v5120
  %v5129 = vmax.f32 %v4637, %v5121
  %v5130 = vmax.f32 %v5122, %v5123
  %v5131 = vld [vmem:[%s5] sm:$0xff]
  %v5132 = vld [vmem:[%s5 + $0x8] sm:$0xff]
  %v5133 = vld [vmem:[%s5 + $0x10] sm:$0xf]
  %v5134 = vmax.f32 %v5124, %v5125
  %s5135 = scalar_lea.vmem %s5, 24
  %v5136 = vld [vmem:[%s5135] sm:$0xff]
  %v5137 = vld [vmem:[%s5135 + $0x8] sm:$0xff]
  %v5138 = vld [vmem:[%s5135 + $0x10] sm:$0xf]
  %vm5139 = vcmask 162816
  %v5141 = vsel %vm5139, %v5134, 0
  %vm5143 = vcmask 1043456
  %v5145 = vsel %vm5143, %v5138, 0
  %5147 = vmatprep.subr.mxu0 0.0
  %5148 = vmatpush1.msra.mxu0 %v5136
  %5149 = vmatprep.subr.mxu0 0.0
  %5150 = vmatpush1.msra.mxu0 %v5137
  %5151 = vmatprep.subr.mxu0 0.0
  %5152 = vmatpush1.msra.mxu0 %v5145
  %5153 = vmatprep.subr.mxu0 0.0
  %5154 = vmatpush1.msra.mxu0 0.0
  %5155 = vmatprep.subr.mxu0 0.0
  %5156 = vmatpush1.msra.mxu0 0.0
  %5157 = vmatprep.subr.mxu0 0.0
  %5158 = vmatpush1.msra.mxu0 0.0
  %5159 = vmatprep.subr.mxu0 0.0
  %5160 = vmatpush1.msra.mxu0 0.0
  %5161 = vmatprep.subr.mxu0 0.0
  %5162 = vmatpush1.msra.mxu0 0.0
  %5163 = vmatprep.subr.mxu0 0.0
  %5164 = vmatpush1.msra.mxu0 0.0
  %5165 = vmatprep.subr.mxu0 0.0
  %5166 = vmatpush1.msra.mxu0 0.0
  %5167 = vmatprep.subr.mxu0 0.0
  %5168 = vmatpush1.msra.mxu0 0.0
  %5169 = vmatprep.subr.mxu0 0.0
  %5170 = vmatpush1.msra.mxu0 0.0
  %5171 = vmatprep.subr.mxu0 0.0
  %5172 = vmatpush1.msra.mxu0 0.0
  %5173 = vmatprep.subr.mxu0 0.0
  %5174 = vmatpush1.msra.mxu0 0.0
  %5175 = vmatprep.subr.mxu0 0.0
  %5176 = vmatpush1.msra.mxu0 0.0
  %5177 = vmatprep.subr.mxu0 0.0
  %5178 = vmatpush1.msra.mxu0 0.0
  %5179 = vmatprep.subr.mxu0 0.0
  %5180 = vmatpush1.msra.mxu0 0.0
  %5181 = vmatprep.subr.mxu0 0.0
  %5182 = vmatpush1.msra.mxu0 0.0
  %5183 = vmatprep.subr.mxu0 0.0
  %5184 = vmatpush1.msra.mxu0 0.0
  %5185 = vmatprep.subr.mxu0 0.0
  %5186 = vmatpush1.msra.mxu0 0.0
  %5187 = vmatprep.subr.mxu0 0.0
  %5188 = vmatpush1.msra.mxu0 0.0
  %5189 = vmatprep.subr.mxu0 0.0
  %5190 = vmatpush1.msra.mxu0 0.0
  %5191 = vmatprep.subr.mxu0 0.0
  %5192 = vmatpush1.msra.mxu0 0.0
  %5193 = vmatprep.subr.mxu0 0.0
  %5194 = vmatpush1.msra.mxu0 0.0
  %5195 = vmatprep.subr.mxu0 0.0
  %5196 = vmatpush1.msra.mxu0 0.0
  %5197 = vmatprep.subr.mxu0 0.0
  %5198 = vmatpush1.msra.mxu0 0.0
  %5199 = vmatprep.subr.mxu0 0.0
  %5200 = vmatpush1.msra.mxu0 0.0
  %5201 = vmatprep.subr.mxu0 0.0
  %5202 = vmatpush1.msra.mxu0 0.0
  %5203 = vmatprep.subr.mxu0 0.0
  %5204 = vmatpush1.msra.mxu0 0.0
  %5205 = vmatprep.subr.mxu0 0.0
  %5206 = vmatpush1.msra.mxu0 0.0
  %5207 = vmatprep.subr.mxu0 0.0
  %5208 = vmatpush1.msra.mxu0 0.0
  %5209 = vmatprep.subr.mxu0 0.0
  %5210 = vmatpush1.msra.mxu0 0.0
  %5211 = vmatprep.mubr.f32.mxu0 0.0
  %5212 = vmatmul.mubr.f32.gmra.mrb[0].mxu0 %v5141
  %v5213 = vpop.f32.mrb[0].mxu0
  %v5214 = vadd.f32 0.0, %v5213
  %v5215 = vpop.f32.mrb[0].mxu0
  %5216 = vdwg.mxu0
  %v5218 = vsel %vm5139, %v5130, 0
  %v5221 = vsel %vm5143, %v5133, 0
  %5223 = vmatprep.subr.mxu0 0.0
  %5224 = vmatpush1.msra.mxu0 %v5131
  %5225 = vmatprep.subr.mxu0 0.0
  %5226 = vmatpush1.msra.mxu0 %v5132
  %5227 = vmatprep.subr.mxu0 0.0
  %5228 = vmatpush1.msra.mxu0 %v5221
  %5229 = vmatprep.subr.mxu0 0.0
  %5230 = vmatpush1.msra.mxu0 0.0
  %5231 = vmatprep.subr.mxu0 0.0
  %5232 = vmatpush1.msra.mxu0 0.0
  %5233 = vmatprep.subr.mxu0 0.0
  %5234 = vmatpush1.msra.mxu0 0.0
  %5235 = vmatprep.subr.mxu0 0.0
  %5236 = vmatpush1.msra.mxu0 0.0
  %5237 = vmatprep.subr.mxu0 0.0
  %5238 = vmatpush1.msra.mxu0 0.0
  %5239 = vmatprep.subr.mxu0 0.0
  %5240 = vmatpush1.msra.mxu0 0.0
  %5241 = vmatprep.subr.mxu0 0.0
  %5242 = vmatpush1.msra.mxu0 0.0
  %5243 = vmatprep.subr.mxu0 0.0
  %5244 = vmatpush1.msra.mxu0 0.0
  %5245 = vmatprep.subr.mxu0 0.0
  %5246 = vmatpush1.msra.mxu0 0.0
  %5247 = vmatprep.subr.mxu0 0.0
  %5248 = vmatpush1.msra.mxu0 0.0
  %5249 = vmatprep.subr.mxu0 0.0
  %5250 = vmatpush1.msra.mxu0 0.0
  %5251 = vmatprep.subr.mxu0 0.0
  %5252 = vmatpush1.msra.mxu0 0.0
  %5253 = vmatprep.subr.mxu0 0.0
  %5254 = vmatpush1.msra.mxu0 0.0
  %5255 = vmatprep.subr.mxu0 0.0
  %5256 = vmatpush1.msra.mxu0 0.0
  %5257 = vmatprep.subr.mxu0 0.0
  %5258 = vmatpush1.msra.mxu0 0.0
  %5259 = vmatprep.subr.mxu0 0.0
  %5260 = vmatpush1.msra.mxu0 0.0
  %5261 = vmatprep.subr.mxu0 0.0
  %5262 = vmatpush1.msra.mxu0 0.0
  %5263 = vmatprep.subr.mxu0 0.0
  %5264 = vmatpush1.msra.mxu0 0.0
  %5265 = vmatprep.subr.mxu0 0.0
  %5266 = vmatpush1.msra.mxu0 0.0
  %5267 = vmatprep.subr.mxu0 0.0
  %5268 = vmatpush1.msra.mxu0 0.0
  %5269 = vmatprep.subr.mxu0 0.0
  %5270 = vmatpush1.msra.mxu0 0.0
  %5271 = vmatprep.subr.mxu0 0.0
  %5272 = vmatpush1.msra.mxu0 0.0
  %5273 = vmatprep.subr.mxu0 0.0
  %5274 = vmatpush1.msra.mxu0 0.0
  %5275 = vmatprep.subr.mxu0 0.0
  %5276 = vmatpush1.msra.mxu0 0.0
  %5277 = vmatprep.subr.mxu0 0.0
  %5278 = vmatpush1.msra.mxu0 0.0
  %5279 = vmatprep.subr.mxu0 0.0
  %5280 = vmatpush1.msra.mxu0 0.0
  %5281 = vmatprep.subr.mxu0 0.0
  %5282 = vmatpush1.msra.mxu0 0.0
  %5283 = vmatprep.subr.mxu0 0.0
  %5284 = vmatpush1.msra.mxu0 0.0
  %5285 = vmatprep.subr.mxu0 0.0
  %5286 = vmatpush1.msra.mxu0 0.0
  %5287 = vmatprep.mubr.f32.mxu0 0.0
  %5288 = vmatmul.mubr.f32.gmra.mrb[0].mxu0 %v5218
  %v5289 = vpop.f32.mrb[0].mxu0
  %v5290 = vadd.f32 %v5214, %v5289
  %v5291 = vpop.f32.mrb[0].mxu0
  %5292 = vdwg.mxu0
  %v5293 = vmax.f32 %v5126, %v5127
  %s5294 = scalar_lea.vmem %s5, 48
  %v5295 = vld [vmem:[%s5294] sm:$0xff]
  %v5296 = vld [vmem:[%s5294 + $0x8] sm:$0xff]
  %v5297 = vld [vmem:[%s5294 + $0x10] sm:$0xf]
  %v5299 = vsel %vm5139, %v5293, 0
  %v5302 = vsel %vm5143, %v5297, 0
  %5304 = vmatprep.subr.mxu0 0.0
  %5305 = vmatpush1.msra.mxu0 %v5295
  %5306 = vmatprep.subr.mxu0 0.0
  %5307 = vmatpush1.msra.mxu0 %v5296
  %5308 = vmatprep.subr.mxu0 0.0
  %5309 = vmatpush1.msra.mxu0 %v5302
  %5310 = vmatprep.subr.mxu0 0.0
  %5311 = vmatpush1.msra.mxu0 0.0
  %5312 = vmatprep.subr.mxu0 0.0
  %5313 = vmatpush1.msra.mxu0 0.0
  %5314 = vmatprep.subr.mxu0 0.0
  %5315 = vmatpush1.msra.mxu0 0.0
  %5316 = vmatprep.subr.mxu0 0.0
  %5317 = vmatpush1.msra.mxu0 0.0
  %5318 = vmatprep.subr.mxu0 0.0
  %5319 = vmatpush1.msra.mxu0 0.0
  %5320 = vmatprep.subr.mxu0 0.0
  %5321 = vmatpush1.msra.mxu0 0.0
  %5322 = vmatprep.subr.mxu0 0.0
  %5323 = vmatpush1.msra.mxu0 0.0
  %5324 = vmatprep.subr.mxu0 0.0
  %5325 = vmatpush1.msra.mxu0 0.0
  %5326 = vmatprep.subr.mxu0 0.0
  %5327 = vmatpush1.msra.mxu0 0.0
  %5328 = vmatprep.subr.mxu0 0.0
  %5329 = vmatpush1.msra.mxu0 0.0
  %5330 = vmatprep.subr.mxu0 0.0
  %5331 = vmatpush1.msra.mxu0 0.0
  %5332 = vmatprep.subr.mxu0 0.0
  %5333 = vmatpush1.msra.mxu0 0.0
  %5334 = vmatprep.subr.mxu0 0.0
  %5335 = vmatpush1.msra.mxu0 0.0
  %5336 = vmatprep.subr.mxu0 0.0
  %5337 = vmatpush1.msra.mxu0 0.0
  %5338 = vmatprep.subr.mxu0 0.0
  %5339 = vmatpush1.msra.mxu0 0.0
  %5340 = vmatprep.subr.mxu0 0.0
  %5341 = vmatpush1.msra.mxu0 0.0
  %5342 = vmatprep.subr.mxu0 0.0
  %5343 = vmatpush1.msra.mxu0 0.0
  %5344 = vmatprep.subr.mxu0 0.0
  %5345 = vmatpush1.msra.mxu0 0.0
  %5346 = vmatprep.subr.mxu0 0.0
  %5347 = vmatpush1.msra.mxu0 0.0
  %5348 = vmatprep.subr.mxu0 0.0
  %5349 = vmatpush1.msra.mxu0 0.0
  %5350 = vmatprep.subr.mxu0 0.0
  %5351 = vmatpush1.msra.mxu0 0.0
  %5352 = vmatprep.subr.mxu0 0.0
  %5353 = vmatpush1.msra.mxu0 0.0
  %5354 = vmatprep.subr.mxu0 0.0
  %5355 = vmatpush1.msra.mxu0 0.0
  %5356 = vmatprep.subr.mxu0 0.0
  %5357 = vmatpush1.msra.mxu0 0.0
  %5358 = vmatprep.subr.mxu0 0.0
  %5359 = vmatpush1.msra.mxu0 0.0
  %5360 = vmatprep.subr.mxu0 0.0
  %5361 = vmatpush1.msra.mxu0 0.0
  %5362 = vmatprep.subr.mxu0 0.0
  %5363 = vmatpush1.msra.mxu0 0.0
  %5364 = vmatprep.subr.mxu0 0.0
  %5365 = vmatpush1.msra.mxu0 0.0
  %5366 = vmatprep.subr.mxu0 0.0
  %5367 = vmatpush1.msra.mxu0 0.0
  %5368 = vmatprep.mubr.f32.mxu0 0.0
  %5369 = vmatmul.mubr.f32.gmra.mrb[0].mxu0 %v5299
  %v5370 = vpop.f32.mrb[0].mxu0
  %v5371 = vadd.f32 0.0, %v5370
  %v5372 = vpop.f32.mrb[0].mxu0
  %5373 = vdwg.mxu0
  %v5374 = vadd.f32 %v5290, %v5371
  %v5375 = vmax.f32 %v5128, %v5129
  %s5376 = scalar_lea.vmem %s5, 72
  %v5377 = vld [vmem:[%s5376] sm:$0xff]
  %v5378 = vld [vmem:[%s5376 + $0x8] sm:$0xff]
  %v5379 = vld [vmem:[%s5376 + $0x10] sm:$0xf]
  %v5381 = vsel %vm5139, %v5375, 0
  %v5384 = vsel %vm5143, %v5379, 0
  %5386 = vmatprep.subr.mxu0 0.0
  %5387 = vmatpush1.msra.mxu0 %v5377
  %5388 = vmatprep.subr.mxu0 0.0
  %5389 = vmatpush1.msra.mxu0 %v5378
  %5390 = vmatprep.subr.mxu0 0.0
  %5391 = vmatpush1.msra.mxu0 %v5384
  %5392 = vmatprep.subr.mxu0 0.0
  %5393 = vmatpush1.msra.mxu0 0.0
  %5394 = vmatprep.subr.mxu0 0.0
  %5395 = vmatpush1.msra.mxu0 0.0
  %5396 = vmatprep.subr.mxu0 0.0
  %5397 = vmatpush1.msra.mxu0 0.0
  %5398 = vmatprep.subr.mxu0 0.0
  %5399 = vmatpush1.msra.mxu0 0.0
  %5400 = vmatprep.subr.mxu0 0.0
  %5401 = vmatpush1.msra.mxu0 0.0
  %5402 = vmatprep.subr.mxu0 0.0
  %5403 = vmatpush1.msra.mxu0 0.0
  %5404 = vmatprep.subr.mxu0 0.0
  %5405 = vmatpush1.msra.mxu0 0.0
  %5406 = vmatprep.subr.mxu0 0.0
  %5407 = vmatpush1.msra.mxu0 0.0
  %5408 = vmatprep.subr.mxu0 0.0
  %5409 = vmatpush1.msra.mxu0 0.0
  %5410 = vmatprep.subr.mxu0 0.0
  %5411 = vmatpush1.msra.mxu0 0.0
  %5412 = vmatprep.subr.mxu0 0.0
  %5413 = vmatpush1.msra.mxu0 0.0
  %5414 = vmatprep.subr.mxu0 0.0
  %5415 = vmatpush1.msra.mxu0 0.0
  %5416 = vmatprep.subr.mxu0 0.0
  %5417 = vmatpush1.msra.mxu0 0.0
  %5418 = vmatprep.subr.mxu0 0.0
  %5419 = vmatpush1.msra.mxu0 0.0
  %5420 = vmatprep.subr.mxu0 0.0
  %5421 = vmatpush1.msra.mxu0 0.0
  %5422 = vmatprep.subr.mxu0 0.0
  %5423 = vmatpush1.msra.mxu0 0.0
  %5424 = vmatprep.subr.mxu0 0.0
  %5425 = vmatpush1.msra.mxu0 0.0
  %5426 = vmatprep.subr.mxu0 0.0
  %5427 = vmatpush1.msra.mxu0 0.0
  %5428 = vmatprep.subr.mxu0 0.0
  %5429 = vmatpush1.msra.mxu0 0.0
  %5430 = vmatprep.subr.mxu0 0.0
  %5431 = vmatpush1.msra.mxu0 0.0
  %5432 = vmatprep.subr.mxu0 0.0
  %5433 = vmatpush1.msra.mxu0 0.0
  %5434 = vmatprep.subr.mxu0 0.0
  %5435 = vmatpush1.msra.mxu0 0.0
  %5436 = vmatprep.subr.mxu0 0.0
  %5437 = vmatpush1.msra.mxu0 0.0
  %5438 = vmatprep.subr.mxu0 0.0
  %5439 = vmatpush1.msra.mxu0 0.0
  %5440 = vmatprep.subr.mxu0 0.0
  %5441 = vmatpush1.msra.mxu0 0.0
  %5442 = vmatprep.subr.mxu0 0.0
  %5443 = vmatpush1.msra.mxu0 0.0
  %5444 = vmatprep.subr.mxu0 0.0
  %5445 = vmatpush1.msra.mxu0 0.0
  %5446 = vmatprep.subr.mxu0 0.0
  %5447 = vmatpush1.msra.mxu0 0.0
  %5448 = vmatprep.subr.mxu0 0.0
  %5449 = vmatpush1.msra.mxu0 0.0
  %5450 = vmatprep.mubr.f32.mxu0 0.0
  %5451 = vmatmul.mubr.f32.gmra.mrb[0].mxu0 %v5381
  %v5452 = vpop.f32.mrb[0].mxu0
  %v5453 = vadd.f32 0.0, %v5452
  %v5454 = vpop.f32.mrb[0].mxu0
  %5455 = vdwg.mxu0
  %v5456 = vadd.f32 %v5374, %v5453
  %5457 = vmatprep.subr.mxu0 0.0
  %5458 = vmatpush1.msra.mxu0 %v4036
  %5459 = vmatprep.subr.mxu0 0.0
  %5460 = vmatpush1.msra.mxu0 %v4037
  %5461 = vmatprep.subr.mxu0 0.0
  %5462 = vmatpush1.msra.mxu0 %v4038
  %5463 = vmatprep.subr.mxu0 0.0
  %5464 = vmatpush1.msra.mxu0 %v4039
  %5465 = vmatprep.subr.mxu0 0.0
  %5466 = vmatpush1.msra.mxu0 %v4040
  %5467 = vmatprep.subr.mxu0 0.0
  %5468 = vmatpush1.msra.mxu0 %v4041
  %5469 = vmatprep.subr.mxu0 0.0
  %5470 = vmatpush1.msra.mxu0 %v4042
  %5471 = vmatprep.subr.mxu0 0.0
  %5472 = vmatpush1.msra.mxu0 %v4043
  %5473 = vmatprep.subr.mxu0 0.0
  %5474 = vmatpush1.msra.mxu0 %v4044
  %5475 = vmatprep.subr.mxu0 0.0
  %5476 = vmatpush1.msra.mxu0 %v4045
  %5477 = vmatprep.subr.mxu0 0.0
  %5478 = vmatpush1.msra.mxu0 0.0
  %5479 = vmatprep.subr.mxu0 0.0
  %5480 = vmatpush1.msra.mxu0 0.0
  %5481 = vmatprep.subr.mxu0 0.0
  %5482 = vmatpush1.msra.mxu0 0.0
  %5483 = vmatprep.subr.mxu0 0.0
  %5484 = vmatpush1.msra.mxu0 0.0
  %5485 = vmatprep.subr.mxu0 0.0
  %5486 = vmatpush1.msra.mxu0 0.0
  %5487 = vmatprep.subr.mxu0 0.0
  %5488 = vmatpush1.msra.mxu0 0.0
  %5489 = vmatprep.subr.mxu0 0.0
  %5490 = vmatpush1.msra.mxu0 0.0
  %5491 = vmatprep.subr.mxu0 0.0
  %5492 = vmatpush1.msra.mxu0 0.0
  %5493 = vmatprep.subr.mxu0 0.0
  %5494 = vmatpush1.msra.mxu0 0.0
  %5495 = vmatprep.subr.mxu0 0.0
  %5496 = vmatpush1.msra.mxu0 0.0
  %5497 = vmatprep.subr.mxu0 0.0
  %5498 = vmatpush1.msra.mxu0 0.0
  %5499 = vmatprep.subr.mxu0 0.0
  %5500 = vmatpush1.msra.mxu0 0.0
  %5501 = vmatprep.subr.mxu0 0.0
  %5502 = vmatpush1.msra.mxu0 0.0
  %5503 = vmatprep.subr.mxu0 0.0
  %5504 = vmatpush1.msra.mxu0 0.0
  %5505 = vmatprep.subr.mxu0 0.0
  %5506 = vmatpush1.msra.mxu0 0.0
  %5507 = vmatprep.subr.mxu0 0.0
  %5508 = vmatpush1.msra.mxu0 0.0
  %5509 = vmatprep.subr.mxu0 0.0
  %5510 = vmatpush1.msra.mxu0 0.0
  %5511 = vmatprep.subr.mxu0 0.0
  %5512 = vmatpush1.msra.mxu0 0.0
  %5513 = vmatprep.subr.mxu0 0.0
  %5514 = vmatpush1.msra.mxu0 0.0
  %5515 = vmatprep.subr.mxu0 0.0
  %5516 = vmatpush1.msra.mxu0 0.0
  %5517 = vmatprep.subr.mxu0 0.0
  %5518 = vmatpush1.msra.mxu0 0.0
  %5519 = vmatprep.subr.mxu0 0.0
  %5520 = vmatpush1.msra.mxu0 0.0
  %5521 = vmatprep.mubr.f32.mxu0 0.0
  %5522 = vmatmul.mubr.f32.gmra.mrb[0].mxu0 %v4480
  %v5523 = vpop.f32.mrb[0].mxu0
  %v5524 = vadd.f32 0.0, %v5523
  %v5525 = vpop.f32.mrb[0].mxu0
  %5526 = vmatprep.mubr.f32.mxu0 0.0
  %5527 = vmatmul.mubr.f32.gmra.mrb[0].mxu0 %v4483
  %v5528 = vpop.f32.mrb[0].mxu0
  %v5529 = vadd.f32 0.0, %v5528
  %v5530 = vpop.f32.mrb[0].mxu0
  %5531 = vmatprep.mubr.f32.mxu0 0.0
  %5532 = vmatmul.mubr.f32.gmra.mrb[0].mxu0 %v4486
  %v5533 = vpop.f32.mrb[0].mxu0
  %v5534 = vadd.f32 0.0, %v5533
  %v5535 = vpop.f32.mrb[0].mxu0
  %5536 = vmatprep.mubr.f32.mxu0 0.0
  %5537 = vmatmul.mubr.f32.gmra.mrb[0].mxu0 %v4489
  %v5538 = vpop.f32.mrb[0].mxu0
  %v5539 = vadd.f32 0.0, %v5538
  %v5540 = vpop.f32.mrb[0].mxu0
  %5541 = vmatprep.mubr.f32.mxu0 0.0
  %5542 = vmatmul.mubr.f32.gmra.mrb[0].mxu0 %v4492
  %v5543 = vpop.f32.mrb[0].mxu0
  %v5544 = vadd.f32 0.0, %v5543
  %v5545 = vpop.f32.mrb[0].mxu0
  %5546 = vmatprep.mubr.f32.mxu0 0.0
  %5547 = vmatmul.mubr.f32.gmra.mrb[0].mxu0 %v4495
  %v5548 = vpop.f32.mrb[0].mxu0
  %v5549 = vadd.f32 0.0, %v5548
  %v5550 = vpop.f32.mrb[0].mxu0
  %5551 = vmatprep.mubr.f32.mxu0 0.0
  %5552 = vmatmul.mubr.f32.gmra.mrb[0].mxu0 %v4498
  %v5553 = vpop.f32.mrb[0].mxu0
  %v5554 = vadd.f32 0.0, %v5553
  %v5555 = vpop.f32.mrb[0].mxu0
  %5556 = vmatprep.mubr.f32.mxu0 0.0
  %5557 = vmatmul.mubr.f32.gmra.mrb[0].mxu0 %v4501
  %v5558 = vpop.f32.mrb[0].mxu0
  %v5559 = vadd.f32 0.0, %v5558
  %v5560 = vpop.f32.mrb[0].mxu0
  %5561 = vdwg.mxu0
  %5562 = vmatprep.subr.mxu0 0.0
  %5563 = vmatpush1.msra.mxu0 %v4017
  %5564 = vmatprep.subr.mxu0 0.0
  %5565 = vmatpush1.msra.mxu0 %v4018
  %5566 = vmatprep.subr.mxu0 0.0
  %5567 = vmatpush1.msra.mxu0 %v4019
  %5568 = vmatprep.subr.mxu0 0.0
  %5569 = vmatpush1.msra.mxu0 %v4020
  %5570 = vmatprep.subr.mxu0 0.0
  %5571 = vmatpush1.msra.mxu0 %v4021
  %5572 = vmatprep.subr.mxu0 0.0
  %5573 = vmatpush1.msra.mxu0 %v4022
  %5574 = vmatprep.subr.mxu0 0.0
  %5575 = vmatpush1.msra.mxu0 %v4023
  %5576 = vmatprep.subr.mxu0 0.0
  %5577 = vmatpush1.msra.mxu0 %v4024
  %5578 = vmatprep.subr.mxu0 0.0
  %5579 = vmatpush1.msra.mxu0 %v4025
  %5580 = vmatprep.subr.mxu0 0.0
  %5581 = vmatpush1.msra.mxu0 %v4026
  %5582 = vmatprep.subr.mxu0 0.0
  %5583 = vmatpush1.msra.mxu0 0.0
  %5584 = vmatprep.subr.mxu0 0.0
  %5585 = vmatpush1.msra.mxu0 0.0
  %5586 = vmatprep.subr.mxu0 0.0
  %5587 = vmatpush1.msra.mxu0 0.0
  %5588 = vmatprep.subr.mxu0 0.0
  %5589 = vmatpush1.msra.mxu0 0.0
  %5590 = vmatprep.subr.mxu0 0.0
  %5591 = vmatpush1.msra.mxu0 0.0
  %5592 = vmatprep.subr.mxu0 0.0
  %5593 = vmatpush1.msra.mxu0 0.0
  %5594 = vmatprep.subr.mxu0 0.0
  %5595 = vmatpush1.msra.mxu0 0.0
  %5596 = vmatprep.subr.mxu0 0.0
  %5597 = vmatpush1.msra.mxu0 0.0
  %5598 = vmatprep.subr.mxu0 0.0
  %5599 = vmatpush1.msra.mxu0 0.0
  %5600 = vmatprep.subr.mxu0 0.0
  %5601 = vmatpush1.msra.mxu0 0.0
  %5602 = vmatprep.subr.mxu0 0.0
  %5603 = vmatpush1.msra.mxu0 0.0
  %5604 = vmatprep.subr.mxu0 0.0
  %5605 = vmatpush1.msra.mxu0 0.0
  %5606 = vmatprep.subr.mxu0 0.0
  %5607 = vmatpush1.msra.mxu0 0.0
  %5608 = vmatprep.subr.mxu0 0.0
  %5609 = vmatpush1.msra.mxu0 0.0
  %5610 = vmatprep.subr.mxu0 0.0
  %5611 = vmatpush1.msra.mxu0 0.0
  %5612 = vmatprep.subr.mxu0 0.0
  %5613 = vmatpush1.msra.mxu0 0.0
  %5614 = vmatprep.subr.mxu0 0.0
  %5615 = vmatpush1.msra.mxu0 0.0
  %5616 = vmatprep.subr.mxu0 0.0
  %5617 = vmatpush1.msra.mxu0 0.0
  %5618 = vmatprep.subr.mxu0 0.0
  %5619 = vmatpush1.msra.mxu0 0.0
  %5620 = vmatprep.subr.mxu0 0.0
  %5621 = vmatpush1.msra.mxu0 0.0
  %5622 = vmatprep.subr.mxu0 0.0
  %5623 = vmatpush1.msra.mxu0 0.0
  %5624 = vmatprep.subr.mxu0 0.0
  %5625 = vmatpush1.msra.mxu0 0.0
  %5626 = vmatprep.mubr.f32.mxu0 0.0
  %5627 = vmatmul.mubr.f32.gmra.mrb[0].mxu0 %v4324
  %v5628 = vpop.f32.mrb[0].mxu0
  %v5629 = vadd.f32 %v5524, %v5628
  %v5630 = vpop.f32.mrb[0].mxu0
  %5631 = vmatprep.mubr.f32.mxu0 0.0
  %5632 = vmatmul.mubr.f32.gmra.mrb[0].mxu0 %v4327
  %v5633 = vpop.f32.mrb[0].mxu0
  %v5634 = vadd.f32 %v5529, %v5633
  %v5635 = vpop.f32.mrb[0].mxu0
  %5636 = vmatprep.mubr.f32.mxu0 0.0
  %5637 = vmatmul.mubr.f32.gmra.mrb[0].mxu0 %v4330
  %v5638 = vpop.f32.mrb[0].mxu0
  %v5639 = vadd.f32 %v5534, %v5638
  %v5640 = vpop.f32.mrb[0].mxu0
  %5641 = vmatprep.mubr.f32.mxu0 0.0
  %5642 = vmatmul.mubr.f32.gmra.mrb[0].mxu0 %v4333
  %v5643 = vpop.f32.mrb[0].mxu0
  %v5644 = vadd.f32 %v5539, %v5643
  %v5645 = vpop.f32.mrb[0].mxu0
  %5646 = vmatprep.mubr.f32.mxu0 0.0
  %5647 = vmatmul.mubr.f32.gmra.mrb[0].mxu0 %v4336
  %v5648 = vpop.f32.mrb[0].mxu0
  %v5649 = vadd.f32 %v5544, %v5648
  %v5650 = vpop.f32.mrb[0].mxu0
  %5651 = vmatprep.mubr.f32.mxu0 0.0
  %5652 = vmatmul.mubr.f32.gmra.mrb[0].mxu0 %v4339
  %v5653 = vpop.f32.mrb[0].mxu0
  %v5654 = vadd.f32 %v5549, %v5653
  %v5655 = vpop.f32.mrb[0].mxu0
  %5656 = vmatprep.mubr.f32.mxu0 0.0
  %5657 = vmatmul.mubr.f32.gmra.mrb[0].mxu0 %v4342
  %v5658 = vpop.f32.mrb[0].mxu0
  %v5659 = vadd.f32 %v5554, %v5658
  %v5660 = vpop.f32.mrb[0].mxu0
  %5661 = vmatprep.mubr.f32.mxu0 0.0
  %5662 = vmatmul.mubr.f32.gmra.mrb[0].mxu0 %v4345
  %v5663 = vpop.f32.mrb[0].mxu0
  %v5664 = vadd.f32 %v5559, %v5663
  %v5665 = vpop.f32.mrb[0].mxu0
  %5666 = vdwg.mxu0
  %5667 = vmatprep.subr.mxu0 0.0
  %5668 = vmatpush1.msra.mxu0 %v4313
  %5669 = vmatprep.subr.mxu0 0.0
  %5670 = vmatpush1.msra.mxu0 %v4314
  %5671 = vmatprep.subr.mxu0 0.0
  %5672 = vmatpush1.msra.mxu0 %v4315
  %5673 = vmatprep.subr.mxu0 0.0
  %5674 = vmatpush1.msra.mxu0 %v4316
  %5675 = vmatprep.subr.mxu0 0.0
  %5676 = vmatpush1.msra.mxu0 %v4317
  %5677 = vmatprep.subr.mxu0 0.0
  %5678 = vmatpush1.msra.mxu0 %v4318
  %5679 = vmatprep.subr.mxu0 0.0
  %5680 = vmatpush1.msra.mxu0 %v4319
  %5681 = vmatprep.subr.mxu0 0.0
  %5682 = vmatpush1.msra.mxu0 %v4320
  %5683 = vmatprep.subr.mxu0 0.0
  %5684 = vmatpush1.msra.mxu0 %v4321
  %5685 = vmatprep.subr.mxu0 0.0
  %5686 = vmatpush1.msra.mxu0 %v4322
  %5687 = vmatprep.subr.mxu0 0.0
  %5688 = vmatpush1.msra.mxu0 0.0
  %5689 = vmatprep.subr.mxu0 0.0
  %5690 = vmatpush1.msra.mxu0 0.0
  %5691 = vmatprep.subr.mxu0 0.0
  %5692 = vmatpush1.msra.mxu0 0.0
  %5693 = vmatprep.subr.mxu0 0.0
  %5694 = vmatpush1.msra.mxu0 0.0
  %5695 = vmatprep.subr.mxu0 0.0
  %5696 = vmatpush1.msra.mxu0 0.0
  %5697 = vmatprep.subr.mxu0 0.0
  %5698 = vmatpush1.msra.mxu0 0.0
  %5699 = vmatprep.subr.mxu0 0.0
  %5700 = vmatpush1.msra.mxu0 0.0
  %5701 = vmatprep.subr.mxu0 0.0
  %5702 = vmatpush1.msra.mxu0 0.0
  %5703 = vmatprep.subr.mxu0 0.0
  %5704 = vmatpush1.msra.mxu0 0.0
  %5705 = vmatprep.subr.mxu0 0.0
  %5706 = vmatpush1.msra.mxu0 0.0
  %5707 = vmatprep.subr.mxu0 0.0
  %5708 = vmatpush1.msra.mxu0 0.0
  %5709 = vmatprep.subr.mxu0 0.0
  %5710 = vmatpush1.msra.mxu0 0.0
  %5711 = vmatprep.subr.mxu0 0.0
  %5712 = vmatpush1.msra.mxu0 0.0
  %5713 = vmatprep.subr.mxu0 0.0
  %5714 = vmatpush1.msra.mxu0 0.0
  %5715 = vmatprep.subr.mxu0 0.0
  %5716 = vmatpush1.msra.mxu0 0.0
  %5717 = vmatprep.subr.mxu0 0.0
  %5718 = vmatpush1.msra.mxu0 0.0
  %5719 = vmatprep.subr.mxu0 0.0
  %5720 = vmatpush1.msra.mxu0 0.0
  %5721 = vmatprep.subr.mxu0 0.0
  %5722 = vmatpush1.msra.mxu0 0.0
  %5723 = vmatprep.subr.mxu0 0.0
  %5724 = vmatpush1.msra.mxu0 0.0
  %5725 = vmatprep.subr.mxu0 0.0
  %5726 = vmatpush1.msra.mxu0 0.0
  %5727 = vmatprep.subr.mxu0 0.0
  %5728 = vmatpush1.msra.mxu0 0.0
  %5729 = vmatprep.subr.mxu0 0.0
  %5730 = vmatpush1.msra.mxu0 0.0
  %5731 = vmatprep.mubr.f32.mxu0 0.0
  %5732 = vmatmul.mubr.f32.gmra.mrb[0].mxu0 %v4970
  %v5733 = vpop.f32.mrb[0].mxu0
  %v5734 = vadd.f32 0.0, %v5733
  %v5735 = vpop.f32.mrb[0].mxu0
  %5736 = vmatprep.mubr.f32.mxu0 0.0
  %5737 = vmatmul.mubr.f32.gmra.mrb[0].mxu0 %v4973
  %v5738 = vpop.f32.mrb[0].mxu0
  %v5739 = vadd.f32 0.0, %v5738
  %v5740 = vpop.f32.mrb[0].mxu0
  %5741 = vmatprep.mubr.f32.mxu0 0.0
  %5742 = vmatmul.mubr.f32.gmra.mrb[0].mxu0 %v4976
  %v5743 = vpop.f32.mrb[0].mxu0
  %v5744 = vadd.f32 0.0, %v5743
  %v5745 = vpop.f32.mrb[0].mxu0
  %5746 = vmatprep.mubr.f32.mxu0 0.0
  %5747 = vmatmul.mubr.f32.gmra.mrb[0].mxu0 %v4979
  %v5748 = vpop.f32.mrb[0].mxu0
  %v5749 = vadd.f32 0.0, %v5748
  %v5750 = vpop.f32.mrb[0].mxu0
  %5751 = vmatprep.mubr.f32.mxu0 0.0
  %5752 = vmatmul.mubr.f32.gmra.mrb[0].mxu0 %v4982
  %v5753 = vpop.f32.mrb[0].mxu0
  %v5754 = vadd.f32 0.0, %v5753
  %v5755 = vpop.f32.mrb[0].mxu0
  %5756 = vmatprep.mubr.f32.mxu0 0.0
  %5757 = vmatmul.mubr.f32.gmra.mrb[0].mxu0 %v4985
  %v5758 = vpop.f32.mrb[0].mxu0
  %v5759 = vadd.f32 0.0, %v5758
  %v5760 = vpop.f32.mrb[0].mxu0
  %5761 = vmatprep.mubr.f32.mxu0 0.0
  %5762 = vmatmul.mubr.f32.gmra.mrb[0].mxu0 %v4988
  %v5763 = vpop.f32.mrb[0].mxu0
  %v5764 = vadd.f32 0.0, %v5763
  %v5765 = vpop.f32.mrb[0].mxu0
  %5766 = vmatprep.mubr.f32.mxu0 0.0
  %5767 = vmatmul.mubr.f32.gmra.mrb[0].mxu0 %v4991
  %v5768 = vpop.f32.mrb[0].mxu0
  %v5769 = vadd.f32 0.0, %v5768
  %v5770 = vpop.f32.mrb[0].mxu0
  %5771 = vdwg.mxu0
  %v5772 = vadd.f32 %v5629, %v5734
  %v5773 = vadd.f32 %v5634, %v5739
  %v5774 = vadd.f32 %v5639, %v5744
  %v5775 = vadd.f32 %v5644, %v5749
  %v5776 = vadd.f32 %v5649, %v5754
  %v5777 = vadd.f32 %v5654, %v5759
  %v5778 = vadd.f32 %v5659, %v5764
  %v5779 = vadd.f32 %v5664, %v5769
  %v5780 = vld [vmem:[#allocation2 + $0x140] sm:$0xff]
  %v5781 = vld [vmem:[#allocation2 + $0x148] sm:$0xff]
  %v5782 = vld [vmem:[#allocation2 + $0x150] sm:$0xff]
  %v5783 = vld [vmem:[#allocation2 + $0x158] sm:$0xff]
  %v5784 = vld [vmem:[#allocation2 + $0x160] sm:$0xff]
  %v5785 = vld [vmem:[#allocation2 + $0x168] sm:$0xff]
  %v5786 = vld [vmem:[#allocation2 + $0x170] sm:$0xff]
  %v5787 = vld [vmem:[#allocation2 + $0x178] sm:$0xff]
  %v5789 = vsel %vm3919, %v5780, 0
  %v5792 = vsel %vm3919, %v5781, 0
  %v5795 = vsel %vm3919, %v5782, 0
  %v5798 = vsel %vm3919, %v5783, 0
  %v5801 = vsel %vm3919, %v5784, 0
  %v5804 = vsel %vm3919, %v5785, 0
  %v5807 = vsel %vm3919, %v5786, 0
  %v5810 = vsel %vm3919, %v5787, 0
  %5812 = vmatprep.subr.mxu0 0.0
  %5813 = vmatpush1.msra.mxu0 %v4469
  %5814 = vmatprep.subr.mxu0 0.0
  %5815 = vmatpush1.msra.mxu0 %v4470
  %5816 = vmatprep.subr.mxu0 0.0
  %5817 = vmatpush1.msra.mxu0 %v4471
  %5818 = vmatprep.subr.mxu0 0.0
  %5819 = vmatpush1.msra.mxu0 %v4472
  %5820 = vmatprep.subr.mxu0 0.0
  %5821 = vmatpush1.msra.mxu0 %v4473
  %5822 = vmatprep.subr.mxu0 0.0
  %5823 = vmatpush1.msra.mxu0 %v4474
  %5824 = vmatprep.subr.mxu0 0.0
  %5825 = vmatpush1.msra.mxu0 %v4475
  %5826 = vmatprep.subr.mxu0 0.0
  %5827 = vmatpush1.msra.mxu0 %v4476
  %5828 = vmatprep.subr.mxu0 0.0
  %5829 = vmatpush1.msra.mxu0 %v4477
  %5830 = vmatprep.subr.mxu0 0.0
  %5831 = vmatpush1.msra.mxu0 %v4478
  %5832 = vmatprep.subr.mxu0 0.0
  %5833 = vmatpush1.msra.mxu0 0.0
  %5834 = vmatprep.subr.mxu0 0.0
  %5835 = vmatpush1.msra.mxu0 0.0
  %5836 = vmatprep.subr.mxu0 0.0
  %5837 = vmatpush1.msra.mxu0 0.0
  %5838 = vmatprep.subr.mxu0 0.0
  %5839 = vmatpush1.msra.mxu0 0.0
  %5840 = vmatprep.subr.mxu0 0.0
  %5841 = vmatpush1.msra.mxu0 0.0
  %5842 = vmatprep.subr.mxu0 0.0
  %5843 = vmatpush1.msra.mxu0 0.0
  %5844 = vmatprep.subr.mxu0 0.0
  %5845 = vmatpush1.msra.mxu0 0.0
  %5846 = vmatprep.subr.mxu0 0.0
  %5847 = vmatpush1.msra.mxu0 0.0
  %5848 = vmatprep.subr.mxu0 0.0
  %5849 = vmatpush1.msra.mxu0 0.0
  %5850 = vmatprep.subr.mxu0 0.0
  %5851 = vmatpush1.msra.mxu0 0.0
  %5852 = vmatprep.subr.mxu0 0.0
  %5853 = vmatpush1.msra.mxu0 0.0
  %5854 = vmatprep.subr.mxu0 0.0
  %5855 = vmatpush1.msra.mxu0 0.0
  %5856 = vmatprep.subr.mxu0 0.0
  %5857 = vmatpush1.msra.mxu0 0.0
  %5858 = vmatprep.subr.mxu0 0.0
  %5859 = vmatpush1.msra.mxu0 0.0
  %5860 = vmatprep.subr.mxu0 0.0
  %5861 = vmatpush1.msra.mxu0 0.0
  %5862 = vmatprep.subr.mxu0 0.0
  %5863 = vmatpush1.msra.mxu0 0.0
  %5864 = vmatprep.subr.mxu0 0.0
  %5865 = vmatpush1.msra.mxu0 0.0
  %5866 = vmatprep.subr.mxu0 0.0
  %5867 = vmatpush1.msra.mxu0 0.0
  %5868 = vmatprep.subr.mxu0 0.0
  %5869 = vmatpush1.msra.mxu0 0.0
  %5870 = vmatprep.subr.mxu0 0.0
  %5871 = vmatpush1.msra.mxu0 0.0
  %5872 = vmatprep.subr.mxu0 0.0
  %5873 = vmatpush1.msra.mxu0 0.0
  %5874 = vmatprep.subr.mxu0 0.0
  %5875 = vmatpush1.msra.mxu0 0.0
  %5876 = vmatprep.mubr.f32.mxu0 0.0
  %5877 = vmatmul.mubr.f32.gmra.mrb[0].mxu0 %v5789
  %v5878 = vpop.f32.mrb[0].mxu0
  %v5879 = vadd.f32 0.0, %v5878
  %v5880 = vpop.f32.mrb[0].mxu0
  %5881 = vmatprep.mubr.f32.mxu0 0.0
  %5882 = vmatmul.mubr.f32.gmra.mrb[0].mxu0 %v5792
  %v5883 = vpop.f32.mrb[0].mxu0
  %v5884 = vadd.f32 0.0, %v5883
  %v5885 = vpop.f32.mrb[0].mxu0
  %5886 = vmatprep.mubr.f32.mxu0 0.0
  %5887 = vmatmul.mubr.f32.gmra.mrb[0].mxu0 %v5795
  %v5888 = vpop.f32.mrb[0].mxu0
  %v5889 = vadd.f32 0.0, %v5888
  %v5890 = vpop.f32.mrb[0].mxu0
  %5891 = vmatprep.mubr.f32.mxu0 0.0
  %5892 = vmatmul.mubr.f32.gmra.mrb[0].mxu0 %v5798
  %v5893 = vpop.f32.mrb[0].mxu0
  %v5894 = vadd.f32 0.0, %v5893
  %v5895 = vpop.f32.mrb[0].mxu0
  %5896 = vmatprep.mubr.f32.mxu0 0.0
  %5897 = vmatmul.mubr.f32.gmra.mrb[0].mxu0 %v5801
  %v5898 = vpop.f32.mrb[0].mxu0
  %v5899 = vadd.f32 0.0, %v5898
  %v5900 = vpop.f32.mrb[0].mxu0
  %5901 = vmatprep.mubr.f32.mxu0 0.0
  %5902 = vmatmul.mubr.f32.gmra.mrb[0].mxu0 %v5804
  %v5903 = vpop.f32.mrb[0].mxu0
  %v5904 = vadd.f32 0.0, %v5903
  %v5905 = vpop.f32.mrb[0].mxu0
  %5906 = vmatprep.mubr.f32.mxu0 0.0
  %5907 = vmatmul.mubr.f32.gmra.mrb[0].mxu0 %v5807
  %v5908 = vpop.f32.mrb[0].mxu0
  %v5909 = vadd.f32 0.0, %v5908
  %v5910 = vpop.f32.mrb[0].mxu0
  %5911 = vmatprep.mubr.f32.mxu0 0.0
  %5912 = vmatmul.mubr.f32.gmra.mrb[0].mxu0 %v5810
  %v5913 = vpop.f32.mrb[0].mxu0
  %v5914 = vadd.f32 0.0, %v5913
  %v5915 = vpop.f32.mrb[0].mxu0
  %5916 = vdwg.mxu0
  %v5917 = vadd.f32 %v5772, %v5879
  %v5918 = vadd.f32 %v5773, %v5884
  %v5919 = vadd.f32 %v5774, %v5889
  %v5920 = vadd.f32 %v5775, %v5894
  %v5921 = vadd.f32 %v5776, %v5899
  %v5922 = vadd.f32 %v5777, %v5904
  %v5923 = vadd.f32 %v5778, %v5909
  %v5924 = vadd.f32 %v5779, %v5914
  %v5925 = vadd.f32 %v5917, %v4620
  %v5926 = vadd.f32 %v5918, %v4620
  %v5927 = vadd.f32 %v5919, %v4620
  %v5928 = vadd.f32 %v5920, %v4620
  %v5929 = vadd.f32 %v5921, %v4620
  %v5930 = vadd.f32 %v5922, %v4620
  %v5931 = vadd.f32 %v5923, %v4620
  %v5932 = vadd.f32 %v5924, %v4620
  %v5933 = vmax.f32 %v5925, 0.0
  %v5934 = vmax.f32 %v5926, 0.0
  %v5935 = vmax.f32 %v5927, 0.0
  %v5936 = vmax.f32 %v5928, 0.0
  %v5937 = vmax.f32 %v5929, 0.0
  %v5938 = vmax.f32 %v5930, 0.0
  %v5939 = vmax.f32 %v5931, 0.0
  %v5940 = vmax.f32 %v5932, 0.0
  %5941 = vmatprep.subr.mxu0 0.0
  %5942 = vmatpush1.msra.mxu0 %v4036
  %5943 = vmatprep.subr.mxu0 0.0
  %5944 = vmatpush1.msra.mxu0 %v4037
  %5945 = vmatprep.subr.mxu0 0.0
  %5946 = vmatpush1.msra.mxu0 %v4038
  %5947 = vmatprep.subr.mxu0 0.0
  %5948 = vmatpush1.msra.mxu0 %v4039
  %5949 = vmatprep.subr.mxu0 0.0
  %5950 = vmatpush1.msra.mxu0 %v4040
  %5951 = vmatprep.subr.mxu0 0.0
  %5952 = vmatpush1.msra.mxu0 %v4041
  %5953 = vmatprep.subr.mxu0 0.0
  %5954 = vmatpush1.msra.mxu0 %v4042
  %5955 = vmatprep.subr.mxu0 0.0
  %5956 = vmatpush1.msra.mxu0 %v4043
  %5957 = vmatprep.subr.mxu0 0.0
  %5958 = vmatpush1.msra.mxu0 %v4044
  %5959 = vmatprep.subr.mxu0 0.0
  %5960 = vmatpush1.msra.mxu0 %v4045
  %5961 = vmatprep.subr.mxu0 0.0
  %5962 = vmatpush1.msra.mxu0 0.0
  %5963 = vmatprep.subr.mxu0 0.0
  %5964 = vmatpush1.msra.mxu0 0.0
  %5965 = vmatprep.subr.mxu0 0.0
  %5966 = vmatpush1.msra.mxu0 0.0
  %5967 = vmatprep.subr.mxu0 0.0
  %5968 = vmatpush1.msra.mxu0 0.0
  %5969 = vmatprep.subr.mxu0 0.0
  %5970 = vmatpush1.msra.mxu0 0.0
  %5971 = vmatprep.subr.mxu0 0.0
  %5972 = vmatpush1.msra.mxu0 0.0
  %5973 = vmatprep.subr.mxu0 0.0
  %5974 = vmatpush1.msra.mxu0 0.0
  %5975 = vmatprep.subr.mxu0 0.0
  %5976 = vmatpush1.msra.mxu0 0.0
  %5977 = vmatprep.subr.mxu0 0.0
  %5978 = vmatpush1.msra.mxu0 0.0
  %5979 = vmatprep.subr.mxu0 0.0
  %5980 = vmatpush1.msra.mxu0 0.0
  %5981 = vmatprep.subr.mxu0 0.0
  %5982 = vmatpush1.msra.mxu0 0.0
  %5983 = vmatprep.subr.mxu0 0.0
  %5984 = vmatpush1.msra.mxu0 0.0
  %5985 = vmatprep.subr.mxu0 0.0
  %5986 = vmatpush1.msra.mxu0 0.0
  %5987 = vmatprep.subr.mxu0 0.0
  %5988 = vmatpush1.msra.mxu0 0.0
  %5989 = vmatprep.subr.mxu0 0.0
  %5990 = vmatpush1.msra.mxu0 0.0
  %5991 = vmatprep.subr.mxu0 0.0
  %5992 = vmatpush1.msra.mxu0 0.0
  %5993 = vmatprep.subr.mxu0 0.0
  %5994 = vmatpush1.msra.mxu0 0.0
  %5995 = vmatprep.subr.mxu0 0.0
  %5996 = vmatpush1.msra.mxu0 0.0
  %5997 = vmatprep.subr.mxu0 0.0
  %5998 = vmatpush1.msra.mxu0 0.0
  %5999 = vmatprep.subr.mxu0 0.0
  %6000 = vmatpush1.msra.mxu0 0.0
  %6001 = vmatprep.subr.mxu0 0.0
  %6002 = vmatpush1.msra.mxu0 0.0
  %6003 = vmatprep.subr.mxu0 0.0
  %6004 = vmatpush1.msra.mxu0 0.0
  %6005 = vmatprep.mubr.f32.mxu0 0.0
  %6006 = vmatmul.mubr.f32.gmra.mrb[0].mxu0 %v4970
  %v6007 = vpop.f32.mrb[0].mxu0
  %v6008 = vadd.f32 0.0, %v6007
  %v6009 = vpop.f32.mrb[0].mxu0
  %6010 = vmatprep.mubr.f32.mxu0 0.0
  %6011 = vmatmul.mubr.f32.gmra.mrb[0].mxu0 %v4973
  %v6012 = vpop.f32.mrb[0].mxu0
  %v6013 = vadd.f32 0.0, %v6012
  %v6014 = vpop.f32.mrb[0].mxu0
  %6015 = vmatprep.mubr.f32.mxu0 0.0
  %6016 = vmatmul.mubr.f32.gmra.mrb[0].mxu0 %v4976
  %v6017 = vpop.f32.mrb[0].mxu0
  %v6018 = vadd.f32 0.0, %v6017
  %v6019 = vpop.f32.mrb[0].mxu0
  %6020 = vmatprep.mubr.f32.mxu0 0.0
  %6021 = vmatmul.mubr.f32.gmra.mrb[0].mxu0 %v4979
  %v6022 = vpop.f32.mrb[0].mxu0
  %v6023 = vadd.f32 0.0, %v6022
  %v6024 = vpop.f32.mrb[0].mxu0
  %6025 = vmatprep.mubr.f32.mxu0 0.0
  %6026 = vmatmul.mubr.f32.gmra.mrb[0].mxu0 %v4982
  %v6027 = vpop.f32.mrb[0].mxu0
  %v6028 = vadd.f32 0.0, %v6027
  %v6029 = vpop.f32.mrb[0].mxu0
  %6030 = vmatprep.mubr.f32.mxu0 0.0
  %6031 = vmatmul.mubr.f32.gmra.mrb[0].mxu0 %v4985
  %v6032 = vpop.f32.mrb[0].mxu0
  %v6033 = vadd.f32 0.0, %v6032
  %v6034 = vpop.f32.mrb[0].mxu0
  %6035 = vmatprep.mubr.f32.mxu0 0.0
  %6036 = vmatmul.mubr.f32.gmra.mrb[0].mxu0 %v4988
  %v6037 = vpop.f32.mrb[0].mxu0
  %v6038 = vadd.f32 0.0, %v6037
  %v6039 = vpop.f32.mrb[0].mxu0
  %6040 = vmatprep.mubr.f32.mxu0 0.0
  %6041 = vmatmul.mubr.f32.gmra.mrb[0].mxu0 %v4991
  %v6042 = vpop.f32.mrb[0].mxu0
  %v6043 = vadd.f32 0.0, %v6042
  %v6044 = vpop.f32.mrb[0].mxu0
  %6045 = vdwg.mxu0
  %6046 = vmatprep.subr.mxu0 0.0
  %6047 = vmatpush1.msra.mxu0 %v4017
  %6048 = vmatprep.subr.mxu0 0.0
  %6049 = vmatpush1.msra.mxu0 %v4018
  %6050 = vmatprep.subr.mxu0 0.0
  %6051 = vmatpush1.msra.mxu0 %v4019
  %6052 = vmatprep.subr.mxu0 0.0
  %6053 = vmatpush1.msra.mxu0 %v4020
  %6054 = vmatprep.subr.mxu0 0.0
  %6055 = vmatpush1.msra.mxu0 %v4021
  %6056 = vmatprep.subr.mxu0 0.0
  %6057 = vmatpush1.msra.mxu0 %v4022
  %6058 = vmatprep.subr.mxu0 0.0
  %6059 = vmatpush1.msra.mxu0 %v4023
  %6060 = vmatprep.subr.mxu0 0.0
  %6061 = vmatpush1.msra.mxu0 %v4024
  %6062 = vmatprep.subr.mxu0 0.0
  %6063 = vmatpush1.msra.mxu0 %v4025
  %6064 = vmatprep.subr.mxu0 0.0
  %6065 = vmatpush1.msra.mxu0 %v4026
  %6066 = vmatprep.subr.mxu0 0.0
  %6067 = vmatpush1.msra.mxu0 0.0
  %6068 = vmatprep.subr.mxu0 0.0
  %6069 = vmatpush1.msra.mxu0 0.0
  %6070 = vmatprep.subr.mxu0 0.0
  %6071 = vmatpush1.msra.mxu0 0.0
  %6072 = vmatprep.subr.mxu0 0.0
  %6073 = vmatpush1.msra.mxu0 0.0
  %6074 = vmatprep.subr.mxu0 0.0
  %6075 = vmatpush1.msra.mxu0 0.0
  %6076 = vmatprep.subr.mxu0 0.0
  %6077 = vmatpush1.msra.mxu0 0.0
  %6078 = vmatprep.subr.mxu0 0.0
  %6079 = vmatpush1.msra.mxu0 0.0
  %6080 = vmatprep.subr.mxu0 0.0
  %6081 = vmatpush1.msra.mxu0 0.0
  %6082 = vmatprep.subr.mxu0 0.0
  %6083 = vmatpush1.msra.mxu0 0.0
  %6084 = vmatprep.subr.mxu0 0.0
  %6085 = vmatpush1.msra.mxu0 0.0
  %6086 = vmatprep.subr.mxu0 0.0
  %6087 = vmatpush1.msra.mxu0 0.0
  %6088 = vmatprep.subr.mxu0 0.0
  %6089 = vmatpush1.msra.mxu0 0.0
  %6090 = vmatprep.subr.mxu0 0.0
  %6091 = vmatpush1.msra.mxu0 0.0
  %6092 = vmatprep.subr.mxu0 0.0
  %6093 = vmatpush1.msra.mxu0 0.0
  %6094 = vmatprep.subr.mxu0 0.0
  %6095 = vmatpush1.msra.mxu0 0.0
  %6096 = vmatprep.subr.mxu0 0.0
  %6097 = vmatpush1.msra.mxu0 0.0
  %6098 = vmatprep.subr.mxu0 0.0
  %6099 = vmatpush1.msra.mxu0 0.0
  %6100 = vmatprep.subr.mxu0 0.0
  %6101 = vmatpush1.msra.mxu0 0.0
  %6102 = vmatprep.subr.mxu0 0.0
  %6103 = vmatpush1.msra.mxu0 0.0
  %6104 = vmatprep.subr.mxu0 0.0
  %6105 = vmatpush1.msra.mxu0 0.0
  %6106 = vmatprep.subr.mxu0 0.0
  %6107 = vmatpush1.msra.mxu0 0.0
  %6108 = vmatprep.subr.mxu0 0.0
  %6109 = vmatpush1.msra.mxu0 0.0
  %6110 = vmatprep.mubr.f32.mxu0 0.0
  %6111 = vmatmul.mubr.f32.gmra.mrb[0].mxu0 %v4480
  %v6112 = vpop.f32.mrb[0].mxu0
  %v6113 = vadd.f32 %v6008, %v6112
  %v6114 = vpop.f32.mrb[0].mxu0
  %6115 = vmatprep.mubr.f32.mxu0 0.0
  %6116 = vmatmul.mubr.f32.gmra.mrb[0].mxu0 %v4483
  %v6117 = vpop.f32.mrb[0].mxu0
  %v6118 = vadd.f32 %v6013, %v6117
  %v6119 = vpop.f32.mrb[0].mxu0
  %6120 = vmatprep.mubr.f32.mxu0 0.0
  %6121 = vmatmul.mubr.f32.gmra.mrb[0].mxu0 %v4486
  %v6122 = vpop.f32.mrb[0].mxu0
  %v6123 = vadd.f32 %v6018, %v6122
  %v6124 = vpop.f32.mrb[0].mxu0
  %6125 = vmatprep.mubr.f32.mxu0 0.0
  %6126 = vmatmul.mubr.f32.gmra.mrb[0].mxu0 %v4489
  %v6127 = vpop.f32.mrb[0].mxu0
  %v6128 = vadd.f32 %v6023, %v6127
  %v6129 = vpop.f32.mrb[0].mxu0
  %6130 = vmatprep.mubr.f32.mxu0 0.0
  %6131 = vmatmul.mubr.f32.gmra.mrb[0].mxu0 %v4492
  %v6132 = vpop.f32.mrb[0].mxu0
  %v6133 = vadd.f32 %v6028, %v6132
  %v6134 = vpop.f32.mrb[0].mxu0
  %6135 = vmatprep.mubr.f32.mxu0 0.0
  %6136 = vmatmul.mubr.f32.gmra.mrb[0].mxu0 %v4495
  %v6137 = vpop.f32.mrb[0].mxu0
  %v6138 = vadd.f32 %v6033, %v6137
  %v6139 = vpop.f32.mrb[0].mxu0
  %6140 = vmatprep.mubr.f32.mxu0 0.0
  %6141 = vmatmul.mubr.f32.gmra.mrb[0].mxu0 %v4498
  %v6142 = vpop.f32.mrb[0].mxu0
  %v6143 = vadd.f32 %v6038, %v6142
  %v6144 = vpop.f32.mrb[0].mxu0
  %6145 = vmatprep.mubr.f32.mxu0 0.0
  %6146 = vmatmul.mubr.f32.gmra.mrb[0].mxu0 %v4501
  %v6147 = vpop.f32.mrb[0].mxu0
  %v6148 = vadd.f32 %v6043, %v6147
  %v6149 = vpop.f32.mrb[0].mxu0
  %6150 = vdwg.mxu0
  %6151 = vmatprep.subr.mxu0 0.0
  %6152 = vmatpush1.msra.mxu0 %v4313
  %6153 = vmatprep.subr.mxu0 0.0
  %6154 = vmatpush1.msra.mxu0 %v4314
  %6155 = vmatprep.subr.mxu0 0.0
  %6156 = vmatpush1.msra.mxu0 %v4315
  %6157 = vmatprep.subr.mxu0 0.0
  %6158 = vmatpush1.msra.mxu0 %v4316
  %6159 = vmatprep.subr.mxu0 0.0
  %6160 = vmatpush1.msra.mxu0 %v4317
  %6161 = vmatprep.subr.mxu0 0.0
  %6162 = vmatpush1.msra.mxu0 %v4318
  %6163 = vmatprep.subr.mxu0 0.0
  %6164 = vmatpush1.msra.mxu0 %v4319
  %6165 = vmatprep.subr.mxu0 0.0
  %6166 = vmatpush1.msra.mxu0 %v4320
  %6167 = vmatprep.subr.mxu0 0.0
  %6168 = vmatpush1.msra.mxu0 %v4321
  %6169 = vmatprep.subr.mxu0 0.0
  %6170 = vmatpush1.msra.mxu0 %v4322
  %6171 = vmatprep.subr.mxu0 0.0
  %6172 = vmatpush1.msra.mxu0 0.0
  %6173 = vmatprep.subr.mxu0 0.0
  %6174 = vmatpush1.msra.mxu0 0.0
  %6175 = vmatprep.subr.mxu0 0.0
  %6176 = vmatpush1.msra.mxu0 0.0
  %6177 = vmatprep.subr.mxu0 0.0
  %6178 = vmatpush1.msra.mxu0 0.0
  %6179 = vmatprep.subr.mxu0 0.0
  %6180 = vmatpush1.msra.mxu0 0.0
  %6181 = vmatprep.subr.mxu0 0.0
  %6182 = vmatpush1.msra.mxu0 0.0
  %6183 = vmatprep.subr.mxu0 0.0
  %6184 = vmatpush1.msra.mxu0 0.0
  %6185 = vmatprep.subr.mxu0 0.0
  %6186 = vmatpush1.msra.mxu0 0.0
  %6187 = vmatprep.subr.mxu0 0.0
  %6188 = vmatpush1.msra.mxu0 0.0
  %6189 = vmatprep.subr.mxu0 0.0
  %6190 = vmatpush1.msra.mxu0 0.0
  %6191 = vmatprep.subr.mxu0 0.0
  %6192 = vmatpush1.msra.mxu0 0.0
  %6193 = vmatprep.subr.mxu0 0.0
  %6194 = vmatpush1.msra.mxu0 0.0
  %6195 = vmatprep.subr.mxu0 0.0
  %6196 = vmatpush1.msra.mxu0 0.0
  %6197 = vmatprep.subr.mxu0 0.0
  %6198 = vmatpush1.msra.mxu0 0.0
  %6199 = vmatprep.subr.mxu0 0.0
  %6200 = vmatpush1.msra.mxu0 0.0
  %6201 = vmatprep.subr.mxu0 0.0
  %6202 = vmatpush1.msra.mxu0 0.0
  %6203 = vmatprep.subr.mxu0 0.0
  %6204 = vmatpush1.msra.mxu0 0.0
  %6205 = vmatprep.subr.mxu0 0.0
  %6206 = vmatpush1.msra.mxu0 0.0
  %6207 = vmatprep.subr.mxu0 0.0
  %6208 = vmatpush1.msra.mxu0 0.0
  %6209 = vmatprep.subr.mxu0 0.0
  %6210 = vmatpush1.msra.mxu0 0.0
  %6211 = vmatprep.subr.mxu0 0.0
  %6212 = vmatpush1.msra.mxu0 0.0
  %6213 = vmatprep.subr.mxu0 0.0
  %6214 = vmatpush1.msra.mxu0 0.0
  %6215 = vmatprep.mubr.f32.mxu0 0.0
  %6216 = vmatmul.mubr.f32.gmra.mrb[0].mxu0 %v5789
  %v6217 = vpop.f32.mrb[0].mxu0
  %v6218 = vadd.f32 0.0, %v6217
  %v6219 = vpop.f32.mrb[0].mxu0
  %6220 = vmatprep.mubr.f32.mxu0 0.0
  %6221 = vmatmul.mubr.f32.gmra.mrb[0].mxu0 %v5792
  %v6222 = vpop.f32.mrb[0].mxu0
  %v6223 = vadd.f32 0.0, %v6222
  %v6224 = vpop.f32.mrb[0].mxu0
  %6225 = vmatprep.mubr.f32.mxu0 0.0
  %6226 = vmatmul.mubr.f32.gmra.mrb[0].mxu0 %v5795
  %v6227 = vpop.f32.mrb[0].mxu0
  %v6228 = vadd.f32 0.0, %v6227
  %v6229 = vpop.f32.mrb[0].mxu0
  %6230 = vmatprep.mubr.f32.mxu0 0.0
  %6231 = vmatmul.mubr.f32.gmra.mrb[0].mxu0 %v5798
  %v6232 = vpop.f32.mrb[0].mxu0
  %v6233 = vadd.f32 0.0, %v6232
  %v6234 = vpop.f32.mrb[0].mxu0
  %6235 = vmatprep.mubr.f32.mxu0 0.0
  %6236 = vmatmul.mubr.f32.gmra.mrb[0].mxu0 %v5801
  %v6237 = vpop.f32.mrb[0].mxu0
  %v6238 = vadd.f32 0.0, %v6237
  %v6239 = vpop.f32.mrb[0].mxu0
  %6240 = vmatprep.mubr.f32.mxu0 0.0
  %6241 = vmatmul.mubr.f32.gmra.mrb[0].mxu0 %v5804
  %v6242 = vpop.f32.mrb[0].mxu0
  %v6243 = vadd.f32 0.0, %v6242
  %v6244 = vpop.f32.mrb[0].mxu0
  %6245 = vmatprep.mubr.f32.mxu0 0.0
  %6246 = vmatmul.mubr.f32.gmra.mrb[0].mxu0 %v5807
  %v6247 = vpop.f32.mrb[0].mxu0
  %v6248 = vadd.f32 0.0, %v6247
  %v6249 = vpop.f32.mrb[0].mxu0
  %6250 = vmatprep.mubr.f32.mxu0 0.0
  %6251 = vmatmul.mubr.f32.gmra.mrb[0].mxu0 %v5810
  %v6252 = vpop.f32.mrb[0].mxu0
  %v6253 = vadd.f32 0.0, %v6252
  %v6254 = vpop.f32.mrb[0].mxu0
  %6255 = vdwg.mxu0
  %v6256 = vadd.f32 %v6113, %v6218
  %v6257 = vadd.f32 %v6118, %v6223
  %v6258 = vadd.f32 %v6123, %v6228
  %v6259 = vadd.f32 %v6128, %v6233
  %v6260 = vadd.f32 %v6133, %v6238
  %v6261 = vadd.f32 %v6138, %v6243
  %v6262 = vadd.f32 %v6143, %v6248
  %v6263 = vadd.f32 %v6148, %v6253
  %v6264 = vld [vmem:[#allocation2 + $0x180] sm:$0xff]
  %v6265 = vld [vmem:[#allocation2 + $0x188] sm:$0xff]
  %v6266 = vld [vmem:[#allocation2 + $0x190] sm:$0xff]
  %v6267 = vld [vmem:[#allocation2 + $0x198] sm:$0xff]
  %v6268 = vld [vmem:[#allocation2 + $0x1a0] sm:$0xff]
  %v6269 = vld [vmem:[#allocation2 + $0x1a8] sm:$0xff]
  %v6270 = vld [vmem:[#allocation2 + $0x1b0] sm:$0xff]
  %v6271 = vld [vmem:[#allocation2 + $0x1b8] sm:$0xff]
  %v6273 = vsel %vm3919, %v6264, 0
  %v6276 = vsel %vm3919, %v6265, 0
  %v6279 = vsel %vm3919, %v6266, 0
  %v6282 = vsel %vm3919, %v6267, 0
  %v6285 = vsel %vm3919, %v6268, 0
  %v6288 = vsel %vm3919, %v6269, 0
  %v6291 = vsel %vm3919, %v6270, 0
  %v6294 = vsel %vm3919, %v6271, 0
  %6296 = vmatprep.subr.mxu0 0.0
  %6297 = vmatpush1.msra.mxu0 %v4469
  %6298 = vmatprep.subr.mxu0 0.0
  %6299 = vmatpush1.msra.mxu0 %v4470
  %6300 = vmatprep.subr.mxu0 0.0
  %6301 = vmatpush1.msra.mxu0 %v4471
  %6302 = vmatprep.subr.mxu0 0.0
  %6303 = vmatpush1.msra.mxu0 %v4472
  %6304 = vmatprep.subr.mxu0 0.0
  %6305 = vmatpush1.msra.mxu0 %v4473
  %6306 = vmatprep.subr.mxu0 0.0
  %6307 = vmatpush1.msra.mxu0 %v4474
  %6308 = vmatprep.subr.mxu0 0.0
  %6309 = vmatpush1.msra.mxu0 %v4475
  %6310 = vmatprep.subr.mxu0 0.0
  %6311 = vmatpush1.msra.mxu0 %v4476
  %6312 = vmatprep.subr.mxu0 0.0
  %6313 = vmatpush1.msra.mxu0 %v4477
  %6314 = vmatprep.subr.mxu0 0.0
  %6315 = vmatpush1.msra.mxu0 %v4478
  %6316 = vmatprep.subr.mxu0 0.0
  %6317 = vmatpush1.msra.mxu0 0.0
  %6318 = vmatprep.subr.mxu0 0.0
  %6319 = vmatpush1.msra.mxu0 0.0
  %6320 = vmatprep.subr.mxu0 0.0
  %6321 = vmatpush1.msra.mxu0 0.0
  %6322 = vmatprep.subr.mxu0 0.0
  %6323 = vmatpush1.msra.mxu0 0.0
  %6324 = vmatprep.subr.mxu0 0.0
  %6325 = vmatpush1.msra.mxu0 0.0
  %6326 = vmatprep.subr.mxu0 0.0
  %6327 = vmatpush1.msra.mxu0 0.0
  %6328 = vmatprep.subr.mxu0 0.0
  %6329 = vmatpush1.msra.mxu0 0.0
  %6330 = vmatprep.subr.mxu0 0.0
  %6331 = vmatpush1.msra.mxu0 0.0
  %6332 = vmatprep.subr.mxu0 0.0
  %6333 = vmatpush1.msra.mxu0 0.0
  %6334 = vmatprep.subr.mxu0 0.0
  %6335 = vmatpush1.msra.mxu0 0.0
  %6336 = vmatprep.subr.mxu0 0.0
  %6337 = vmatpush1.msra.mxu0 0.0
  %6338 = vmatprep.subr.mxu0 0.0
  %6339 = vmatpush1.msra.mxu0 0.0
  %6340 = vmatprep.subr.mxu0 0.0
  %6341 = vmatpush1.msra.mxu0 0.0
  %6342 = vmatprep.subr.mxu0 0.0
  %6343 = vmatpush1.msra.mxu0 0.0
  %6344 = vmatprep.subr.mxu0 0.0
  %6345 = vmatpush1.msra.mxu0 0.0
  %6346 = vmatprep.subr.mxu0 0.0
  %6347 = vmatpush1.msra.mxu0 0.0
  %6348 = vmatprep.subr.mxu0 0.0
  %6349 = vmatpush1.msra.mxu0 0.0
  %6350 = vmatprep.subr.mxu0 0.0
  %6351 = vmatpush1.msra.mxu0 0.0
  %6352 = vmatprep.subr.mxu0 0.0
  %6353 = vmatpush1.msra.mxu0 0.0
  %6354 = vmatprep.subr.mxu0 0.0
  %6355 = vmatpush1.msra.mxu0 0.0
  %6356 = vmatprep.subr.mxu0 0.0
  %6357 = vmatpush1.msra.mxu0 0.0
  %6358 = vmatprep.subr.mxu0 0.0
  %6359 = vmatpush1.msra.mxu0 0.0
  %6360 = vmatprep.mubr.f32.mxu0 0.0
  %6361 = vmatmul.mubr.f32.gmra.mrb[0].mxu0 %v6273
  %v6362 = vpop.f32.mrb[0].mxu0
  %v6363 = vadd.f32 0.0, %v6362
  %v6364 = vpop.f32.mrb[0].mxu0
  %6365 = vmatprep.mubr.f32.mxu0 0.0
  %6366 = vmatmul.mubr.f32.gmra.mrb[0].mxu0 %v6276
  %v6367 = vpop.f32.mrb[0].mxu0
  %v6368 = vadd.f32 0.0, %v6367
  %v6369 = vpop.f32.mrb[0].mxu0
  %6370 = vmatprep.mubr.f32.mxu0 0.0
  %6371 = vmatmul.mubr.f32.gmra.mrb[0].mxu0 %v6279
  %v6372 = vpop.f32.mrb[0].mxu0
  %v6373 = vadd.f32 0.0, %v6372
  %v6374 = vpop.f32.mrb[0].mxu0
  %6375 = vmatprep.mubr.f32.mxu0 0.0
  %6376 = vmatmul.mubr.f32.gmra.mrb[0].mxu0 %v6282
  %v6377 = vpop.f32.mrb[0].mxu0
  %v6378 = vadd.f32 0.0, %v6377
  %v6379 = vpop.f32.mrb[0].mxu0
  %6380 = vmatprep.mubr.f32.mxu0 0.0
  %6381 = vmatmul.mubr.f32.gmra.mrb[0].mxu0 %v6285
  %v6382 = vpop.f32.mrb[0].mxu0
  %v6383 = vadd.f32 0.0, %v6382
  %v6384 = vpop.f32.mrb[0].mxu0
  %6385 = vmatprep.mubr.f32.mxu0 0.0
  %6386 = vmatmul.mubr.f32.gmra.mrb[0].mxu0 %v6288
  %v6387 = vpop.f32.mrb[0].mxu0
  %v6388 = vadd.f32 0.0, %v6387
  %v6389 = vpop.f32.mrb[0].mxu0
  %6390 = vmatprep.mubr.f32.mxu0 0.0
  %6391 = vmatmul.mubr.f32.gmra.mrb[0].mxu0 %v6291
  %v6392 = vpop.f32.mrb[0].mxu0
  %v6393 = vadd.f32 0.0, %v6392
  %v6394 = vpop.f32.mrb[0].mxu0
  %6395 = vmatprep.mubr.f32.mxu0 0.0
  %6396 = vmatmul.mubr.f32.gmra.mrb[0].mxu0 %v6294
  %v6397 = vpop.f32.mrb[0].mxu0
  %v6398 = vadd.f32 0.0, %v6397
  %v6399 = vpop.f32.mrb[0].mxu0
  %6400 = vdwg.mxu0
  %v6401 = vadd.f32 %v6256, %v6363
  %v6402 = vadd.f32 %v6257, %v6368
  %v6403 = vadd.f32 %v6258, %v6373
  %v6404 = vadd.f32 %v6259, %v6378
  %v6405 = vadd.f32 %v6260, %v6383
  %v6406 = vadd.f32 %v6261, %v6388
  %v6407 = vadd.f32 %v6262, %v6393
  %v6408 = vadd.f32 %v6263, %v6398
  %v6409 = vadd.f32 %v6401, %v4620
  %v6410 = vadd.f32 %v6402, %v4620
  %v6411 = vadd.f32 %v6403, %v4620
  %v6412 = vadd.f32 %v6404, %v4620
  %v6413 = vadd.f32 %v6405, %v4620
  %v6414 = vadd.f32 %v6406, %v4620
  %v6415 = vadd.f32 %v6407, %v4620
  %v6416 = vadd.f32 %v6408, %v4620
  %v6417 = vmax.f32 %v6409, 0.0
  %v6418 = vmax.f32 %v6410, 0.0
  %v6419 = vmax.f32 %v6411, 0.0
  %v6420 = vmax.f32 %v6412, 0.0
  %v6421 = vmax.f32 %v6413, 0.0
  %v6422 = vmax.f32 %v6414, 0.0
  %v6423 = vmax.f32 %v6415, 0.0
  %v6424 = vmax.f32 %v6416, 0.0
  %v6425 = vmax.f32 %v5933, %v6417
  %v6426 = vmax.f32 %v5934, %v6418
  %v6427 = vmax.f32 %v5935, %v6419
  %v6428 = vmax.f32 %v5936, %v6420
  %v6429 = vmax.f32 %v5937, %v6421
  %v6430 = vmax.f32 %v5938, %v6422
  %v6431 = vmax.f32 %v5939, %v6423
  %v6432 = vmax.f32 %v5940, %v6424
  %v6433 = vmax.f32 %v6425, %v6426
  %s6434 = scalar_lea.vmem %s5, 96
  %v6435 = vld [vmem:[%s6434] sm:$0xff]
  %v6436 = vld [vmem:[%s6434 + $0x8] sm:$0xff]
  %v6437 = vld [vmem:[%s6434 + $0x10] sm:$0xf]
  %v6439 = vsel %vm5139, %v6433, 0
  %v6442 = vsel %vm5143, %v6437, 0
  %6444 = vmatprep.subr.mxu0 0.0
  %6445 = vmatpush1.msra.mxu0 %v6435
  %6446 = vmatprep.subr.mxu0 0.0
  %6447 = vmatpush1.msra.mxu0 %v6436
  %6448 = vmatprep.subr.mxu0 0.0
  %6449 = vmatpush1.msra.mxu0 %v6442
  %6450 = vmatprep.subr.mxu0 0.0
  %6451 = vmatpush1.msra.mxu0 0.0
  %6452 = vmatprep.subr.mxu0 0.0
  %6453 = vmatpush1.msra.mxu0 0.0
  %6454 = vmatprep.subr.mxu0 0.0
  %6455 = vmatpush1.msra.mxu0 0.0
  %6456 = vmatprep.subr.mxu0 0.0
  %6457 = vmatpush1.msra.mxu0 0.0
  %6458 = vmatprep.subr.mxu0 0.0
  %6459 = vmatpush1.msra.mxu0 0.0
  %6460 = vmatprep.subr.mxu0 0.0
  %6461 = vmatpush1.msra.mxu0 0.0
  %6462 = vmatprep.subr.mxu0 0.0
  %6463 = vmatpush1.msra.mxu0 0.0
  %6464 = vmatprep.subr.mxu0 0.0
  %6465 = vmatpush1.msra.mxu0 0.0
  %6466 = vmatprep.subr.mxu0 0.0
  %6467 = vmatpush1.msra.mxu0 0.0
  %6468 = vmatprep.subr.mxu0 0.0
  %6469 = vmatpush1.msra.mxu0 0.0
  %6470 = vmatprep.subr.mxu0 0.0
  %6471 = vmatpush1.msra.mxu0 0.0
  %6472 = vmatprep.subr.mxu0 0.0
  %6473 = vmatpush1.msra.mxu0 0.0
  %6474 = vmatprep.subr.mxu0 0.0
  %6475 = vmatpush1.msra.mxu0 0.0
  %6476 = vmatprep.subr.mxu0 0.0
  %6477 = vmatpush1.msra.mxu0 0.0
  %6478 = vmatprep.subr.mxu0 0.0
  %6479 = vmatpush1.msra.mxu0 0.0
  %6480 = vmatprep.subr.mxu0 0.0
  %6481 = vmatpush1.msra.mxu0 0.0
  %6482 = vmatprep.subr.mxu0 0.0
  %6483 = vmatpush1.msra.mxu0 0.0
  %6484 = vmatprep.subr.mxu0 0.0
  %6485 = vmatpush1.msra.mxu0 0.0
  %6486 = vmatprep.subr.mxu0 0.0
  %6487 = vmatpush1.msra.mxu0 0.0
  %6488 = vmatprep.subr.mxu0 0.0
  %6489 = vmatpush1.msra.mxu0 0.0
  %6490 = vmatprep.subr.mxu0 0.0
  %6491 = vmatpush1.msra.mxu0 0.0
  %6492 = vmatprep.subr.mxu0 0.0
  %6493 = vmatpush1.msra.mxu0 0.0
  %6494 = vmatprep.subr.mxu0 0.0
  %6495 = vmatpush1.msra.mxu0 0.0
  %6496 = vmatprep.subr.mxu0 0.0
  %6497 = vmatpush1.msra.mxu0 0.0
  %6498 = vmatprep.subr.mxu0 0.0
  %6499 = vmatpush1.msra.mxu0 0.0
  %6500 = vmatprep.subr.mxu0 0.0
  %6501 = vmatpush1.msra.mxu0 0.0
  %6502 = vmatprep.subr.mxu0 0.0
  %6503 = vmatpush1.msra.mxu0 0.0
  %6504 = vmatprep.subr.mxu0 0.0
  %6505 = vmatpush1.msra.mxu0 0.0
  %6506 = vmatprep.subr.mxu0 0.0
  %6507 = vmatpush1.msra.mxu0 0.0
  %6508 = vmatprep.mubr.f32.mxu0 0.0
  %6509 = vmatmul.mubr.f32.gmra.mrb[0].mxu0 %v6439
  %v6510 = vpop.f32.mrb[0].mxu0
  %v6511 = vadd.f32 0.0, %v6510
  %v6512 = vpop.f32.mrb[0].mxu0
  %6513 = vdwg.mxu0
  %v6514 = vadd.f32 %v5456, %v6511
  %v6515 = vmax.f32 %v6427, %v6428
  %s6516 = scalar_lea.vmem %s5, 120
  %v6517 = vld [vmem:[%s6516] sm:$0xff]
  %v6518 = vld [vmem:[%s6516 + $0x8] sm:$0xff]
  %v6519 = vld [vmem:[%s6516 + $0x10] sm:$0xf]
  %v6521 = vsel %vm5139, %v6515, 0
  %v6524 = vsel %vm5143, %v6519, 0
  %6526 = vmatprep.subr.mxu0 0.0
  %6527 = vmatpush1.msra.mxu0 %v6517
  %6528 = vmatprep.subr.mxu0 0.0
  %6529 = vmatpush1.msra.mxu0 %v6518
  %6530 = vmatprep.subr.mxu0 0.0
  %6531 = vmatpush1.msra.mxu0 %v6524
  %6532 = vmatprep.subr.mxu0 0.0
  %6533 = vmatpush1.msra.mxu0 0.0
  %6534 = vmatprep.subr.mxu0 0.0
  %6535 = vmatpush1.msra.mxu0 0.0
  %6536 = vmatprep.subr.mxu0 0.0
  %6537 = vmatpush1.msra.mxu0 0.0
  %6538 = vmatprep.subr.mxu0 0.0
  %6539 = vmatpush1.msra.mxu0 0.0
  %6540 = vmatprep.subr.mxu0 0.0
  %6541 = vmatpush1.msra.mxu0 0.0
  %6542 = vmatprep.subr.mxu0 0.0
  %6543 = vmatpush1.msra.mxu0 0.0
  %6544 = vmatprep.subr.mxu0 0.0
  %6545 = vmatpush1.msra.mxu0 0.0
  %6546 = vmatprep.subr.mxu0 0.0
  %6547 = vmatpush1.msra.mxu0 0.0
  %6548 = vmatprep.subr.mxu0 0.0
  %6549 = vmatpush1.msra.mxu0 0.0
  %6550 = vmatprep.subr.mxu0 0.0
  %6551 = vmatpush1.msra.mxu0 0.0
  %6552 = vmatprep.subr.mxu0 0.0
  %6553 = vmatpush1.msra.mxu0 0.0
  %6554 = vmatprep.subr.mxu0 0.0
  %6555 = vmatpush1.msra.mxu0 0.0
  %6556 = vmatprep.subr.mxu0 0.0
  %6557 = vmatpush1.msra.mxu0 0.0
  %6558 = vmatprep.subr.mxu0 0.0
  %6559 = vmatpush1.msra.mxu0 0.0
  %6560 = vmatprep.subr.mxu0 0.0
  %6561 = vmatpush1.msra.mxu0 0.0
  %6562 = vmatprep.subr.mxu0 0.0
  %6563 = vmatpush1.msra.mxu0 0.0
  %6564 = vmatprep.subr.mxu0 0.0
  %6565 = vmatpush1.msra.mxu0 0.0
  %6566 = vmatprep.subr.mxu0 0.0
  %6567 = vmatpush1.msra.mxu0 0.0
  %6568 = vmatprep.subr.mxu0 0.0
  %6569 = vmatpush1.msra.mxu0 0.0
  %6570 = vmatprep.subr.mxu0 0.0
  %6571 = vmatpush1.msra.mxu0 0.0
  %6572 = vmatprep.subr.mxu0 0.0
  %6573 = vmatpush1.msra.mxu0 0.0
  %6574 = vmatprep.subr.mxu0 0.0
  %6575 = vmatpush1.msra.mxu0 0.0
  %6576 = vmatprep.subr.mxu0 0.0
  %6577 = vmatpush1.msra.mxu0 0.0
  %6578 = vmatprep.subr.mxu0 0.0
  %6579 = vmatpush1.msra.mxu0 0.0
  %6580 = vmatprep.subr.mxu0 0.0
  %6581 = vmatpush1.msra.mxu0 0.0
  %6582 = vmatprep.subr.mxu0 0.0
  %6583 = vmatpush1.msra.mxu0 0.0
  %6584 = vmatprep.subr.mxu0 0.0
  %6585 = vmatpush1.msra.mxu0 0.0
  %6586 = vmatprep.subr.mxu0 0.0
  %6587 = vmatpush1.msra.mxu0 0.0
  %6588 = vmatprep.subr.mxu0 0.0
  %6589 = vmatpush1.msra.mxu0 0.0
  %6590 = vmatprep.mubr.f32.mxu0 0.0
  %6591 = vmatmul.mubr.f32.gmra.mrb[0].mxu0 %v6521
  %v6592 = vpop.f32.mrb[0].mxu0
  %v6593 = vadd.f32 0.0, %v6592
  %v6594 = vpop.f32.mrb[0].mxu0
  %6595 = vdwg.mxu0
  %v6596 = vadd.f32 %v6514, %v6593
  %v6597 = vmax.f32 %v6429, %v6430
  %s6598 = scalar_lea.vmem %s5, 144
  %v6599 = vld [vmem:[%s6598] sm:$0xff]
  %v6600 = vld [vmem:[%s6598 + $0x8] sm:$0xff]
  %v6601 = vld [vmem:[%s6598 + $0x10] sm:$0xf]
  %v6603 = vsel %vm5139, %v6597, 0
  %v6606 = vsel %vm5143, %v6601, 0
  %6608 = vmatprep.subr.mxu0 0.0
  %6609 = vmatpush1.msra.mxu0 %v6599
  %6610 = vmatprep.subr.mxu0 0.0
  %6611 = vmatpush1.msra.mxu0 %v6600
  %6612 = vmatprep.subr.mxu0 0.0
  %6613 = vmatpush1.msra.mxu0 %v6606
  %6614 = vmatprep.subr.mxu0 0.0
  %6615 = vmatpush1.msra.mxu0 0.0
  %6616 = vmatprep.subr.mxu0 0.0
  %6617 = vmatpush1.msra.mxu0 0.0
  %6618 = vmatprep.subr.mxu0 0.0
  %6619 = vmatpush1.msra.mxu0 0.0
  %6620 = vmatprep.subr.mxu0 0.0
  %6621 = vmatpush1.msra.mxu0 0.0
  %6622 = vmatprep.subr.mxu0 0.0
  %6623 = vmatpush1.msra.mxu0 0.0
  %6624 = vmatprep.subr.mxu0 0.0
  %6625 = vmatpush1.msra.mxu0 0.0
  %6626 = vmatprep.subr.mxu0 0.0
  %6627 = vmatpush1.msra.mxu0 0.0
  %6628 = vmatprep.subr.mxu0 0.0
  %6629 = vmatpush1.msra.mxu0 0.0
  %6630 = vmatprep.subr.mxu0 0.0
  %6631 = vmatpush1.msra.mxu0 0.0
  %6632 = vmatprep.subr.mxu0 0.0
  %6633 = vmatpush1.msra.mxu0 0.0
  %6634 = vmatprep.subr.mxu0 0.0
  %6635 = vmatpush1.msra.mxu0 0.0
  %6636 = vmatprep.subr.mxu0 0.0
  %6637 = vmatpush1.msra.mxu0 0.0
  %6638 = vmatprep.subr.mxu0 0.0
  %6639 = vmatpush1.msra.mxu0 0.0
  %6640 = vmatprep.subr.mxu0 0.0
  %6641 = vmatpush1.msra.mxu0 0.0
  %6642 = vmatprep.subr.mxu0 0.0
  %6643 = vmatpush1.msra.mxu0 0.0
  %6644 = vmatprep.subr.mxu0 0.0
  %6645 = vmatpush1.msra.mxu0 0.0
  %6646 = vmatprep.subr.mxu0 0.0
  %6647 = vmatpush1.msra.mxu0 0.0
  %6648 = vmatprep.subr.mxu0 0.0
  %6649 = vmatpush1.msra.mxu0 0.0
  %6650 = vmatprep.subr.mxu0 0.0
  %6651 = vmatpush1.msra.mxu0 0.0
  %6652 = vmatprep.subr.mxu0 0.0
  %6653 = vmatpush1.msra.mxu0 0.0
  %6654 = vmatprep.subr.mxu0 0.0
  %6655 = vmatpush1.msra.mxu0 0.0
  %6656 = vmatprep.subr.mxu0 0.0
  %6657 = vmatpush1.msra.mxu0 0.0
  %6658 = vmatprep.subr.mxu0 0.0
  %6659 = vmatpush1.msra.mxu0 0.0
  %6660 = vmatprep.subr.mxu0 0.0
  %6661 = vmatpush1.msra.mxu0 0.0
  %6662 = vmatprep.subr.mxu0 0.0
  %6663 = vmatpush1.msra.mxu0 0.0
  %6664 = vmatprep.subr.mxu0 0.0
  %6665 = vmatpush1.msra.mxu0 0.0
  %6666 = vmatprep.subr.mxu0 0.0
  %6667 = vmatpush1.msra.mxu0 0.0
  %6668 = vmatprep.subr.mxu0 0.0
  %6669 = vmatpush1.msra.mxu0 0.0
  %6670 = vmatprep.subr.mxu0 0.0
  %6671 = vmatpush1.msra.mxu0 0.0
  %6672 = vmatprep.mubr.f32.mxu0 0.0
  %6673 = vmatmul.mubr.f32.gmra.mrb[0].mxu0 %v6603
  %v6674 = vpop.f32.mrb[0].mxu0
  %v6675 = vadd.f32 0.0, %v6674
  %v6676 = vpop.f32.mrb[0].mxu0
  %6677 = vdwg.mxu0
  %v6678 = vadd.f32 %v6596, %v6675
  %v6679 = vmax.f32 %v6431, %v6432
  %s6680 = scalar_lea.vmem %s5, 168
  %v6681 = vld [vmem:[%s6680] sm:$0xff]
  %v6682 = vld [vmem:[%s6680 + $0x8] sm:$0xff]
  %v6683 = vld [vmem:[%s6680 + $0x10] sm:$0xf]
  %v6685 = vsel %vm5139, %v6679, 0
  %v6688 = vsel %vm5143, %v6683, 0
  %6690 = vmatprep.subr.mxu0 0.0
  %6691 = vmatpush1.msra.mxu0 %v6681
  %6692 = vmatprep.subr.mxu0 0.0
  %6693 = vmatpush1.msra.mxu0 %v6682
  %6694 = vmatprep.subr.mxu0 0.0
  %6695 = vmatpush1.msra.mxu0 %v6688
  %6696 = vmatprep.subr.mxu0 0.0
  %6697 = vmatpush1.msra.mxu0 0.0
  %6698 = vmatprep.subr.mxu0 0.0
  %6699 = vmatpush1.msra.mxu0 0.0
  %6700 = vmatprep.subr.mxu0 0.0
  %6701 = vmatpush1.msra.mxu0 0.0
  %6702 = vmatprep.subr.mxu0 0.0
  %6703 = vmatpush1.msra.mxu0 0.0
  %6704 = vmatprep.subr.mxu0 0.0
  %6705 = vmatpush1.msra.mxu0 0.0
  %6706 = vmatprep.subr.mxu0 0.0
  %6707 = vmatpush1.msra.mxu0 0.0
  %6708 = vmatprep.subr.mxu0 0.0
  %6709 = vmatpush1.msra.mxu0 0.0
  %6710 = vmatprep.subr.mxu0 0.0
  %6711 = vmatpush1.msra.mxu0 0.0
  %6712 = vmatprep.subr.mxu0 0.0
  %6713 = vmatpush1.msra.mxu0 0.0
  %6714 = vmatprep.subr.mxu0 0.0
  %6715 = vmatpush1.msra.mxu0 0.0
  %6716 = vmatprep.subr.mxu0 0.0
  %6717 = vmatpush1.msra.mxu0 0.0
  %6718 = vmatprep.subr.mxu0 0.0
  %6719 = vmatpush1.msra.mxu0 0.0
  %6720 = vmatprep.subr.mxu0 0.0
  %6721 = vmatpush1.msra.mxu0 0.0
  %6722 = vmatprep.subr.mxu0 0.0
  %6723 = vmatpush1.msra.mxu0 0.0
  %6724 = vmatprep.subr.mxu0 0.0
  %6725 = vmatpush1.msra.mxu0 0.0
  %6726 = vmatprep.subr.mxu0 0.0
  %6727 = vmatpush1.msra.mxu0 0.0
  %6728 = vmatprep.subr.mxu0 0.0
  %6729 = vmatpush1.msra.mxu0 0.0
  %6730 = vmatprep.subr.mxu0 0.0
  %6731 = vmatpush1.msra.mxu0 0.0
  %6732 = vmatprep.subr.mxu0 0.0
  %6733 = vmatpush1.msra.mxu0 0.0
  %6734 = vmatprep.subr.mxu0 0.0
  %6735 = vmatpush1.msra.mxu0 0.0
  %6736 = vmatprep.subr.mxu0 0.0
  %6737 = vmatpush1.msra.mxu0 0.0
  %6738 = vmatprep.subr.mxu0 0.0
  %6739 = vmatpush1.msra.mxu0 0.0
  %6740 = vmatprep.subr.mxu0 0.0
  %6741 = vmatpush1.msra.mxu0 0.0
  %6742 = vmatprep.subr.mxu0 0.0
  %6743 = vmatpush1.msra.mxu0 0.0
  %6744 = vmatprep.subr.mxu0 0.0
  %6745 = vmatpush1.msra.mxu0 0.0
  %6746 = vmatprep.subr.mxu0 0.0
  %6747 = vmatpush1.msra.mxu0 0.0
  %6748 = vmatprep.subr.mxu0 0.0
  %6749 = vmatpush1.msra.mxu0 0.0
  %6750 = vmatprep.subr.mxu0 0.0
  %6751 = vmatpush1.msra.mxu0 0.0
  %6752 = vmatprep.subr.mxu0 0.0
  %6753 = vmatpush1.msra.mxu0 0.0
  %6754 = vmatprep.mubr.f32.mxu0 0.0
  %6755 = vmatmul.mubr.f32.gmra.mrb[0].mxu0 %v6685
  %v6756 = vpop.f32.mrb[0].mxu0
  %v6757 = vadd.f32 0.0, %v6756
  %v6758 = vpop.f32.mrb[0].mxu0
  %6759 = vdwg.mxu0
  %v6760 = vadd.f32 %v6678, %v6757
  %6761 = vmatprep.subr.mxu0 0.0
  %6762 = vmatpush1.msra.mxu0 %v4036
  %6763 = vmatprep.subr.mxu0 0.0
  %6764 = vmatpush1.msra.mxu0 %v4037
  %6765 = vmatprep.subr.mxu0 0.0
  %6766 = vmatpush1.msra.mxu0 %v4038
  %6767 = vmatprep.subr.mxu0 0.0
  %6768 = vmatpush1.msra.mxu0 %v4039
  %6769 = vmatprep.subr.mxu0 0.0
  %6770 = vmatpush1.msra.mxu0 %v4040
  %6771 = vmatprep.subr.mxu0 0.0
  %6772 = vmatpush1.msra.mxu0 %v4041
  %6773 = vmatprep.subr.mxu0 0.0
  %6774 = vmatpush1.msra.mxu0 %v4042
  %6775 = vmatprep.subr.mxu0 0.0
  %6776 = vmatpush1.msra.mxu0 %v4043
  %6777 = vmatprep.subr.mxu0 0.0
  %6778 = vmatpush1.msra.mxu0 %v4044
  %6779 = vmatprep.subr.mxu0 0.0
  %6780 = vmatpush1.msra.mxu0 %v4045
  %6781 = vmatprep.subr.mxu0 0.0
  %6782 = vmatpush1.msra.mxu0 0.0
  %6783 = vmatprep.subr.mxu0 0.0
  %6784 = vmatpush1.msra.mxu0 0.0
  %6785 = vmatprep.subr.mxu0 0.0
  %6786 = vmatpush1.msra.mxu0 0.0
  %6787 = vmatprep.subr.mxu0 0.0
  %6788 = vmatpush1.msra.mxu0 0.0
  %6789 = vmatprep.subr.mxu0 0.0
  %6790 = vmatpush1.msra.mxu0 0.0
  %6791 = vmatprep.subr.mxu0 0.0
  %6792 = vmatpush1.msra.mxu0 0.0
  %6793 = vmatprep.subr.mxu0 0.0
  %6794 = vmatpush1.msra.mxu0 0.0
  %6795 = vmatprep.subr.mxu0 0.0
  %6796 = vmatpush1.msra.mxu0 0.0
  %6797 = vmatprep.subr.mxu0 0.0
  %6798 = vmatpush1.msra.mxu0 0.0
  %6799 = vmatprep.subr.mxu0 0.0
  %6800 = vmatpush1.msra.mxu0 0.0
  %6801 = vmatprep.subr.mxu0 0.0
  %6802 = vmatpush1.msra.mxu0 0.0
  %6803 = vmatprep.subr.mxu0 0.0
  %6804 = vmatpush1.msra.mxu0 0.0
  %6805 = vmatprep.subr.mxu0 0.0
  %6806 = vmatpush1.msra.mxu0 0.0
  %6807 = vmatprep.subr.mxu0 0.0
  %6808 = vmatpush1.msra.mxu0 0.0
  %6809 = vmatprep.subr.mxu0 0.0
  %6810 = vmatpush1.msra.mxu0 0.0
  %6811 = vmatprep.subr.mxu0 0.0
  %6812 = vmatpush1.msra.mxu0 0.0
  %6813 = vmatprep.subr.mxu0 0.0
  %6814 = vmatpush1.msra.mxu0 0.0
  %6815 = vmatprep.subr.mxu0 0.0
  %6816 = vmatpush1.msra.mxu0 0.0
  %6817 = vmatprep.subr.mxu0 0.0
  %6818 = vmatpush1.msra.mxu0 0.0
  %6819 = vmatprep.subr.mxu0 0.0
  %6820 = vmatpush1.msra.mxu0 0.0
  %6821 = vmatprep.subr.mxu0 0.0
  %6822 = vmatpush1.msra.mxu0 0.0
  %6823 = vmatprep.subr.mxu0 0.0
  %6824 = vmatpush1.msra.mxu0 0.0
  %6825 = vmatprep.mubr.f32.mxu0 0.0
  %6826 = vmatmul.mubr.f32.gmra.mrb[0].mxu0 %v5789
  %v6827 = vpop.f32.mrb[0].mxu0
  %v6828 = vadd.f32 0.0, %v6827
  %v6829 = vpop.f32.mrb[0].mxu0
  %6830 = vmatprep.mubr.f32.mxu0 0.0
  %6831 = vmatmul.mubr.f32.gmra.mrb[0].mxu0 %v5792
  %v6832 = vpop.f32.mrb[0].mxu0
  %v6833 = vadd.f32 0.0, %v6832
  %v6834 = vpop.f32.mrb[0].mxu0
  %6835 = vmatprep.mubr.f32.mxu0 0.0
  %6836 = vmatmul.mubr.f32.gmra.mrb[0].mxu0 %v5795
  %v6837 = vpop.f32.mrb[0].mxu0
  %v6838 = vadd.f32 0.0, %v6837
  %v6839 = vpop.f32.mrb[0].mxu0
  %6840 = vmatprep.mubr.f32.mxu0 0.0
  %6841 = vmatmul.mubr.f32.gmra.mrb[0].mxu0 %v5798
  %v6842 = vpop.f32.mrb[0].mxu0
  %v6843 = vadd.f32 0.0, %v6842
  %v6844 = vpop.f32.mrb[0].mxu0
  %6845 = vmatprep.mubr.f32.mxu0 0.0
  %6846 = vmatmul.mubr.f32.gmra.mrb[0].mxu0 %v5801
  %v6847 = vpop.f32.mrb[0].mxu0
  %v6848 = vadd.f32 0.0, %v6847
  %v6849 = vpop.f32.mrb[0].mxu0
  %6850 = vmatprep.mubr.f32.mxu0 0.0
  %6851 = vmatmul.mubr.f32.gmra.mrb[0].mxu0 %v5804
  %v6852 = vpop.f32.mrb[0].mxu0
  %v6853 = vadd.f32 0.0, %v6852
  %v6854 = vpop.f32.mrb[0].mxu0
  %6855 = vmatprep.mubr.f32.mxu0 0.0
  %6856 = vmatmul.mubr.f32.gmra.mrb[0].mxu0 %v5807
  %v6857 = vpop.f32.mrb[0].mxu0
  %v6858 = vadd.f32 0.0, %v6857
  %v6859 = vpop.f32.mrb[0].mxu0
  %6860 = vmatprep.mubr.f32.mxu0 0.0
  %6861 = vmatmul.mubr.f32.gmra.mrb[0].mxu0 %v5810
  %v6862 = vpop.f32.mrb[0].mxu0
  %v6863 = vadd.f32 0.0, %v6862
  %v6864 = vpop.f32.mrb[0].mxu0
  %6865 = vdwg.mxu0
  %6866 = vmatprep.subr.mxu0 0.0
  %6867 = vmatpush1.msra.mxu0 %v4017
  %6868 = vmatprep.subr.mxu0 0.0
  %6869 = vmatpush1.msra.mxu0 %v4018
  %6870 = vmatprep.subr.mxu0 0.0
  %6871 = vmatpush1.msra.mxu0 %v4019
  %6872 = vmatprep.subr.mxu0 0.0
  %6873 = vmatpush1.msra.mxu0 %v4020
  %6874 = vmatprep.subr.mxu0 0.0
  %6875 = vmatpush1.msra.mxu0 %v4021
  %6876 = vmatprep.subr.mxu0 0.0
  %6877 = vmatpush1.msra.mxu0 %v4022
  %6878 = vmatprep.subr.mxu0 0.0
  %6879 = vmatpush1.msra.mxu0 %v4023
  %6880 = vmatprep.subr.mxu0 0.0
  %6881 = vmatpush1.msra.mxu0 %v4024
  %6882 = vmatprep.subr.mxu0 0.0
  %6883 = vmatpush1.msra.mxu0 %v4025
  %6884 = vmatprep.subr.mxu0 0.0
  %6885 = vmatpush1.msra.mxu0 %v4026
  %6886 = vmatprep.subr.mxu0 0.0
  %6887 = vmatpush1.msra.mxu0 0.0
  %6888 = vmatprep.subr.mxu0 0.0
  %6889 = vmatpush1.msra.mxu0 0.0
  %6890 = vmatprep.subr.mxu0 0.0
  %6891 = vmatpush1.msra.mxu0 0.0
  %6892 = vmatprep.subr.mxu0 0.0
  %6893 = vmatpush1.msra.mxu0 0.0
  %6894 = vmatprep.subr.mxu0 0.0
  %6895 = vmatpush1.msra.mxu0 0.0
  %6896 = vmatprep.subr.mxu0 0.0
  %6897 = vmatpush1.msra.mxu0 0.0
  %6898 = vmatprep.subr.mxu0 0.0
  %6899 = vmatpush1.msra.mxu0 0.0
  %6900 = vmatprep.subr.mxu0 0.0
  %6901 = vmatpush1.msra.mxu0 0.0
  %6902 = vmatprep.subr.mxu0 0.0
  %6903 = vmatpush1.msra.mxu0 0.0
  %6904 = vmatprep.subr.mxu0 0.0
  %6905 = vmatpush1.msra.mxu0 0.0
  %6906 = vmatprep.subr.mxu0 0.0
  %6907 = vmatpush1.msra.mxu0 0.0
  %6908 = vmatprep.subr.mxu0 0.0
  %6909 = vmatpush1.msra.mxu0 0.0
  %6910 = vmatprep.subr.mxu0 0.0
  %6911 = vmatpush1.msra.mxu0 0.0
  %6912 = vmatprep.subr.mxu0 0.0
  %6913 = vmatpush1.msra.mxu0 0.0
  %6914 = vmatprep.subr.mxu0 0.0
  %6915 = vmatpush1.msra.mxu0 0.0
  %6916 = vmatprep.subr.mxu0 0.0
  %6917 = vmatpush1.msra.mxu0 0.0
  %6918 = vmatprep.subr.mxu0 0.0
  %6919 = vmatpush1.msra.mxu0 0.0
  %6920 = vmatprep.subr.mxu0 0.0
  %6921 = vmatpush1.msra.mxu0 0.0
  %6922 = vmatprep.subr.mxu0 0.0
  %6923 = vmatpush1.msra.mxu0 0.0
  %6924 = vmatprep.subr.mxu0 0.0
  %6925 = vmatpush1.msra.mxu0 0.0
  %6926 = vmatprep.subr.mxu0 0.0
  %6927 = vmatpush1.msra.mxu0 0.0
  %6928 = vmatprep.subr.mxu0 0.0
  %6929 = vmatpush1.msra.mxu0 0.0
  %6930 = vmatprep.mubr.f32.mxu0 0.0
  %6931 = vmatmul.mubr.f32.gmra.mrb[0].mxu0 %v4970
  %v6932 = vpop.f32.mrb[0].mxu0
  %v6933 = vadd.f32 %v6828, %v6932
  %v6934 = vpop.f32.mrb[0].mxu0
  %6935 = vmatprep.mubr.f32.mxu0 0.0
  %6936 = vmatmul.mubr.f32.gmra.mrb[0].mxu0 %v4973
  %v6937 = vpop.f32.mrb[0].mxu0
  %v6938 = vadd.f32 %v6833, %v6937
  %v6939 = vpop.f32.mrb[0].mxu0
  %6940 = vmatprep.mubr.f32.mxu0 0.0
  %6941 = vmatmul.mubr.f32.gmra.mrb[0].mxu0 %v4976
  %v6942 = vpop.f32.mrb[0].mxu0
  %v6943 = vadd.f32 %v6838, %v6942
  %v6944 = vpop.f32.mrb[0].mxu0
  %6945 = vmatprep.mubr.f32.mxu0 0.0
  %6946 = vmatmul.mubr.f32.gmra.mrb[0].mxu0 %v4979
  %v6947 = vpop.f32.mrb[0].mxu0
  %v6948 = vadd.f32 %v6843, %v6947
  %v6949 = vpop.f32.mrb[0].mxu0
  %6950 = vmatprep.mubr.f32.mxu0 0.0
  %6951 = vmatmul.mubr.f32.gmra.mrb[0].mxu0 %v4982
  %v6952 = vpop.f32.mrb[0].mxu0
  %v6953 = vadd.f32 %v6848, %v6952
  %v6954 = vpop.f32.mrb[0].mxu0
  %6955 = vmatprep.mubr.f32.mxu0 0.0
  %6956 = vmatmul.mubr.f32.gmra.mrb[0].mxu0 %v4985
  %v6957 = vpop.f32.mrb[0].mxu0
  %v6958 = vadd.f32 %v6853, %v6957
  %v6959 = vpop.f32.mrb[0].mxu0
  %6960 = vmatprep.mubr.f32.mxu0 0.0
  %6961 = vmatmul.mubr.f32.gmra.mrb[0].mxu0 %v4988
  %v6962 = vpop.f32.mrb[0].mxu0
  %v6963 = vadd.f32 %v6858, %v6962
  %v6964 = vpop.f32.mrb[0].mxu0
  %6965 = vmatprep.mubr.f32.mxu0 0.0
  %6966 = vmatmul.mubr.f32.gmra.mrb[0].mxu0 %v4991
  %v6967 = vpop.f32.mrb[0].mxu0
  %v6968 = vadd.f32 %v6863, %v6967
  %v6969 = vpop.f32.mrb[0].mxu0
  %6970 = vdwg.mxu0
  %6971 = vmatprep.subr.mxu0 0.0
  %6972 = vmatpush1.msra.mxu0 %v4313
  %6973 = vmatprep.subr.mxu0 0.0
  %6974 = vmatpush1.msra.mxu0 %v4314
  %6975 = vmatprep.subr.mxu0 0.0
  %6976 = vmatpush1.msra.mxu0 %v4315
  %6977 = vmatprep.subr.mxu0 0.0
  %6978 = vmatpush1.msra.mxu0 %v4316
  %6979 = vmatprep.subr.mxu0 0.0
  %6980 = vmatpush1.msra.mxu0 %v4317
  %6981 = vmatprep.subr.mxu0 0.0
  %6982 = vmatpush1.msra.mxu0 %v4318
  %6983 = vmatprep.subr.mxu0 0.0
  %6984 = vmatpush1.msra.mxu0 %v4319
  %6985 = vmatprep.subr.mxu0 0.0
  %6986 = vmatpush1.msra.mxu0 %v4320
  %6987 = vmatprep.subr.mxu0 0.0
  %6988 = vmatpush1.msra.mxu0 %v4321
  %6989 = vmatprep.subr.mxu0 0.0
  %6990 = vmatpush1.msra.mxu0 %v4322
  %6991 = vmatprep.subr.mxu0 0.0
  %6992 = vmatpush1.msra.mxu0 0.0
  %6993 = vmatprep.subr.mxu0 0.0
  %6994 = vmatpush1.msra.mxu0 0.0
  %6995 = vmatprep.subr.mxu0 0.0
  %6996 = vmatpush1.msra.mxu0 0.0
  %6997 = vmatprep.subr.mxu0 0.0
  %6998 = vmatpush1.msra.mxu0 0.0
  %6999 = vmatprep.subr.mxu0 0.0
  %7000 = vmatpush1.msra.mxu0 0.0
  %7001 = vmatprep.subr.mxu0 0.0
  %7002 = vmatpush1.msra.mxu0 0.0
  %7003 = vmatprep.subr.mxu0 0.0
  %7004 = vmatpush1.msra.mxu0 0.0
  %7005 = vmatprep.subr.mxu0 0.0
  %7006 = vmatpush1.msra.mxu0 0.0
  %7007 = vmatprep.subr.mxu0 0.0
  %7008 = vmatpush1.msra.mxu0 0.0
  %7009 = vmatprep.subr.mxu0 0.0
  %7010 = vmatpush1.msra.mxu0 0.0
  %7011 = vmatprep.subr.mxu0 0.0
  %7012 = vmatpush1.msra.mxu0 0.0
  %7013 = vmatprep.subr.mxu0 0.0
  %7014 = vmatpush1.msra.mxu0 0.0
  %7015 = vmatprep.subr.mxu0 0.0
  %7016 = vmatpush1.msra.mxu0 0.0
  %7017 = vmatprep.subr.mxu0 0.0
  %7018 = vmatpush1.msra.mxu0 0.0
  %7019 = vmatprep.subr.mxu0 0.0
  %7020 = vmatpush1.msra.mxu0 0.0
  %7021 = vmatprep.subr.mxu0 0.0
  %7022 = vmatpush1.msra.mxu0 0.0
  %7023 = vmatprep.subr.mxu0 0.0
  %7024 = vmatpush1.msra.mxu0 0.0
  %7025 = vmatprep.subr.mxu0 0.0
  %7026 = vmatpush1.msra.mxu0 0.0
  %7027 = vmatprep.subr.mxu0 0.0
  %7028 = vmatpush1.msra.mxu0 0.0
  %7029 = vmatprep.subr.mxu0 0.0
  %7030 = vmatpush1.msra.mxu0 0.0
  %7031 = vmatprep.subr.mxu0 0.0
  %7032 = vmatpush1.msra.mxu0 0.0
  %7033 = vmatprep.subr.mxu0 0.0
  %7034 = vmatpush1.msra.mxu0 0.0
  %7035 = vmatprep.mubr.f32.mxu0 0.0
  %7036 = vmatmul.mubr.f32.gmra.mrb[0].mxu0 %v6273
  %v7037 = vpop.f32.mrb[0].mxu0
  %v7038 = vadd.f32 0.0, %v7037
  %v7039 = vpop.f32.mrb[0].mxu0
  %7040 = vmatprep.mubr.f32.mxu0 0.0
  %7041 = vmatmul.mubr.f32.gmra.mrb[0].mxu0 %v6276
  %v7042 = vpop.f32.mrb[0].mxu0
  %v7043 = vadd.f32 0.0, %v7042
  %v7044 = vpop.f32.mrb[0].mxu0
  %7045 = vmatprep.mubr.f32.mxu0 0.0
  %7046 = vmatmul.mubr.f32.gmra.mrb[0].mxu0 %v6279
  %v7047 = vpop.f32.mrb[0].mxu0
  %v7048 = vadd.f32 0.0, %v7047
  %v7049 = vpop.f32.mrb[0].mxu0
  %7050 = vmatprep.mubr.f32.mxu0 0.0
  %7051 = vmatmul.mubr.f32.gmra.mrb[0].mxu0 %v6282
  %v7052 = vpop.f32.mrb[0].mxu0
  %v7053 = vadd.f32 0.0, %v7052
  %v7054 = vpop.f32.mrb[0].mxu0
  %7055 = vmatprep.mubr.f32.mxu0 0.0
  %7056 = vmatmul.mubr.f32.gmra.mrb[0].mxu0 %v6285
  %v7057 = vpop.f32.mrb[0].mxu0
  %v7058 = vadd.f32 0.0, %v7057
  %v7059 = vpop.f32.mrb[0].mxu0
  %7060 = vmatprep.mubr.f32.mxu0 0.0
  %7061 = vmatmul.mubr.f32.gmra.mrb[0].mxu0 %v6288
  %v7062 = vpop.f32.mrb[0].mxu0
  %v7063 = vadd.f32 0.0, %v7062
  %v7064 = vpop.f32.mrb[0].mxu0
  %7065 = vmatprep.mubr.f32.mxu0 0.0
  %7066 = vmatmul.mubr.f32.gmra.mrb[0].mxu0 %v6291
  %v7067 = vpop.f32.mrb[0].mxu0
  %v7068 = vadd.f32 0.0, %v7067
  %v7069 = vpop.f32.mrb[0].mxu0
  %7070 = vmatprep.mubr.f32.mxu0 0.0
  %7071 = vmatmul.mubr.f32.gmra.mrb[0].mxu0 %v6294
  %v7072 = vpop.f32.mrb[0].mxu0
  %v7073 = vadd.f32 0.0, %v7072
  %v7074 = vpop.f32.mrb[0].mxu0
  %7075 = vdwg.mxu0
  %v7076 = vadd.f32 %v6933, %v7038
  %v7077 = vadd.f32 %v6938, %v7043
  %v7078 = vadd.f32 %v6943, %v7048
  %v7079 = vadd.f32 %v6948, %v7053
  %v7080 = vadd.f32 %v6953, %v7058
  %v7081 = vadd.f32 %v6958, %v7063
  %v7082 = vadd.f32 %v6963, %v7068
  %v7083 = vadd.f32 %v6968, %v7073
  %v7084 = vld [vmem:[#allocation2 + $0x1c0] sm:$0xff]
  %v7085 = vld [vmem:[#allocation2 + $0x1c8] sm:$0xff]
  %v7086 = vld [vmem:[#allocation2 + $0x1d0] sm:$0xff]
  %v7087 = vld [vmem:[#allocation2 + $0x1d8] sm:$0xff]
  %v7088 = vld [vmem:[#allocation2 + $0x1e0] sm:$0xff]
  %v7089 = vld [vmem:[#allocation2 + $0x1e8] sm:$0xff]
  %v7090 = vld [vmem:[#allocation2 + $0x1f0] sm:$0xff]
  %v7091 = vld [vmem:[#allocation2 + $0x1f8] sm:$0xff]
  %v7093 = vsel %vm3919, %v7084, 0
  %v7096 = vsel %vm3919, %v7085, 0
  %v7099 = vsel %vm3919, %v7086, 0
  %v7102 = vsel %vm3919, %v7087, 0
  %v7105 = vsel %vm3919, %v7088, 0
  %v7108 = vsel %vm3919, %v7089, 0
  %v7111 = vsel %vm3919, %v7090, 0
  %v7114 = vsel %vm3919, %v7091, 0
  %7116 = vmatprep.subr.mxu0 0.0
  %7117 = vmatpush1.msra.mxu0 %v4469
  %7118 = vmatprep.subr.mxu0 0.0
  %7119 = vmatpush1.msra.mxu0 %v4470
  %7120 = vmatprep.subr.mxu0 0.0
  %7121 = vmatpush1.msra.mxu0 %v4471
  %7122 = vmatprep.subr.mxu0 0.0
  %7123 = vmatpush1.msra.mxu0 %v4472
  %7124 = vmatprep.subr.mxu0 0.0
  %7125 = vmatpush1.msra.mxu0 %v4473
  %7126 = vmatprep.subr.mxu0 0.0
  %7127 = vmatpush1.msra.mxu0 %v4474
  %7128 = vmatprep.subr.mxu0 0.0
  %7129 = vmatpush1.msra.mxu0 %v4475
  %7130 = vmatprep.subr.mxu0 0.0
  %7131 = vmatpush1.msra.mxu0 %v4476
  %7132 = vmatprep.subr.mxu0 0.0
  %7133 = vmatpush1.msra.mxu0 %v4477
  %7134 = vmatprep.subr.mxu0 0.0
  %7135 = vmatpush1.msra.mxu0 %v4478
  %7136 = vmatprep.subr.mxu0 0.0
  %7137 = vmatpush1.msra.mxu0 0.0
  %7138 = vmatprep.subr.mxu0 0.0
  %7139 = vmatpush1.msra.mxu0 0.0
  %7140 = vmatprep.subr.mxu0 0.0
  %7141 = vmatpush1.msra.mxu0 0.0
  %7142 = vmatprep.subr.mxu0 0.0
  %7143 = vmatpush1.msra.mxu0 0.0
  %7144 = vmatprep.subr.mxu0 0.0
  %7145 = vmatpush1.msra.mxu0 0.0
  %7146 = vmatprep.subr.mxu0 0.0
  %7147 = vmatpush1.msra.mxu0 0.0
  %7148 = vmatprep.subr.mxu0 0.0
  %7149 = vmatpush1.msra.mxu0 0.0
  %7150 = vmatprep.subr.mxu0 0.0
  %7151 = vmatpush1.msra.mxu0 0.0
  %7152 = vmatprep.subr.mxu0 0.0
  %7153 = vmatpush1.msra.mxu0 0.0
  %7154 = vmatprep.subr.mxu0 0.0
  %7155 = vmatpush1.msra.mxu0 0.0
  %7156 = vmatprep.subr.mxu0 0.0
  %7157 = vmatpush1.msra.mxu0 0.0
  %7158 = vmatprep.subr.mxu0 0.0
  %7159 = vmatpush1.msra.mxu0 0.0
  %7160 = vmatprep.subr.mxu0 0.0
  %7161 = vmatpush1.msra.mxu0 0.0
  %7162 = vmatprep.subr.mxu0 0.0
  %7163 = vmatpush1.msra.mxu0 0.0
  %7164 = vmatprep.subr.mxu0 0.0
  %7165 = vmatpush1.msra.mxu0 0.0
  %7166 = vmatprep.subr.mxu0 0.0
  %7167 = vmatpush1.msra.mxu0 0.0
  %7168 = vmatprep.subr.mxu0 0.0
  %7169 = vmatpush1.msra.mxu0 0.0
  %7170 = vmatprep.subr.mxu0 0.0
  %7171 = vmatpush1.msra.mxu0 0.0
  %7172 = vmatprep.subr.mxu0 0.0
  %7173 = vmatpush1.msra.mxu0 0.0
  %7174 = vmatprep.subr.mxu0 0.0
  %7175 = vmatpush1.msra.mxu0 0.0
  %7176 = vmatprep.subr.mxu0 0.0
  %7177 = vmatpush1.msra.mxu0 0.0
  %7178 = vmatprep.subr.mxu0 0.0
  %7179 = vmatpush1.msra.mxu0 0.0
  %7180 = vmatprep.mubr.f32.mxu0 0.0
  %7181 = vmatmul.mubr.f32.gmra.mrb[0].mxu0 %v7093
  %v7182 = vpop.f32.mrb[0].mxu0
  %v7183 = vadd.f32 0.0, %v7182
  %v7184 = vpop.f32.mrb[0].mxu0
  %7185 = vmatprep.mubr.f32.mxu0 0.0
  %7186 = vmatmul.mubr.f32.gmra.mrb[0].mxu0 %v7096
  %v7187 = vpop.f32.mrb[0].mxu0
  %v7188 = vadd.f32 0.0, %v7187
  %v7189 = vpop.f32.mrb[0].mxu0
  %7190 = vmatprep.mubr.f32.mxu0 0.0
  %7191 = vmatmul.mubr.f32.gmra.mrb[0].mxu0 %v7099
  %v7192 = vpop.f32.mrb[0].mxu0
  %v7193 = vadd.f32 0.0, %v7192
  %v7194 = vpop.f32.mrb[0].mxu0
  %7195 = vmatprep.mubr.f32.mxu0 0.0
  %7196 = vmatmul.mubr.f32.gmra.mrb[0].mxu0 %v7102
  %v7197 = vpop.f32.mrb[0].mxu0
  %v7198 = vadd.f32 0.0, %v7197
  %v7199 = vpop.f32.mrb[0].mxu0
  %7200 = vmatprep.mubr.f32.mxu0 0.0
  %7201 = vmatmul.mubr.f32.gmra.mrb[0].mxu0 %v7105
  %v7202 = vpop.f32.mrb[0].mxu0
  %v7203 = vadd.f32 0.0, %v7202
  %v7204 = vpop.f32.mrb[0].mxu0
  %7205 = vmatprep.mubr.f32.mxu0 0.0
  %7206 = vmatmul.mubr.f32.gmra.mrb[0].mxu0 %v7108
  %v7207 = vpop.f32.mrb[0].mxu0
  %v7208 = vadd.f32 0.0, %v7207
  %v7209 = vpop.f32.mrb[0].mxu0
  %7210 = vmatprep.mubr.f32.mxu0 0.0
  %7211 = vmatmul.mubr.f32.gmra.mrb[0].mxu0 %v7111
  %v7212 = vpop.f32.mrb[0].mxu0
  %v7213 = vadd.f32 0.0, %v7212
  %v7214 = vpop.f32.mrb[0].mxu0
  %7215 = vmatprep.mubr.f32.mxu0 0.0
  %7216 = vmatmul.mubr.f32.gmra.mrb[0].mxu0 %v7114
  %v7217 = vpop.f32.mrb[0].mxu0
  %v7218 = vadd.f32 0.0, %v7217
  %v7219 = vpop.f32.mrb[0].mxu0
  %7220 = vdwg.mxu0
  %v7221 = vadd.f32 %v7076, %v7183
  %v7222 = vadd.f32 %v7077, %v7188
  %v7223 = vadd.f32 %v7078, %v7193
  %v7224 = vadd.f32 %v7079, %v7198
  %v7225 = vadd.f32 %v7080, %v7203
  %v7226 = vadd.f32 %v7081, %v7208
  %v7227 = vadd.f32 %v7082, %v7213
  %v7228 = vadd.f32 %v7083, %v7218
  %v7229 = vadd.f32 %v7221, %v4620
  %v7230 = vadd.f32 %v7222, %v4620
  %v7231 = vadd.f32 %v7223, %v4620
  %v7232 = vadd.f32 %v7224, %v4620
  %v7233 = vadd.f32 %v7225, %v4620
  %v7234 = vadd.f32 %v7226, %v4620
  %v7235 = vadd.f32 %v7227, %v4620
  %v7236 = vadd.f32 %v7228, %v4620
  %v7237 = vmax.f32 %v7229, 0.0
  %v7238 = vmax.f32 %v7230, 0.0
  %v7239 = vmax.f32 %v7231, 0.0
  %v7240 = vmax.f32 %v7232, 0.0
  %v7241 = vmax.f32 %v7233, 0.0
  %v7242 = vmax.f32 %v7234, 0.0
  %v7243 = vmax.f32 %v7235, 0.0
  %v7244 = vmax.f32 %v7236, 0.0
  %7245 = vmatprep.subr.mxu0 0.0
  %7246 = vmatpush1.msra.mxu0 %v4036
  %7247 = vmatprep.subr.mxu0 0.0
  %7248 = vmatpush1.msra.mxu0 %v4037
  %7249 = vmatprep.subr.mxu0 0.0
  %7250 = vmatpush1.msra.mxu0 %v4038
  %7251 = vmatprep.subr.mxu0 0.0
  %7252 = vmatpush1.msra.mxu0 %v4039
  %7253 = vmatprep.subr.mxu0 0.0
  %7254 = vmatpush1.msra.mxu0 %v4040
  %7255 = vmatprep.subr.mxu0 0.0
  %7256 = vmatpush1.msra.mxu0 %v4041
  %7257 = vmatprep.subr.mxu0 0.0
  %7258 = vmatpush1.msra.mxu0 %v4042
  %7259 = vmatprep.subr.mxu0 0.0
  %7260 = vmatpush1.msra.mxu0 %v4043
  %7261 = vmatprep.subr.mxu0 0.0
  %7262 = vmatpush1.msra.mxu0 %v4044
  %7263 = vmatprep.subr.mxu0 0.0
  %7264 = vmatpush1.msra.mxu0 %v4045
  %7265 = vmatprep.subr.mxu0 0.0
  %7266 = vmatpush1.msra.mxu0 0.0
  %7267 = vmatprep.subr.mxu0 0.0
  %7268 = vmatpush1.msra.mxu0 0.0
  %7269 = vmatprep.subr.mxu0 0.0
  %7270 = vmatpush1.msra.mxu0 0.0
  %7271 = vmatprep.subr.mxu0 0.0
  %7272 = vmatpush1.msra.mxu0 0.0
  %7273 = vmatprep.subr.mxu0 0.0
  %7274 = vmatpush1.msra.mxu0 0.0
  %7275 = vmatprep.subr.mxu0 0.0
  %7276 = vmatpush1.msra.mxu0 0.0
  %7277 = vmatprep.subr.mxu0 0.0
  %7278 = vmatpush1.msra.mxu0 0.0
  %7279 = vmatprep.subr.mxu0 0.0
  %7280 = vmatpush1.msra.mxu0 0.0
  %7281 = vmatprep.subr.mxu0 0.0
  %7282 = vmatpush1.msra.mxu0 0.0
  %7283 = vmatprep.subr.mxu0 0.0
  %7284 = vmatpush1.msra.mxu0 0.0
  %7285 = vmatprep.subr.mxu0 0.0
  %7286 = vmatpush1.msra.mxu0 0.0
  %7287 = vmatprep.subr.mxu0 0.0
  %7288 = vmatpush1.msra.mxu0 0.0
  %7289 = vmatprep.subr.mxu0 0.0
  %7290 = vmatpush1.msra.mxu0 0.0
  %7291 = vmatprep.subr.mxu0 0.0
  %7292 = vmatpush1.msra.mxu0 0.0
  %7293 = vmatprep.subr.mxu0 0.0
  %7294 = vmatpush1.msra.mxu0 0.0
  %7295 = vmatprep.subr.mxu0 0.0
  %7296 = vmatpush1.msra.mxu0 0.0
  %7297 = vmatprep.subr.mxu0 0.0
  %7298 = vmatpush1.msra.mxu0 0.0
  %7299 = vmatprep.subr.mxu0 0.0
  %7300 = vmatpush1.msra.mxu0 0.0
  %7301 = vmatprep.subr.mxu0 0.0
  %7302 = vmatpush1.msra.mxu0 0.0
  %7303 = vmatprep.subr.mxu0 0.0
  %7304 = vmatpush1.msra.mxu0 0.0
  %7305 = vmatprep.subr.mxu0 0.0
  %7306 = vmatpush1.msra.mxu0 0.0
  %7307 = vmatprep.subr.mxu0 0.0
  %7308 = vmatpush1.msra.mxu0 0.0
  %7309 = vmatprep.mubr.f32.mxu0 0.0
  %7310 = vmatmul.mubr.f32.gmra.mrb[0].mxu0 %v6273
  %v7311 = vpop.f32.mrb[0].mxu0
  %v7312 = vadd.f32 0.0, %v7311
  %v7313 = vpop.f32.mrb[0].mxu0
  %7314 = vmatprep.mubr.f32.mxu0 0.0
  %7315 = vmatmul.mubr.f32.gmra.mrb[0].mxu0 %v6276
  %v7316 = vpop.f32.mrb[0].mxu0
  %v7317 = vadd.f32 0.0, %v7316
  %v7318 = vpop.f32.mrb[0].mxu0
  %7319 = vmatprep.mubr.f32.mxu0 0.0
  %7320 = vmatmul.mubr.f32.gmra.mrb[0].mxu0 %v6279
  %v7321 = vpop.f32.mrb[0].mxu0
  %v7322 = vadd.f32 0.0, %v7321
  %v7323 = vpop.f32.mrb[0].mxu0
  %7324 = vmatprep.mubr.f32.mxu0 0.0
  %7325 = vmatmul.mubr.f32.gmra.mrb[0].mxu0 %v6282
  %v7326 = vpop.f32.mrb[0].mxu0
  %v7327 = vadd.f32 0.0, %v7326
  %v7328 = vpop.f32.mrb[0].mxu0
  %7329 = vmatprep.mubr.f32.mxu0 0.0
  %7330 = vmatmul.mubr.f32.gmra.mrb[0].mxu0 %v6285
  %v7331 = vpop.f32.mrb[0].mxu0
  %v7332 = vadd.f32 0.0, %v7331
  %v7333 = vpop.f32.mrb[0].mxu0
  %7334 = vmatprep.mubr.f32.mxu0 0.0
  %7335 = vmatmul.mubr.f32.gmra.mrb[0].mxu0 %v6288
  %v7336 = vpop.f32.mrb[0].mxu0
  %v7337 = vadd.f32 0.0, %v7336
  %v7338 = vpop.f32.mrb[0].mxu0
  %7339 = vmatprep.mubr.f32.mxu0 0.0
  %7340 = vmatmul.mubr.f32.gmra.mrb[0].mxu0 %v6291
  %v7341 = vpop.f32.mrb[0].mxu0
  %v7342 = vadd.f32 0.0, %v7341
  %v7343 = vpop.f32.mrb[0].mxu0
  %7344 = vmatprep.mubr.f32.mxu0 0.0
  %7345 = vmatmul.mubr.f32.gmra.mrb[0].mxu0 %v6294
  %v7346 = vpop.f32.mrb[0].mxu0
  %v7347 = vadd.f32 0.0, %v7346
  %v7348 = vpop.f32.mrb[0].mxu0
  %7349 = vdwg.mxu0
  %7350 = vmatprep.subr.mxu0 0.0
  %7351 = vmatpush1.msra.mxu0 %v4017
  %7352 = vmatprep.subr.mxu0 0.0
  %7353 = vmatpush1.msra.mxu0 %v4018
  %7354 = vmatprep.subr.mxu0 0.0
  %7355 = vmatpush1.msra.mxu0 %v4019
  %7356 = vmatprep.subr.mxu0 0.0
  %7357 = vmatpush1.msra.mxu0 %v4020
  %7358 = vmatprep.subr.mxu0 0.0
  %7359 = vmatpush1.msra.mxu0 %v4021
  %7360 = vmatprep.subr.mxu0 0.0
  %7361 = vmatpush1.msra.mxu0 %v4022
  %7362 = vmatprep.subr.mxu0 0.0
  %7363 = vmatpush1.msra.mxu0 %v4023
  %7364 = vmatprep.subr.mxu0 0.0
  %7365 = vmatpush1.msra.mxu0 %v4024
  %7366 = vmatprep.subr.mxu0 0.0
  %7367 = vmatpush1.msra.mxu0 %v4025
  %7368 = vmatprep.subr.mxu0 0.0
  %7369 = vmatpush1.msra.mxu0 %v4026
  %7370 = vmatprep.subr.mxu0 0.0
  %7371 = vmatpush1.msra.mxu0 0.0
  %7372 = vmatprep.subr.mxu0 0.0
  %7373 = vmatpush1.msra.mxu0 0.0
  %7374 = vmatprep.subr.mxu0 0.0
  %7375 = vmatpush1.msra.mxu0 0.0
  %7376 = vmatprep.subr.mxu0 0.0
  %7377 = vmatpush1.msra.mxu0 0.0
  %7378 = vmatprep.subr.mxu0 0.0
  %7379 = vmatpush1.msra.mxu0 0.0
  %7380 = vmatprep.subr.mxu0 0.0
  %7381 = vmatpush1.msra.mxu0 0.0
  %7382 = vmatprep.subr.mxu0 0.0
  %7383 = vmatpush1.msra.mxu0 0.0
  %7384 = vmatprep.subr.mxu0 0.0
  %7385 = vmatpush1.msra.mxu0 0.0
  %7386 = vmatprep.subr.mxu0 0.0
  %7387 = vmatpush1.msra.mxu0 0.0
  %7388 = vmatprep.subr.mxu0 0.0
  %7389 = vmatpush1.msra.mxu0 0.0
  %7390 = vmatprep.subr.mxu0 0.0
  %7391 = vmatpush1.msra.mxu0 0.0
  %7392 = vmatprep.subr.mxu0 0.0
  %7393 = vmatpush1.msra.mxu0 0.0
  %7394 = vmatprep.subr.mxu0 0.0
  %7395 = vmatpush1.msra.mxu0 0.0
  %7396 = vmatprep.subr.mxu0 0.0
  %7397 = vmatpush1.msra.mxu0 0.0
  %7398 = vmatprep.subr.mxu0 0.0
  %7399 = vmatpush1.msra.mxu0 0.0
  %7400 = vmatprep.subr.mxu0 0.0
  %7401 = vmatpush1.msra.mxu0 0.0
  %7402 = vmatprep.subr.mxu0 0.0
  %7403 = vmatpush1.msra.mxu0 0.0
  %7404 = vmatprep.subr.mxu0 0.0
  %7405 = vmatpush1.msra.mxu0 0.0
  %7406 = vmatprep.subr.mxu0 0.0
  %7407 = vmatpush1.msra.mxu0 0.0
  %7408 = vmatprep.subr.mxu0 0.0
  %7409 = vmatpush1.msra.mxu0 0.0
  %7410 = vmatprep.subr.mxu0 0.0
  %7411 = vmatpush1.msra.mxu0 0.0
  %7412 = vmatprep.subr.mxu0 0.0
  %7413 = vmatpush1.msra.mxu0 0.0
  %7414 = vmatprep.mubr.f32.mxu0 0.0
  %7415 = vmatmul.mubr.f32.gmra.mrb[0].mxu0 %v5789
  %v7416 = vpop.f32.mrb[0].mxu0
  %v7417 = vadd.f32 %v7312, %v7416
  %v7418 = vpop.f32.mrb[0].mxu0
  %7419 = vmatprep.mubr.f32.mxu0 0.0
  %7420 = vmatmul.mubr.f32.gmra.mrb[0].mxu0 %v5792
  %v7421 = vpop.f32.mrb[0].mxu0
  %v7422 = vadd.f32 %v7317, %v7421
  %v7423 = vpop.f32.mrb[0].mxu0
  %7424 = vmatprep.mubr.f32.mxu0 0.0
  %7425 = vmatmul.mubr.f32.gmra.mrb[0].mxu0 %v5795
  %v7426 = vpop.f32.mrb[0].mxu0
  %v7427 = vadd.f32 %v7322, %v7426
  %v7428 = vpop.f32.mrb[0].mxu0
  %7429 = vmatprep.mubr.f32.mxu0 0.0
  %7430 = vmatmul.mubr.f32.gmra.mrb[0].mxu0 %v5798
  %v7431 = vpop.f32.mrb[0].mxu0
  %v7432 = vadd.f32 %v7327, %v7431
  %v7433 = vpop.f32.mrb[0].mxu0
  %7434 = vmatprep.mubr.f32.mxu0 0.0
  %7435 = vmatmul.mubr.f32.gmra.mrb[0].mxu0 %v5801
  %v7436 = vpop.f32.mrb[0].mxu0
  %v7437 = vadd.f32 %v7332, %v7436
  %v7438 = vpop.f32.mrb[0].mxu0
  %7439 = vmatprep.mubr.f32.mxu0 0.0
  %7440 = vmatmul.mubr.f32.gmra.mrb[0].mxu0 %v5804
  %v7441 = vpop.f32.mrb[0].mxu0
  %v7442 = vadd.f32 %v7337, %v7441
  %v7443 = vpop.f32.mrb[0].mxu0
  %7444 = vmatprep.mubr.f32.mxu0 0.0
  %7445 = vmatmul.mubr.f32.gmra.mrb[0].mxu0 %v5807
  %v7446 = vpop.f32.mrb[0].mxu0
  %v7447 = vadd.f32 %v7342, %v7446
  %v7448 = vpop.f32.mrb[0].mxu0
  %7449 = vmatprep.mubr.f32.mxu0 0.0
  %7450 = vmatmul.mubr.f32.gmra.mrb[0].mxu0 %v5810
  %v7451 = vpop.f32.mrb[0].mxu0
  %v7452 = vadd.f32 %v7347, %v7451
  %v7453 = vpop.f32.mrb[0].mxu0
  %7454 = vdwg.mxu0
  %7455 = vmatprep.subr.mxu0 0.0
  %7456 = vmatpush1.msra.mxu0 %v4313
  %7457 = vmatprep.subr.mxu0 0.0
  %7458 = vmatpush1.msra.mxu0 %v4314
  %7459 = vmatprep.subr.mxu0 0.0
  %7460 = vmatpush1.msra.mxu0 %v4315
  %7461 = vmatprep.subr.mxu0 0.0
  %7462 = vmatpush1.msra.mxu0 %v4316
  %7463 = vmatprep.subr.mxu0 0.0
  %7464 = vmatpush1.msra.mxu0 %v4317
  %7465 = vmatprep.subr.mxu0 0.0
  %7466 = vmatpush1.msra.mxu0 %v4318
  %7467 = vmatprep.subr.mxu0 0.0
  %7468 = vmatpush1.msra.mxu0 %v4319
  %7469 = vmatprep.subr.mxu0 0.0
  %7470 = vmatpush1.msra.mxu0 %v4320
  %7471 = vmatprep.subr.mxu0 0.0
  %7472 = vmatpush1.msra.mxu0 %v4321
  %7473 = vmatprep.subr.mxu0 0.0
  %7474 = vmatpush1.msra.mxu0 %v4322
  %7475 = vmatprep.subr.mxu0 0.0
  %7476 = vmatpush1.msra.mxu0 0.0
  %7477 = vmatprep.subr.mxu0 0.0
  %7478 = vmatpush1.msra.mxu0 0.0
  %7479 = vmatprep.subr.mxu0 0.0
  %7480 = vmatpush1.msra.mxu0 0.0
  %7481 = vmatprep.subr.mxu0 0.0
  %7482 = vmatpush1.msra.mxu0 0.0
  %7483 = vmatprep.subr.mxu0 0.0
  %7484 = vmatpush1.msra.mxu0 0.0
  %7485 = vmatprep.subr.mxu0 0.0
  %7486 = vmatpush1.msra.mxu0 0.0
  %7487 = vmatprep.subr.mxu0 0.0
  %7488 = vmatpush1.msra.mxu0 0.0
  %7489 = vmatprep.subr.mxu0 0.0
  %7490 = vmatpush1.msra.mxu0 0.0
  %7491 = vmatprep.subr.mxu0 0.0
  %7492 = vmatpush1.msra.mxu0 0.0
  %7493 = vmatprep.subr.mxu0 0.0
  %7494 = vmatpush1.msra.mxu0 0.0
  %7495 = vmatprep.subr.mxu0 0.0
  %7496 = vmatpush1.msra.mxu0 0.0
  %7497 = vmatprep.subr.mxu0 0.0
  %7498 = vmatpush1.msra.mxu0 0.0
  %7499 = vmatprep.subr.mxu0 0.0
  %7500 = vmatpush1.msra.mxu0 0.0
  %7501 = vmatprep.subr.mxu0 0.0
  %7502 = vmatpush1.msra.mxu0 0.0
  %7503 = vmatprep.subr.mxu0 0.0
  %7504 = vmatpush1.msra.mxu0 0.0
  %7505 = vmatprep.subr.mxu0 0.0
  %7506 = vmatpush1.msra.mxu0 0.0
  %7507 = vmatprep.subr.mxu0 0.0
  %7508 = vmatpush1.msra.mxu0 0.0
  %7509 = vmatprep.subr.mxu0 0.0
  %7510 = vmatpush1.msra.mxu0 0.0
  %7511 = vmatprep.subr.mxu0 0.0
  %7512 = vmatpush1.msra.mxu0 0.0
  %7513 = vmatprep.subr.mxu0 0.0
  %7514 = vmatpush1.msra.mxu0 0.0
  %7515 = vmatprep.subr.mxu0 0.0
  %7516 = vmatpush1.msra.mxu0 0.0
  %7517 = vmatprep.subr.mxu0 0.0
  %7518 = vmatpush1.msra.mxu0 0.0
  %7519 = vmatprep.mubr.f32.mxu0 0.0
  %7520 = vmatmul.mubr.f32.gmra.mrb[0].mxu0 %v7093
  %v7521 = vpop.f32.mrb[0].mxu0
  %v7522 = vadd.f32 0.0, %v7521
  %v7523 = vpop.f32.mrb[0].mxu0
  %7524 = vmatprep.mubr.f32.mxu0 0.0
  %7525 = vmatmul.mubr.f32.gmra.mrb[0].mxu0 %v7096
  %v7526 = vpop.f32.mrb[0].mxu0
  %v7527 = vadd.f32 0.0, %v7526
  %v7528 = vpop.f32.mrb[0].mxu0
  %7529 = vmatprep.mubr.f32.mxu0 0.0
  %7530 = vmatmul.mubr.f32.gmra.mrb[0].mxu0 %v7099
  %v7531 = vpop.f32.mrb[0].mxu0
  %v7532 = vadd.f32 0.0, %v7531
  %v7533 = vpop.f32.mrb[0].mxu0
  %7534 = vmatprep.mubr.f32.mxu0 0.0
  %7535 = vmatmul.mubr.f32.gmra.mrb[0].mxu0 %v7102
  %v7536 = vpop.f32.mrb[0].mxu0
  %v7537 = vadd.f32 0.0, %v7536
  %v7538 = vpop.f32.mrb[0].mxu0
  %7539 = vmatprep.mubr.f32.mxu0 0.0
  %7540 = vmatmul.mubr.f32.gmra.mrb[0].mxu0 %v7105
  %v7541 = vpop.f32.mrb[0].mxu0
  %v7542 = vadd.f32 0.0, %v7541
  %v7543 = vpop.f32.mrb[0].mxu0
  %7544 = vmatprep.mubr.f32.mxu0 0.0
  %7545 = vmatmul.mubr.f32.gmra.mrb[0].mxu0 %v7108
  %v7546 = vpop.f32.mrb[0].mxu0
  %v7547 = vadd.f32 0.0, %v7546
  %v7548 = vpop.f32.mrb[0].mxu0
  %7549 = vmatprep.mubr.f32.mxu0 0.0
  %7550 = vmatmul.mubr.f32.gmra.mrb[0].mxu0 %v7111
  %v7551 = vpop.f32.mrb[0].mxu0
  %v7552 = vadd.f32 0.0, %v7551
  %v7553 = vpop.f32.mrb[0].mxu0
  %7554 = vmatprep.mubr.f32.mxu0 0.0
  %7555 = vmatmul.mubr.f32.gmra.mrb[0].mxu0 %v7114
  %v7556 = vpop.f32.mrb[0].mxu0
  %v7557 = vadd.f32 0.0, %v7556
  %v7558 = vpop.f32.mrb[0].mxu0
  %7559 = vdwg.mxu0
  %v7560 = vadd.f32 %v7417, %v7522
  %v7561 = vadd.f32 %v7422, %v7527
  %v7562 = vadd.f32 %v7427, %v7532
  %v7563 = vadd.f32 %v7432, %v7537
  %v7564 = vadd.f32 %v7437, %v7542
  %v7565 = vadd.f32 %v7442, %v7547
  %v7566 = vadd.f32 %v7447, %v7552
  %v7567 = vadd.f32 %v7452, %v7557
  %v7568 = vld [vmem:[#allocation2 + $0x200] sm:$0xff]
  %v7569 = vld [vmem:[#allocation2 + $0x208] sm:$0xff]
  %v7570 = vld [vmem:[#allocation2 + $0x210] sm:$0xff]
  %v7571 = vld [vmem:[#allocation2 + $0x218] sm:$0xff]
  %v7572 = vld [vmem:[#allocation2 + $0x220] sm:$0xff]
  %v7573 = vld [vmem:[#allocation2 + $0x228] sm:$0xff]
  %v7574 = vld [vmem:[#allocation2 + $0x230] sm:$0xff]
  %v7575 = vld [vmem:[#allocation2 + $0x238] sm:$0xff]
  %v7577 = vsel %vm3919, %v7568, 0
  %v7580 = vsel %vm3919, %v7569, 0
  %v7583 = vsel %vm3919, %v7570, 0
  %v7586 = vsel %vm3919, %v7571, 0
  %v7589 = vsel %vm3919, %v7572, 0
  %v7592 = vsel %vm3919, %v7573, 0
  %v7595 = vsel %vm3919, %v7574, 0
  %v7598 = vsel %vm3919, %v7575, 0
  %7600 = vmatprep.subr.mxu0 0.0
  %7601 = vmatpush1.msra.mxu0 %v4469
  %7602 = vmatprep.subr.mxu0 0.0
  %7603 = vmatpush1.msra.mxu0 %v4470
  %7604 = vmatprep.subr.mxu0 0.0
  %7605 = vmatpush1.msra.mxu0 %v4471
  %7606 = vmatprep.subr.mxu0 0.0
  %7607 = vmatpush1.msra.mxu0 %v4472
  %7608 = vmatprep.subr.mxu0 0.0
  %7609 = vmatpush1.msra.mxu0 %v4473
  %7610 = vmatprep.subr.mxu0 0.0
  %7611 = vmatpush1.msra.mxu0 %v4474
  %7612 = vmatprep.subr.mxu0 0.0
  %7613 = vmatpush1.msra.mxu0 %v4475
  %7614 = vmatprep.subr.mxu0 0.0
  %7615 = vmatpush1.msra.mxu0 %v4476
  %7616 = vmatprep.subr.mxu0 0.0
  %7617 = vmatpush1.msra.mxu0 %v4477
  %7618 = vmatprep.subr.mxu0 0.0
  %7619 = vmatpush1.msra.mxu0 %v4478
  %7620 = vmatprep.subr.mxu0 0.0
  %7621 = vmatpush1.msra.mxu0 0.0
  %7622 = vmatprep.subr.mxu0 0.0
  %7623 = vmatpush1.msra.mxu0 0.0
  %7624 = vmatprep.subr.mxu0 0.0
  %7625 = vmatpush1.msra.mxu0 0.0
  %7626 = vmatprep.subr.mxu0 0.0
  %7627 = vmatpush1.msra.mxu0 0.0
  %7628 = vmatprep.subr.mxu0 0.0
  %7629 = vmatpush1.msra.mxu0 0.0
  %7630 = vmatprep.subr.mxu0 0.0
  %7631 = vmatpush1.msra.mxu0 0.0
  %7632 = vmatprep.subr.mxu0 0.0
  %7633 = vmatpush1.msra.mxu0 0.0
  %7634 = vmatprep.subr.mxu0 0.0
  %7635 = vmatpush1.msra.mxu0 0.0
  %7636 = vmatprep.subr.mxu0 0.0
  %7637 = vmatpush1.msra.mxu0 0.0
  %7638 = vmatprep.subr.mxu0 0.0
  %7639 = vmatpush1.msra.mxu0 0.0
  %7640 = vmatprep.subr.mxu0 0.0
  %7641 = vmatpush1.msra.mxu0 0.0
  %7642 = vmatprep.subr.mxu0 0.0
  %7643 = vmatpush1.msra.mxu0 0.0
  %7644 = vmatprep.subr.mxu0 0.0
  %7645 = vmatpush1.msra.mxu0 0.0
  %7646 = vmatprep.subr.mxu0 0.0
  %7647 = vmatpush1.msra.mxu0 0.0
  %7648 = vmatprep.subr.mxu0 0.0
  %7649 = vmatpush1.msra.mxu0 0.0
  %7650 = vmatprep.subr.mxu0 0.0
  %7651 = vmatpush1.msra.mxu0 0.0
  %7652 = vmatprep.subr.mxu0 0.0
  %7653 = vmatpush1.msra.mxu0 0.0
  %7654 = vmatprep.subr.mxu0 0.0
  %7655 = vmatpush1.msra.mxu0 0.0
  %7656 = vmatprep.subr.mxu0 0.0
  %7657 = vmatpush1.msra.mxu0 0.0
  %7658 = vmatprep.subr.mxu0 0.0
  %7659 = vmatpush1.msra.mxu0 0.0
  %7660 = vmatprep.subr.mxu0 0.0
  %7661 = vmatpush1.msra.mxu0 0.0
  %7662 = vmatprep.subr.mxu0 0.0
  %7663 = vmatpush1.msra.mxu0 0.0
  %7664 = vmatprep.mubr.f32.mxu0 0.0
  %7665 = vmatmul.mubr.f32.gmra.mrb[0].mxu0 %v7577
  %v7666 = vpop.f32.mrb[0].mxu0
  %v7667 = vadd.f32 0.0, %v7666
  %v7668 = vpop.f32.mrb[0].mxu0
  %7669 = vmatprep.mubr.f32.mxu0 0.0
  %7670 = vmatmul.mubr.f32.gmra.mrb[0].mxu0 %v7580
  %v7671 = vpop.f32.mrb[0].mxu0
  %v7672 = vadd.f32 0.0, %v7671
  %v7673 = vpop.f32.mrb[0].mxu0
  %7674 = vmatprep.mubr.f32.mxu0 0.0
  %7675 = vmatmul.mubr.f32.gmra.mrb[0].mxu0 %v7583
  %v7676 = vpop.f32.mrb[0].mxu0
  %v7677 = vadd.f32 0.0, %v7676
  %v7678 = vpop.f32.mrb[0].mxu0
  %7679 = vmatprep.mubr.f32.mxu0 0.0
  %7680 = vmatmul.mubr.f32.gmra.mrb[0].mxu0 %v7586
  %v7681 = vpop.f32.mrb[0].mxu0
  %v7682 = vadd.f32 0.0, %v7681
  %v7683 = vpop.f32.mrb[0].mxu0
  %7684 = vmatprep.mubr.f32.mxu0 0.0
  %7685 = vmatmul.mubr.f32.gmra.mrb[0].mxu0 %v7589
  %v7686 = vpop.f32.mrb[0].mxu0
  %v7687 = vadd.f32 0.0, %v7686
  %v7688 = vpop.f32.mrb[0].mxu0
  %7689 = vmatprep.mubr.f32.mxu0 0.0
  %7690 = vmatmul.mubr.f32.gmra.mrb[0].mxu0 %v7592
  %v7691 = vpop.f32.mrb[0].mxu0
  %v7692 = vadd.f32 0.0, %v7691
  %v7693 = vpop.f32.mrb[0].mxu0
  %7694 = vmatprep.mubr.f32.mxu0 0.0
  %7695 = vmatmul.mubr.f32.gmra.mrb[0].mxu0 %v7595
  %v7696 = vpop.f32.mrb[0].mxu0
  %v7697 = vadd.f32 0.0, %v7696
  %v7698 = vpop.f32.mrb[0].mxu0
  %7699 = vmatprep.mubr.f32.mxu0 0.0
  %7700 = vmatmul.mubr.f32.gmra.mrb[0].mxu0 %v7598
  %v7701 = vpop.f32.mrb[0].mxu0
  %v7702 = vadd.f32 0.0, %v7701
  %v7703 = vpop.f32.mrb[0].mxu0
  %7704 = vdwg.mxu0
  %v7705 = vadd.f32 %v7560, %v7667
  %v7706 = vadd.f32 %v7561, %v7672
  %v7707 = vadd.f32 %v7562, %v7677
  %v7708 = vadd.f32 %v7563, %v7682
  %v7709 = vadd.f32 %v7564, %v7687
  %v7710 = vadd.f32 %v7565, %v7692
  %v7711 = vadd.f32 %v7566, %v7697
  %v7712 = vadd.f32 %v7567, %v7702
  %v7713 = vadd.f32 %v7705, %v4620
  %v7714 = vadd.f32 %v7706, %v4620
  %v7715 = vadd.f32 %v7707, %v4620
  %v7716 = vadd.f32 %v7708, %v4620
  %v7717 = vadd.f32 %v7709, %v4620
  %v7718 = vadd.f32 %v7710, %v4620
  %v7719 = vadd.f32 %v7711, %v4620
  %v7720 = vadd.f32 %v7712, %v4620
  %v7721 = vmax.f32 %v7713, 0.0
  %v7722 = vmax.f32 %v7714, 0.0
  %v7723 = vmax.f32 %v7715, 0.0
  %v7724 = vmax.f32 %v7716, 0.0
  %v7725 = vmax.f32 %v7717, 0.0
  %v7726 = vmax.f32 %v7718, 0.0
  %v7727 = vmax.f32 %v7719, 0.0
  %v7728 = vmax.f32 %v7720, 0.0
  %v7729 = vmax.f32 %v7237, %v7721
  %v7730 = vmax.f32 %v7238, %v7722
  %v7731 = vmax.f32 %v7239, %v7723
  %v7732 = vmax.f32 %v7240, %v7724
  %v7733 = vmax.f32 %v7241, %v7725
  %v7734 = vmax.f32 %v7242, %v7726
  %v7735 = vmax.f32 %v7243, %v7727
  %v7736 = vmax.f32 %v7244, %v7728
  %v7737 = vmax.f32 %v7729, %v7730
  %s7738 = scalar_lea.vmem %s5, 192
  %v7739 = vld [vmem:[%s7738] sm:$0xff]
  %v7740 = vld [vmem:[%s7738 + $0x8] sm:$0xff]
  %v7741 = vld [vmem:[%s7738 + $0x10] sm:$0xf]
  %v7743 = vsel %vm5139, %v7737, 0
  %v7746 = vsel %vm5143, %v7741, 0
  %7748 = vmatprep.subr.mxu0 0.0
  %7749 = vmatpush1.msra.mxu0 %v7739
  %7750 = vmatprep.subr.mxu0 0.0
  %7751 = vmatpush1.msra.mxu0 %v7740
  %7752 = vmatprep.subr.mxu0 0.0
  %7753 = vmatpush1.msra.mxu0 %v7746
  %7754 = vmatprep.subr.mxu0 0.0
  %7755 = vmatpush1.msra.mxu0 0.0
  %7756 = vmatprep.subr.mxu0 0.0
  %7757 = vmatpush1.msra.mxu0 0.0
  %7758 = vmatprep.subr.mxu0 0.0
  %7759 = vmatpush1.msra.mxu0 0.0
  %7760 = vmatprep.subr.mxu0 0.0
  %7761 = vmatpush1.msra.mxu0 0.0
  %7762 = vmatprep.subr.mxu0 0.0
  %7763 = vmatpush1.msra.mxu0 0.0
  %7764 = vmatprep.subr.mxu0 0.0
  %7765 = vmatpush1.msra.mxu0 0.0
  %7766 = vmatprep.subr.mxu0 0.0
  %7767 = vmatpush1.msra.mxu0 0.0
  %7768 = vmatprep.subr.mxu0 0.0
  %7769 = vmatpush1.msra.mxu0 0.0
  %7770 = vmatprep.subr.mxu0 0.0
  %7771 = vmatpush1.msra.mxu0 0.0
  %7772 = vmatprep.subr.mxu0 0.0
  %7773 = vmatpush1.msra.mxu0 0.0
  %7774 = vmatprep.subr.mxu0 0.0
  %7775 = vmatpush1.msra.mxu0 0.0
  %7776 = vmatprep.subr.mxu0 0.0
  %7777 = vmatpush1.msra.mxu0 0.0
  %7778 = vmatprep.subr.mxu0 0.0
  %7779 = vmatpush1.msra.mxu0 0.0
  %7780 = vmatprep.subr.mxu0 0.0
  %7781 = vmatpush1.msra.mxu0 0.0
  %7782 = vmatprep.subr.mxu0 0.0
  %7783 = vmatpush1.msra.mxu0 0.0
  %7784 = vmatprep.subr.mxu0 0.0
  %7785 = vmatpush1.msra.mxu0 0.0
  %7786 = vmatprep.subr.mxu0 0.0
  %7787 = vmatpush1.msra.mxu0 0.0
  %7788 = vmatprep.subr.mxu0 0.0
  %7789 = vmatpush1.msra.mxu0 0.0
  %7790 = vmatprep.subr.mxu0 0.0
  %7791 = vmatpush1.msra.mxu0 0.0
  %7792 = vmatprep.subr.mxu0 0.0
  %7793 = vmatpush1.msra.mxu0 0.0
  %7794 = vmatprep.subr.mxu0 0.0
  %7795 = vmatpush1.msra.mxu0 0.0
  %7796 = vmatprep.subr.mxu0 0.0
  %7797 = vmatpush1.msra.mxu0 0.0
  %7798 = vmatprep.subr.mxu0 0.0
  %7799 = vmatpush1.msra.mxu0 0.0
  %7800 = vmatprep.subr.mxu0 0.0
  %7801 = vmatpush1.msra.mxu0 0.0
  %7802 = vmatprep.subr.mxu0 0.0
  %7803 = vmatpush1.msra.mxu0 0.0
  %7804 = vmatprep.subr.mxu0 0.0
  %7805 = vmatpush1.msra.mxu0 0.0
  %7806 = vmatprep.subr.mxu0 0.0
  %7807 = vmatpush1.msra.mxu0 0.0
  %7808 = vmatprep.subr.mxu0 0.0
  %7809 = vmatpush1.msra.mxu0 0.0
  %7810 = vmatprep.subr.mxu0 0.0
  %7811 = vmatpush1.msra.mxu0 0.0
  %7812 = vmatprep.mubr.f32.mxu0 0.0
  %7813 = vmatmul.mubr.f32.gmra.mrb[0].mxu0 %v7743
  %v7814 = vpop.f32.mrb[0].mxu0
  %v7815 = vadd.f32 0.0, %v7814
  %v7816 = vpop.f32.mrb[0].mxu0
  %7817 = vdwg.mxu0
  %v7818 = vadd.f32 %v6760, %v7815
  %v7819 = vmax.f32 %v7731, %v7732
  %s7820 = scalar_lea.vmem %s5, 216
  %v7821 = vld [vmem:[%s7820] sm:$0xff]
  %v7822 = vld [vmem:[%s7820 + $0x8] sm:$0xff]
  %v7823 = vld [vmem:[%s7820 + $0x10] sm:$0xf]
  %v7825 = vsel %vm5139, %v7819, 0
  %v7828 = vsel %vm5143, %v7823, 0
  %7830 = vmatprep.subr.mxu0 0.0
  %7831 = vmatpush1.msra.mxu0 %v7821
  %7832 = vmatprep.subr.mxu0 0.0
  %7833 = vmatpush1.msra.mxu0 %v7822
  %7834 = vmatprep.subr.mxu0 0.0
  %7835 = vmatpush1.msra.mxu0 %v7828
  %7836 = vmatprep.subr.mxu0 0.0
  %7837 = vmatpush1.msra.mxu0 0.0
  %7838 = vmatprep.subr.mxu0 0.0
  %7839 = vmatpush1.msra.mxu0 0.0
  %7840 = vmatprep.subr.mxu0 0.0
  %7841 = vmatpush1.msra.mxu0 0.0
  %7842 = vmatprep.subr.mxu0 0.0
  %7843 = vmatpush1.msra.mxu0 0.0
  %7844 = vmatprep.subr.mxu0 0.0
  %7845 = vmatpush1.msra.mxu0 0.0
  %7846 = vmatprep.subr.mxu0 0.0
  %7847 = vmatpush1.msra.mxu0 0.0
  %7848 = vmatprep.subr.mxu0 0.0
  %7849 = vmatpush1.msra.mxu0 0.0
  %7850 = vmatprep.subr.mxu0 0.0
  %7851 = vmatpush1.msra.mxu0 0.0
  %7852 = vmatprep.subr.mxu0 0.0
  %7853 = vmatpush1.msra.mxu0 0.0
  %7854 = vmatprep.subr.mxu0 0.0
  %7855 = vmatpush1.msra.mxu0 0.0
  %7856 = vmatprep.subr.mxu0 0.0
  %7857 = vmatpush1.msra.mxu0 0.0
  %7858 = vmatprep.subr.mxu0 0.0
  %7859 = vmatpush1.msra.mxu0 0.0
  %7860 = vmatprep.subr.mxu0 0.0
  %7861 = vmatpush1.msra.mxu0 0.0
  %7862 = vmatprep.subr.mxu0 0.0
  %7863 = vmatpush1.msra.mxu0 0.0
  %7864 = vmatprep.subr.mxu0 0.0
  %7865 = vmatpush1.msra.mxu0 0.0
  %7866 = vmatprep.subr.mxu0 0.0
  %7867 = vmatpush1.msra.mxu0 0.0
  %7868 = vmatprep.subr.mxu0 0.0
  %7869 = vmatpush1.msra.mxu0 0.0
  %7870 = vmatprep.subr.mxu0 0.0
  %7871 = vmatpush1.msra.mxu0 0.0
  %7872 = vmatprep.subr.mxu0 0.0
  %7873 = vmatpush1.msra.mxu0 0.0
  %7874 = vmatprep.subr.mxu0 0.0
  %7875 = vmatpush1.msra.mxu0 0.0
  %7876 = vmatprep.subr.mxu0 0.0
  %7877 = vmatpush1.msra.mxu0 0.0
  %7878 = vmatprep.subr.mxu0 0.0
  %7879 = vmatpush1.msra.mxu0 0.0
  %7880 = vmatprep.subr.mxu0 0.0
  %7881 = vmatpush1.msra.mxu0 0.0
  %7882 = vmatprep.subr.mxu0 0.0
  %7883 = vmatpush1.msra.mxu0 0.0
  %7884 = vmatprep.subr.mxu0 0.0
  %7885 = vmatpush1.msra.mxu0 0.0
  %7886 = vmatprep.subr.mxu0 0.0
  %7887 = vmatpush1.msra.mxu0 0.0
  %7888 = vmatprep.subr.mxu0 0.0
  %7889 = vmatpush1.msra.mxu0 0.0
  %7890 = vmatprep.subr.mxu0 0.0
  %7891 = vmatpush1.msra.mxu0 0.0
  %7892 = vmatprep.subr.mxu0 0.0
  %7893 = vmatpush1.msra.mxu0 0.0
  %7894 = vmatprep.mubr.f32.mxu0 0.0
  %7895 = vmatmul.mubr.f32.gmra.mrb[0].mxu0 %v7825
  %v7896 = vpop.f32.mrb[0].mxu0
  %v7897 = vadd.f32 0.0, %v7896
  %v7898 = vpop.f32.mrb[0].mxu0
  %7899 = vdwg.mxu0
  %v7900 = vadd.f32 %v7818, %v7897
  %v7901 = vmax.f32 %v7733, %v7734
  %s7902 = scalar_lea.vmem %s5, 240
  %v7903 = vld [vmem:[%s7902] sm:$0xff]
  %v7904 = vld [vmem:[%s7902 + $0x8] sm:$0xff]
  %v7905 = vld [vmem:[%s7902 + $0x10] sm:$0xf]
  %v7907 = vsel %vm5139, %v7901, 0
  %v7910 = vsel %vm5143, %v7905, 0
  %7912 = vmatprep.subr.mxu0 0.0
  %7913 = vmatpush1.msra.mxu0 %v7903
  %7914 = vmatprep.subr.mxu0 0.0
  %7915 = vmatpush1.msra.mxu0 %v7904
  %7916 = vmatprep.subr.mxu0 0.0
  %7917 = vmatpush1.msra.mxu0 %v7910
  %7918 = vmatprep.subr.mxu0 0.0
  %7919 = vmatpush1.msra.mxu0 0.0
  %7920 = vmatprep.subr.mxu0 0.0
  %7921 = vmatpush1.msra.mxu0 0.0
  %7922 = vmatprep.subr.mxu0 0.0
  %7923 = vmatpush1.msra.mxu0 0.0
  %7924 = vmatprep.subr.mxu0 0.0
  %7925 = vmatpush1.msra.mxu0 0.0
  %7926 = vmatprep.subr.mxu0 0.0
  %7927 = vmatpush1.msra.mxu0 0.0
  %7928 = vmatprep.subr.mxu0 0.0
  %7929 = vmatpush1.msra.mxu0 0.0
  %7930 = vmatprep.subr.mxu0 0.0
  %7931 = vmatpush1.msra.mxu0 0.0
  %7932 = vmatprep.subr.mxu0 0.0
  %7933 = vmatpush1.msra.mxu0 0.0
  %7934 = vmatprep.subr.mxu0 0.0
  %7935 = vmatpush1.msra.mxu0 0.0
  %7936 = vmatprep.subr.mxu0 0.0
  %7937 = vmatpush1.msra.mxu0 0.0
  %7938 = vmatprep.subr.mxu0 0.0
  %7939 = vmatpush1.msra.mxu0 0.0
  %7940 = vmatprep.subr.mxu0 0.0
  %7941 = vmatpush1.msra.mxu0 0.0
  %7942 = vmatprep.subr.mxu0 0.0
  %7943 = vmatpush1.msra.mxu0 0.0
  %7944 = vmatprep.subr.mxu0 0.0
  %7945 = vmatpush1.msra.mxu0 0.0
  %7946 = vmatprep.subr.mxu0 0.0
  %7947 = vmatpush1.msra.mxu0 0.0
  %7948 = vmatprep.subr.mxu0 0.0
  %7949 = vmatpush1.msra.mxu0 0.0
  %7950 = vmatprep.subr.mxu0 0.0
  %7951 = vmatpush1.msra.mxu0 0.0
  %7952 = vmatprep.subr.mxu0 0.0
  %7953 = vmatpush1.msra.mxu0 0.0
  %7954 = vmatprep.subr.mxu0 0.0
  %7955 = vmatpush1.msra.mxu0 0.0
  %7956 = vmatprep.subr.mxu0 0.0
  %7957 = vmatpush1.msra.mxu0 0.0
  %7958 = vmatprep.subr.mxu0 0.0
  %7959 = vmatpush1.msra.mxu0 0.0
  %7960 = vmatprep.subr.mxu0 0.0
  %7961 = vmatpush1.msra.mxu0 0.0
  %7962 = vmatprep.subr.mxu0 0.0
  %7963 = vmatpush1.msra.mxu0 0.0
  %7964 = vmatprep.subr.mxu0 0.0
  %7965 = vmatpush1.msra.mxu0 0.0
  %7966 = vmatprep.subr.mxu0 0.0
  %7967 = vmatpush1.msra.mxu0 0.0
  %7968 = vmatprep.subr.mxu0 0.0
  %7969 = vmatpush1.msra.mxu0 0.0
  %7970 = vmatprep.subr.mxu0 0.0
  %7971 = vmatpush1.msra.mxu0 0.0
  %7972 = vmatprep.subr.mxu0 0.0
  %7973 = vmatpush1.msra.mxu0 0.0
  %7974 = vmatprep.subr.mxu0 0.0
  %7975 = vmatpush1.msra.mxu0 0.0
  %7976 = vmatprep.mubr.f32.mxu0 0.0
  %7977 = vmatmul.mubr.f32.gmra.mrb[0].mxu0 %v7907
  %v7978 = vpop.f32.mrb[0].mxu0
  %v7979 = vadd.f32 0.0, %v7978
  %v7980 = vpop.f32.mrb[0].mxu0
  %7981 = vdwg.mxu0
  %v7982 = vadd.f32 %v7900, %v7979
  %v7983 = vmax.f32 %v7735, %v7736
  %s7984 = scalar_lea.vmem %s5, 264
  %v7985 = vld [vmem:[%s7984] sm:$0xff]
  %v7986 = vld [vmem:[%s7984 + $0x8] sm:$0xff]
  %v7987 = vld [vmem:[%s7984 + $0x10] sm:$0xf]
  %v7989 = vsel %vm5139, %v7983, 0
  %v7992 = vsel %vm5143, %v7987, 0
  %7994 = vmatprep.subr.mxu0 0.0
  %7995 = vmatpush1.msra.mxu0 %v7985
  %7996 = vmatprep.subr.mxu0 0.0
  %7997 = vmatpush1.msra.mxu0 %v7986
  %7998 = vmatprep.subr.mxu0 0.0
  %7999 = vmatpush1.msra.mxu0 %v7992
  %8000 = vmatprep.subr.mxu0 0.0
  %8001 = vmatpush1.msra.mxu0 0.0
  %8002 = vmatprep.subr.mxu0 0.0
  %8003 = vmatpush1.msra.mxu0 0.0
  %8004 = vmatprep.subr.mxu0 0.0
  %8005 = vmatpush1.msra.mxu0 0.0
  %8006 = vmatprep.subr.mxu0 0.0
  %8007 = vmatpush1.msra.mxu0 0.0
  %8008 = vmatprep.subr.mxu0 0.0
  %8009 = vmatpush1.msra.mxu0 0.0
  %8010 = vmatprep.subr.mxu0 0.0
  %8011 = vmatpush1.msra.mxu0 0.0
  %8012 = vmatprep.subr.mxu0 0.0
  %8013 = vmatpush1.msra.mxu0 0.0
  %8014 = vmatprep.subr.mxu0 0.0
  %8015 = vmatpush1.msra.mxu0 0.0
  %8016 = vmatprep.subr.mxu0 0.0
  %8017 = vmatpush1.msra.mxu0 0.0
  %8018 = vmatprep.subr.mxu0 0.0
  %8019 = vmatpush1.msra.mxu0 0.0
  %8020 = vmatprep.subr.mxu0 0.0
  %8021 = vmatpush1.msra.mxu0 0.0
  %8022 = vmatprep.subr.mxu0 0.0
  %8023 = vmatpush1.msra.mxu0 0.0
  %8024 = vmatprep.subr.mxu0 0.0
  %8025 = vmatpush1.msra.mxu0 0.0
  %8026 = vmatprep.subr.mxu0 0.0
  %8027 = vmatpush1.msra.mxu0 0.0
  %8028 = vmatprep.subr.mxu0 0.0
  %8029 = vmatpush1.msra.mxu0 0.0
  %8030 = vmatprep.subr.mxu0 0.0
  %8031 = vmatpush1.msra.mxu0 0.0
  %8032 = vmatprep.subr.mxu0 0.0
  %8033 = vmatpush1.msra.mxu0 0.0
  %8034 = vmatprep.subr.mxu0 0.0
  %8035 = vmatpush1.msra.mxu0 0.0
  %8036 = vmatprep.subr.mxu0 0.0
  %8037 = vmatpush1.msra.mxu0 0.0
  %8038 = vmatprep.subr.mxu0 0.0
  %8039 = vmatpush1.msra.mxu0 0.0
  %8040 = vmatprep.subr.mxu0 0.0
  %8041 = vmatpush1.msra.mxu0 0.0
  %8042 = vmatprep.subr.mxu0 0.0
  %8043 = vmatpush1.msra.mxu0 0.0
  %8044 = vmatprep.subr.mxu0 0.0
  %8045 = vmatpush1.msra.mxu0 0.0
  %8046 = vmatprep.subr.mxu0 0.0
  %8047 = vmatpush1.msra.mxu0 0.0
  %8048 = vmatprep.subr.mxu0 0.0
  %8049 = vmatpush1.msra.mxu0 0.0
  %8050 = vmatprep.subr.mxu0 0.0
  %8051 = vmatpush1.msra.mxu0 0.0
  %8052 = vmatprep.subr.mxu0 0.0
  %8053 = vmatpush1.msra.mxu0 0.0
  %8054 = vmatprep.subr.mxu0 0.0
  %8055 = vmatpush1.msra.mxu0 0.0
  %8056 = vmatprep.subr.mxu0 0.0
  %8057 = vmatpush1.msra.mxu0 0.0
  %8058 = vmatprep.mubr.f32.mxu0 0.0
  %8059 = vmatmul.mubr.f32.gmra.mrb[0].mxu0 %v7989
  %v8060 = vpop.f32.mrb[0].mxu0
  %v8061 = vadd.f32 0.0, %v8060
  %v8062 = vpop.f32.mrb[0].mxu0
  %8063 = vdwg.mxu0
  %v8064 = vadd.f32 %v7982, %v8061
  %8065 = vmatprep.subr.mxu0 0.0
  %8066 = vmatpush1.msra.mxu0 %v4036
  %8067 = vmatprep.subr.mxu0 0.0
  %8068 = vmatpush1.msra.mxu0 %v4037
  %8069 = vmatprep.subr.mxu0 0.0
  %8070 = vmatpush1.msra.mxu0 %v4038
  %8071 = vmatprep.subr.mxu0 0.0
  %8072 = vmatpush1.msra.mxu0 %v4039
  %8073 = vmatprep.subr.mxu0 0.0
  %8074 = vmatpush1.msra.mxu0 %v4040
  %8075 = vmatprep.subr.mxu0 0.0
  %8076 = vmatpush1.msra.mxu0 %v4041
  %8077 = vmatprep.subr.mxu0 0.0
  %8078 = vmatpush1.msra.mxu0 %v4042
  %8079 = vmatprep.subr.mxu0 0.0
  %8080 = vmatpush1.msra.mxu0 %v4043
  %8081 = vmatprep.subr.mxu0 0.0
  %8082 = vmatpush1.msra.mxu0 %v4044
  %8083 = vmatprep.subr.mxu0 0.0
  %8084 = vmatpush1.msra.mxu0 %v4045
  %8085 = vmatprep.subr.mxu0 0.0
  %8086 = vmatpush1.msra.mxu0 0.0
  %8087 = vmatprep.subr.mxu0 0.0
  %8088 = vmatpush1.msra.mxu0 0.0
  %8089 = vmatprep.subr.mxu0 0.0
  %8090 = vmatpush1.msra.mxu0 0.0
  %8091 = vmatprep.subr.mxu0 0.0
  %8092 = vmatpush1.msra.mxu0 0.0
  %8093 = vmatprep.subr.mxu0 0.0
  %8094 = vmatpush1.msra.mxu0 0.0
  %8095 = vmatprep.subr.mxu0 0.0
  %8096 = vmatpush1.msra.mxu0 0.0
  %8097 = vmatprep.subr.mxu0 0.0
  %8098 = vmatpush1.msra.mxu0 0.0
  %8099 = vmatprep.subr.mxu0 0.0
  %8100 = vmatpush1.msra.mxu0 0.0
  %8101 = vmatprep.subr.mxu0 0.0
  %8102 = vmatpush1.msra.mxu0 0.0
  %8103 = vmatprep.subr.mxu0 0.0
  %8104 = vmatpush1.msra.mxu0 0.0
  %8105 = vmatprep.subr.mxu0 0.0
  %8106 = vmatpush1.msra.mxu0 0.0
  %8107 = vmatprep.subr.mxu0 0.0
  %8108 = vmatpush1.msra.mxu0 0.0
  %8109 = vmatprep.subr.mxu0 0.0
  %8110 = vmatpush1.msra.mxu0 0.0
  %8111 = vmatprep.subr.mxu0 0.0
  %8112 = vmatpush1.msra.mxu0 0.0
  %8113 = vmatprep.subr.mxu0 0.0
  %8114 = vmatpush1.msra.mxu0 0.0
  %8115 = vmatprep.subr.mxu0 0.0
  %8116 = vmatpush1.msra.mxu0 0.0
  %8117 = vmatprep.subr.mxu0 0.0
  %8118 = vmatpush1.msra.mxu0 0.0
  %8119 = vmatprep.subr.mxu0 0.0
  %8120 = vmatpush1.msra.mxu0 0.0
  %8121 = vmatprep.subr.mxu0 0.0
  %8122 = vmatpush1.msra.mxu0 0.0
  %8123 = vmatprep.subr.mxu0 0.0
  %8124 = vmatpush1.msra.mxu0 0.0
  %8125 = vmatprep.subr.mxu0 0.0
  %8126 = vmatpush1.msra.mxu0 0.0
  %8127 = vmatprep.subr.mxu0 0.0
  %8128 = vmatpush1.msra.mxu0 0.0
  %8129 = vmatprep.mubr.f32.mxu0 0.0
  %8130 = vmatmul.mubr.f32.gmra.mrb[0].mxu0 %v7093
  %v8131 = vpop.f32.mrb[0].mxu0
  %v8132 = vadd.f32 0.0, %v8131
  %v8133 = vpop.f32.mrb[0].mxu0
  %8134 = vmatprep.mubr.f32.mxu0 0.0
  %8135 = vmatmul.mubr.f32.gmra.mrb[0].mxu0 %v7096
  %v8136 = vpop.f32.mrb[0].mxu0
  %v8137 = vadd.f32 0.0, %v8136
  %v8138 = vpop.f32.mrb[0].mxu0
  %8139 = vmatprep.mubr.f32.mxu0 0.0
  %8140 = vmatmul.mubr.f32.gmra.mrb[0].mxu0 %v7099
  %v8141 = vpop.f32.mrb[0].mxu0
  %v8142 = vadd.f32 0.0, %v8141
  %v8143 = vpop.f32.mrb[0].mxu0
  %8144 = vmatprep.mubr.f32.mxu0 0.0
  %8145 = vmatmul.mubr.f32.gmra.mrb[0].mxu0 %v7102
  %v8146 = vpop.f32.mrb[0].mxu0
  %v8147 = vadd.f32 0.0, %v8146
  %v8148 = vpop.f32.mrb[0].mxu0
  %8149 = vmatprep.mubr.f32.mxu0 0.0
  %8150 = vmatmul.mubr.f32.gmra.mrb[0].mxu0 %v7105
  %v8151 = vpop.f32.mrb[0].mxu0
  %v8152 = vadd.f32 0.0, %v8151
  %v8153 = vpop.f32.mrb[0].mxu0
  %8154 = vmatprep.mubr.f32.mxu0 0.0
  %8155 = vmatmul.mubr.f32.gmra.mrb[0].mxu0 %v7108
  %v8156 = vpop.f32.mrb[0].mxu0
  %v8157 = vadd.f32 0.0, %v8156
  %v8158 = vpop.f32.mrb[0].mxu0
  %8159 = vmatprep.mubr.f32.mxu0 0.0
  %8160 = vmatmul.mubr.f32.gmra.mrb[0].mxu0 %v7111
  %v8161 = vpop.f32.mrb[0].mxu0
  %v8162 = vadd.f32 0.0, %v8161
  %v8163 = vpop.f32.mrb[0].mxu0
  %8164 = vmatprep.mubr.f32.mxu0 0.0
  %8165 = vmatmul.mubr.f32.gmra.mrb[0].mxu0 %v7114
  %v8166 = vpop.f32.mrb[0].mxu0
  %v8167 = vadd.f32 0.0, %v8166
  %v8168 = vpop.f32.mrb[0].mxu0
  %8169 = vdwg.mxu0
  %8170 = vmatprep.subr.mxu0 0.0
  %8171 = vmatpush1.msra.mxu0 %v4017
  %8172 = vmatprep.subr.mxu0 0.0
  %8173 = vmatpush1.msra.mxu0 %v4018
  %8174 = vmatprep.subr.mxu0 0.0
  %8175 = vmatpush1.msra.mxu0 %v4019
  %8176 = vmatprep.subr.mxu0 0.0
  %8177 = vmatpush1.msra.mxu0 %v4020
  %8178 = vmatprep.subr.mxu0 0.0
  %8179 = vmatpush1.msra.mxu0 %v4021
  %8180 = vmatprep.subr.mxu0 0.0
  %8181 = vmatpush1.msra.mxu0 %v4022
  %8182 = vmatprep.subr.mxu0 0.0
  %8183 = vmatpush1.msra.mxu0 %v4023
  %8184 = vmatprep.subr.mxu0 0.0
  %8185 = vmatpush1.msra.mxu0 %v4024
  %8186 = vmatprep.subr.mxu0 0.0
  %8187 = vmatpush1.msra.mxu0 %v4025
  %8188 = vmatprep.subr.mxu0 0.0
  %8189 = vmatpush1.msra.mxu0 %v4026
  %8190 = vmatprep.subr.mxu0 0.0
  %8191 = vmatpush1.msra.mxu0 0.0
  %8192 = vmatprep.subr.mxu0 0.0
  %8193 = vmatpush1.msra.mxu0 0.0
  %8194 = vmatprep.subr.mxu0 0.0
  %8195 = vmatpush1.msra.mxu0 0.0
  %8196 = vmatprep.subr.mxu0 0.0
  %8197 = vmatpush1.msra.mxu0 0.0
  %8198 = vmatprep.subr.mxu0 0.0
  %8199 = vmatpush1.msra.mxu0 0.0
  %8200 = vmatprep.subr.mxu0 0.0
  %8201 = vmatpush1.msra.mxu0 0.0
  %8202 = vmatprep.subr.mxu0 0.0
  %8203 = vmatpush1.msra.mxu0 0.0
  %8204 = vmatprep.subr.mxu0 0.0
  %8205 = vmatpush1.msra.mxu0 0.0
  %8206 = vmatprep.subr.mxu0 0.0
  %8207 = vmatpush1.msra.mxu0 0.0
  %8208 = vmatprep.subr.mxu0 0.0
  %8209 = vmatpush1.msra.mxu0 0.0
  %8210 = vmatprep.subr.mxu0 0.0
  %8211 = vmatpush1.msra.mxu0 0.0
  %8212 = vmatprep.subr.mxu0 0.0
  %8213 = vmatpush1.msra.mxu0 0.0
  %8214 = vmatprep.subr.mxu0 0.0
  %8215 = vmatpush1.msra.mxu0 0.0
  %8216 = vmatprep.subr.mxu0 0.0
  %8217 = vmatpush1.msra.mxu0 0.0
  %8218 = vmatprep.subr.mxu0 0.0
  %8219 = vmatpush1.msra.mxu0 0.0
  %8220 = vmatprep.subr.mxu0 0.0
  %8221 = vmatpush1.msra.mxu0 0.0
  %8222 = vmatprep.subr.mxu0 0.0
  %8223 = vmatpush1.msra.mxu0 0.0
  %8224 = vmatprep.subr.mxu0 0.0
  %8225 = vmatpush1.msra.mxu0 0.0
  %8226 = vmatprep.subr.mxu0 0.0
  %8227 = vmatpush1.msra.mxu0 0.0
  %8228 = vmatprep.subr.mxu0 0.0
  %8229 = vmatpush1.msra.mxu0 0.0
  %8230 = vmatprep.subr.mxu0 0.0
  %8231 = vmatpush1.msra.mxu0 0.0
  %8232 = vmatprep.subr.mxu0 0.0
  %8233 = vmatpush1.msra.mxu0 0.0
  %8234 = vmatprep.mubr.f32.mxu0 0.0
  %8235 = vmatmul.mubr.f32.gmra.mrb[0].mxu0 %v6273
  %v8236 = vpop.f32.mrb[0].mxu0
  %v8237 = vadd.f32 %v8132, %v8236
  %v8238 = vpop.f32.mrb[0].mxu0
  %8239 = vmatprep.mubr.f32.mxu0 0.0
  %8240 = vmatmul.mubr.f32.gmra.mrb[0].mxu0 %v6276
  %v8241 = vpop.f32.mrb[0].mxu0
  %v8242 = vadd.f32 %v8137, %v8241
  %v8243 = vpop.f32.mrb[0].mxu0
  %8244 = vmatprep.mubr.f32.mxu0 0.0
  %8245 = vmatmul.mubr.f32.gmra.mrb[0].mxu0 %v6279
  %v8246 = vpop.f32.mrb[0].mxu0
  %v8247 = vadd.f32 %v8142, %v8246
  %v8248 = vpop.f32.mrb[0].mxu0
  %8249 = vmatprep.mubr.f32.mxu0 0.0
  %8250 = vmatmul.mubr.f32.gmra.mrb[0].mxu0 %v6282
  %v8251 = vpop.f32.mrb[0].mxu0
  %v8252 = vadd.f32 %v8147, %v8251
  %v8253 = vpop.f32.mrb[0].mxu0
  %8254 = vmatprep.mubr.f32.mxu0 0.0
  %8255 = vmatmul.mubr.f32.gmra.mrb[0].mxu0 %v6285
  %v8256 = vpop.f32.mrb[0].mxu0
  %v8257 = vadd.f32 %v8152, %v8256
  %v8258 = vpop.f32.mrb[0].mxu0
  %8259 = vmatprep.mubr.f32.mxu0 0.0
  %8260 = vmatmul.mubr.f32.gmra.mrb[0].mxu0 %v6288
  %v8261 = vpop.f32.mrb[0].mxu0
  %v8262 = vadd.f32 %v8157, %v8261
  %v8263 = vpop.f32.mrb[0].mxu0
  %8264 = vmatprep.mubr.f32.mxu0 0.0
  %8265 = vmatmul.mubr.f32.gmra.mrb[0].mxu0 %v6291
  %v8266 = vpop.f32.mrb[0].mxu0
  %v8267 = vadd.f32 %v8162, %v8266
  %v8268 = vpop.f32.mrb[0].mxu0
  %8269 = vmatprep.mubr.f32.mxu0 0.0
  %8270 = vmatmul.mubr.f32.gmra.mrb[0].mxu0 %v6294
  %v8271 = vpop.f32.mrb[0].mxu0
  %v8272 = vadd.f32 %v8167, %v8271
  %v8273 = vpop.f32.mrb[0].mxu0
  %8274 = vdwg.mxu0
  %8275 = vmatprep.subr.mxu0 0.0
  %8276 = vmatpush1.msra.mxu0 %v4313
  %8277 = vmatprep.subr.mxu0 0.0
  %8278 = vmatpush1.msra.mxu0 %v4314
  %8279 = vmatprep.subr.mxu0 0.0
  %8280 = vmatpush1.msra.mxu0 %v4315
  %8281 = vmatprep.subr.mxu0 0.0
  %8282 = vmatpush1.msra.mxu0 %v4316
  %8283 = vmatprep.subr.mxu0 0.0
  %8284 = vmatpush1.msra.mxu0 %v4317
  %8285 = vmatprep.subr.mxu0 0.0
  %8286 = vmatpush1.msra.mxu0 %v4318
  %8287 = vmatprep.subr.mxu0 0.0
  %8288 = vmatpush1.msra.mxu0 %v4319
  %8289 = vmatprep.subr.mxu0 0.0
  %8290 = vmatpush1.msra.mxu0 %v4320
  %8291 = vmatprep.subr.mxu0 0.0
  %8292 = vmatpush1.msra.mxu0 %v4321
  %8293 = vmatprep.subr.mxu0 0.0
  %8294 = vmatpush1.msra.mxu0 %v4322
  %8295 = vmatprep.subr.mxu0 0.0
  %8296 = vmatpush1.msra.mxu0 0.0
  %8297 = vmatprep.subr.mxu0 0.0
  %8298 = vmatpush1.msra.mxu0 0.0
  %8299 = vmatprep.subr.mxu0 0.0
  %8300 = vmatpush1.msra.mxu0 0.0
  %8301 = vmatprep.subr.mxu0 0.0
  %8302 = vmatpush1.msra.mxu0 0.0
  %8303 = vmatprep.subr.mxu0 0.0
  %8304 = vmatpush1.msra.mxu0 0.0
  %8305 = vmatprep.subr.mxu0 0.0
  %8306 = vmatpush1.msra.mxu0 0.0
  %8307 = vmatprep.subr.mxu0 0.0
  %8308 = vmatpush1.msra.mxu0 0.0
  %8309 = vmatprep.subr.mxu0 0.0
  %8310 = vmatpush1.msra.mxu0 0.0
  %8311 = vmatprep.subr.mxu0 0.0
  %8312 = vmatpush1.msra.mxu0 0.0
  %8313 = vmatprep.subr.mxu0 0.0
  %8314 = vmatpush1.msra.mxu0 0.0
  %8315 = vmatprep.subr.mxu0 0.0
  %8316 = vmatpush1.msra.mxu0 0.0
  %8317 = vmatprep.subr.mxu0 0.0
  %8318 = vmatpush1.msra.mxu0 0.0
  %8319 = vmatprep.subr.mxu0 0.0
  %8320 = vmatpush1.msra.mxu0 0.0
  %8321 = vmatprep.subr.mxu0 0.0
  %8322 = vmatpush1.msra.mxu0 0.0
  %8323 = vmatprep.subr.mxu0 0.0
  %8324 = vmatpush1.msra.mxu0 0.0
  %8325 = vmatprep.subr.mxu0 0.0
  %8326 = vmatpush1.msra.mxu0 0.0
  %8327 = vmatprep.subr.mxu0 0.0
  %8328 = vmatpush1.msra.mxu0 0.0
  %8329 = vmatprep.subr.mxu0 0.0
  %8330 = vmatpush1.msra.mxu0 0.0
  %8331 = vmatprep.subr.mxu0 0.0
  %8332 = vmatpush1.msra.mxu0 0.0
  %8333 = vmatprep.subr.mxu0 0.0
  %8334 = vmatpush1.msra.mxu0 0.0
  %8335 = vmatprep.subr.mxu0 0.0
  %8336 = vmatpush1.msra.mxu0 0.0
  %8337 = vmatprep.subr.mxu0 0.0
  %8338 = vmatpush1.msra.mxu0 0.0
  %8339 = vmatprep.mubr.f32.mxu0 0.0
  %8340 = vmatmul.mubr.f32.gmra.mrb[0].mxu0 %v7577
  %v8341 = vpop.f32.mrb[0].mxu0
  %v8342 = vadd.f32 0.0, %v8341
  %v8343 = vpop.f32.mrb[0].mxu0
  %8344 = vmatprep.mubr.f32.mxu0 0.0
  %8345 = vmatmul.mubr.f32.gmra.mrb[0].mxu0 %v7580
  %v8346 = vpop.f32.mrb[0].mxu0
  %v8347 = vadd.f32 0.0, %v8346
  %v8348 = vpop.f32.mrb[0].mxu0
  %8349 = vmatprep.mubr.f32.mxu0 0.0
  %8350 = vmatmul.mubr.f32.gmra.mrb[0].mxu0 %v7583
  %v8351 = vpop.f32.mrb[0].mxu0
  %v8352 = vadd.f32 0.0, %v8351
  %v8353 = vpop.f32.mrb[0].mxu0
  %8354 = vmatprep.mubr.f32.mxu0 0.0
  %8355 = vmatmul.mubr.f32.gmra.mrb[0].mxu0 %v7586
  %v8356 = vpop.f32.mrb[0].mxu0
  %v8357 = vadd.f32 0.0, %v8356
  %v8358 = vpop.f32.mrb[0].mxu0
  %8359 = vmatprep.mubr.f32.mxu0 0.0
  %8360 = vmatmul.mubr.f32.gmra.mrb[0].mxu0 %v7589
  %v8361 = vpop.f32.mrb[0].mxu0
  %v8362 = vadd.f32 0.0, %v8361
  %v8363 = vpop.f32.mrb[0].mxu0
  %8364 = vmatprep.mubr.f32.mxu0 0.0
  %8365 = vmatmul.mubr.f32.gmra.mrb[0].mxu0 %v7592
  %v8366 = vpop.f32.mrb[0].mxu0
  %v8367 = vadd.f32 0.0, %v8366
  %v8368 = vpop.f32.mrb[0].mxu0
  %8369 = vmatprep.mubr.f32.mxu0 0.0
  %8370 = vmatmul.mubr.f32.gmra.mrb[0].mxu0 %v7595
  %v8371 = vpop.f32.mrb[0].mxu0
  %v8372 = vadd.f32 0.0, %v8371
  %v8373 = vpop.f32.mrb[0].mxu0
  %8374 = vmatprep.mubr.f32.mxu0 0.0
  %8375 = vmatmul.mubr.f32.gmra.mrb[0].mxu0 %v7598
  %v8376 = vpop.f32.mrb[0].mxu0
  %v8377 = vadd.f32 0.0, %v8376
  %v8378 = vpop.f32.mrb[0].mxu0
  %8379 = vdwg.mxu0
  %v8380 = vadd.f32 %v8237, %v8342
  %v8381 = vadd.f32 %v8242, %v8347
  %v8382 = vadd.f32 %v8247, %v8352
  %v8383 = vadd.f32 %v8252, %v8357
  %v8384 = vadd.f32 %v8257, %v8362
  %v8385 = vadd.f32 %v8262, %v8367
  %v8386 = vadd.f32 %v8267, %v8372
  %v8387 = vadd.f32 %v8272, %v8377
  %v8388 = vld [vmem:[#allocation2 + $0x240] sm:$0xff]
  %v8389 = vld [vmem:[#allocation2 + $0x248] sm:$0xff]
  %v8390 = vld [vmem:[#allocation2 + $0x250] sm:$0xff]
  %v8391 = vld [vmem:[#allocation2 + $0x258] sm:$0xff]
  %v8392 = vld [vmem:[#allocation2 + $0x260] sm:$0xff]
  %v8393 = vld [vmem:[#allocation2 + $0x268] sm:$0xff]
  %v8394 = vld [vmem:[#allocation2 + $0x270] sm:$0xff]
  %v8395 = vld [vmem:[#allocation2 + $0x278] sm:$0xff]
  %v8397 = vsel %vm3919, %v8388, 0
  %v8400 = vsel %vm3919, %v8389, 0
  %v8403 = vsel %vm3919, %v8390, 0
  %v8406 = vsel %vm3919, %v8391, 0
  %v8409 = vsel %vm3919, %v8392, 0
  %v8412 = vsel %vm3919, %v8393, 0
  %v8415 = vsel %vm3919, %v8394, 0
  %v8418 = vsel %vm3919, %v8395, 0
  %8420 = vmatprep.subr.mxu0 0.0
  %8421 = vmatpush1.msra.mxu0 %v4469
  %8422 = vmatprep.subr.mxu0 0.0
  %8423 = vmatpush1.msra.mxu0 %v4470
  %8424 = vmatprep.subr.mxu0 0.0
  %8425 = vmatpush1.msra.mxu0 %v4471
  %8426 = vmatprep.subr.mxu0 0.0
  %8427 = vmatpush1.msra.mxu0 %v4472
  %8428 = vmatprep.subr.mxu0 0.0
  %8429 = vmatpush1.msra.mxu0 %v4473
  %8430 = vmatprep.subr.mxu0 0.0
  %8431 = vmatpush1.msra.mxu0 %v4474
  %8432 = vmatprep.subr.mxu0 0.0
  %8433 = vmatpush1.msra.mxu0 %v4475
  %8434 = vmatprep.subr.mxu0 0.0
  %8435 = vmatpush1.msra.mxu0 %v4476
  %8436 = vmatprep.subr.mxu0 0.0
  %8437 = vmatpush1.msra.mxu0 %v4477
  %8438 = vmatprep.subr.mxu0 0.0
  %8439 = vmatpush1.msra.mxu0 %v4478
  %8440 = vmatprep.subr.mxu0 0.0
  %8441 = vmatpush1.msra.mxu0 0.0
  %8442 = vmatprep.subr.mxu0 0.0
  %8443 = vmatpush1.msra.mxu0 0.0
  %8444 = vmatprep.subr.mxu0 0.0
  %8445 = vmatpush1.msra.mxu0 0.0
  %8446 = vmatprep.subr.mxu0 0.0
  %8447 = vmatpush1.msra.mxu0 0.0
  %8448 = vmatprep.subr.mxu0 0.0
  %8449 = vmatpush1.msra.mxu0 0.0
  %8450 = vmatprep.subr.mxu0 0.0
  %8451 = vmatpush1.msra.mxu0 0.0
  %8452 = vmatprep.subr.mxu0 0.0
  %8453 = vmatpush1.msra.mxu0 0.0
  %8454 = vmatprep.subr.mxu0 0.0
  %8455 = vmatpush1.msra.mxu0 0.0
  %8456 = vmatprep.subr.mxu0 0.0
  %8457 = vmatpush1.msra.mxu0 0.0
  %8458 = vmatprep.subr.mxu0 0.0
  %8459 = vmatpush1.msra.mxu0 0.0
  %8460 = vmatprep.subr.mxu0 0.0
  %8461 = vmatpush1.msra.mxu0 0.0
  %8462 = vmatprep.subr.mxu0 0.0
  %8463 = vmatpush1.msra.mxu0 0.0
  %8464 = vmatprep.subr.mxu0 0.0
  %8465 = vmatpush1.msra.mxu0 0.0
  %8466 = vmatprep.subr.mxu0 0.0
  %8467 = vmatpush1.msra.mxu0 0.0
  %8468 = vmatprep.subr.mxu0 0.0
  %8469 = vmatpush1.msra.mxu0 0.0
  %8470 = vmatprep.subr.mxu0 0.0
  %8471 = vmatpush1.msra.mxu0 0.0
  %8472 = vmatprep.subr.mxu0 0.0
  %8473 = vmatpush1.msra.mxu0 0.0
  %8474 = vmatprep.subr.mxu0 0.0
  %8475 = vmatpush1.msra.mxu0 0.0
  %8476 = vmatprep.subr.mxu0 0.0
  %8477 = vmatpush1.msra.mxu0 0.0
  %8478 = vmatprep.subr.mxu0 0.0
  %8479 = vmatpush1.msra.mxu0 0.0
  %8480 = vmatprep.subr.mxu0 0.0
  %8481 = vmatpush1.msra.mxu0 0.0
  %8482 = vmatprep.subr.mxu0 0.0
  %8483 = vmatpush1.msra.mxu0 0.0
  %8484 = vmatprep.mubr.f32.mxu0 0.0
  %8485 = vmatmul.mubr.f32.gmra.mrb[0].mxu0 %v8397
  %v8486 = vpop.f32.mrb[0].mxu0
  %v8487 = vadd.f32 0.0, %v8486
  %v8488 = vpop.f32.mrb[0].mxu0
  %8489 = vmatprep.mubr.f32.mxu0 0.0
  %8490 = vmatmul.mubr.f32.gmra.mrb[0].mxu0 %v8400
  %v8491 = vpop.f32.mrb[0].mxu0
  %v8492 = vadd.f32 0.0, %v8491
  %v8493 = vpop.f32.mrb[0].mxu0
  %8494 = vmatprep.mubr.f32.mxu0 0.0
  %8495 = vmatmul.mubr.f32.gmra.mrb[0].mxu0 %v8403
  %v8496 = vpop.f32.mrb[0].mxu0
  %v8497 = vadd.f32 0.0, %v8496
  %v8498 = vpop.f32.mrb[0].mxu0
  %8499 = vmatprep.mubr.f32.mxu0 0.0
  %8500 = vmatmul.mubr.f32.gmra.mrb[0].mxu0 %v8406
  %v8501 = vpop.f32.mrb[0].mxu0
  %v8502 = vadd.f32 0.0, %v8501
  %v8503 = vpop.f32.mrb[0].mxu0
  %8504 = vmatprep.mubr.f32.mxu0 0.0
  %8505 = vmatmul.mubr.f32.gmra.mrb[0].mxu0 %v8409
  %v8506 = vpop.f32.mrb[0].mxu0
  %v8507 = vadd.f32 0.0, %v8506
  %v8508 = vpop.f32.mrb[0].mxu0
  %8509 = vmatprep.mubr.f32.mxu0 0.0
  %8510 = vmatmul.mubr.f32.gmra.mrb[0].mxu0 %v8412
  %v8511 = vpop.f32.mrb[0].mxu0
  %v8512 = vadd.f32 0.0, %v8511
  %v8513 = vpop.f32.mrb[0].mxu0
  %8514 = vmatprep.mubr.f32.mxu0 0.0
  %8515 = vmatmul.mubr.f32.gmra.mrb[0].mxu0 %v8415
  %v8516 = vpop.f32.mrb[0].mxu0
  %v8517 = vadd.f32 0.0, %v8516
  %v8518 = vpop.f32.mrb[0].mxu0
  %8519 = vmatprep.mubr.f32.mxu0 0.0
  %8520 = vmatmul.mubr.f32.gmra.mrb[0].mxu0 %v8418
  %v8521 = vpop.f32.mrb[0].mxu0
  %v8522 = vadd.f32 0.0, %v8521
  %v8523 = vpop.f32.mrb[0].mxu0
  %8524 = vdwg.mxu0
  %v8525 = vadd.f32 %v8380, %v8487
  %v8526 = vadd.f32 %v8381, %v8492
  %v8527 = vadd.f32 %v8382, %v8497
  %v8528 = vadd.f32 %v8383, %v8502
  %v8529 = vadd.f32 %v8384, %v8507
  %v8530 = vadd.f32 %v8385, %v8512
  %v8531 = vadd.f32 %v8386, %v8517
  %v8532 = vadd.f32 %v8387, %v8522
  %v8533 = vadd.f32 %v8525, %v4620
  %v8534 = vadd.f32 %v8526, %v4620
  %v8535 = vadd.f32 %v8527, %v4620
  %v8536 = vadd.f32 %v8528, %v4620
  %v8537 = vadd.f32 %v8529, %v4620
  %v8538 = vadd.f32 %v8530, %v4620
  %v8539 = vadd.f32 %v8531, %v4620
  %v8540 = vadd.f32 %v8532, %v4620
  %v8541 = vmax.f32 %v8533, 0.0
  %v8542 = vmax.f32 %v8534, 0.0
  %v8543 = vmax.f32 %v8535, 0.0
  %v8544 = vmax.f32 %v8536, 0.0
  %v8545 = vmax.f32 %v8537, 0.0
  %v8546 = vmax.f32 %v8538, 0.0
  %v8547 = vmax.f32 %v8539, 0.0
  %v8548 = vmax.f32 %v8540, 0.0
  %8549 = vmatprep.subr.mxu0 0.0
  %8550 = vmatpush1.msra.mxu0 %v4036
  %8551 = vmatprep.subr.mxu0 0.0
  %8552 = vmatpush1.msra.mxu0 %v4037
  %8553 = vmatprep.subr.mxu0 0.0
  %8554 = vmatpush1.msra.mxu0 %v4038
  %8555 = vmatprep.subr.mxu0 0.0
  %8556 = vmatpush1.msra.mxu0 %v4039
  %8557 = vmatprep.subr.mxu0 0.0
  %8558 = vmatpush1.msra.mxu0 %v4040
  %8559 = vmatprep.subr.mxu0 0.0
  %8560 = vmatpush1.msra.mxu0 %v4041
  %8561 = vmatprep.subr.mxu0 0.0
  %8562 = vmatpush1.msra.mxu0 %v4042
  %8563 = vmatprep.subr.mxu0 0.0
  %8564 = vmatpush1.msra.mxu0 %v4043
  %8565 = vmatprep.subr.mxu0 0.0
  %8566 = vmatpush1.msra.mxu0 %v4044
  %8567 = vmatprep.subr.mxu0 0.0
  %8568 = vmatpush1.msra.mxu0 %v4045
  %8569 = vmatprep.subr.mxu0 0.0
  %8570 = vmatpush1.msra.mxu0 0.0
  %8571 = vmatprep.subr.mxu0 0.0
  %8572 = vmatpush1.msra.mxu0 0.0
  %8573 = vmatprep.subr.mxu0 0.0
  %8574 = vmatpush1.msra.mxu0 0.0
  %8575 = vmatprep.subr.mxu0 0.0
  %8576 = vmatpush1.msra.mxu0 0.0
  %8577 = vmatprep.subr.mxu0 0.0
  %8578 = vmatpush1.msra.mxu0 0.0
  %8579 = vmatprep.subr.mxu0 0.0
  %8580 = vmatpush1.msra.mxu0 0.0
  %8581 = vmatprep.subr.mxu0 0.0
  %8582 = vmatpush1.msra.mxu0 0.0
  %8583 = vmatprep.subr.mxu0 0.0
  %8584 = vmatpush1.msra.mxu0 0.0
  %8585 = vmatprep.subr.mxu0 0.0
  %8586 = vmatpush1.msra.mxu0 0.0
  %8587 = vmatprep.subr.mxu0 0.0
  %8588 = vmatpush1.msra.mxu0 0.0
  %8589 = vmatprep.subr.mxu0 0.0
  %8590 = vmatpush1.msra.mxu0 0.0
  %8591 = vmatprep.subr.mxu0 0.0
  %8592 = vmatpush1.msra.mxu0 0.0
  %8593 = vmatprep.subr.mxu0 0.0
  %8594 = vmatpush1.msra.mxu0 0.0
  %8595 = vmatprep.subr.mxu0 0.0
  %8596 = vmatpush1.msra.mxu0 0.0
  %8597 = vmatprep.subr.mxu0 0.0
  %8598 = vmatpush1.msra.mxu0 0.0
  %8599 = vmatprep.subr.mxu0 0.0
  %8600 = vmatpush1.msra.mxu0 0.0
  %8601 = vmatprep.subr.mxu0 0.0
  %8602 = vmatpush1.msra.mxu0 0.0
  %8603 = vmatprep.subr.mxu0 0.0
  %8604 = vmatpush1.msra.mxu0 0.0
  %8605 = vmatprep.subr.mxu0 0.0
  %8606 = vmatpush1.msra.mxu0 0.0
  %8607 = vmatprep.subr.mxu0 0.0
  %8608 = vmatpush1.msra.mxu0 0.0
  %8609 = vmatprep.subr.mxu0 0.0
  %8610 = vmatpush1.msra.mxu0 0.0
  %8611 = vmatprep.subr.mxu0 0.0
  %8612 = vmatpush1.msra.mxu0 0.0
  %8613 = vmatprep.mubr.f32.mxu0 0.0
  %8614 = vmatmul.mubr.f32.gmra.mrb[0].mxu0 %v7577
  %v8615 = vpop.f32.mrb[0].mxu0
  %v8616 = vadd.f32 0.0, %v8615
  %v8617 = vpop.f32.mrb[0].mxu0
  %8618 = vmatprep.mubr.f32.mxu0 0.0
  %8619 = vmatmul.mubr.f32.gmra.mrb[0].mxu0 %v7580
  %v8620 = vpop.f32.mrb[0].mxu0
  %v8621 = vadd.f32 0.0, %v8620
  %v8622 = vpop.f32.mrb[0].mxu0
  %8623 = vmatprep.mubr.f32.mxu0 0.0
  %8624 = vmatmul.mubr.f32.gmra.mrb[0].mxu0 %v7583
  %v8625 = vpop.f32.mrb[0].mxu0
  %v8626 = vadd.f32 0.0, %v8625
  %v8627 = vpop.f32.mrb[0].mxu0
  %8628 = vmatprep.mubr.f32.mxu0 0.0
  %8629 = vmatmul.mubr.f32.gmra.mrb[0].mxu0 %v7586
  %v8630 = vpop.f32.mrb[0].mxu0
  %v8631 = vadd.f32 0.0, %v8630
  %v8632 = vpop.f32.mrb[0].mxu0
  %8633 = vmatprep.mubr.f32.mxu0 0.0
  %8634 = vmatmul.mubr.f32.gmra.mrb[0].mxu0 %v7589
  %v8635 = vpop.f32.mrb[0].mxu0
  %v8636 = vadd.f32 0.0, %v8635
  %v8637 = vpop.f32.mrb[0].mxu0
  %8638 = vmatprep.mubr.f32.mxu0 0.0
  %8639 = vmatmul.mubr.f32.gmra.mrb[0].mxu0 %v7592
  %v8640 = vpop.f32.mrb[0].mxu0
  %v8641 = vadd.f32 0.0, %v8640
  %v8642 = vpop.f32.mrb[0].mxu0
  %8643 = vmatprep.mubr.f32.mxu0 0.0
  %8644 = vmatmul.mubr.f32.gmra.mrb[0].mxu0 %v7595
  %v8645 = vpop.f32.mrb[0].mxu0
  %v8646 = vadd.f32 0.0, %v8645
  %v8647 = vpop.f32.mrb[0].mxu0
  %8648 = vmatprep.mubr.f32.mxu0 0.0
  %8649 = vmatmul.mubr.f32.gmra.mrb[0].mxu0 %v7598
  %v8650 = vpop.f32.mrb[0].mxu0
  %v8651 = vadd.f32 0.0, %v8650
  %v8652 = vpop.f32.mrb[0].mxu0
  %8653 = vdwg.mxu0
  %8654 = vmatprep.subr.mxu0 0.0
  %8655 = vmatpush1.msra.mxu0 %v4017
  %8656 = vmatprep.subr.mxu0 0.0
  %8657 = vmatpush1.msra.mxu0 %v4018
  %8658 = vmatprep.subr.mxu0 0.0
  %8659 = vmatpush1.msra.mxu0 %v4019
  %8660 = vmatprep.subr.mxu0 0.0
  %8661 = vmatpush1.msra.mxu0 %v4020
  %8662 = vmatprep.subr.mxu0 0.0
  %8663 = vmatpush1.msra.mxu0 %v4021
  %8664 = vmatprep.subr.mxu0 0.0
  %8665 = vmatpush1.msra.mxu0 %v4022
  %8666 = vmatprep.subr.mxu0 0.0
  %8667 = vmatpush1.msra.mxu0 %v4023
  %8668 = vmatprep.subr.mxu0 0.0
  %8669 = vmatpush1.msra.mxu0 %v4024
  %8670 = vmatprep.subr.mxu0 0.0
  %8671 = vmatpush1.msra.mxu0 %v4025
  %8672 = vmatprep.subr.mxu0 0.0
  %8673 = vmatpush1.msra.mxu0 %v4026
  %8674 = vmatprep.subr.mxu0 0.0
  %8675 = vmatpush1.msra.mxu0 0.0
  %8676 = vmatprep.subr.mxu0 0.0
  %8677 = vmatpush1.msra.mxu0 0.0
  %8678 = vmatprep.subr.mxu0 0.0
  %8679 = vmatpush1.msra.mxu0 0.0
  %8680 = vmatprep.subr.mxu0 0.0
  %8681 = vmatpush1.msra.mxu0 0.0
  %8682 = vmatprep.subr.mxu0 0.0
  %8683 = vmatpush1.msra.mxu0 0.0
  %8684 = vmatprep.subr.mxu0 0.0
  %8685 = vmatpush1.msra.mxu0 0.0
  %8686 = vmatprep.subr.mxu0 0.0
  %8687 = vmatpush1.msra.mxu0 0.0
  %8688 = vmatprep.subr.mxu0 0.0
  %8689 = vmatpush1.msra.mxu0 0.0
  %8690 = vmatprep.subr.mxu0 0.0
  %8691 = vmatpush1.msra.mxu0 0.0
  %8692 = vmatprep.subr.mxu0 0.0
  %8693 = vmatpush1.msra.mxu0 0.0
  %8694 = vmatprep.subr.mxu0 0.0
  %8695 = vmatpush1.msra.mxu0 0.0
  %8696 = vmatprep.subr.mxu0 0.0
  %8697 = vmatpush1.msra.mxu0 0.0
  %8698 = vmatprep.subr.mxu0 0.0
  %8699 = vmatpush1.msra.mxu0 0.0
  %8700 = vmatprep.subr.mxu0 0.0
  %8701 = vmatpush1.msra.mxu0 0.0
  %8702 = vmatprep.subr.mxu0 0.0
  %8703 = vmatpush1.msra.mxu0 0.0
  %8704 = vmatprep.subr.mxu0 0.0
  %8705 = vmatpush1.msra.mxu0 0.0
  %8706 = vmatprep.subr.mxu0 0.0
  %8707 = vmatpush1.msra.mxu0 0.0
  %8708 = vmatprep.subr.mxu0 0.0
  %8709 = vmatpush1.msra.mxu0 0.0
  %8710 = vmatprep.subr.mxu0 0.0
  %8711 = vmatpush1.msra.mxu0 0.0
  %8712 = vmatprep.subr.mxu0 0.0
  %8713 = vmatpush1.msra.mxu0 0.0
  %8714 = vmatprep.subr.mxu0 0.0
  %8715 = vmatpush1.msra.mxu0 0.0
  %8716 = vmatprep.subr.mxu0 0.0
  %8717 = vmatpush1.msra.mxu0 0.0
  %8718 = vmatprep.mubr.f32.mxu0 0.0
  %8719 = vmatmul.mubr.f32.gmra.mrb[0].mxu0 %v7093
  %v8720 = vpop.f32.mrb[0].mxu0
  %v8721 = vadd.f32 %v8616, %v8720
  %v8722 = vpop.f32.mrb[0].mxu0
  %8723 = vmatprep.mubr.f32.mxu0 0.0
  %8724 = vmatmul.mubr.f32.gmra.mrb[0].mxu0 %v7096
  %v8725 = vpop.f32.mrb[0].mxu0
  %v8726 = vadd.f32 %v8621, %v8725
  %v8727 = vpop.f32.mrb[0].mxu0
  %8728 = vmatprep.mubr.f32.mxu0 0.0
  %8729 = vmatmul.mubr.f32.gmra.mrb[0].mxu0 %v7099
  %v8730 = vpop.f32.mrb[0].mxu0
  %v8731 = vadd.f32 %v8626, %v8730
  %v8732 = vpop.f32.mrb[0].mxu0
  %8733 = vmatprep.mubr.f32.mxu0 0.0
  %8734 = vmatmul.mubr.f32.gmra.mrb[0].mxu0 %v7102
  %v8735 = vpop.f32.mrb[0].mxu0
  %v8736 = vadd.f32 %v8631, %v8735
  %v8737 = vpop.f32.mrb[0].mxu0
  %8738 = vmatprep.mubr.f32.mxu0 0.0
  %8739 = vmatmul.mubr.f32.gmra.mrb[0].mxu0 %v7105
  %v8740 = vpop.f32.mrb[0].mxu0
  %v8741 = vadd.f32 %v8636, %v8740
  %v8742 = vpop.f32.mrb[0].mxu0
  %8743 = vmatprep.mubr.f32.mxu0 0.0
  %8744 = vmatmul.mubr.f32.gmra.mrb[0].mxu0 %v7108
  %v8745 = vpop.f32.mrb[0].mxu0
  %v8746 = vadd.f32 %v8641, %v8745
  %v8747 = vpop.f32.mrb[0].mxu0
  %8748 = vmatprep.mubr.f32.mxu0 0.0
  %8749 = vmatmul.mubr.f32.gmra.mrb[0].mxu0 %v7111
  %v8750 = vpop.f32.mrb[0].mxu0
  %v8751 = vadd.f32 %v8646, %v8750
  %v8752 = vpop.f32.mrb[0].mxu0
  %8753 = vmatprep.mubr.f32.mxu0 0.0
  %8754 = vmatmul.mubr.f32.gmra.mrb[0].mxu0 %v7114
  %v8755 = vpop.f32.mrb[0].mxu0
  %v8756 = vadd.f32 %v8651, %v8755
  %v8757 = vpop.f32.mrb[0].mxu0
  %8758 = vdwg.mxu0
  %8759 = vmatprep.subr.mxu0 0.0
  %8760 = vmatpush1.msra.mxu0 %v4313
  %8761 = vmatprep.subr.mxu0 0.0
  %8762 = vmatpush1.msra.mxu0 %v4314
  %8763 = vmatprep.subr.mxu0 0.0
  %8764 = vmatpush1.msra.mxu0 %v4315
  %8765 = vmatprep.subr.mxu0 0.0
  %8766 = vmatpush1.msra.mxu0 %v4316
  %8767 = vmatprep.subr.mxu0 0.0
  %8768 = vmatpush1.msra.mxu0 %v4317
  %8769 = vmatprep.subr.mxu0 0.0
  %8770 = vmatpush1.msra.mxu0 %v4318
  %8771 = vmatprep.subr.mxu0 0.0
  %8772 = vmatpush1.msra.mxu0 %v4319
  %8773 = vmatprep.subr.mxu0 0.0
  %8774 = vmatpush1.msra.mxu0 %v4320
  %8775 = vmatprep.subr.mxu0 0.0
  %8776 = vmatpush1.msra.mxu0 %v4321
  %8777 = vmatprep.subr.mxu0 0.0
  %8778 = vmatpush1.msra.mxu0 %v4322
  %8779 = vmatprep.subr.mxu0 0.0
  %8780 = vmatpush1.msra.mxu0 0.0
  %8781 = vmatprep.subr.mxu0 0.0
  %8782 = vmatpush1.msra.mxu0 0.0
  %8783 = vmatprep.subr.mxu0 0.0
  %8784 = vmatpush1.msra.mxu0 0.0
  %8785 = vmatprep.subr.mxu0 0.0
  %8786 = vmatpush1.msra.mxu0 0.0
  %8787 = vmatprep.subr.mxu0 0.0
  %8788 = vmatpush1.msra.mxu0 0.0
  %8789 = vmatprep.subr.mxu0 0.0
  %8790 = vmatpush1.msra.mxu0 0.0
  %8791 = vmatprep.subr.mxu0 0.0
  %8792 = vmatpush1.msra.mxu0 0.0
  %8793 = vmatprep.subr.mxu0 0.0
  %8794 = vmatpush1.msra.mxu0 0.0
  %8795 = vmatprep.subr.mxu0 0.0
  %8796 = vmatpush1.msra.mxu0 0.0
  %8797 = vmatprep.subr.mxu0 0.0
  %8798 = vmatpush1.msra.mxu0 0.0
  %8799 = vmatprep.subr.mxu0 0.0
  %8800 = vmatpush1.msra.mxu0 0.0
  %8801 = vmatprep.subr.mxu0 0.0
  %8802 = vmatpush1.msra.mxu0 0.0
  %8803 = vmatprep.subr.mxu0 0.0
  %8804 = vmatpush1.msra.mxu0 0.0
  %8805 = vmatprep.subr.mxu0 0.0
  %8806 = vmatpush1.msra.mxu0 0.0
  %8807 = vmatprep.subr.mxu0 0.0
  %8808 = vmatpush1.msra.mxu0 0.0
  %8809 = vmatprep.subr.mxu0 0.0
  %8810 = vmatpush1.msra.mxu0 0.0
  %8811 = vmatprep.subr.mxu0 0.0
  %8812 = vmatpush1.msra.mxu0 0.0
  %8813 = vmatprep.subr.mxu0 0.0
  %8814 = vmatpush1.msra.mxu0 0.0
  %8815 = vmatprep.subr.mxu0 0.0
  %8816 = vmatpush1.msra.mxu0 0.0
  %8817 = vmatprep.subr.mxu0 0.0
  %8818 = vmatpush1.msra.mxu0 0.0
  %8819 = vmatprep.subr.mxu0 0.0
  %8820 = vmatpush1.msra.mxu0 0.0
  %8821 = vmatprep.subr.mxu0 0.0
  %8822 = vmatpush1.msra.mxu0 0.0
  %8823 = vmatprep.mubr.f32.mxu0 0.0
  %8824 = vmatmul.mubr.f32.gmra.mrb[0].mxu0 %v8397
  %v8825 = vpop.f32.mrb[0].mxu0
  %v8826 = vadd.f32 0.0, %v8825
  %v8827 = vpop.f32.mrb[0].mxu0
  %8828 = vmatprep.mubr.f32.mxu0 0.0
  %8829 = vmatmul.mubr.f32.gmra.mrb[0].mxu0 %v8400
  %v8830 = vpop.f32.mrb[0].mxu0
  %v8831 = vadd.f32 0.0, %v8830
  %v8832 = vpop.f32.mrb[0].mxu0
  %8833 = vmatprep.mubr.f32.mxu0 0.0
  %8834 = vmatmul.mubr.f32.gmra.mrb[0].mxu0 %v8403
  %v8835 = vpop.f32.mrb[0].mxu0
  %v8836 = vadd.f32 0.0, %v8835
  %v8837 = vpop.f32.mrb[0].mxu0
  %8838 = vmatprep.mubr.f32.mxu0 0.0
  %8839 = vmatmul.mubr.f32.gmra.mrb[0].mxu0 %v8406
  %v8840 = vpop.f32.mrb[0].mxu0
  %v8841 = vadd.f32 0.0, %v8840
  %v8842 = vpop.f32.mrb[0].mxu0
  %8843 = vmatprep.mubr.f32.mxu0 0.0
  %8844 = vmatmul.mubr.f32.gmra.mrb[0].mxu0 %v8409
  %v8845 = vpop.f32.mrb[0].mxu0
  %v8846 = vadd.f32 0.0, %v8845
  %v8847 = vpop.f32.mrb[0].mxu0
  %8848 = vmatprep.mubr.f32.mxu0 0.0
  %8849 = vmatmul.mubr.f32.gmra.mrb[0].mxu0 %v8412
  %v8850 = vpop.f32.mrb[0].mxu0
  %v8851 = vadd.f32 0.0, %v8850
  %v8852 = vpop.f32.mrb[0].mxu0
  %8853 = vmatprep.mubr.f32.mxu0 0.0
  %8854 = vmatmul.mubr.f32.gmra.mrb[0].mxu0 %v8415
  %v8855 = vpop.f32.mrb[0].mxu0
  %v8856 = vadd.f32 0.0, %v8855
  %v8857 = vpop.f32.mrb[0].mxu0
  %8858 = vmatprep.mubr.f32.mxu0 0.0
  %8859 = vmatmul.mubr.f32.gmra.mrb[0].mxu0 %v8418
  %v8860 = vpop.f32.mrb[0].mxu0
  %v8861 = vadd.f32 0.0, %v8860
  %v8862 = vpop.f32.mrb[0].mxu0
  %8863 = vdwg.mxu0
  %v8864 = vadd.f32 %v8721, %v8826
  %v8865 = vadd.f32 %v8726, %v8831
  %v8866 = vadd.f32 %v8731, %v8836
  %v8867 = vadd.f32 %v8736, %v8841
  %v8868 = vadd.f32 %v8741, %v8846
  %v8869 = vadd.f32 %v8746, %v8851
  %v8870 = vadd.f32 %v8751, %v8856
  %v8871 = vadd.f32 %v8756, %v8861
  %v8872 = vld [vmem:[#allocation2 + $0x280] sm:$0xff]
  %v8873 = vld [vmem:[#allocation2 + $0x288] sm:$0xff]
  %v8874 = vld [vmem:[#allocation2 + $0x290] sm:$0xff]
  %v8875 = vld [vmem:[#allocation2 + $0x298] sm:$0xff]
  %v8876 = vld [vmem:[#allocation2 + $0x2a0] sm:$0xff]
  %v8877 = vld [vmem:[#allocation2 + $0x2a8] sm:$0xff]
  %v8878 = vld [vmem:[#allocation2 + $0x2b0] sm:$0xff]
  %v8879 = vld [vmem:[#allocation2 + $0x2b8] sm:$0xff]
  %v8881 = vsel %vm3919, %v8872, 0
  %v8884 = vsel %vm3919, %v8873, 0
  %v8887 = vsel %vm3919, %v8874, 0
  %v8890 = vsel %vm3919, %v8875, 0
  %v8893 = vsel %vm3919, %v8876, 0
  %v8896 = vsel %vm3919, %v8877, 0
  %v8899 = vsel %vm3919, %v8878, 0
  %v8902 = vsel %vm3919, %v8879, 0
  %8904 = vmatprep.subr.mxu0 0.0
  %8905 = vmatpush1.msra.mxu0 %v4469
  %8906 = vmatprep.subr.mxu0 0.0
  %8907 = vmatpush1.msra.mxu0 %v4470
  %8908 = vmatprep.subr.mxu0 0.0
  %8909 = vmatpush1.msra.mxu0 %v4471
  %8910 = vmatprep.subr.mxu0 0.0
  %8911 = vmatpush1.msra.mxu0 %v4472
  %8912 = vmatprep.subr.mxu0 0.0
  %8913 = vmatpush1.msra.mxu0 %v4473
  %8914 = vmatprep.subr.mxu0 0.0
  %8915 = vmatpush1.msra.mxu0 %v4474
  %8916 = vmatprep.subr.mxu0 0.0
  %8917 = vmatpush1.msra.mxu0 %v4475
  %8918 = vmatprep.subr.mxu0 0.0
  %8919 = vmatpush1.msra.mxu0 %v4476
  %8920 = vmatprep.subr.mxu0 0.0
  %8921 = vmatpush1.msra.mxu0 %v4477
  %8922 = vmatprep.subr.mxu0 0.0
  %8923 = vmatpush1.msra.mxu0 %v4478
  %8924 = vmatprep.subr.mxu0 0.0
  %8925 = vmatpush1.msra.mxu0 0.0
  %8926 = vmatprep.subr.mxu0 0.0
  %8927 = vmatpush1.msra.mxu0 0.0
  %8928 = vmatprep.subr.mxu0 0.0
  %8929 = vmatpush1.msra.mxu0 0.0
  %8930 = vmatprep.subr.mxu0 0.0
  %8931 = vmatpush1.msra.mxu0 0.0
  %8932 = vmatprep.subr.mxu0 0.0
  %8933 = vmatpush1.msra.mxu0 0.0
  %8934 = vmatprep.subr.mxu0 0.0
  %8935 = vmatpush1.msra.mxu0 0.0
  %8936 = vmatprep.subr.mxu0 0.0
  %8937 = vmatpush1.msra.mxu0 0.0
  %8938 = vmatprep.subr.mxu0 0.0
  %8939 = vmatpush1.msra.mxu0 0.0
  %8940 = vmatprep.subr.mxu0 0.0
  %8941 = vmatpush1.msra.mxu0 0.0
  %8942 = vmatprep.subr.mxu0 0.0
  %8943 = vmatpush1.msra.mxu0 0.0
  %8944 = vmatprep.subr.mxu0 0.0
  %8945 = vmatpush1.msra.mxu0 0.0
  %8946 = vmatprep.subr.mxu0 0.0
  %8947 = vmatpush1.msra.mxu0 0.0
  %8948 = vmatprep.subr.mxu0 0.0
  %8949 = vmatpush1.msra.mxu0 0.0
  %8950 = vmatprep.subr.mxu0 0.0
  %8951 = vmatpush1.msra.mxu0 0.0
  %8952 = vmatprep.subr.mxu0 0.0
  %8953 = vmatpush1.msra.mxu0 0.0
  %8954 = vmatprep.subr.mxu0 0.0
  %8955 = vmatpush1.msra.mxu0 0.0
  %8956 = vmatprep.subr.mxu0 0.0
  %8957 = vmatpush1.msra.mxu0 0.0
  %8958 = vmatprep.subr.mxu0 0.0
  %8959 = vmatpush1.msra.mxu0 0.0
  %8960 = vmatprep.subr.mxu0 0.0
  %8961 = vmatpush1.msra.mxu0 0.0
  %8962 = vmatprep.subr.mxu0 0.0
  %8963 = vmatpush1.msra.mxu0 0.0
  %8964 = vmatprep.subr.mxu0 0.0
  %8965 = vmatpush1.msra.mxu0 0.0
  %8966 = vmatprep.subr.mxu0 0.0
  %8967 = vmatpush1.msra.mxu0 0.0
  %8968 = vmatprep.mubr.f32.mxu0 0.0
  %8969 = vmatmul.mubr.f32.gmra.mrb[0].mxu0 %v8881
  %v8970 = vpop.f32.mrb[0].mxu0
  %v8971 = vadd.f32 0.0, %v8970
  %v8972 = vpop.f32.mrb[0].mxu0
  %8973 = vmatprep.mubr.f32.mxu0 0.0
  %8974 = vmatmul.mubr.f32.gmra.mrb[0].mxu0 %v8884
  %v8975 = vpop.f32.mrb[0].mxu0
  %v8976 = vadd.f32 0.0, %v8975
  %v8977 = vpop.f32.mrb[0].mxu0
  %8978 = vmatprep.mubr.f32.mxu0 0.0
  %8979 = vmatmul.mubr.f32.gmra.mrb[0].mxu0 %v8887
  %v8980 = vpop.f32.mrb[0].mxu0
  %v8981 = vadd.f32 0.0, %v8980
  %v8982 = vpop.f32.mrb[0].mxu0
  %8983 = vmatprep.mubr.f32.mxu0 0.0
  %8984 = vmatmul.mubr.f32.gmra.mrb[0].mxu0 %v8890
  %v8985 = vpop.f32.mrb[0].mxu0
  %v8986 = vadd.f32 0.0, %v8985
  %v8987 = vpop.f32.mrb[0].mxu0
  %8988 = vmatprep.mubr.f32.mxu0 0.0
  %8989 = vmatmul.mubr.f32.gmra.mrb[0].mxu0 %v8893
  %v8990 = vpop.f32.mrb[0].mxu0
  %v8991 = vadd.f32 0.0, %v8990
  %v8992 = vpop.f32.mrb[0].mxu0
  %8993 = vmatprep.mubr.f32.mxu0 0.0
  %8994 = vmatmul.mubr.f32.gmra.mrb[0].mxu0 %v8896
  %v8995 = vpop.f32.mrb[0].mxu0
  %v8996 = vadd.f32 0.0, %v8995
  %v8997 = vpop.f32.mrb[0].mxu0
  %8998 = vmatprep.mubr.f32.mxu0 0.0
  %8999 = vmatmul.mubr.f32.gmra.mrb[0].mxu0 %v8899
  %v9000 = vpop.f32.mrb[0].mxu0
  %v9001 = vadd.f32 0.0, %v9000
  %v9002 = vpop.f32.mrb[0].mxu0
  %9003 = vmatprep.mubr.f32.mxu0 0.0
  %9004 = vmatmul.mubr.f32.gmra.mrb[0].mxu0 %v8902
  %v9005 = vpop.f32.mrb[0].mxu0
  %v9006 = vadd.f32 0.0, %v9005
  %v9007 = vpop.f32.mrb[0].mxu0
  %9008 = vdwg.mxu0
  %v9009 = vadd.f32 %v8864, %v8971
  %v9010 = vadd.f32 %v8865, %v8976
  %v9011 = vadd.f32 %v8866, %v8981
  %v9012 = vadd.f32 %v8867, %v8986
  %v9013 = vadd.f32 %v8868, %v8991
  %v9014 = vadd.f32 %v8869, %v8996
  %v9015 = vadd.f32 %v8870, %v9001
  %v9016 = vadd.f32 %v8871, %v9006
  %v9017 = vadd.f32 %v9009, %v4620
  %v9018 = vadd.f32 %v9010, %v4620
  %v9019 = vadd.f32 %v9011, %v4620
  %v9020 = vadd.f32 %v9012, %v4620
  %v9021 = vadd.f32 %v9013, %v4620
  %v9022 = vadd.f32 %v9014, %v4620
  %v9023 = vadd.f32 %v9015, %v4620
  %v9024 = vadd.f32 %v9016, %v4620
  %v9025 = vmax.f32 %v9017, 0.0
  %v9026 = vmax.f32 %v9018, 0.0
  %v9027 = vmax.f32 %v9019, 0.0
  %v9028 = vmax.f32 %v9020, 0.0
  %v9029 = vmax.f32 %v9021, 0.0
  %v9030 = vmax.f32 %v9022, 0.0
  %v9031 = vmax.f32 %v9023, 0.0
  %v9032 = vmax.f32 %v9024, 0.0
  %v9033 = vmax.f32 %v8541, %v9025
  %v9034 = vmax.f32 %v8542, %v9026
  %v9035 = vmax.f32 %v8543, %v9027
  %v9036 = vmax.f32 %v8544, %v9028
  %v9037 = vmax.f32 %v8545, %v9029
  %v9038 = vmax.f32 %v8546, %v9030
  %v9039 = vmax.f32 %v8547, %v9031
  %v9040 = vmax.f32 %v8548, %v9032
  %v9041 = vmax.f32 %v9033, %v9034
  %s9042 = scalar_lea.vmem %s5, 288
  %v9043 = vld [vmem:[%s9042] sm:$0xff]
  %v9044 = vld [vmem:[%s9042 + $0x8] sm:$0xff]
  %v9045 = vld [vmem:[%s9042 + $0x10] sm:$0xf]
  %v9047 = vsel %vm5139, %v9041, 0
  %v9050 = vsel %vm5143, %v9045, 0
  %9052 = vmatprep.subr.mxu0 0.0
  %9053 = vmatpush1.msra.mxu0 %v9043
  %9054 = vmatprep.subr.mxu0 0.0
  %9055 = vmatpush1.msra.mxu0 %v9044
  %9056 = vmatprep.subr.mxu0 0.0
  %9057 = vmatpush1.msra.mxu0 %v9050
  %9058 = vmatprep.subr.mxu0 0.0
  %9059 = vmatpush1.msra.mxu0 0.0
  %9060 = vmatprep.subr.mxu0 0.0
  %9061 = vmatpush1.msra.mxu0 0.0
  %9062 = vmatprep.subr.mxu0 0.0
  %9063 = vmatpush1.msra.mxu0 0.0
  %9064 = vmatprep.subr.mxu0 0.0
  %9065 = vmatpush1.msra.mxu0 0.0
  %9066 = vmatprep.subr.mxu0 0.0
  %9067 = vmatpush1.msra.mxu0 0.0
  %9068 = vmatprep.subr.mxu0 0.0
  %9069 = vmatpush1.msra.mxu0 0.0
  %9070 = vmatprep.subr.mxu0 0.0
  %9071 = vmatpush1.msra.mxu0 0.0
  %9072 = vmatprep.subr.mxu0 0.0
  %9073 = vmatpush1.msra.mxu0 0.0
  %9074 = vmatprep.subr.mxu0 0.0
  %9075 = vmatpush1.msra.mxu0 0.0
  %9076 = vmatprep.subr.mxu0 0.0
  %9077 = vmatpush1.msra.mxu0 0.0
  %9078 = vmatprep.subr.mxu0 0.0
  %9079 = vmatpush1.msra.mxu0 0.0
  %9080 = vmatprep.subr.mxu0 0.0
  %9081 = vmatpush1.msra.mxu0 0.0
  %9082 = vmatprep.subr.mxu0 0.0
  %9083 = vmatpush1.msra.mxu0 0.0
  %9084 = vmatprep.subr.mxu0 0.0
  %9085 = vmatpush1.msra.mxu0 0.0
  %9086 = vmatprep.subr.mxu0 0.0
  %9087 = vmatpush1.msra.mxu0 0.0
  %9088 = vmatprep.subr.mxu0 0.0
  %9089 = vmatpush1.msra.mxu0 0.0
  %9090 = vmatprep.subr.mxu0 0.0
  %9091 = vmatpush1.msra.mxu0 0.0
  %9092 = vmatprep.subr.mxu0 0.0
  %9093 = vmatpush1.msra.mxu0 0.0
  %9094 = vmatprep.subr.mxu0 0.0
  %9095 = vmatpush1.msra.mxu0 0.0
  %9096 = vmatprep.subr.mxu0 0.0
  %9097 = vmatpush1.msra.mxu0 0.0
  %9098 = vmatprep.subr.mxu0 0.0
  %9099 = vmatpush1.msra.mxu0 0.0
  %9100 = vmatprep.subr.mxu0 0.0
  %9101 = vmatpush1.msra.mxu0 0.0
  %9102 = vmatprep.subr.mxu0 0.0
  %9103 = vmatpush1.msra.mxu0 0.0
  %9104 = vmatprep.subr.mxu0 0.0
  %9105 = vmatpush1.msra.mxu0 0.0
  %9106 = vmatprep.subr.mxu0 0.0
  %9107 = vmatpush1.msra.mxu0 0.0
  %9108 = vmatprep.subr.mxu0 0.0
  %9109 = vmatpush1.msra.mxu0 0.0
  %9110 = vmatprep.subr.mxu0 0.0
  %9111 = vmatpush1.msra.mxu0 0.0
  %9112 = vmatprep.subr.mxu0 0.0
  %9113 = vmatpush1.msra.mxu0 0.0
  %9114 = vmatprep.subr.mxu0 0.0
  %9115 = vmatpush1.msra.mxu0 0.0
  %9116 = vmatprep.mubr.f32.mxu0 0.0
  %9117 = vmatmul.mubr.f32.gmra.mrb[0].mxu0 %v9047
  %v9118 = vpop.f32.mrb[0].mxu0
  %v9119 = vadd.f32 0.0, %v9118
  %v9120 = vpop.f32.mrb[0].mxu0
  %9121 = vdwg.mxu0
  %v9122 = vadd.f32 %v8064, %v9119
  %v9123 = vmax.f32 %v9035, %v9036
  %s9124 = scalar_lea.vmem %s5, 312
  %v9125 = vld [vmem:[%s9124] sm:$0xff]
  %v9126 = vld [vmem:[%s9124 + $0x8] sm:$0xff]
  %v9127 = vld [vmem:[%s9124 + $0x10] sm:$0xf]
  %v9129 = vsel %vm5139, %v9123, 0
  %v9132 = vsel %vm5143, %v9127, 0
  %9134 = vmatprep.subr.mxu0 0.0
  %9135 = vmatpush1.msra.mxu0 %v9125
  %9136 = vmatprep.subr.mxu0 0.0
  %9137 = vmatpush1.msra.mxu0 %v9126
  %9138 = vmatprep.subr.mxu0 0.0
  %9139 = vmatpush1.msra.mxu0 %v9132
  %9140 = vmatprep.subr.mxu0 0.0
  %9141 = vmatpush1.msra.mxu0 0.0
  %9142 = vmatprep.subr.mxu0 0.0
  %9143 = vmatpush1.msra.mxu0 0.0
  %9144 = vmatprep.subr.mxu0 0.0
  %9145 = vmatpush1.msra.mxu0 0.0
  %9146 = vmatprep.subr.mxu0 0.0
  %9147 = vmatpush1.msra.mxu0 0.0
  %9148 = vmatprep.subr.mxu0 0.0
  %9149 = vmatpush1.msra.mxu0 0.0
  %9150 = vmatprep.subr.mxu0 0.0
  %9151 = vmatpush1.msra.mxu0 0.0
  %9152 = vmatprep.subr.mxu0 0.0
  %9153 = vmatpush1.msra.mxu0 0.0
  %9154 = vmatprep.subr.mxu0 0.0
  %9155 = vmatpush1.msra.mxu0 0.0
  %9156 = vmatprep.subr.mxu0 0.0
  %9157 = vmatpush1.msra.mxu0 0.0
  %9158 = vmatprep.subr.mxu0 0.0
  %9159 = vmatpush1.msra.mxu0 0.0
  %9160 = vmatprep.subr.mxu0 0.0
  %9161 = vmatpush1.msra.mxu0 0.0
  %9162 = vmatprep.subr.mxu0 0.0
  %9163 = vmatpush1.msra.mxu0 0.0
  %9164 = vmatprep.subr.mxu0 0.0
  %9165 = vmatpush1.msra.mxu0 0.0
  %9166 = vmatprep.subr.mxu0 0.0
  %9167 = vmatpush1.msra.mxu0 0.0
  %9168 = vmatprep.subr.mxu0 0.0
  %9169 = vmatpush1.msra.mxu0 0.0
  %9170 = vmatprep.subr.mxu0 0.0
  %9171 = vmatpush1.msra.mxu0 0.0
  %9172 = vmatprep.subr.mxu0 0.0
  %9173 = vmatpush1.msra.mxu0 0.0
  %9174 = vmatprep.subr.mxu0 0.0
  %9175 = vmatpush1.msra.mxu0 0.0
  %9176 = vmatprep.subr.mxu0 0.0
  %9177 = vmatpush1.msra.mxu0 0.0
  %9178 = vmatprep.subr.mxu0 0.0
  %9179 = vmatpush1.msra.mxu0 0.0
  %9180 = vmatprep.subr.mxu0 0.0
  %9181 = vmatpush1.msra.mxu0 0.0
  %9182 = vmatprep.subr.mxu0 0.0
  %9183 = vmatpush1.msra.mxu0 0.0
  %9184 = vmatprep.subr.mxu0 0.0
  %9185 = vmatpush1.msra.mxu0 0.0
  %9186 = vmatprep.subr.mxu0 0.0
  %9187 = vmatpush1.msra.mxu0 0.0
  %9188 = vmatprep.subr.mxu0 0.0
  %9189 = vmatpush1.msra.mxu0 0.0
  %9190 = vmatprep.subr.mxu0 0.0
  %9191 = vmatpush1.msra.mxu0 0.0
  %9192 = vmatprep.subr.mxu0 0.0
  %9193 = vmatpush1.msra.mxu0 0.0
  %9194 = vmatprep.subr.mxu0 0.0
  %9195 = vmatpush1.msra.mxu0 0.0
  %9196 = vmatprep.subr.mxu0 0.0
  %9197 = vmatpush1.msra.mxu0 0.0
  %9198 = vmatprep.mubr.f32.mxu0 0.0
  %9199 = vmatmul.mubr.f32.gmra.mrb[0].mxu0 %v9129
  %v9200 = vpop.f32.mrb[0].mxu0
  %v9201 = vadd.f32 0.0, %v9200
  %v9202 = vpop.f32.mrb[0].mxu0
  %9203 = vdwg.mxu0
  %v9204 = vadd.f32 %v9122, %v9201
  %v9205 = vmax.f32 %v9037, %v9038
  %s9206 = scalar_lea.vmem %s5, 336
  %v9207 = vld [vmem:[%s9206] sm:$0xff]
  %v9208 = vld [vmem:[%s9206 + $0x8] sm:$0xff]
  %v9209 = vld [vmem:[%s9206 + $0x10] sm:$0xf]
  %v9211 = vsel %vm5139, %v9205, 0
  %v9214 = vsel %vm5143, %v9209, 0
  %9216 = vmatprep.subr.mxu0 0.0
  %9217 = vmatpush1.msra.mxu0 %v9207
  %9218 = vmatprep.subr.mxu0 0.0
  %9219 = vmatpush1.msra.mxu0 %v9208
  %9220 = vmatprep.subr.mxu0 0.0
  %9221 = vmatpush1.msra.mxu0 %v9214
  %9222 = vmatprep.subr.mxu0 0.0
  %9223 = vmatpush1.msra.mxu0 0.0
  %9224 = vmatprep.subr.mxu0 0.0
  %9225 = vmatpush1.msra.mxu0 0.0
  %9226 = vmatprep.subr.mxu0 0.0
  %9227 = vmatpush1.msra.mxu0 0.0
  %9228 = vmatprep.subr.mxu0 0.0
  %9229 = vmatpush1.msra.mxu0 0.0
  %9230 = vmatprep.subr.mxu0 0.0
  %9231 = vmatpush1.msra.mxu0 0.0
  %9232 = vmatprep.subr.mxu0 0.0
  %9233 = vmatpush1.msra.mxu0 0.0
  %9234 = vmatprep.subr.mxu0 0.0
  %9235 = vmatpush1.msra.mxu0 0.0
  %9236 = vmatprep.subr.mxu0 0.0
  %9237 = vmatpush1.msra.mxu0 0.0
  %9238 = vmatprep.subr.mxu0 0.0
  %9239 = vmatpush1.msra.mxu0 0.0
  %9240 = vmatprep.subr.mxu0 0.0
  %9241 = vmatpush1.msra.mxu0 0.0
  %9242 = vmatprep.subr.mxu0 0.0
  %9243 = vmatpush1.msra.mxu0 0.0
  %9244 = vmatprep.subr.mxu0 0.0
  %9245 = vmatpush1.msra.mxu0 0.0
  %9246 = vmatprep.subr.mxu0 0.0
  %9247 = vmatpush1.msra.mxu0 0.0
  %9248 = vmatprep.subr.mxu0 0.0
  %9249 = vmatpush1.msra.mxu0 0.0
  %9250 = vmatprep.subr.mxu0 0.0
  %9251 = vmatpush1.msra.mxu0 0.0
  %9252 = vmatprep.subr.mxu0 0.0
  %9253 = vmatpush1.msra.mxu0 0.0
  %9254 = vmatprep.subr.mxu0 0.0
  %9255 = vmatpush1.msra.mxu0 0.0
  %9256 = vmatprep.subr.mxu0 0.0
  %9257 = vmatpush1.msra.mxu0 0.0
  %9258 = vmatprep.subr.mxu0 0.0
  %9259 = vmatpush1.msra.mxu0 0.0
  %9260 = vmatprep.subr.mxu0 0.0
  %9261 = vmatpush1.msra.mxu0 0.0
  %9262 = vmatprep.subr.mxu0 0.0
  %9263 = vmatpush1.msra.mxu0 0.0
  %9264 = vmatprep.subr.mxu0 0.0
  %9265 = vmatpush1.msra.mxu0 0.0
  %9266 = vmatprep.subr.mxu0 0.0
  %9267 = vmatpush1.msra.mxu0 0.0
  %9268 = vmatprep.subr.mxu0 0.0
  %9269 = vmatpush1.msra.mxu0 0.0
  %9270 = vmatprep.subr.mxu0 0.0
  %9271 = vmatpush1.msra.mxu0 0.0
  %9272 = vmatprep.subr.mxu0 0.0
  %9273 = vmatpush1.msra.mxu0 0.0
  %9274 = vmatprep.subr.mxu0 0.0
  %9275 = vmatpush1.msra.mxu0 0.0
  %9276 = vmatprep.subr.mxu0 0.0
  %9277 = vmatpush1.msra.mxu0 0.0
  %9278 = vmatprep.subr.mxu0 0.0
  %9279 = vmatpush1.msra.mxu0 0.0
  %9280 = vmatprep.mubr.f32.mxu0 0.0
  %9281 = vmatmul.mubr.f32.gmra.mrb[0].mxu0 %v9211
  %v9282 = vpop.f32.mrb[0].mxu0
  %v9283 = vadd.f32 0.0, %v9282
  %v9284 = vpop.f32.mrb[0].mxu0
  %9285 = vdwg.mxu0
  %v9286 = vadd.f32 %v9204, %v9283
  %v9287 = vmax.f32 %v9039, %v9040
  %s9288 = scalar_lea.vmem %s5, 360
  %v9289 = vld [vmem:[%s9288] sm:$0xff]
  %v9290 = vld [vmem:[%s9288 + $0x8] sm:$0xff]
  %v9291 = vld [vmem:[%s9288 + $0x10] sm:$0xf]
  %v9293 = vsel %vm5139, %v9287, 0
  %v9296 = vsel %vm5143, %v9291, 0
  %9298 = vmatprep.subr.mxu0 0.0
  %9299 = vmatpush1.msra.mxu0 %v9289
  %9300 = vmatprep.subr.mxu0 0.0
  %9301 = vmatpush1.msra.mxu0 %v9290
  %9302 = vmatprep.subr.mxu0 0.0
  %9303 = vmatpush1.msra.mxu0 %v9296
  %9304 = vmatprep.subr.mxu0 0.0
  %9305 = vmatpush1.msra.mxu0 0.0
  %9306 = vmatprep.subr.mxu0 0.0
  %9307 = vmatpush1.msra.mxu0 0.0
  %9308 = vmatprep.subr.mxu0 0.0
  %9309 = vmatpush1.msra.mxu0 0.0
  %9310 = vmatprep.subr.mxu0 0.0
  %9311 = vmatpush1.msra.mxu0 0.0
  %9312 = vmatprep.subr.mxu0 0.0
  %9313 = vmatpush1.msra.mxu0 0.0
  %9314 = vmatprep.subr.mxu0 0.0
  %9315 = vmatpush1.msra.mxu0 0.0
  %9316 = vmatprep.subr.mxu0 0.0
  %9317 = vmatpush1.msra.mxu0 0.0
  %9318 = vmatprep.subr.mxu0 0.0
  %9319 = vmatpush1.msra.mxu0 0.0
  %9320 = vmatprep.subr.mxu0 0.0
  %9321 = vmatpush1.msra.mxu0 0.0
  %9322 = vmatprep.subr.mxu0 0.0
  %9323 = vmatpush1.msra.mxu0 0.0
  %9324 = vmatprep.subr.mxu0 0.0
  %9325 = vmatpush1.msra.mxu0 0.0
  %9326 = vmatprep.subr.mxu0 0.0
  %9327 = vmatpush1.msra.mxu0 0.0
  %9328 = vmatprep.subr.mxu0 0.0
  %9329 = vmatpush1.msra.mxu0 0.0
  %9330 = vmatprep.subr.mxu0 0.0
  %9331 = vmatpush1.msra.mxu0 0.0
  %9332 = vmatprep.subr.mxu0 0.0
  %9333 = vmatpush1.msra.mxu0 0.0
  %9334 = vmatprep.subr.mxu0 0.0
  %9335 = vmatpush1.msra.mxu0 0.0
  %9336 = vmatprep.subr.mxu0 0.0
  %9337 = vmatpush1.msra.mxu0 0.0
  %9338 = vmatprep.subr.mxu0 0.0
  %9339 = vmatpush1.msra.mxu0 0.0
  %9340 = vmatprep.subr.mxu0 0.0
  %9341 = vmatpush1.msra.mxu0 0.0
  %9342 = vmatprep.subr.mxu0 0.0
  %9343 = vmatpush1.msra.mxu0 0.0
  %9344 = vmatprep.subr.mxu0 0.0
  %9345 = vmatpush1.msra.mxu0 0.0
  %9346 = vmatprep.subr.mxu0 0.0
  %9347 = vmatpush1.msra.mxu0 0.0
  %9348 = vmatprep.subr.mxu0 0.0
  %9349 = vmatpush1.msra.mxu0 0.0
  %9350 = vmatprep.subr.mxu0 0.0
  %9351 = vmatpush1.msra.mxu0 0.0
  %9352 = vmatprep.subr.mxu0 0.0
  %9353 = vmatpush1.msra.mxu0 0.0
  %9354 = vmatprep.subr.mxu0 0.0
  %9355 = vmatpush1.msra.mxu0 0.0
  %9356 = vmatprep.subr.mxu0 0.0
  %9357 = vmatpush1.msra.mxu0 0.0
  %9358 = vmatprep.subr.mxu0 0.0
  %9359 = vmatpush1.msra.mxu0 0.0
  %9360 = vmatprep.subr.mxu0 0.0
  %9361 = vmatpush1.msra.mxu0 0.0
  %9362 = vmatprep.mubr.f32.mxu0 0.0
  %9363 = vmatmul.mubr.f32.gmra.mrb[0].mxu0 %v9293
  %v9364 = vpop.f32.mrb[0].mxu0
  %v9365 = vadd.f32 0.0, %v9364
  %v9366 = vpop.f32.mrb[0].mxu0
  %9367 = vdwg.mxu0
  %v9368 = vadd.f32 %v9286, %v9365
  %v9369 = vld [vmem:[%s6] sm:$0x1]
  %v9371 = vlaneseq
  %v9372 = vshrl.u32 %v9371, 7
  %v9373 = vsub.s32 0, %v9372
  %v9374 = vrot.slane %v9369, %v9373
  %v9376 = vadd.f32 %v9368, %v9374
  %v9377 = vmax.f32 %v9376, 0.0
  %v9378 = vld [vmem:[%s7] sm:$0xff]
  %v9379 = vld [vmem:[%s7 + $0x8] sm:$0xff]
  %v9380 = vld [vmem:[%s7 + $0x10] sm:$0xff]
  %v9381 = vld [vmem:[%s7 + $0x18] sm:$0xff]
  %v9382 = vld [vmem:[%s7 + $0x20] sm:$0xff]
  %v9383 = vld [vmem:[%s7 + $0x28] sm:$0xff]
  %v9384 = vld [vmem:[%s7 + $0x30] sm:$0xff]
  %v9385 = vld [vmem:[%s7 + $0x38] sm:$0xf]
  %v9386 = vld [vmem:[%s8] sm:$0x1]
  %v9388 = vlaneseq
  %v9389 = vshrl.u32 %v9388, 7
  %v9390 = vsub.s32 0, %v9389
  %v9391 = vrot.slane %v9386, %v9390
  %vm9393 = vcmask 490496
  %v9395 = vsel %vm9393, %v9377, 0
  %v9398 = vsel %vm5143, %v9385, 0
  %9400 = vmatprep.subr.mxu0 0.0
  %9401 = vmatpush1.msra.mxu0 %v9378
  %9402 = vmatprep.subr.mxu0 0.0
  %9403 = vmatpush1.msra.mxu0 %v9379
  %9404 = vmatprep.subr.mxu0 0.0
  %9405 = vmatpush1.msra.mxu0 %v9380
  %9406 = vmatprep.subr.mxu0 0.0
  %9407 = vmatpush1.msra.mxu0 %v9381
  %9408 = vmatprep.subr.mxu0 0.0
  %9409 = vmatpush1.msra.mxu0 %v9382
  %9410 = vmatprep.subr.mxu0 0.0
  %9411 = vmatpush1.msra.mxu0 %v9383
  %9412 = vmatprep.subr.mxu0 0.0
  %9413 = vmatpush1.msra.mxu0 %v9384
  %9414 = vmatprep.subr.mxu0 0.0
  %9415 = vmatpush1.msra.mxu0 %v9398
  %9416 = vmatprep.subr.mxu0 0.0
  %9417 = vmatpush1.msra.mxu0 0.0
  %9418 = vmatprep.subr.mxu0 0.0
  %9419 = vmatpush1.msra.mxu0 0.0
  %9420 = vmatprep.subr.mxu0 0.0
  %9421 = vmatpush1.msra.mxu0 0.0
  %9422 = vmatprep.subr.mxu0 0.0
  %9423 = vmatpush1.msra.mxu0 0.0
  %9424 = vmatprep.subr.mxu0 0.0
  %9425 = vmatpush1.msra.mxu0 0.0
  %9426 = vmatprep.subr.mxu0 0.0
  %9427 = vmatpush1.msra.mxu0 0.0
  %9428 = vmatprep.subr.mxu0 0.0
  %9429 = vmatpush1.msra.mxu0 0.0
  %9430 = vmatprep.subr.mxu0 0.0
  %9431 = vmatpush1.msra.mxu0 0.0
  %9432 = vmatprep.subr.mxu0 0.0
  %9433 = vmatpush1.msra.mxu0 0.0
  %9434 = vmatprep.subr.mxu0 0.0
  %9435 = vmatpush1.msra.mxu0 0.0
  %9436 = vmatprep.subr.mxu0 0.0
  %9437 = vmatpush1.msra.mxu0 0.0
  %9438 = vmatprep.subr.mxu0 0.0
  %9439 = vmatpush1.msra.mxu0 0.0
  %9440 = vmatprep.subr.mxu0 0.0
  %9441 = vmatpush1.msra.mxu0 0.0
  %9442 = vmatprep.subr.mxu0 0.0
  %9443 = vmatpush1.msra.mxu0 0.0
  %9444 = vmatprep.subr.mxu0 0.0
  %9445 = vmatpush1.msra.mxu0 0.0
  %9446 = vmatprep.subr.mxu0 0.0
  %9447 = vmatpush1.msra.mxu0 0.0
  %9448 = vmatprep.subr.mxu0 0.0
  %9449 = vmatpush1.msra.mxu0 0.0
  %9450 = vmatprep.subr.mxu0 0.0
  %9451 = vmatpush1.msra.mxu0 0.0
  %9452 = vmatprep.subr.mxu0 0.0
  %9453 = vmatpush1.msra.mxu0 0.0
  %9454 = vmatprep.subr.mxu0 0.0
  %9455 = vmatpush1.msra.mxu0 0.0
  %9456 = vmatprep.subr.mxu0 0.0
  %9457 = vmatpush1.msra.mxu0 0.0
  %9458 = vmatprep.subr.mxu0 0.0
  %9459 = vmatpush1.msra.mxu0 0.0
  %9460 = vmatprep.subr.mxu0 0.0
  %9461 = vmatpush1.msra.mxu0 0.0
  %9462 = vmatprep.subr.mxu0 0.0
  %9463 = vmatpush1.msra.mxu0 0.0
  %9464 = vmatprep.mubr.f32.mxu0 0.0
  %9465 = vmatmul.mubr.f32.gmra.mrb[0].mxu0 %v9395
  %v9466 = vpop.f32.mrb[0].mxu0
  %v9467 = vadd.f32 %v9391, %v9466
  %v9468 = vpop.f32.mrb[0].mxu0
  %9469 = vdwg.mxu0
  %vm9470 = vcmask 80896
  %v9471 = vsel %vm9470, %v9467, -inf
  %9472 = vmax.xlane.f32.xlu0 %v9471
  %v9473 = vpop.xlane.xlu0 %9472
  %v9474 = vsub.f32 %v9467, %v9473
  %v9475 = vmul.f32 %v9474, 1.442695
  %v9476 = vpow.pop %v9475
  %v9477 = vsel %vm9470, %v9476, 0.0
  %9478 = vadd.xlane.f32.xlu0 %v9477
  %v9479 = vpop.xlane.xlu0 %9478
  %v9480 = vlog2.pop %v9479
  %v9481 = vmul.f32 %v9480, 0.6931472
  %v9482 = vsub.f32 %v9474, %v9481
  %9483 = vst.msk [vmem:[%s9] sm:$0xff] %vm9470, %v9482
  // Predicated region
  $region38: #{the_net_forward.1} parent=0 // pred_check
    _
  $region39: #{the_net_forward.1} parent=0 // pred_check_branch
    %9485 = sbr.rel (0) target = $region41
  $region40: #{the_net_forward.1} parent=0 // pred_region
    _
  $region41: #{the_net_forward.1} parent=0 // pred_fallthru
    _
  // Predicated region
  $region42: #{the_net_forward.1} parent=0 // pred_check
    _
  $region43: #{the_net_forward.1} parent=0 // pred_check_branch
    %9487 = sbr.rel (0) target = $region45
  $region44: #{the_net_forward.1} parent=0 // pred_region
    _
  $region45: #{the_net_forward.1} parent=0 // pred_fallthru
    _

</llo_original>
